<compile_context>
chip_gen: v6e
topology: v6e:2x2x1
jax: 0.10.0
libtpu: 0.0.40
codegen_flags: <defaults>
</compile_context>

<pallas_src>
import math

import jax
import jax.numpy as jnp
from jax.experimental import pallas as pl
from jax.experimental.pallas import tpu as pltpu

# ----------------------------- model hyper-params ---------------------------
BATCH = 2
TRG_LEN = 8
SRC_LEN = 8
SYN_LEN = 8            # synonym candidates per sentence (tile-aligned)
HID = 32
HEADS = 4
HEAD_DIM = HID // HEADS
PF_DIM = 64
LAYERS = 2
VOCAB = 128            # lane-dense logits
MAX_LEN = 100
LN_EPS = 1e-5          # torch.nn.LayerNorm default
SCALE = math.sqrt(HID)

# rows of the packed per-layer vector operand (each row padded to 128 lanes)
R_SA_BQKV, R_SA_BO, R_LN1_G, R_LN1_B = 0, 1, 2, 3
R_CA_BQ, R_CA_BKV, R_CA_BO, R_LN2_G, R_LN2_B = 4, 5, 6, 7, 8
R_FF_B1, R_FF_B2, R_LN3_G, R_LN3_B = 9, 10, 11, 12
N_VEC_ROWS = 13


# --------------------------------- kernel -----------------------------------
def decoder_kernel(
    tok_ref,        # [B*T, 1] int32 decoder token ids
    syn_ref,        # [B*W, 1] int32 synonym (original word) ids
    emb_ref,        # [V, H]   tied embedding table
    pe_trg_ref,     # [B*T, H] positional encoding per target row
    pe_syn_ref,     # [W, H]   positional encoding rows used as p-embedding
    enc_ref,        # [B*S, H] encoder outputs
    trg_mask_ref,   # [B, T, T] float (nonzero = keep)
    src_mask_ref,   # [B, 1, S] float (nonzero = keep)
    w_sa_qkv_ref,   # [L, H, 3H]
    w_sa_o_ref,     # [L, H, H]
    w_ca_q_ref,     # [L, H, H]
    w_ca_kv_ref,    # [L, H, 2H]
    w_ca_o_ref,     # [L, H, H]
    w_ff1_ref,      # [L, H, PF]
    w_ff2_ref,      # [L, PF, H]
    vecs_ref,       # [L, 13, 128] packed biases + LayerNorm params
    glob_ref,       # [4, 128] packed W_a_o / V_a_o / W_a_p / V_a_p
    w_fh_ref,       # [3H, H]
    logits_ref,     # out: [B*T, V] float32
    yhat_ref,       # out: [B*T, 1] int32
):
    f32 = jnp.float32
    B, T, S, W = BATCH, TRG_LEN, SRC_LEN, SYN_LEN

    emb = emb_ref[...]                                              # [V, H]

    # ---- embeddings via one-hot matmul (VOCAB == lane width) ----------------
    iota_t = jax.lax.broadcasted_iota(jnp.int32, (B * T, VOCAB), 1)
    onehot_t = (tok_ref[...] == iota_t).astype(f32)                 # [B*T, V]
    trg = (jnp.dot(onehot_t, emb, preferred_element_type=f32) * f32(SCALE)
           + pe_trg_ref[...])                                       # [B*T, H]

    iota_s = jax.lax.broadcasted_iota(jnp.int32, (B * W, VOCAB), 1)
    onehot_s = (syn_ref[...] == iota_s).astype(f32)                 # [B*W, V]
    syn_o = jnp.dot(onehot_s, emb, preferred_element_type=f32)      # [B*W, H]

    enc = enc_ref[...]                                              # [B*S, H]

    # ---- additive attention masks, hoisted (shared by all layers / heads) ---
    neg = f32(-1e10)
    trg_bias = jnp.where(trg_mask_ref[...] == 0, neg, f32(0.0))     # [B, T, T]
    src_bias = jnp.where(src_mask_ref[...] == 0, neg, f32(0.0))     # [B, 1, S]

    inv_scale = f32(1.0 / math.sqrt(HEAD_DIM))

    def softmax_last(e):
        m = jnp.max(e, axis=-1, keepdims=True)
        p = jnp.exp(e - m)
        return p * pl.reciprocal(jnp.sum(p, axis=-1, keepdims=True), approx=True)

    def layer_norm(v, g, b):
        mu = jnp.mean(v, axis=-1, keepdims=True)
        var = jnp.mean((v - mu) ** 2, axis=-1, keepdims=True)
        return (v - mu) * jax.lax.rsqrt(var + LN_EPS) * g + b

    def attention(q2d, k2d, v2d, bias, w_o, b_o, tq, tk):
        # q2d: [B*tq, H]; k2d/v2d: [B*tk, H]; bias broadcastable to [B, tq, tk]
        q3 = q2d.reshape(B, tq, HID)
        k3 = k2d.reshape(B, tk, HID)
        v3 = v2d.reshape(B, tk, HID)
        out = jnp.zeros((B * tq, HID), f32)
        for h in range(HEADS):                      # short static loop
            lo, hi = h * HEAD_DIM, (h + 1) * HEAD_DIM
            e = jnp.einsum('bqd,bkd->bqk', q3[:, :, lo:hi], k3[:, :, lo:hi],
                           preferred_element_type=f32) * inv_scale
            p = softmax_last(e + bias)
            oh = jnp.einsum('bqk,bkd->bqd', p, v3[:, :, lo:hi],
                            preferred_element_type=f32)             # [B, tq, hd]
            # fused per-head output projection (no concat of heads needed)
            out = out + jnp.dot(oh.reshape(B * tq, HEAD_DIM), w_o[lo:hi, :],
                                preferred_element_type=f32)
        return out + b_o

    # ---- decoder layer stack -------------------------------------------------
    x = trg
    for l in range(LAYERS):
        vl = vecs_ref[l]                                            # [13, 128]

        # masked self attention (fused QKV projection)
        qkv = (jnp.dot(x, w_sa_qkv_ref[l], preferred_element_type=f32)
               + vl[R_SA_BQKV:R_SA_BQKV + 1, 0:3 * HID])            # [B*T, 3H]
        sa = attention(qkv[:, 0:HID], qkv[:, HID:2 * HID], qkv[:, 2 * HID:3 * HID],
                       trg_bias, w_sa_o_ref[l],
                       vl[R_SA_BO:R_SA_BO + 1, 0:HID], T, T)
        x = layer_norm(x + sa, vl[R_LN1_G:R_LN1_G + 1, 0:HID],
                       vl[R_LN1_B:R_LN1_B + 1, 0:HID])

        # encoder (cross) attention (fused KV projection)
        q = (jnp.dot(x, w_ca_q_ref[l], preferred_element_type=f32)
             + vl[R_CA_BQ:R_CA_BQ + 1, 0:HID])
        kv = (jnp.dot(enc, w_ca_kv_ref[l], preferred_element_type=f32)
              + vl[R_CA_BKV:R_CA_BKV + 1, 0:2 * HID])               # [B*S, 2H]
        ca = attention(q, kv[:, 0:HID], kv[:, HID:2 * HID],
                       src_bias, w_ca_o_ref[l],
                       vl[R_CA_BO:R_CA_BO + 1, 0:HID], T, S)
        x = layer_norm(x + ca, vl[R_LN2_G:R_LN2_G + 1, 0:HID],
                       vl[R_LN2_B:R_LN2_B + 1, 0:HID])

        # position-wise feed-forward
        h1 = jnp.maximum(jnp.dot(x, w_ff1_ref[l], preferred_element_type=f32)
                         + vl[R_FF_B1:R_FF_B1 + 1, 0:PF_DIM], f32(0.0))
        ff = (jnp.dot(h1, w_ff2_ref[l], preferred_element_type=f32)
              + vl[R_FF_B2:R_FF_B2 + 1, 0:HID])
        x = layer_norm(x + ff, vl[R_LN3_G:R_LN3_G + 1, 0:HID],
                       vl[R_LN3_B:R_LN3_B + 1, 0:HID])

    # ---- synonym attention: c_o (candidate tokens) and c_p (positions) ------
    syn3 = syn_o.reshape(B, W, HID)
    pe_syn3 = jnp.broadcast_to(pe_syn_ref[...].reshape(1, W, HID), (B, W, HID))

    def synonym_context(w_row, v_row, table3):
        # score[b,t,w] = sum_d Vh[d]*tanh(Wh[d]*x[b,t,d])
        #              + sum_d Ve[d]*tanh(We[d]*table[b,w,d])
        w_h, w_e = w_row[:, 0:HID], w_row[:, HID:2 * HID]           # [1, H]
        v_h, v_e = v_row[:, 0:HID], v_row[:, HID:2 * HID]
        a_term = jnp.sum(v_h * jnp.tanh(w_h * x), axis=-1, keepdims=True)
        a_term = a_term.reshape(B, T, 1)
        v_e3 = jnp.broadcast_to(v_e.reshape(1, 1, HID), (B, T, HID))
        b_term = jnp.einsum('bth,bwh->btw', v_e3, jnp.tanh(w_e * table3),
                            preferred_element_type=f32)             # [B, T, W]
        attn = softmax_last(a_term + b_term)
        ctx = jnp.einsum('btw,bwh->bth', attn, table3,
                         preferred_element_type=f32)                # [B, T, H]
        return ctx.reshape(B * T, HID)

    c_o = synonym_context(glob_ref[0:1, :], glob_ref[1:2, :], syn3)
    c_p = synonym_context(glob_ref[2:3, :], glob_ref[3:4, :], pe_syn3)

    # out_dec = tanh(f_h([x | c_o | c_p])) -- concat folded into three matmuls
    w_fh = w_fh_ref[...]                                            # [3H, H]
    out_dec = jnp.tanh(
        jnp.dot(x, w_fh[0:HID, :], preferred_element_type=f32)
        + jnp.dot(c_o, w_fh[HID:2 * HID, :], preferred_element_type=f32)
        + jnp.dot(c_p, w_fh[2 * HID:3 * HID, :], preferred_element_type=f32))

    # tied-embedding logits: lane-dense [B*T, V] store
    logits = jnp.einsum('nd,vd->nv', out_dec, emb, preferred_element_type=f32)
    logits_ref[...] = logits

    # argmax over vocab (first max index, like torch.argmax)
    m = jnp.max(logits, axis=-1, keepdims=True)
    idx = jax.lax.broadcasted_iota(jnp.int32, (B * T, VOCAB), 1).astype(f32)
    yhat = jnp.min(jnp.where(logits >= m, idx, f32(VOCAB)), axis=-1, keepdims=True)
    yhat_ref[...] = yhat.astype(jnp.int32)


# --------------------------------- wrapper ----------------------------------
def decoder_forward(decoder_input, enc_src, trg_mask, src_mask,
                    sent_synonym_dict, packed):
    B, T = decoder_input.shape
    S = enc_src.shape[1]
    W = sent_synonym_dict.shape[1]
    assert (B, T, S, W) == (BATCH, TRG_LEN, SRC_LEN, SYN_LEN)

    pe = packed["pe"]
    tok = decoder_input.reshape(B * T, 1).astype(jnp.int32)
    syn = sent_synonym_dict[:, :, 0].reshape(B * W, 1).astype(jnp.int32)
    pe_trg = jnp.tile(pe[:T], (B, 1))                 # row b*T+t -> pe[t]
    pe_syn = pe[:W]
    enc2d = enc_src.reshape(B * S, HID).astype(jnp.float32)
    trg_mask2 = trg_mask.reshape(B, T, T).astype(jnp.float32)
    src_mask2 = src_mask.reshape(B, 1, S).astype(jnp.float32)

    vmem = pl.BlockSpec(memory_space=pltpu.MemorySpace.VMEM)
    logits2d, yhat2d = pl.pallas_call(
        decoder_kernel,
        out_shape=(jax.ShapeDtypeStruct((B * T, VOCAB), jnp.float32),
                   jax.ShapeDtypeStruct((B * T, 1), jnp.int32)),
        in_specs=[vmem] * 18,
        out_specs=(vmem, vmem),
    )(tok, syn, packed["emb"], pe_trg, pe_syn, enc2d, trg_mask2, src_mask2,
      packed["w_sa_qkv"], packed["w_sa_o"], packed["w_ca_q"], packed["w_ca_kv"],
      packed["w_ca_o"], packed["w_ff1"], packed["w_ff2"],
      packed["vecs"], packed["glob"], packed["w_fh"])

    return logits2d.reshape(B, T, VOCAB), yhat2d.reshape(B, T)


# ---------------------------- parameter creation -----------------------------
def build_pe(max_len, hid):
    pos = jnp.arange(max_len, dtype=jnp.float32)[:, None]
    div = jnp.exp(jnp.arange(0, hid, 2, dtype=jnp.float32)
                  * (-math.log(10000.0) / hid))
    pe = jnp.zeros((max_len, hid), jnp.float32)
    pe = pe.at[:, 0::2].set(jnp.sin(pos * div))
    pe = pe.at[:, 1::2].set(jnp.cos(pos * div))
    return pe


def make_params(key):
    keys = iter(jax.random.split(key, 128))

    def w(shape, std=0.1):
        return jax.random.normal(next(keys), shape, jnp.float32) * std

    emb = w((VOCAB, HID), 0.1)
    pe = build_pe(MAX_LEN, HID)

    layers = []
    for _ in range(LAYERS):
        lp = dict(
            self=dict(wq=w((HID, HID)), bq=w((HID,), 0.05),
                      wk=w((HID, HID)), bk=w((HID,), 0.05),
                      wv=w((HID, HID)), bv=w((HID,), 0.05),
                      wo=w((HID, HID)), bo=w((HID,), 0.05)),
            cross=dict(wq=w((HID, HID)), bq=w((HID,), 0.05),
                       wk=w((HID, HID)), bk=w((HID,), 0.05),
                       wv=w((HID, HID)), bv=w((HID,), 0.05),
                       wo=w((HID, HID)), bo=w((HID,), 0.05)),
            w1=w((HID, PF_DIM)), b1=w((PF_DIM,), 0.05),
            w2=w((PF_DIM, HID)), b2=w((HID,), 0.05),
            ln1_g=1.0 + w((HID,), 0.1), ln1_b=w((HID,), 0.05),
            ln2_g=1.0 + w((HID,), 0.1), ln2_b=w((HID,), 0.05),
            ln3_g=1.0 + w((HID,), 0.1), ln3_b=w((HID,), 0.05),
        )
        layers.append(lp)

    raw = dict(emb=emb, pe=pe, layers=layers,
               W_a_o=w((2 * HID,), 0.2), V_a_o=w((2 * HID,), 0.2),
               W_a_p=w((2 * HID,), 0.2), V_a_p=w((2 * HID,), 0.2),
               w_fh=w((3 * HID, HID), 0.1))

    # ---- pack for the kernel (fused QKV / KV, stacked small vectors) --------
    def stack(fn):
        return jnp.stack([fn(lp) for lp in layers], axis=0)

    w_sa_qkv = stack(lambda lp: jnp.concatenate(
        [lp["self"]["wq"], lp["self"]["wk"], lp["self"]["wv"]], axis=1))
    w_sa_o = stack(lambda lp: lp["self"]["wo"])
    w_ca_q = stack(lambda lp: lp["cross"]["wq"])
    w_ca_kv = stack(lambda lp: jnp.concatenate(
        [lp["cross"]["wk"], lp["cross"]["wv"]], axis=1))
    w_ca_o = stack(lambda lp: lp["cross"]["wo"])
    w_ff1 = stack(lambda lp: lp["w1"])
    w_ff2 = stack(lambda lp: lp["w2"])

    def row(vec):
        return jnp.zeros((128,), jnp.float32).at[:vec.shape[0]].set(vec)

    vec_blocks = []
    for lp in layers:
        rows = [None] * N_VEC_ROWS
        rows[R_SA_BQKV] = row(jnp.concatenate(
            [lp["self"]["bq"], lp["self"]["bk"], lp["self"]["bv"]]))
        rows[R_SA_BO] = row(lp["self"]["bo"])
        rows[R_LN1_G] = row(lp["ln1_g"])
        rows[R_LN1_B] = row(lp["ln1_b"])
        rows[R_CA_BQ] = row(lp["cross"]["bq"])
        rows[R_CA_BKV] = row(jnp.concatenate([lp["cross"]["bk"], lp["cross"]["bv"]]))
        rows[R_CA_BO] = row(lp["cross"]["bo"])
        rows[R_LN2_G] = row(lp["ln2_g"])
        rows[R_LN2_B] = row(lp["ln2_b"])
        rows[R_FF_B1] = row(lp["b1"])
        rows[R_FF_B2] = row(lp["b2"])
        rows[R_LN3_G] = row(lp["ln3_g"])
        rows[R_LN3_B] = row(lp["ln3_b"])
        vec_blocks.append(jnp.stack(rows, axis=0))
    vecs = jnp.stack(vec_blocks, axis=0)                      # [L, 13, 128]

    glob = jnp.stack([row(raw["W_a_o"]), row(raw["V_a_o"]),
                      row(raw["W_a_p"]), row(raw["V_a_p"])], axis=0)   # [4, 128]

    packed = dict(emb=emb, pe=pe,
                  w_sa_qkv=w_sa_qkv, w_sa_o=w_sa_o, w_ca_q=w_ca_q,
                  w_ca_kv=w_ca_kv, w_ca_o=w_ca_o, w_ff1=w_ff1, w_ff2=w_ff2,
                  vecs=vecs, glob=glob, w_fh=raw["w_fh"])
    return raw, packed


# ------------------------------ JAX reference --------------------------------
def reference_decoder(decoder_input, enc_src, trg_mask, src_mask,
                      sent_synonym_dict, raw):
    B, T = decoder_input.shape
    W = sent_synonym_dict.shape[1]
    emb, pe = raw["emb"], raw["pe"]

    x = emb[decoder_input] * jnp.float32(SCALE) + pe[:T][None, :, :]
    syn_o_emb = emb[sent_synonym_dict[:, :, 0]]                       # [B, W, H]
    syn_p_emb = jnp.broadcast_to(pe[:W][None, :, :], (B, W, HID))

    def mha(q_in, k_in, v_in, mask, p):
        Lq, Lk = q_in.shape[1], k_in.shape[1]
        Q = (q_in @ p["wq"] + p["bq"]).reshape(B, Lq, HEADS, HEAD_DIM).transpose(0, 2, 1, 3)
        K = (k_in @ p["wk"] + p["bk"]).reshape(B, Lk, HEADS, HEAD_DIM).transpose(0, 2, 1, 3)
        V = (v_in @ p["wv"] + p["bv"]).reshape(B, Lk, HEADS, HEAD_DIM).transpose(0, 2, 1, 3)
        energy = jnp.einsum('bhqd,bhkd->bhqk', Q, K) / jnp.float32(math.sqrt(HEAD_DIM))
        energy = jnp.where(mask == 0, jnp.float32(-1e10), energy)
        attn = jax.nn.softmax(energy, axis=-1)
        o = jnp.einsum('bhqk,bhkd->bhqd', attn, V).transpose(0, 2, 1, 3).reshape(B, Lq, HID)
        return o @ p["wo"] + p["bo"]

    def ln(v, g, b):
        mu = v.mean(-1, keepdims=True)
        var = ((v - mu) ** 2).mean(-1, keepdims=True)
        return (v - mu) * jax.lax.rsqrt(var + LN_EPS) * g + b

    for lp in raw["layers"]:
        x = ln(x + mha(x, x, x, trg_mask, lp["self"]), lp["ln1_g"], lp["ln1_b"])
        x = ln(x + mha(x, enc_src, enc_src, src_mask, lp["cross"]),
               lp["ln2_g"], lp["ln2_b"])
        ff = jnp.maximum(x @ lp["w1"] + lp["b1"], 0.0) @ lp["w2"] + lp["b2"]
        x = ln(x + ff, lp["ln3_g"], lp["ln3_b"])

    def syn_att(Wa, Va, table):
        h = jnp.broadcast_to(x[:, :, None, :], (B, T, W, HID))
        e = jnp.broadcast_to(table[:, None, :, :], (B, T, W, HID))
        cat = jnp.concatenate([h, e], axis=-1)                        # [B,T,W,2H]
        score = jnp.sum(Va * jnp.tanh(Wa * cat), axis=-1)             # [B,T,W]
        a = jax.nn.softmax(score, axis=-1)
        return jnp.einsum('btw,bwh->bth', a, table)

    c_o = syn_att(raw["W_a_o"], raw["V_a_o"], syn_o_emb)
    c_p = syn_att(raw["W_a_p"], raw["V_a_p"], syn_p_emb)
    out_dec = jnp.tanh(jnp.concatenate([x, c_o, c_p], axis=-1) @ raw["w_fh"])
    logits = jnp.einsum('btd,vd->btv', out_dec, emb)
    return logits, jnp.argmax(logits, axis=-1)


# ------------------------------------ main -----------------------------------
if __name__ == "__main__":
    root = jax.random.PRNGKey(0)
    k_tok, k_syn, k_syn_p, k_enc, k_par = jax.random.split(root, 5)

    decoder_input = jax.random.randint(k_tok, (BATCH, TRG_LEN), 0, VOCAB, dtype=jnp.int32)
    syn_o = jax.random.randint(k_syn, (BATCH, SYN_LEN), 0, VOCAB, dtype=jnp.int32)
    syn_p = jax.random.randint(k_syn_p, (BATCH, SYN_LEN), 0, VOCAB, dtype=jnp.int32)
    sent_synonym_dict = jnp.stack([syn_o, syn_p], axis=-1)            # [B, W, 2]
    enc_src = jax.random.normal(k_enc, (BATCH, SRC_LEN, HID), jnp.float32)

    # causal target mask (+ pad the last target key position of batch 1)
    causal = jnp.tril(jnp.ones((TRG_LEN, TRG_LEN), jnp.float32))
    trg_keep = jnp.ones((BATCH, TRG_LEN), jnp.float32).at[1, TRG_LEN - 1].set(0.0)
    trg_mask = (causal[None, :, :] * trg_keep[:, None, :])[:, None, :, :]  # [B,1,T,T]
    src_mask = jnp.ones((BATCH, 1, 1, SRC_LEN), jnp.float32).at[0, 0, 0, SRC_LEN - 1].set(0.0)

    raw, packed = make_params(k_par)

    logits, y_hat = decoder_forward(decoder_input, enc_src, trg_mask, src_mask,
                                    sent_synonym_dict, packed)
    logits = jax.block_until_ready(logits)

    ref_logits, ref_yhat = reference_decoder(decoder_input, enc_src, trg_mask,
                                             src_mask, sent_synonym_dict, raw)

    assert logits.shape == (BATCH, TRG_LEN, VOCAB)
    assert y_hat.shape == (BATCH, TRG_LEN)
    err = float(jnp.max(jnp.abs(logits - ref_logits)))
    assert err < 5e-3, f"max abs logits err {err}"
    # argmax may legitimately differ only where top-2 logits are near-tied
    # (approx-reciprocal softmax); require agreement everywhere else.
    top2 = jnp.sort(ref_logits, axis=-1)[..., -2:]
    margin = top2[..., 1] - top2[..., 0]
    assert bool(jnp.all((y_hat == ref_yhat) | (margin < 2e-2))), "argmax mismatch"
    print("KERNEL_OK")
</pallas_src>

<mosaic_0001>
module attributes {stable_mosaic.version = 11 : i64} {
  func.func @decoder_kernel(%arg0: memref<16x1xi32, #tpu.memory_space<vmem>>, %arg1: memref<16x1xi32, #tpu.memory_space<vmem>>, %arg2: memref<128x32xf32, #tpu.memory_space<vmem>>, %arg3: memref<16x32xf32, #tpu.memory_space<vmem>>, %arg4: memref<8x32xf32, #tpu.memory_space<vmem>>, %arg5: memref<16x32xf32, #tpu.memory_space<vmem>>, %arg6: memref<2x8x8xf32, #tpu.memory_space<vmem>>, %arg7: memref<2x1x8xf32, #tpu.memory_space<vmem>>, %arg8: memref<2x32x96xf32, #tpu.memory_space<vmem>>, %arg9: memref<2x32x32xf32, #tpu.memory_space<vmem>>, %arg10: memref<2x32x32xf32, #tpu.memory_space<vmem>>, %arg11: memref<2x32x64xf32, #tpu.memory_space<vmem>>, %arg12: memref<2x32x32xf32, #tpu.memory_space<vmem>>, %arg13: memref<2x32x64xf32, #tpu.memory_space<vmem>>, %arg14: memref<2x64x32xf32, #tpu.memory_space<vmem>>, %arg15: memref<2x13x128xf32, #tpu.memory_space<vmem>>, %arg16: memref<4x128xf32, #tpu.memory_space<vmem>>, %arg17: memref<96x32xf32, #tpu.memory_space<vmem>>, %arg18: memref<16x128xf32, #tpu.memory_space<vmem>>, %arg19: memref<16x1xi32, #tpu.memory_space<vmem>>) attributes {dimension_semantics = [], scalar_prefetch = 0 : i64, scratch_operands = 0 : i64, tpu.core_type = #tpu.core_type<tc>} {
    %c0 = arith.constant 0 : index
    %c0_0 = arith.constant 0 : index
    %0 = vector.load %arg2[%c0, %c0_0] : memref<128x32xf32, #tpu.memory_space<vmem>>, vector<128x32xf32>
    %1 = tpu.iota {dimensions = array<i32: 1>} : vector<16x128xi32>
    %c0_1 = arith.constant 0 : index
    %c0_2 = arith.constant 0 : index
    %2 = vector.load %arg0[%c0_1, %c0_2] : memref<16x1xi32, #tpu.memory_space<vmem>>, vector<16x1xi32>
    %3 = vector.broadcast %2 : vector<16x1xi32> to vector<16x128xi32>
    %4 = arith.cmpi eq, %3, %1 : vector<16x128xi32>
    %5 = arith.extui %4 : vector<16x128xi1> to vector<16x128xi32>
    %6 = arith.sitofp %5 : vector<16x128xi32> to vector<16x128xf32>
    %cst = arith.constant dense<0.000000e+00> : vector<16x32xf32>
    %7 = tpu.matmul %6, %0, %cst {dimension_numbers = #tpu.dot_dimension_numbers<[1], [0], [0], [1], [0, 0, 1, 1], [], []>} : vector<16x128xf32>, vector<128x32xf32>, vector<16x32xf32> -> vector<16x32xf32>
    %cst_3 = arith.constant 5.65685415 : f32
    %8 = vector.broadcast %cst_3 : f32 to vector<16x32xf32>
    %9 = arith.mulf %7, %8 : vector<16x32xf32>
    %c0_4 = arith.constant 0 : index
    %c0_5 = arith.constant 0 : index
    %10 = vector.load %arg3[%c0_4, %c0_5] : memref<16x32xf32, #tpu.memory_space<vmem>>, vector<16x32xf32>
    %11 = arith.addf %9, %10 : vector<16x32xf32>
    %12 = tpu.iota {dimensions = array<i32: 1>} : vector<16x128xi32>
    %c0_6 = arith.constant 0 : index
    %c0_7 = arith.constant 0 : index
    %13 = vector.load %arg1[%c0_6, %c0_7] : memref<16x1xi32, #tpu.memory_space<vmem>>, vector<16x1xi32>
    %14 = vector.broadcast %13 : vector<16x1xi32> to vector<16x128xi32>
    %15 = arith.cmpi eq, %14, %12 : vector<16x128xi32>
    %16 = arith.extui %15 : vector<16x128xi1> to vector<16x128xi32>
    %17 = arith.sitofp %16 : vector<16x128xi32> to vector<16x128xf32>
    %cst_8 = arith.constant dense<0.000000e+00> : vector<16x32xf32>
    %18 = tpu.matmul %17, %0, %cst_8 {dimension_numbers = #tpu.dot_dimension_numbers<[1], [0], [0], [1], [0, 0, 1, 1], [], []>} : vector<16x128xf32>, vector<128x32xf32>, vector<16x32xf32> -> vector<16x32xf32>
    %c0_9 = arith.constant 0 : index
    %c0_10 = arith.constant 0 : index
    %19 = vector.load %arg5[%c0_9, %c0_10] : memref<16x32xf32, #tpu.memory_space<vmem>>, vector<16x32xf32>
    %c0_11 = arith.constant 0 : index
    %c0_12 = arith.constant 0 : index
    %c0_13 = arith.constant 0 : index
    %20 = vector.load %arg6[%c0_11, %c0_12, %c0_13] : memref<2x8x8xf32, #tpu.memory_space<vmem>>, vector<2x8x8xf32>
    %cst_14 = arith.constant 0.000000e+00 : f32
    %21 = vector.broadcast %cst_14 : f32 to vector<2x8x8xf32>
    %22 = arith.cmpf oeq, %20, %21 : vector<2x8x8xf32>
    %cst_15 = arith.constant -1.000000e+10 : f32
    %cst_16 = arith.constant 0.000000e+00 : f32
    %23 = vector.broadcast %cst_15 : f32 to vector<2x8x8xf32>
    %24 = vector.broadcast %cst_16 : f32 to vector<2x8x8xf32>
    %25 = arith.select %22, %23, %24 : vector<2x8x8xi1>, vector<2x8x8xf32>
    %c0_17 = arith.constant 0 : index
    %c0_18 = arith.constant 0 : index
    %c0_19 = arith.constant 0 : index
    %26 = vector.load %arg7[%c0_17, %c0_18, %c0_19] : memref<2x1x8xf32, #tpu.memory_space<vmem>>, vector<2x1x8xf32>
    %cst_20 = arith.constant 0.000000e+00 : f32
    %27 = vector.broadcast %cst_20 : f32 to vector<2x1x8xf32>
    %28 = arith.cmpf oeq, %26, %27 : vector<2x1x8xf32>
    %cst_21 = arith.constant -1.000000e+10 : f32
    %cst_22 = arith.constant 0.000000e+00 : f32
    %29 = vector.broadcast %cst_21 : f32 to vector<2x1x8xf32>
    %30 = vector.broadcast %cst_22 : f32 to vector<2x1x8xf32>
    %31 = arith.select %28, %29, %30 : vector<2x1x8xi1>, vector<2x1x8xf32>
    %c0_23 = arith.constant 0 : index
    %c0_24 = arith.constant 0 : index
    %c0_25 = arith.constant 0 : index
    %32 = vector.load %arg15[%c0_23, %c0_24, %c0_25] : memref<2x13x128xf32, #tpu.memory_space<vmem>>, vector<1x13x128xf32>
    %33 = vector.shape_cast %32 : vector<1x13x128xf32> to vector<13x128xf32>
    %c0_26 = arith.constant 0 : index
    %c0_27 = arith.constant 0 : index
    %c0_28 = arith.constant 0 : index
    %34 = vector.load %arg8[%c0_26, %c0_27, %c0_28] : memref<2x32x96xf32, #tpu.memory_space<vmem>>, vector<1x32x96xf32>
    %35 = vector.shape_cast %34 : vector<1x32x96xf32> to vector<32x96xf32>
    %cst_29 = arith.constant dense<0.000000e+00> : vector<16x96xf32>
    %36 = tpu.matmul %11, %35, %cst_29 {dimension_numbers = #tpu.dot_dimension_numbers<[1], [0], [0], [1], [0, 0, 1, 1], [], []>} : vector<16x32xf32>, vector<32x96xf32>, vector<16x96xf32> -> vector<16x96xf32>
    %37 = vector.extract_strided_slice %33 {offsets = [0, 0], sizes = [1, 96], strides = [1, 1]} : vector<13x128xf32> to vector<1x96xf32>
    %38 = vector.broadcast %37 : vector<1x96xf32> to vector<16x96xf32>
    %39 = arith.addf %36, %38 : vector<16x96xf32>
    %40 = vector.extract_strided_slice %39 {offsets = [0, 0], sizes = [16, 32], strides = [1, 1]} : vector<16x96xf32> to vector<16x32xf32>
    %41 = vector.extract_strided_slice %39 {offsets = [0, 32], sizes = [16, 32], strides = [1, 1]} : vector<16x96xf32> to vector<16x32xf32>
    %42 = vector.extract_strided_slice %39 {offsets = [0, 64], sizes = [16, 32], strides = [1, 1]} : vector<16x96xf32> to vector<16x32xf32>
    %c0_30 = arith.constant 0 : index
    %c0_31 = arith.constant 0 : index
    %c0_32 = arith.constant 0 : index
    %43 = vector.load %arg9[%c0_30, %c0_31, %c0_32] : memref<2x32x32xf32, #tpu.memory_space<vmem>>, vector<1x32x32xf32>
    %44 = vector.shape_cast %43 : vector<1x32x32xf32> to vector<32x32xf32>
    %45 = vector.extract_strided_slice %33 {offsets = [1, 0], sizes = [1, 32], strides = [1, 1]} : vector<13x128xf32> to vector<1x32xf32>
    %46 = vector.shape_cast %40 : vector<16x32xf32> to vector<2x8x32xf32>
    %47 = vector.shape_cast %41 : vector<16x32xf32> to vector<2x8x32xf32>
    %48 = vector.shape_cast %42 : vector<16x32xf32> to vector<2x8x32xf32>
    %cst_33 = arith.constant 0.000000e+00 : f32
    %49 = vector.broadcast %cst_33 : f32 to vector<16x32xf32>
    %50 = vector.extract_strided_slice %46 {offsets = [0, 0, 0], sizes = [2, 8, 8], strides = [1, 1, 1]} : vector<2x8x32xf32> to vector<2x8x8xf32>
    %51 = vector.extract_strided_slice %47 {offsets = [0, 0, 0], sizes = [2, 8, 8], strides = [1, 1, 1]} : vector<2x8x32xf32> to vector<2x8x8xf32>
    "tpu.trace_start"() <{level = 10 : i32, message = "bqd,bkd->bqk"}> : () -> ()
    %cst_34 = arith.constant dense<0.000000e+00> : vector<2x8x8xf32>
    %52 = tpu.matmul %50, %51, %cst_34 {dimension_numbers = #tpu.dot_dimension_numbers<[2], [2], [1], [1], [0, 0, 0, 1, 1, 1], [0], [0]>} : vector<2x8x8xf32>, vector<2x8x8xf32>, vector<2x8x8xf32> -> vector<2x8x8xf32>
    "tpu.trace_stop"() : () -> ()
    %cst_35 = arith.constant 0.353553385 : f32
    %53 = vector.broadcast %cst_35 : f32 to vector<2x8x8xf32>
    %54 = arith.mulf %52, %53 : vector<2x8x8xf32>
    %55 = arith.addf %54, %25 : vector<2x8x8xf32>
    %cst_36 = arith.constant dense<0xFF800000> : vector<2x8xf32>
    %56 = vector.multi_reduction <maximumf>, %55, %cst_36 [2] : vector<2x8x8xf32> to vector<2x8xf32>
    %57 = vector.shape_cast %56 : vector<2x8xf32> to vector<2x8x1xf32>
    %58 = vector.broadcast %57 : vector<2x8x1xf32> to vector<2x8x8xf32>
    %59 = arith.subf %55, %58 : vector<2x8x8xf32>
    %60 = math.exp %59 : vector<2x8x8xf32>
    %cst_37 = arith.constant dense<0.000000e+00> : vector<2x8xf32>
    %61 = vector.multi_reduction <add>, %60, %cst_37 [2] : vector<2x8x8xf32> to vector<2x8xf32>
    %62 = vector.shape_cast %61 : vector<2x8xf32> to vector<2x8x1xf32>
    %63 = tpu.reciprocal %62 {approx = true} : vector<2x8x1xf32> -> vector<2x8x1xf32>
    %64 = vector.broadcast %63 : vector<2x8x1xf32> to vector<2x8x8xf32>
    %65 = arith.mulf %60, %64 : vector<2x8x8xf32>
    %66 = vector.extract_strided_slice %48 {offsets = [0, 0, 0], sizes = [2, 8, 8], strides = [1, 1, 1]} : vector<2x8x32xf32> to vector<2x8x8xf32>
    "tpu.trace_start"() <{level = 10 : i32, message = "bqk,bkd->bqd"}> : () -> ()
    %cst_38 = arith.constant dense<0.000000e+00> : vector<2x8x8xf32>
    %67 = tpu.matmul %65, %66, %cst_38 {dimension_numbers = #tpu.dot_dimension_numbers<[2], [1], [1], [2], [0, 0, 0, 1, 1, 2], [0], [0]>} : vector<2x8x8xf32>, vector<2x8x8xf32>, vector<2x8x8xf32> -> vector<2x8x8xf32>
    "tpu.trace_stop"() : () -> ()
    %68 = vector.shape_cast %67 : vector<2x8x8xf32> to vector<16x8xf32>
    %69 = vector.extract_strided_slice %44 {offsets = [0, 0], sizes = [8, 32], strides = [1, 1]} : vector<32x32xf32> to vector<8x32xf32>
    %cst_39 = arith.constant dense<0.000000e+00> : vector<16x32xf32>
    %70 = tpu.matmul %68, %69, %cst_39 {dimension_numbers = #tpu.dot_dimension_numbers<[1], [0], [0], [1], [0, 0, 1, 1], [], []>} : vector<16x8xf32>, vector<8x32xf32>, vector<16x32xf32> -> vector<16x32xf32>
    %71 = arith.addf %49, %70 : vector<16x32xf32>
    %72 = vector.extract_strided_slice %46 {offsets = [0, 0, 8], sizes = [2, 8, 8], strides = [1, 1, 1]} : vector<2x8x32xf32> to vector<2x8x8xf32>
    %73 = vector.extract_strided_slice %47 {offsets = [0, 0, 8], sizes = [2, 8, 8], strides = [1, 1, 1]} : vector<2x8x32xf32> to vector<2x8x8xf32>
    "tpu.trace_start"() <{level = 10 : i32, message = "bqd,bkd->bqk"}> : () -> ()
    %cst_40 = arith.constant dense<0.000000e+00> : vector<2x8x8xf32>
    %74 = tpu.matmul %72, %73, %cst_40 {dimension_numbers = #tpu.dot_dimension_numbers<[2], [2], [1], [1], [0, 0, 0, 1, 1, 1], [0], [0]>} : vector<2x8x8xf32>, vector<2x8x8xf32>, vector<2x8x8xf32> -> vector<2x8x8xf32>
    "tpu.trace_stop"() : () -> ()
    %cst_41 = arith.constant 0.353553385 : f32
    %75 = vector.broadcast %cst_41 : f32 to vector<2x8x8xf32>
    %76 = arith.mulf %74, %75 : vector<2x8x8xf32>
    %77 = arith.addf %76, %25 : vector<2x8x8xf32>
    %cst_42 = arith.constant dense<0xFF800000> : vector<2x8xf32>
    %78 = vector.multi_reduction <maximumf>, %77, %cst_42 [2] : vector<2x8x8xf32> to vector<2x8xf32>
    %79 = vector.shape_cast %78 : vector<2x8xf32> to vector<2x8x1xf32>
    %80 = vector.broadcast %79 : vector<2x8x1xf32> to vector<2x8x8xf32>
    %81 = arith.subf %77, %80 : vector<2x8x8xf32>
    %82 = math.exp %81 : vector<2x8x8xf32>
    %cst_43 = arith.constant dense<0.000000e+00> : vector<2x8xf32>
    %83 = vector.multi_reduction <add>, %82, %cst_43 [2] : vector<2x8x8xf32> to vector<2x8xf32>
    %84 = vector.shape_cast %83 : vector<2x8xf32> to vector<2x8x1xf32>
    %85 = tpu.reciprocal %84 {approx = true} : vector<2x8x1xf32> -> vector<2x8x1xf32>
    %86 = vector.broadcast %85 : vector<2x8x1xf32> to vector<2x8x8xf32>
    %87 = arith.mulf %82, %86 : vector<2x8x8xf32>
    %88 = vector.extract_strided_slice %48 {offsets = [0, 0, 8], sizes = [2, 8, 8], strides = [1, 1, 1]} : vector<2x8x32xf32> to vector<2x8x8xf32>
    "tpu.trace_start"() <{level = 10 : i32, message = "bqk,bkd->bqd"}> : () -> ()
    %cst_44 = arith.constant dense<0.000000e+00> : vector<2x8x8xf32>
    %89 = tpu.matmul %87, %88, %cst_44 {dimension_numbers = #tpu.dot_dimension_numbers<[2], [1], [1], [2], [0, 0, 0, 1, 1, 2], [0], [0]>} : vector<2x8x8xf32>, vector<2x8x8xf32>, vector<2x8x8xf32> -> vector<2x8x8xf32>
    "tpu.trace_stop"() : () -> ()
    %90 = vector.shape_cast %89 : vector<2x8x8xf32> to vector<16x8xf32>
    %91 = vector.extract_strided_slice %44 {offsets = [8, 0], sizes = [8, 32], strides = [1, 1]} : vector<32x32xf32> to vector<8x32xf32>
    %cst_45 = arith.constant dense<0.000000e+00> : vector<16x32xf32>
    %92 = tpu.matmul %90, %91, %cst_45 {dimension_numbers = #tpu.dot_dimension_numbers<[1], [0], [0], [1], [0, 0, 1, 1], [], []>} : vector<16x8xf32>, vector<8x32xf32>, vector<16x32xf32> -> vector<16x32xf32>
    %93 = arith.addf %71, %92 : vector<16x32xf32>
    %94 = vector.extract_strided_slice %46 {offsets = [0, 0, 16], sizes = [2, 8, 8], strides = [1, 1, 1]} : vector<2x8x32xf32> to vector<2x8x8xf32>
    %95 = vector.extract_strided_slice %47 {offsets = [0, 0, 16], sizes = [2, 8, 8], strides = [1, 1, 1]} : vector<2x8x32xf32> to vector<2x8x8xf32>
    "tpu.trace_start"() <{level = 10 : i32, message = "bqd,bkd->bqk"}> : () -> ()
    %cst_46 = arith.constant dense<0.000000e+00> : vector<2x8x8xf32>
    %96 = tpu.matmul %94, %95, %cst_46 {dimension_numbers = #tpu.dot_dimension_numbers<[2], [2], [1], [1], [0, 0, 0, 1, 1, 1], [0], [0]>} : vector<2x8x8xf32>, vector<2x8x8xf32>, vector<2x8x8xf32> -> vector<2x8x8xf32>
    "tpu.trace_stop"() : () -> ()
    %cst_47 = arith.constant 0.353553385 : f32
    %97 = vector.broadcast %cst_47 : f32 to vector<2x8x8xf32>
    %98 = arith.mulf %96, %97 : vector<2x8x8xf32>
    %99 = arith.addf %98, %25 : vector<2x8x8xf32>
    %cst_48 = arith.constant dense<0xFF800000> : vector<2x8xf32>
    %100 = vector.multi_reduction <maximumf>, %99, %cst_48 [2] : vector<2x8x8xf32> to vector<2x8xf32>
    %101 = vector.shape_cast %100 : vector<2x8xf32> to vector<2x8x1xf32>
    %102 = vector.broadcast %101 : vector<2x8x1xf32> to vector<2x8x8xf32>
    %103 = arith.subf %99, %102 : vector<2x8x8xf32>
    %104 = math.exp %103 : vector<2x8x8xf32>
    %cst_49 = arith.constant dense<0.000000e+00> : vector<2x8xf32>
    %105 = vector.multi_reduction <add>, %104, %cst_49 [2] : vector<2x8x8xf32> to vector<2x8xf32>
    %106 = vector.shape_cast %105 : vector<2x8xf32> to vector<2x8x1xf32>
    %107 = tpu.reciprocal %106 {approx = true} : vector<2x8x1xf32> -> vector<2x8x1xf32>
    %108 = vector.broadcast %107 : vector<2x8x1xf32> to vector<2x8x8xf32>
    %109 = arith.mulf %104, %108 : vector<2x8x8xf32>
    %110 = vector.extract_strided_slice %48 {offsets = [0, 0, 16], sizes = [2, 8, 8], strides = [1, 1, 1]} : vector<2x8x32xf32> to vector<2x8x8xf32>
    "tpu.trace_start"() <{level = 10 : i32, message = "bqk,bkd->bqd"}> : () -> ()
    %cst_50 = arith.constant dense<0.000000e+00> : vector<2x8x8xf32>
    %111 = tpu.matmul %109, %110, %cst_50 {dimension_numbers = #tpu.dot_dimension_numbers<[2], [1], [1], [2], [0, 0, 0, 1, 1, 2], [0], [0]>} : vector<2x8x8xf32>, vector<2x8x8xf32>, vector<2x8x8xf32> -> vector<2x8x8xf32>
    "tpu.trace_stop"() : () -> ()
    %112 = vector.shape_cast %111 : vector<2x8x8xf32> to vector<16x8xf32>
    %113 = vector.extract_strided_slice %44 {offsets = [16, 0], sizes = [8, 32], strides = [1, 1]} : vector<32x32xf32> to vector<8x32xf32>
    %cst_51 = arith.constant dense<0.000000e+00> : vector<16x32xf32>
    %114 = tpu.matmul %112, %113, %cst_51 {dimension_numbers = #tpu.dot_dimension_numbers<[1], [0], [0], [1], [0, 0, 1, 1], [], []>} : vector<16x8xf32>, vector<8x32xf32>, vector<16x32xf32> -> vector<16x32xf32>
    %115 = arith.addf %93, %114 : vector<16x32xf32>
    %116 = vector.extract_strided_slice %46 {offsets = [0, 0, 24], sizes = [2, 8, 8], strides = [1, 1, 1]} : vector<2x8x32xf32> to vector<2x8x8xf32>
    %117 = vector.extract_strided_slice %47 {offsets = [0, 0, 24], sizes = [2, 8, 8], strides = [1, 1, 1]} : vector<2x8x32xf32> to vector<2x8x8xf32>
    "tpu.trace_start"() <{level = 10 : i32, message = "bqd,bkd->bqk"}> : () -> ()
    %cst_52 = arith.constant dense<0.000000e+00> : vector<2x8x8xf32>
    %118 = tpu.matmul %116, %117, %cst_52 {dimension_numbers = #tpu.dot_dimension_numbers<[2], [2], [1], [1], [0, 0, 0, 1, 1, 1], [0], [0]>} : vector<2x8x8xf32>, vector<2x8x8xf32>, vector<2x8x8xf32> -> vector<2x8x8xf32>
    "tpu.trace_stop"() : () -> ()
    %cst_53 = arith.constant 0.353553385 : f32
    %119 = vector.broadcast %cst_53 : f32 to vector<2x8x8xf32>
    %120 = arith.mulf %118, %119 : vector<2x8x8xf32>
    %121 = arith.addf %120, %25 : vector<2x8x8xf32>
    %cst_54 = arith.constant dense<0xFF800000> : vector<2x8xf32>
    %122 = vector.multi_reduction <maximumf>, %121, %cst_54 [2] : vector<2x8x8xf32> to vector<2x8xf32>
    %123 = vector.shape_cast %122 : vector<2x8xf32> to vector<2x8x1xf32>
    %124 = vector.broadcast %123 : vector<2x8x1xf32> to vector<2x8x8xf32>
    %125 = arith.subf %121, %124 : vector<2x8x8xf32>
    %126 = math.exp %125 : vector<2x8x8xf32>
    %cst_55 = arith.constant dense<0.000000e+00> : vector<2x8xf32>
    %127 = vector.multi_reduction <add>, %126, %cst_55 [2] : vector<2x8x8xf32> to vector<2x8xf32>
    %128 = vector.shape_cast %127 : vector<2x8xf32> to vector<2x8x1xf32>
    %129 = tpu.reciprocal %128 {approx = true} : vector<2x8x1xf32> -> vector<2x8x1xf32>
    %130 = vector.broadcast %129 : vector<2x8x1xf32> to vector<2x8x8xf32>
    %131 = arith.mulf %126, %130 : vector<2x8x8xf32>
    %132 = vector.extract_strided_slice %48 {offsets = [0, 0, 24], sizes = [2, 8, 8], strides = [1, 1, 1]} : vector<2x8x32xf32> to vector<2x8x8xf32>
    "tpu.trace_start"() <{level = 10 : i32, message = "bqk,bkd->bqd"}> : () -> ()
    %cst_56 = arith.constant dense<0.000000e+00> : vector<2x8x8xf32>
    %133 = tpu.matmul %131, %132, %cst_56 {dimension_numbers = #tpu.dot_dimension_numbers<[2], [1], [1], [2], [0, 0, 0, 1, 1, 2], [0], [0]>} : vector<2x8x8xf32>, vector<2x8x8xf32>, vector<2x8x8xf32> -> vector<2x8x8xf32>
    "tpu.trace_stop"() : () -> ()
    %134 = vector.shape_cast %133 : vector<2x8x8xf32> to vector<16x8xf32>
    %135 = vector.extract_strided_slice %44 {offsets = [24, 0], sizes = [8, 32], strides = [1, 1]} : vector<32x32xf32> to vector<8x32xf32>
    %cst_57 = arith.constant dense<0.000000e+00> : vector<16x32xf32>
    %136 = tpu.matmul %134, %135, %cst_57 {dimension_numbers = #tpu.dot_dimension_numbers<[1], [0], [0], [1], [0, 0, 1, 1], [], []>} : vector<16x8xf32>, vector<8x32xf32>, vector<16x32xf32> -> vector<16x32xf32>
    %137 = arith.addf %115, %136 : vector<16x32xf32>
    %138 = vector.broadcast %45 : vector<1x32xf32> to vector<16x32xf32>
    %139 = arith.addf %137, %138 : vector<16x32xf32>
    %140 = arith.addf %11, %139 : vector<16x32xf32>
    %141 = vector.extract_strided_slice %33 {offsets = [2, 0], sizes = [1, 32], strides = [1, 1]} : vector<13x128xf32> to vector<1x32xf32>
    %142 = vector.extract_strided_slice %33 {offsets = [3, 0], sizes = [1, 32], strides = [1, 1]} : vector<13x128xf32> to vector<1x32xf32>
    %cst_58 = arith.constant dense<0.000000e+00> : vector<16xf32>
    %143 = vector.multi_reduction <add>, %140, %cst_58 [1] : vector<16x32xf32> to vector<16xf32>
    %144 = vector.shape_cast %143 : vector<16xf32> to vector<16x1xf32>
    %cst_59 = arith.constant 3.200000e+01 : f32
    %145 = vector.broadcast %cst_59 : f32 to vector<16x1xf32>
    %146 = arith.divf %144, %145 : vector<16x1xf32>
    %147 = vector.broadcast %146 : vector<16x1xf32> to vector<16x32xf32>
    %148 = arith.subf %140, %147 : vector<16x32xf32>
    %149 = arith.mulf %148, %148 : vector<16x32xf32>
    %cst_60 = arith.constant dense<0.000000e+00> : vector<16xf32>
    %150 = vector.multi_reduction <add>, %149, %cst_60 [1] : vector<16x32xf32> to vector<16xf32>
    %151 = vector.shape_cast %150 : vector<16xf32> to vector<16x1xf32>
    %cst_61 = arith.constant 3.200000e+01 : f32
    %152 = vector.broadcast %cst_61 : f32 to vector<16x1xf32>
    %153 = arith.divf %151, %152 : vector<16x1xf32>
    %154 = vector.broadcast %146 : vector<16x1xf32> to vector<16x32xf32>
    %155 = arith.subf %140, %154 : vector<16x32xf32>
    %cst_62 = arith.constant 9.99999974E-6 : f32
    %156 = vector.broadcast %cst_62 : f32 to vector<16x1xf32>
    %157 = arith.addf %153, %156 : vector<16x1xf32>
    %158 = math.rsqrt %157 : vector<16x1xf32>
    %159 = vector.broadcast %158 : vector<16x1xf32> to vector<16x32xf32>
    %160 = arith.mulf %155, %159 : vector<16x32xf32>
    %161 = vector.broadcast %141 : vector<1x32xf32> to vector<16x32xf32>
    %162 = arith.mulf %160, %161 : vector<16x32xf32>
    %163 = vector.broadcast %142 : vector<1x32xf32> to vector<16x32xf32>
    %164 = arith.addf %162, %163 : vector<16x32xf32>
    %c0_63 = arith.constant 0 : index
    %c0_64 = arith.constant 0 : index
    %c0_65 = arith.constant 0 : index
    %165 = vector.load %arg10[%c0_63, %c0_64, %c0_65] : memref<2x32x32xf32, #tpu.memory_space<vmem>>, vector<1x32x32xf32>
    %166 = vector.shape_cast %165 : vector<1x32x32xf32> to vector<32x32xf32>
    %cst_66 = arith.constant dense<0.000000e+00> : vector<16x32xf32>
    %167 = tpu.matmul %164, %166, %cst_66 {dimension_numbers = #tpu.dot_dimension_numbers<[1], [0], [0], [1], [0, 0, 1, 1], [], []>} : vector<16x32xf32>, vector<32x32xf32>, vector<16x32xf32> -> vector<16x32xf32>
    %168 = vector.extract_strided_slice %33 {offsets = [4, 0], sizes = [1, 32], strides = [1, 1]} : vector<13x128xf32> to vector<1x32xf32>
    %169 = vector.broadcast %168 : vector<1x32xf32> to vector<16x32xf32>
    %170 = arith.addf %167, %169 : vector<16x32xf32>
    %c0_67 = arith.constant 0 : index
    %c0_68 = arith.constant 0 : index
    %c0_69 = arith.constant 0 : index
    %171 = vector.load %arg11[%c0_67, %c0_68, %c0_69] : memref<2x32x64xf32, #tpu.memory_space<vmem>>, vector<1x32x64xf32>
    %172 = vector.shape_cast %171 : vector<1x32x64xf32> to vector<32x64xf32>
    %cst_70 = arith.constant dense<0.000000e+00> : vector<16x64xf32>
    %173 = tpu.matmul %19, %172, %cst_70 {dimension_numbers = #tpu.dot_dimension_numbers<[1], [0], [0], [1], [0, 0, 1, 1], [], []>} : vector<16x32xf32>, vector<32x64xf32>, vector<16x64xf32> -> vector<16x64xf32>
    %174 = vector.extract_strided_slice %33 {offsets = [5, 0], sizes = [1, 64], strides = [1, 1]} : vector<13x128xf32> to vector<1x64xf32>
    %175 = vector.broadcast %174 : vector<1x64xf32> to vector<16x64xf32>
    %176 = arith.addf %173, %175 : vector<16x64xf32>
    %177 = vector.extract_strided_slice %176 {offsets = [0, 0], sizes = [16, 32], strides = [1, 1]} : vector<16x64xf32> to vector<16x32xf32>
    %178 = vector.extract_strided_slice %176 {offsets = [0, 32], sizes = [16, 32], strides = [1, 1]} : vector<16x64xf32> to vector<16x32xf32>
    %c0_71 = arith.constant 0 : index
    %c0_72 = arith.constant 0 : index
    %c0_73 = arith.constant 0 : index
    %179 = vector.load %arg12[%c0_71, %c0_72, %c0_73] : memref<2x32x32xf32, #tpu.memory_space<vmem>>, vector<1x32x32xf32>
    %180 = vector.shape_cast %179 : vector<1x32x32xf32> to vector<32x32xf32>
    %181 = vector.extract_strided_slice %33 {offsets = [6, 0], sizes = [1, 32], strides = [1, 1]} : vector<13x128xf32> to vector<1x32xf32>
    %182 = vector.shape_cast %170 : vector<16x32xf32> to vector<2x8x32xf32>
    %183 = vector.shape_cast %177 : vector<16x32xf32> to vector<2x8x32xf32>
    %184 = vector.shape_cast %178 : vector<16x32xf32> to vector<2x8x32xf32>
    %cst_74 = arith.constant 0.000000e+00 : f32
    %185 = vector.broadcast %cst_74 : f32 to vector<16x32xf32>
    %186 = vector.extract_strided_slice %182 {offsets = [0, 0, 0], sizes = [2, 8, 8], strides = [1, 1, 1]} : vector<2x8x32xf32> to vector<2x8x8xf32>
    %187 = vector.extract_strided_slice %183 {offsets = [0, 0, 0], sizes = [2, 8, 8], strides = [1, 1, 1]} : vector<2x8x32xf32> to vector<2x8x8xf32>
    "tpu.trace_start"() <{level = 10 : i32, message = "bqd,bkd->bqk"}> : () -> ()
    %cst_75 = arith.constant dense<0.000000e+00> : vector<2x8x8xf32>
    %188 = tpu.matmul %186, %187, %cst_75 {dimension_numbers = #tpu.dot_dimension_numbers<[2], [2], [1], [1], [0, 0, 0, 1, 1, 1], [0], [0]>} : vector<2x8x8xf32>, vector<2x8x8xf32>, vector<2x8x8xf32> -> vector<2x8x8xf32>
    "tpu.trace_stop"() : () -> ()
    %cst_76 = arith.constant 0.353553385 : f32
    %189 = vector.broadcast %cst_76 : f32 to vector<2x8x8xf32>
    %190 = arith.mulf %188, %189 : vector<2x8x8xf32>
    %191 = vector.broadcast %31 : vector<2x1x8xf32> to vector<2x8x8xf32>
    %192 = arith.addf %190, %191 : vector<2x8x8xf32>
    %cst_77 = arith.constant dense<0xFF800000> : vector<2x8xf32>
    %193 = vector.multi_reduction <maximumf>, %192, %cst_77 [2] : vector<2x8x8xf32> to vector<2x8xf32>
    %194 = vector.shape_cast %193 : vector<2x8xf32> to vector<2x8x1xf32>
    %195 = vector.broadcast %194 : vector<2x8x1xf32> to vector<2x8x8xf32>
    %196 = arith.subf %192, %195 : vector<2x8x8xf32>
    %197 = math.exp %196 : vector<2x8x8xf32>
    %cst_78 = arith.constant dense<0.000000e+00> : vector<2x8xf32>
    %198 = vector.multi_reduction <add>, %197, %cst_78 [2] : vector<2x8x8xf32> to vector<2x8xf32>
    %199 = vector.shape_cast %198 : vector<2x8xf32> to vector<2x8x1xf32>
    %200 = tpu.reciprocal %199 {approx = true} : vector<2x8x1xf32> -> vector<2x8x1xf32>
    %201 = vector.broadcast %200 : vector<2x8x1xf32> to vector<2x8x8xf32>
    %202 = arith.mulf %197, %201 : vector<2x8x8xf32>
    %203 = vector.extract_strided_slice %184 {offsets = [0, 0, 0], sizes = [2, 8, 8], strides = [1, 1, 1]} : vector<2x8x32xf32> to vector<2x8x8xf32>
    "tpu.trace_start"() <{level = 10 : i32, message = "bqk,bkd->bqd"}> : () -> ()
    %cst_79 = arith.constant dense<0.000000e+00> : vector<2x8x8xf32>
    %204 = tpu.matmul %202, %203, %cst_79 {dimension_numbers = #tpu.dot_dimension_numbers<[2], [1], [1], [2], [0, 0, 0, 1, 1, 2], [0], [0]>} : vector<2x8x8xf32>, vector<2x8x8xf32>, vector<2x8x8xf32> -> vector<2x8x8xf32>
    "tpu.trace_stop"() : () -> ()
    %205 = vector.shape_cast %204 : vector<2x8x8xf32> to vector<16x8xf32>
    %206 = vector.extract_strided_slice %180 {offsets = [0, 0], sizes = [8, 32], strides = [1, 1]} : vector<32x32xf32> to vector<8x32xf32>
    %cst_80 = arith.constant dense<0.000000e+00> : vector<16x32xf32>
    %207 = tpu.matmul %205, %206, %cst_80 {dimension_numbers = #tpu.dot_dimension_numbers<[1], [0], [0], [1], [0, 0, 1, 1], [], []>} : vector<16x8xf32>, vector<8x32xf32>, vector<16x32xf32> -> vector<16x32xf32>
    %208 = arith.addf %185, %207 : vector<16x32xf32>
    %209 = vector.extract_strided_slice %182 {offsets = [0, 0, 8], sizes = [2, 8, 8], strides = [1, 1, 1]} : vector<2x8x32xf32> to vector<2x8x8xf32>
    %210 = vector.extract_strided_slice %183 {offsets = [0, 0, 8], sizes = [2, 8, 8], strides = [1, 1, 1]} : vector<2x8x32xf32> to vector<2x8x8xf32>
    "tpu.trace_start"() <{level = 10 : i32, message = "bqd,bkd->bqk"}> : () -> ()
    %cst_81 = arith.constant dense<0.000000e+00> : vector<2x8x8xf32>
    %211 = tpu.matmul %209, %210, %cst_81 {dimension_numbers = #tpu.dot_dimension_numbers<[2], [2], [1], [1], [0, 0, 0, 1, 1, 1], [0], [0]>} : vector<2x8x8xf32>, vector<2x8x8xf32>, vector<2x8x8xf32> -> vector<2x8x8xf32>
    "tpu.trace_stop"() : () -> ()
    %cst_82 = arith.constant 0.353553385 : f32
    %212 = vector.broadcast %cst_82 : f32 to vector<2x8x8xf32>
    %213 = arith.mulf %211, %212 : vector<2x8x8xf32>
    %214 = vector.broadcast %31 : vector<2x1x8xf32> to vector<2x8x8xf32>
    %215 = arith.addf %213, %214 : vector<2x8x8xf32>
    %cst_83 = arith.constant dense<0xFF800000> : vector<2x8xf32>
    %216 = vector.multi_reduction <maximumf>, %215, %cst_83 [2] : vector<2x8x8xf32> to vector<2x8xf32>
    %217 = vector.shape_cast %216 : vector<2x8xf32> to vector<2x8x1xf32>
    %218 = vector.broadcast %217 : vector<2x8x1xf32> to vector<2x8x8xf32>
    %219 = arith.subf %215, %218 : vector<2x8x8xf32>
    %220 = math.exp %219 : vector<2x8x8xf32>
    %cst_84 = arith.constant dense<0.000000e+00> : vector<2x8xf32>
    %221 = vector.multi_reduction <add>, %220, %cst_84 [2] : vector<2x8x8xf32> to vector<2x8xf32>
    %222 = vector.shape_cast %221 : vector<2x8xf32> to vector<2x8x1xf32>
    %223 = tpu.reciprocal %222 {approx = true} : vector<2x8x1xf32> -> vector<2x8x1xf32>
    %224 = vector.broadcast %223 : vector<2x8x1xf32> to vector<2x8x8xf32>
    %225 = arith.mulf %220, %224 : vector<2x8x8xf32>
    %226 = vector.extract_strided_slice %184 {offsets = [0, 0, 8], sizes = [2, 8, 8], strides = [1, 1, 1]} : vector<2x8x32xf32> to vector<2x8x8xf32>
    "tpu.trace_start"() <{level = 10 : i32, message = "bqk,bkd->bqd"}> : () -> ()
    %cst_85 = arith.constant dense<0.000000e+00> : vector<2x8x8xf32>
    %227 = tpu.matmul %225, %226, %cst_85 {dimension_numbers = #tpu.dot_dimension_numbers<[2], [1], [1], [2], [0, 0, 0, 1, 1, 2], [0], [0]>} : vector<2x8x8xf32>, vector<2x8x8xf32>, vector<2x8x8xf32> -> vector<2x8x8xf32>
    "tpu.trace_stop"() : () -> ()
    %228 = vector.shape_cast %227 : vector<2x8x8xf32> to vector<16x8xf32>
    %229 = vector.extract_strided_slice %180 {offsets = [8, 0], sizes = [8, 32], strides = [1, 1]} : vector<32x32xf32> to vector<8x32xf32>
    %cst_86 = arith.constant dense<0.000000e+00> : vector<16x32xf32>
    %230 = tpu.matmul %228, %229, %cst_86 {dimension_numbers = #tpu.dot_dimension_numbers<[1], [0], [0], [1], [0, 0, 1, 1], [], []>} : vector<16x8xf32>, vector<8x32xf32>, vector<16x32xf32> -> vector<16x32xf32>
    %231 = arith.addf %208, %230 : vector<16x32xf32>
    %232 = vector.extract_strided_slice %182 {offsets = [0, 0, 16], sizes = [2, 8, 8], strides = [1, 1, 1]} : vector<2x8x32xf32> to vector<2x8x8xf32>
    %233 = vector.extract_strided_slice %183 {offsets = [0, 0, 16], sizes = [2, 8, 8], strides = [1, 1, 1]} : vector<2x8x32xf32> to vector<2x8x8xf32>
    "tpu.trace_start"() <{level = 10 : i32, message = "bqd,bkd->bqk"}> : () -> ()
    %cst_87 = arith.constant dense<0.000000e+00> : vector<2x8x8xf32>
    %234 = tpu.matmul %232, %233, %cst_87 {dimension_numbers = #tpu.dot_dimension_numbers<[2], [2], [1], [1], [0, 0, 0, 1, 1, 1], [0], [0]>} : vector<2x8x8xf32>, vector<2x8x8xf32>, vector<2x8x8xf32> -> vector<2x8x8xf32>
    "tpu.trace_stop"() : () -> ()
    %cst_88 = arith.constant 0.353553385 : f32
    %235 = vector.broadcast %cst_88 : f32 to vector<2x8x8xf32>
    %236 = arith.mulf %234, %235 : vector<2x8x8xf32>
    %237 = vector.broadcast %31 : vector<2x1x8xf32> to vector<2x8x8xf32>
    %238 = arith.addf %236, %237 : vector<2x8x8xf32>
    %cst_89 = arith.constant dense<0xFF800000> : vector<2x8xf32>
    %239 = vector.multi_reduction <maximumf>, %238, %cst_89 [2] : vector<2x8x8xf32> to vector<2x8xf32>
    %240 = vector.shape_cast %239 : vector<2x8xf32> to vector<2x8x1xf32>
    %241 = vector.broadcast %240 : vector<2x8x1xf32> to vector<2x8x8xf32>
    %242 = arith.subf %238, %241 : vector<2x8x8xf32>
    %243 = math.exp %242 : vector<2x8x8xf32>
    %cst_90 = arith.constant dense<0.000000e+00> : vector<2x8xf32>
    %244 = vector.multi_reduction <add>, %243, %cst_90 [2] : vector<2x8x8xf32> to vector<2x8xf32>
    %245 = vector.shape_cast %244 : vector<2x8xf32> to vector<2x8x1xf32>
    %246 = tpu.reciprocal %245 {approx = true} : vector<2x8x1xf32> -> vector<2x8x1xf32>
    %247 = vector.broadcast %246 : vector<2x8x1xf32> to vector<2x8x8xf32>
    %248 = arith.mulf %243, %247 : vector<2x8x8xf32>
    %249 = vector.extract_strided_slice %184 {offsets = [0, 0, 16], sizes = [2, 8, 8], strides = [1, 1, 1]} : vector<2x8x32xf32> to vector<2x8x8xf32>
    "tpu.trace_start"() <{level = 10 : i32, message = "bqk,bkd->bqd"}> : () -> ()
    %cst_91 = arith.constant dense<0.000000e+00> : vector<2x8x8xf32>
    %250 = tpu.matmul %248, %249, %cst_91 {dimension_numbers = #tpu.dot_dimension_numbers<[2], [1], [1], [2], [0, 0, 0, 1, 1, 2], [0], [0]>} : vector<2x8x8xf32>, vector<2x8x8xf32>, vector<2x8x8xf32> -> vector<2x8x8xf32>
    "tpu.trace_stop"() : () -> ()
    %251 = vector.shape_cast %250 : vector<2x8x8xf32> to vector<16x8xf32>
    %252 = vector.extract_strided_slice %180 {offsets = [16, 0], sizes = [8, 32], strides = [1, 1]} : vector<32x32xf32> to vector<8x32xf32>
    %cst_92 = arith.constant dense<0.000000e+00> : vector<16x32xf32>
    %253 = tpu.matmul %251, %252, %cst_92 {dimension_numbers = #tpu.dot_dimension_numbers<[1], [0], [0], [1], [0, 0, 1, 1], [], []>} : vector<16x8xf32>, vector<8x32xf32>, vector<16x32xf32> -> vector<16x32xf32>
    %254 = arith.addf %231, %253 : vector<16x32xf32>
    %255 = vector.extract_strided_slice %182 {offsets = [0, 0, 24], sizes = [2, 8, 8], strides = [1, 1, 1]} : vector<2x8x32xf32> to vector<2x8x8xf32>
    %256 = vector.extract_strided_slice %183 {offsets = [0, 0, 24], sizes = [2, 8, 8], strides = [1, 1, 1]} : vector<2x8x32xf32> to vector<2x8x8xf32>
    "tpu.trace_start"() <{level = 10 : i32, message = "bqd,bkd->bqk"}> : () -> ()
    %cst_93 = arith.constant dense<0.000000e+00> : vector<2x8x8xf32>
    %257 = tpu.matmul %255, %256, %cst_93 {dimension_numbers = #tpu.dot_dimension_numbers<[2], [2], [1], [1], [0, 0, 0, 1, 1, 1], [0], [0]>} : vector<2x8x8xf32>, vector<2x8x8xf32>, vector<2x8x8xf32> -> vector<2x8x8xf32>
    "tpu.trace_stop"() : () -> ()
    %cst_94 = arith.constant 0.353553385 : f32
    %258 = vector.broadcast %cst_94 : f32 to vector<2x8x8xf32>
    %259 = arith.mulf %257, %258 : vector<2x8x8xf32>
    %260 = vector.broadcast %31 : vector<2x1x8xf32> to vector<2x8x8xf32>
    %261 = arith.addf %259, %260 : vector<2x8x8xf32>
    %cst_95 = arith.constant dense<0xFF800000> : vector<2x8xf32>
    %262 = vector.multi_reduction <maximumf>, %261, %cst_95 [2] : vector<2x8x8xf32> to vector<2x8xf32>
    %263 = vector.shape_cast %262 : vector<2x8xf32> to vector<2x8x1xf32>
    %264 = vector.broadcast %263 : vector<2x8x1xf32> to vector<2x8x8xf32>
    %265 = arith.subf %261, %264 : vector<2x8x8xf32>
    %266 = math.exp %265 : vector<2x8x8xf32>
    %cst_96 = arith.constant dense<0.000000e+00> : vector<2x8xf32>
    %267 = vector.multi_reduction <add>, %266, %cst_96 [2] : vector<2x8x8xf32> to vector<2x8xf32>
    %268 = vector.shape_cast %267 : vector<2x8xf32> to vector<2x8x1xf32>
    %269 = tpu.reciprocal %268 {approx = true} : vector<2x8x1xf32> -> vector<2x8x1xf32>
    %270 = vector.broadcast %269 : vector<2x8x1xf32> to vector<2x8x8xf32>
    %271 = arith.mulf %266, %270 : vector<2x8x8xf32>
    %272 = vector.extract_strided_slice %184 {offsets = [0, 0, 24], sizes = [2, 8, 8], strides = [1, 1, 1]} : vector<2x8x32xf32> to vector<2x8x8xf32>
    "tpu.trace_start"() <{level = 10 : i32, message = "bqk,bkd->bqd"}> : () -> ()
    %cst_97 = arith.constant dense<0.000000e+00> : vector<2x8x8xf32>
    %273 = tpu.matmul %271, %272, %cst_97 {dimension_numbers = #tpu.dot_dimension_numbers<[2], [1], [1], [2], [0, 0, 0, 1, 1, 2], [0], [0]>} : vector<2x8x8xf32>, vector<2x8x8xf32>, vector<2x8x8xf32> -> vector<2x8x8xf32>
    "tpu.trace_stop"() : () -> ()
    %274 = vector.shape_cast %273 : vector<2x8x8xf32> to vector<16x8xf32>
    %275 = vector.extract_strided_slice %180 {offsets = [24, 0], sizes = [8, 32], strides = [1, 1]} : vector<32x32xf32> to vector<8x32xf32>
    %cst_98 = arith.constant dense<0.000000e+00> : vector<16x32xf32>
    %276 = tpu.matmul %274, %275, %cst_98 {dimension_numbers = #tpu.dot_dimension_numbers<[1], [0], [0], [1], [0, 0, 1, 1], [], []>} : vector<16x8xf32>, vector<8x32xf32>, vector<16x32xf32> -> vector<16x32xf32>
    %277 = arith.addf %254, %276 : vector<16x32xf32>
    %278 = vector.broadcast %181 : vector<1x32xf32> to vector<16x32xf32>
    %279 = arith.addf %277, %278 : vector<16x32xf32>
    %280 = arith.addf %164, %279 : vector<16x32xf32>
    %281 = vector.extract_strided_slice %33 {offsets = [7, 0], sizes = [1, 32], strides = [1, 1]} : vector<13x128xf32> to vector<1x32xf32>
    %282 = vector.extract_strided_slice %33 {offsets = [8, 0], sizes = [1, 32], strides = [1, 1]} : vector<13x128xf32> to vector<1x32xf32>
    %cst_99 = arith.constant dense<0.000000e+00> : vector<16xf32>
    %283 = vector.multi_reduction <add>, %280, %cst_99 [1] : vector<16x32xf32> to vector<16xf32>
    %284 = vector.shape_cast %283 : vector<16xf32> to vector<16x1xf32>
    %cst_100 = arith.constant 3.200000e+01 : f32
    %285 = vector.broadcast %cst_100 : f32 to vector<16x1xf32>
    %286 = arith.divf %284, %285 : vector<16x1xf32>
    %287 = vector.broadcast %286 : vector<16x1xf32> to vector<16x32xf32>
    %288 = arith.subf %280, %287 : vector<16x32xf32>
    %289 = arith.mulf %288, %288 : vector<16x32xf32>
    %cst_101 = arith.constant dense<0.000000e+00> : vector<16xf32>
    %290 = vector.multi_reduction <add>, %289, %cst_101 [1] : vector<16x32xf32> to vector<16xf32>
    %291 = vector.shape_cast %290 : vector<16xf32> to vector<16x1xf32>
    %cst_102 = arith.constant 3.200000e+01 : f32
    %292 = vector.broadcast %cst_102 : f32 to vector<16x1xf32>
    %293 = arith.divf %291, %292 : vector<16x1xf32>
    %294 = vector.broadcast %286 : vector<16x1xf32> to vector<16x32xf32>
    %295 = arith.subf %280, %294 : vector<16x32xf32>
    %cst_103 = arith.constant 9.99999974E-6 : f32
    %296 = vector.broadcast %cst_103 : f32 to vector<16x1xf32>
    %297 = arith.addf %293, %296 : vector<16x1xf32>
    %298 = math.rsqrt %297 : vector<16x1xf32>
    %299 = vector.broadcast %298 : vector<16x1xf32> to vector<16x32xf32>
    %300 = arith.mulf %295, %299 : vector<16x32xf32>
    %301 = vector.broadcast %281 : vector<1x32xf32> to vector<16x32xf32>
    %302 = arith.mulf %300, %301 : vector<16x32xf32>
    %303 = vector.broadcast %282 : vector<1x32xf32> to vector<16x32xf32>
    %304 = arith.addf %302, %303 : vector<16x32xf32>
    %c0_104 = arith.constant 0 : index
    %c0_105 = arith.constant 0 : index
    %c0_106 = arith.constant 0 : index
    %305 = vector.load %arg13[%c0_104, %c0_105, %c0_106] : memref<2x32x64xf32, #tpu.memory_space<vmem>>, vector<1x32x64xf32>
    %306 = vector.shape_cast %305 : vector<1x32x64xf32> to vector<32x64xf32>
    %cst_107 = arith.constant dense<0.000000e+00> : vector<16x64xf32>
    %307 = tpu.matmul %304, %306, %cst_107 {dimension_numbers = #tpu.dot_dimension_numbers<[1], [0], [0], [1], [0, 0, 1, 1], [], []>} : vector<16x32xf32>, vector<32x64xf32>, vector<16x64xf32> -> vector<16x64xf32>
    %308 = vector.extract_strided_slice %33 {offsets = [9, 0], sizes = [1, 64], strides = [1, 1]} : vector<13x128xf32> to vector<1x64xf32>
    %309 = vector.broadcast %308 : vector<1x64xf32> to vector<16x64xf32>
    %310 = arith.addf %307, %309 : vector<16x64xf32>
    %cst_108 = arith.constant 0.000000e+00 : f32
    %311 = vector.broadcast %cst_108 : f32 to vector<16x64xf32>
    %312 = arith.maximumf %310, %311 : vector<16x64xf32>
    %c0_109 = arith.constant 0 : index
    %c0_110 = arith.constant 0 : index
    %c0_111 = arith.constant 0 : index
    %313 = vector.load %arg14[%c0_109, %c0_110, %c0_111] : memref<2x64x32xf32, #tpu.memory_space<vmem>>, vector<1x64x32xf32>
    %314 = vector.shape_cast %313 : vector<1x64x32xf32> to vector<64x32xf32>
    %cst_112 = arith.constant dense<0.000000e+00> : vector<16x32xf32>
    %315 = tpu.matmul %312, %314, %cst_112 {dimension_numbers = #tpu.dot_dimension_numbers<[1], [0], [0], [1], [0, 0, 1, 1], [], []>} : vector<16x64xf32>, vector<64x32xf32>, vector<16x32xf32> -> vector<16x32xf32>
    %316 = vector.extract_strided_slice %33 {offsets = [10, 0], sizes = [1, 32], strides = [1, 1]} : vector<13x128xf32> to vector<1x32xf32>
    %317 = vector.broadcast %316 : vector<1x32xf32> to vector<16x32xf32>
    %318 = arith.addf %315, %317 : vector<16x32xf32>
    %319 = arith.addf %304, %318 : vector<16x32xf32>
    %320 = vector.extract_strided_slice %33 {offsets = [11, 0], sizes = [1, 32], strides = [1, 1]} : vector<13x128xf32> to vector<1x32xf32>
    %321 = vector.extract_strided_slice %33 {offsets = [12, 0], sizes = [1, 32], strides = [1, 1]} : vector<13x128xf32> to vector<1x32xf32>
    %cst_113 = arith.constant dense<0.000000e+00> : vector<16xf32>
    %322 = vector.multi_reduction <add>, %319, %cst_113 [1] : vector<16x32xf32> to vector<16xf32>
    %323 = vector.shape_cast %322 : vector<16xf32> to vector<16x1xf32>
    %cst_114 = arith.constant 3.200000e+01 : f32
    %324 = vector.broadcast %cst_114 : f32 to vector<16x1xf32>
    %325 = arith.divf %323, %324 : vector<16x1xf32>
    %326 = vector.broadcast %325 : vector<16x1xf32> to vector<16x32xf32>
    %327 = arith.subf %319, %326 : vector<16x32xf32>
    %328 = arith.mulf %327, %327 : vector<16x32xf32>
    %cst_115 = arith.constant dense<0.000000e+00> : vector<16xf32>
    %329 = vector.multi_reduction <add>, %328, %cst_115 [1] : vector<16x32xf32> to vector<16xf32>
    %330 = vector.shape_cast %329 : vector<16xf32> to vector<16x1xf32>
    %cst_116 = arith.constant 3.200000e+01 : f32
    %331 = vector.broadcast %cst_116 : f32 to vector<16x1xf32>
    %332 = arith.divf %330, %331 : vector<16x1xf32>
    %333 = vector.broadcast %325 : vector<16x1xf32> to vector<16x32xf32>
    %334 = arith.subf %319, %333 : vector<16x32xf32>
    %cst_117 = arith.constant 9.99999974E-6 : f32
    %335 = vector.broadcast %cst_117 : f32 to vector<16x1xf32>
    %336 = arith.addf %332, %335 : vector<16x1xf32>
    %337 = math.rsqrt %336 : vector<16x1xf32>
    %338 = vector.broadcast %337 : vector<16x1xf32> to vector<16x32xf32>
    %339 = arith.mulf %334, %338 : vector<16x32xf32>
    %340 = vector.broadcast %320 : vector<1x32xf32> to vector<16x32xf32>
    %341 = arith.mulf %339, %340 : vector<16x32xf32>
    %342 = vector.broadcast %321 : vector<1x32xf32> to vector<16x32xf32>
    %343 = arith.addf %341, %342 : vector<16x32xf32>
    %c1 = arith.constant 1 : index
    %c0_118 = arith.constant 0 : index
    %c0_119 = arith.constant 0 : index
    %344 = vector.load %arg15[%c1, %c0_118, %c0_119] : memref<2x13x128xf32, #tpu.memory_space<vmem>>, vector<1x13x128xf32>
    %345 = vector.shape_cast %344 : vector<1x13x128xf32> to vector<13x128xf32>
    %c1_120 = arith.constant 1 : index
    %c0_121 = arith.constant 0 : index
    %c0_122 = arith.constant 0 : index
    %346 = vector.load %arg8[%c1_120, %c0_121, %c0_122] : memref<2x32x96xf32, #tpu.memory_space<vmem>>, vector<1x32x96xf32>
    %347 = vector.shape_cast %346 : vector<1x32x96xf32> to vector<32x96xf32>
    %cst_123 = arith.constant dense<0.000000e+00> : vector<16x96xf32>
    %348 = tpu.matmul %343, %347, %cst_123 {dimension_numbers = #tpu.dot_dimension_numbers<[1], [0], [0], [1], [0, 0, 1, 1], [], []>} : vector<16x32xf32>, vector<32x96xf32>, vector<16x96xf32> -> vector<16x96xf32>
    %349 = vector.extract_strided_slice %345 {offsets = [0, 0], sizes = [1, 96], strides = [1, 1]} : vector<13x128xf32> to vector<1x96xf32>
    %350 = vector.broadcast %349 : vector<1x96xf32> to vector<16x96xf32>
    %351 = arith.addf %348, %350 : vector<16x96xf32>
    %352 = vector.extract_strided_slice %351 {offsets = [0, 0], sizes = [16, 32], strides = [1, 1]} : vector<16x96xf32> to vector<16x32xf32>
    %353 = vector.extract_strided_slice %351 {offsets = [0, 32], sizes = [16, 32], strides = [1, 1]} : vector<16x96xf32> to vector<16x32xf32>
    %354 = vector.extract_strided_slice %351 {offsets = [0, 64], sizes = [16, 32], strides = [1, 1]} : vector<16x96xf32> to vector<16x32xf32>
    %c1_124 = arith.constant 1 : index
    %c0_125 = arith.constant 0 : index
    %c0_126 = arith.constant 0 : index
    %355 = vector.load %arg9[%c1_124, %c0_125, %c0_126] : memref<2x32x32xf32, #tpu.memory_space<vmem>>, vector<1x32x32xf32>
    %356 = vector.shape_cast %355 : vector<1x32x32xf32> to vector<32x32xf32>
    %357 = vector.extract_strided_slice %345 {offsets = [1, 0], sizes = [1, 32], strides = [1, 1]} : vector<13x128xf32> to vector<1x32xf32>
    %358 = vector.shape_cast %352 : vector<16x32xf32> to vector<2x8x32xf32>
    %359 = vector.shape_cast %353 : vector<16x32xf32> to vector<2x8x32xf32>
    %360 = vector.shape_cast %354 : vector<16x32xf32> to vector<2x8x32xf32>
    %cst_127 = arith.constant 0.000000e+00 : f32
    %361 = vector.broadcast %cst_127 : f32 to vector<16x32xf32>
    %362 = vector.extract_strided_slice %358 {offsets = [0, 0, 0], sizes = [2, 8, 8], strides = [1, 1, 1]} : vector<2x8x32xf32> to vector<2x8x8xf32>
    %363 = vector.extract_strided_slice %359 {offsets = [0, 0, 0], sizes = [2, 8, 8], strides = [1, 1, 1]} : vector<2x8x32xf32> to vector<2x8x8xf32>
    "tpu.trace_start"() <{level = 10 : i32, message = "bqd,bkd->bqk"}> : () -> ()
    %cst_128 = arith.constant dense<0.000000e+00> : vector<2x8x8xf32>
    %364 = tpu.matmul %362, %363, %cst_128 {dimension_numbers = #tpu.dot_dimension_numbers<[2], [2], [1], [1], [0, 0, 0, 1, 1, 1], [0], [0]>} : vector<2x8x8xf32>, vector<2x8x8xf32>, vector<2x8x8xf32> -> vector<2x8x8xf32>
    "tpu.trace_stop"() : () -> ()
    %cst_129 = arith.constant 0.353553385 : f32
    %365 = vector.broadcast %cst_129 : f32 to vector<2x8x8xf32>
    %366 = arith.mulf %364, %365 : vector<2x8x8xf32>
    %367 = arith.addf %366, %25 : vector<2x8x8xf32>
    %cst_130 = arith.constant dense<0xFF800000> : vector<2x8xf32>
    %368 = vector.multi_reduction <maximumf>, %367, %cst_130 [2] : vector<2x8x8xf32> to vector<2x8xf32>
    %369 = vector.shape_cast %368 : vector<2x8xf32> to vector<2x8x1xf32>
    %370 = vector.broadcast %369 : vector<2x8x1xf32> to vector<2x8x8xf32>
    %371 = arith.subf %367, %370 : vector<2x8x8xf32>
    %372 = math.exp %371 : vector<2x8x8xf32>
    %cst_131 = arith.constant dense<0.000000e+00> : vector<2x8xf32>
    %373 = vector.multi_reduction <add>, %372, %cst_131 [2] : vector<2x8x8xf32> to vector<2x8xf32>
    %374 = vector.shape_cast %373 : vector<2x8xf32> to vector<2x8x1xf32>
    %375 = tpu.reciprocal %374 {approx = true} : vector<2x8x1xf32> -> vector<2x8x1xf32>
    %376 = vector.broadcast %375 : vector<2x8x1xf32> to vector<2x8x8xf32>
    %377 = arith.mulf %372, %376 : vector<2x8x8xf32>
    %378 = vector.extract_strided_slice %360 {offsets = [0, 0, 0], sizes = [2, 8, 8], strides = [1, 1, 1]} : vector<2x8x32xf32> to vector<2x8x8xf32>
    "tpu.trace_start"() <{level = 10 : i32, message = "bqk,bkd->bqd"}> : () -> ()
    %cst_132 = arith.constant dense<0.000000e+00> : vector<2x8x8xf32>
    %379 = tpu.matmul %377, %378, %cst_132 {dimension_numbers = #tpu.dot_dimension_numbers<[2], [1], [1], [2], [0, 0, 0, 1, 1, 2], [0], [0]>} : vector<2x8x8xf32>, vector<2x8x8xf32>, vector<2x8x8xf32> -> vector<2x8x8xf32>
    "tpu.trace_stop"() : () -> ()
    %380 = vector.shape_cast %379 : vector<2x8x8xf32> to vector<16x8xf32>
    %381 = vector.extract_strided_slice %356 {offsets = [0, 0], sizes = [8, 32], strides = [1, 1]} : vector<32x32xf32> to vector<8x32xf32>
    %cst_133 = arith.constant dense<0.000000e+00> : vector<16x32xf32>
    %382 = tpu.matmul %380, %381, %cst_133 {dimension_numbers = #tpu.dot_dimension_numbers<[1], [0], [0], [1], [0, 0, 1, 1], [], []>} : vector<16x8xf32>, vector<8x32xf32>, vector<16x32xf32> -> vector<16x32xf32>
    %383 = arith.addf %361, %382 : vector<16x32xf32>
    %384 = vector.extract_strided_slice %358 {offsets = [0, 0, 8], sizes = [2, 8, 8], strides = [1, 1, 1]} : vector<2x8x32xf32> to vector<2x8x8xf32>
    %385 = vector.extract_strided_slice %359 {offsets = [0, 0, 8], sizes = [2, 8, 8], strides = [1, 1, 1]} : vector<2x8x32xf32> to vector<2x8x8xf32>
    "tpu.trace_start"() <{level = 10 : i32, message = "bqd,bkd->bqk"}> : () -> ()
    %cst_134 = arith.constant dense<0.000000e+00> : vector<2x8x8xf32>
    %386 = tpu.matmul %384, %385, %cst_134 {dimension_numbers = #tpu.dot_dimension_numbers<[2], [2], [1], [1], [0, 0, 0, 1, 1, 1], [0], [0]>} : vector<2x8x8xf32>, vector<2x8x8xf32>, vector<2x8x8xf32> -> vector<2x8x8xf32>
    "tpu.trace_stop"() : () -> ()
    %cst_135 = arith.constant 0.353553385 : f32
    %387 = vector.broadcast %cst_135 : f32 to vector<2x8x8xf32>
    %388 = arith.mulf %386, %387 : vector<2x8x8xf32>
    %389 = arith.addf %388, %25 : vector<2x8x8xf32>
    %cst_136 = arith.constant dense<0xFF800000> : vector<2x8xf32>
    %390 = vector.multi_reduction <maximumf>, %389, %cst_136 [2] : vector<2x8x8xf32> to vector<2x8xf32>
    %391 = vector.shape_cast %390 : vector<2x8xf32> to vector<2x8x1xf32>
    %392 = vector.broadcast %391 : vector<2x8x1xf32> to vector<2x8x8xf32>
    %393 = arith.subf %389, %392 : vector<2x8x8xf32>
    %394 = math.exp %393 : vector<2x8x8xf32>
    %cst_137 = arith.constant dense<0.000000e+00> : vector<2x8xf32>
    %395 = vector.multi_reduction <add>, %394, %cst_137 [2] : vector<2x8x8xf32> to vector<2x8xf32>
    %396 = vector.shape_cast %395 : vector<2x8xf32> to vector<2x8x1xf32>
    %397 = tpu.reciprocal %396 {approx = true} : vector<2x8x1xf32> -> vector<2x8x1xf32>
    %398 = vector.broadcast %397 : vector<2x8x1xf32> to vector<2x8x8xf32>
    %399 = arith.mulf %394, %398 : vector<2x8x8xf32>
    %400 = vector.extract_strided_slice %360 {offsets = [0, 0, 8], sizes = [2, 8, 8], strides = [1, 1, 1]} : vector<2x8x32xf32> to vector<2x8x8xf32>
    "tpu.trace_start"() <{level = 10 : i32, message = "bqk,bkd->bqd"}> : () -> ()
    %cst_138 = arith.constant dense<0.000000e+00> : vector<2x8x8xf32>
    %401 = tpu.matmul %399, %400, %cst_138 {dimension_numbers = #tpu.dot_dimension_numbers<[2], [1], [1], [2], [0, 0, 0, 1, 1, 2], [0], [0]>} : vector<2x8x8xf32>, vector<2x8x8xf32>, vector<2x8x8xf32> -> vector<2x8x8xf32>
    "tpu.trace_stop"() : () -> ()
    %402 = vector.shape_cast %401 : vector<2x8x8xf32> to vector<16x8xf32>
    %403 = vector.extract_strided_slice %356 {offsets = [8, 0], sizes = [8, 32], strides = [1, 1]} : vector<32x32xf32> to vector<8x32xf32>
    %cst_139 = arith.constant dense<0.000000e+00> : vector<16x32xf32>
    %404 = tpu.matmul %402, %403, %cst_139 {dimension_numbers = #tpu.dot_dimension_numbers<[1], [0], [0], [1], [0, 0, 1, 1], [], []>} : vector<16x8xf32>, vector<8x32xf32>, vector<16x32xf32> -> vector<16x32xf32>
    %405 = arith.addf %383, %404 : vector<16x32xf32>
    %406 = vector.extract_strided_slice %358 {offsets = [0, 0, 16], sizes = [2, 8, 8], strides = [1, 1, 1]} : vector<2x8x32xf32> to vector<2x8x8xf32>
    %407 = vector.extract_strided_slice %359 {offsets = [0, 0, 16], sizes = [2, 8, 8], strides = [1, 1, 1]} : vector<2x8x32xf32> to vector<2x8x8xf32>
    "tpu.trace_start"() <{level = 10 : i32, message = "bqd,bkd->bqk"}> : () -> ()
    %cst_140 = arith.constant dense<0.000000e+00> : vector<2x8x8xf32>
    %408 = tpu.matmul %406, %407, %cst_140 {dimension_numbers = #tpu.dot_dimension_numbers<[2], [2], [1], [1], [0, 0, 0, 1, 1, 1], [0], [0]>} : vector<2x8x8xf32>, vector<2x8x8xf32>, vector<2x8x8xf32> -> vector<2x8x8xf32>
    "tpu.trace_stop"() : () -> ()
    %cst_141 = arith.constant 0.353553385 : f32
    %409 = vector.broadcast %cst_141 : f32 to vector<2x8x8xf32>
    %410 = arith.mulf %408, %409 : vector<2x8x8xf32>
    %411 = arith.addf %410, %25 : vector<2x8x8xf32>
    %cst_142 = arith.constant dense<0xFF800000> : vector<2x8xf32>
    %412 = vector.multi_reduction <maximumf>, %411, %cst_142 [2] : vector<2x8x8xf32> to vector<2x8xf32>
    %413 = vector.shape_cast %412 : vector<2x8xf32> to vector<2x8x1xf32>
    %414 = vector.broadcast %413 : vector<2x8x1xf32> to vector<2x8x8xf32>
    %415 = arith.subf %411, %414 : vector<2x8x8xf32>
    %416 = math.exp %415 : vector<2x8x8xf32>
    %cst_143 = arith.constant dense<0.000000e+00> : vector<2x8xf32>
    %417 = vector.multi_reduction <add>, %416, %cst_143 [2] : vector<2x8x8xf32> to vector<2x8xf32>
    %418 = vector.shape_cast %417 : vector<2x8xf32> to vector<2x8x1xf32>
    %419 = tpu.reciprocal %418 {approx = true} : vector<2x8x1xf32> -> vector<2x8x1xf32>
    %420 = vector.broadcast %419 : vector<2x8x1xf32> to vector<2x8x8xf32>
    %421 = arith.mulf %416, %420 : vector<2x8x8xf32>
    %422 = vector.extract_strided_slice %360 {offsets = [0, 0, 16], sizes = [2, 8, 8], strides = [1, 1, 1]} : vector<2x8x32xf32> to vector<2x8x8xf32>
    "tpu.trace_start"() <{level = 10 : i32, message = "bqk,bkd->bqd"}> : () -> ()
    %cst_144 = arith.constant dense<0.000000e+00> : vector<2x8x8xf32>
    %423 = tpu.matmul %421, %422, %cst_144 {dimension_numbers = #tpu.dot_dimension_numbers<[2], [1], [1], [2], [0, 0, 0, 1, 1, 2], [0], [0]>} : vector<2x8x8xf32>, vector<2x8x8xf32>, vector<2x8x8xf32> -> vector<2x8x8xf32>
    "tpu.trace_stop"() : () -> ()
    %424 = vector.shape_cast %423 : vector<2x8x8xf32> to vector<16x8xf32>
    %425 = vector.extract_strided_slice %356 {offsets = [16, 0], sizes = [8, 32], strides = [1, 1]} : vector<32x32xf32> to vector<8x32xf32>
    %cst_145 = arith.constant dense<0.000000e+00> : vector<16x32xf32>
    %426 = tpu.matmul %424, %425, %cst_145 {dimension_numbers = #tpu.dot_dimension_numbers<[1], [0], [0], [1], [0, 0, 1, 1], [], []>} : vector<16x8xf32>, vector<8x32xf32>, vector<16x32xf32> -> vector<16x32xf32>
    %427 = arith.addf %405, %426 : vector<16x32xf32>
    %428 = vector.extract_strided_slice %358 {offsets = [0, 0, 24], sizes = [2, 8, 8], strides = [1, 1, 1]} : vector<2x8x32xf32> to vector<2x8x8xf32>
    %429 = vector.extract_strided_slice %359 {offsets = [0, 0, 24], sizes = [2, 8, 8], strides = [1, 1, 1]} : vector<2x8x32xf32> to vector<2x8x8xf32>
    "tpu.trace_start"() <{level = 10 : i32, message = "bqd,bkd->bqk"}> : () -> ()
    %cst_146 = arith.constant dense<0.000000e+00> : vector<2x8x8xf32>
    %430 = tpu.matmul %428, %429, %cst_146 {dimension_numbers = #tpu.dot_dimension_numbers<[2], [2], [1], [1], [0, 0, 0, 1, 1, 1], [0], [0]>} : vector<2x8x8xf32>, vector<2x8x8xf32>, vector<2x8x8xf32> -> vector<2x8x8xf32>
    "tpu.trace_stop"() : () -> ()
    %cst_147 = arith.constant 0.353553385 : f32
    %431 = vector.broadcast %cst_147 : f32 to vector<2x8x8xf32>
    %432 = arith.mulf %430, %431 : vector<2x8x8xf32>
    %433 = arith.addf %432, %25 : vector<2x8x8xf32>
    %cst_148 = arith.constant dense<0xFF800000> : vector<2x8xf32>
    %434 = vector.multi_reduction <maximumf>, %433, %cst_148 [2] : vector<2x8x8xf32> to vector<2x8xf32>
    %435 = vector.shape_cast %434 : vector<2x8xf32> to vector<2x8x1xf32>
    %436 = vector.broadcast %435 : vector<2x8x1xf32> to vector<2x8x8xf32>
    %437 = arith.subf %433, %436 : vector<2x8x8xf32>
    %438 = math.exp %437 : vector<2x8x8xf32>
    %cst_149 = arith.constant dense<0.000000e+00> : vector<2x8xf32>
    %439 = vector.multi_reduction <add>, %438, %cst_149 [2] : vector<2x8x8xf32> to vector<2x8xf32>
    %440 = vector.shape_cast %439 : vector<2x8xf32> to vector<2x8x1xf32>
    %441 = tpu.reciprocal %440 {approx = true} : vector<2x8x1xf32> -> vector<2x8x1xf32>
    %442 = vector.broadcast %441 : vector<2x8x1xf32> to vector<2x8x8xf32>
    %443 = arith.mulf %438, %442 : vector<2x8x8xf32>
    %444 = vector.extract_strided_slice %360 {offsets = [0, 0, 24], sizes = [2, 8, 8], strides = [1, 1, 1]} : vector<2x8x32xf32> to vector<2x8x8xf32>
    "tpu.trace_start"() <{level = 10 : i32, message = "bqk,bkd->bqd"}> : () -> ()
    %cst_150 = arith.constant dense<0.000000e+00> : vector<2x8x8xf32>
    %445 = tpu.matmul %443, %444, %cst_150 {dimension_numbers = #tpu.dot_dimension_numbers<[2], [1], [1], [2], [0, 0, 0, 1, 1, 2], [0], [0]>} : vector<2x8x8xf32>, vector<2x8x8xf32>, vector<2x8x8xf32> -> vector<2x8x8xf32>
    "tpu.trace_stop"() : () -> ()
    %446 = vector.shape_cast %445 : vector<2x8x8xf32> to vector<16x8xf32>
    %447 = vector.extract_strided_slice %356 {offsets = [24, 0], sizes = [8, 32], strides = [1, 1]} : vector<32x32xf32> to vector<8x32xf32>
    %cst_151 = arith.constant dense<0.000000e+00> : vector<16x32xf32>
    %448 = tpu.matmul %446, %447, %cst_151 {dimension_numbers = #tpu.dot_dimension_numbers<[1], [0], [0], [1], [0, 0, 1, 1], [], []>} : vector<16x8xf32>, vector<8x32xf32>, vector<16x32xf32> -> vector<16x32xf32>
    %449 = arith.addf %427, %448 : vector<16x32xf32>
    %450 = vector.broadcast %357 : vector<1x32xf32> to vector<16x32xf32>
    %451 = arith.addf %449, %450 : vector<16x32xf32>
    %452 = arith.addf %343, %451 : vector<16x32xf32>
    %453 = vector.extract_strided_slice %345 {offsets = [2, 0], sizes = [1, 32], strides = [1, 1]} : vector<13x128xf32> to vector<1x32xf32>
    %454 = vector.extract_strided_slice %345 {offsets = [3, 0], sizes = [1, 32], strides = [1, 1]} : vector<13x128xf32> to vector<1x32xf32>
    %cst_152 = arith.constant dense<0.000000e+00> : vector<16xf32>
    %455 = vector.multi_reduction <add>, %452, %cst_152 [1] : vector<16x32xf32> to vector<16xf32>
    %456 = vector.shape_cast %455 : vector<16xf32> to vector<16x1xf32>
    %cst_153 = arith.constant 3.200000e+01 : f32
    %457 = vector.broadcast %cst_153 : f32 to vector<16x1xf32>
    %458 = arith.divf %456, %457 : vector<16x1xf32>
    %459 = vector.broadcast %458 : vector<16x1xf32> to vector<16x32xf32>
    %460 = arith.subf %452, %459 : vector<16x32xf32>
    %461 = arith.mulf %460, %460 : vector<16x32xf32>
    %cst_154 = arith.constant dense<0.000000e+00> : vector<16xf32>
    %462 = vector.multi_reduction <add>, %461, %cst_154 [1] : vector<16x32xf32> to vector<16xf32>
    %463 = vector.shape_cast %462 : vector<16xf32> to vector<16x1xf32>
    %cst_155 = arith.constant 3.200000e+01 : f32
    %464 = vector.broadcast %cst_155 : f32 to vector<16x1xf32>
    %465 = arith.divf %463, %464 : vector<16x1xf32>
    %466 = vector.broadcast %458 : vector<16x1xf32> to vector<16x32xf32>
    %467 = arith.subf %452, %466 : vector<16x32xf32>
    %cst_156 = arith.constant 9.99999974E-6 : f32
    %468 = vector.broadcast %cst_156 : f32 to vector<16x1xf32>
    %469 = arith.addf %465, %468 : vector<16x1xf32>
    %470 = math.rsqrt %469 : vector<16x1xf32>
    %471 = vector.broadcast %470 : vector<16x1xf32> to vector<16x32xf32>
    %472 = arith.mulf %467, %471 : vector<16x32xf32>
    %473 = vector.broadcast %453 : vector<1x32xf32> to vector<16x32xf32>
    %474 = arith.mulf %472, %473 : vector<16x32xf32>
    %475 = vector.broadcast %454 : vector<1x32xf32> to vector<16x32xf32>
    %476 = arith.addf %474, %475 : vector<16x32xf32>
    %c1_157 = arith.constant 1 : index
    %c0_158 = arith.constant 0 : index
    %c0_159 = arith.constant 0 : index
    %477 = vector.load %arg10[%c1_157, %c0_158, %c0_159] : memref<2x32x32xf32, #tpu.memory_space<vmem>>, vector<1x32x32xf32>
    %478 = vector.shape_cast %477 : vector<1x32x32xf32> to vector<32x32xf32>
    %cst_160 = arith.constant dense<0.000000e+00> : vector<16x32xf32>
    %479 = tpu.matmul %476, %478, %cst_160 {dimension_numbers = #tpu.dot_dimension_numbers<[1], [0], [0], [1], [0, 0, 1, 1], [], []>} : vector<16x32xf32>, vector<32x32xf32>, vector<16x32xf32> -> vector<16x32xf32>
    %480 = vector.extract_strided_slice %345 {offsets = [4, 0], sizes = [1, 32], strides = [1, 1]} : vector<13x128xf32> to vector<1x32xf32>
    %481 = vector.broadcast %480 : vector<1x32xf32> to vector<16x32xf32>
    %482 = arith.addf %479, %481 : vector<16x32xf32>
    %c1_161 = arith.constant 1 : index
    %c0_162 = arith.constant 0 : index
    %c0_163 = arith.constant 0 : index
    %483 = vector.load %arg11[%c1_161, %c0_162, %c0_163] : memref<2x32x64xf32, #tpu.memory_space<vmem>>, vector<1x32x64xf32>
    %484 = vector.shape_cast %483 : vector<1x32x64xf32> to vector<32x64xf32>
    %cst_164 = arith.constant dense<0.000000e+00> : vector<16x64xf32>
    %485 = tpu.matmul %19, %484, %cst_164 {dimension_numbers = #tpu.dot_dimension_numbers<[1], [0], [0], [1], [0, 0, 1, 1], [], []>} : vector<16x32xf32>, vector<32x64xf32>, vector<16x64xf32> -> vector<16x64xf32>
    %486 = vector.extract_strided_slice %345 {offsets = [5, 0], sizes = [1, 64], strides = [1, 1]} : vector<13x128xf32> to vector<1x64xf32>
    %487 = vector.broadcast %486 : vector<1x64xf32> to vector<16x64xf32>
    %488 = arith.addf %485, %487 : vector<16x64xf32>
    %489 = vector.extract_strided_slice %488 {offsets = [0, 0], sizes = [16, 32], strides = [1, 1]} : vector<16x64xf32> to vector<16x32xf32>
    %490 = vector.extract_strided_slice %488 {offsets = [0, 32], sizes = [16, 32], strides = [1, 1]} : vector<16x64xf32> to vector<16x32xf32>
    %c1_165 = arith.constant 1 : index
    %c0_166 = arith.constant 0 : index
    %c0_167 = arith.constant 0 : index
    %491 = vector.load %arg12[%c1_165, %c0_166, %c0_167] : memref<2x32x32xf32, #tpu.memory_space<vmem>>, vector<1x32x32xf32>
    %492 = vector.shape_cast %491 : vector<1x32x32xf32> to vector<32x32xf32>
    %493 = vector.extract_strided_slice %345 {offsets = [6, 0], sizes = [1, 32], strides = [1, 1]} : vector<13x128xf32> to vector<1x32xf32>
    %494 = vector.shape_cast %482 : vector<16x32xf32> to vector<2x8x32xf32>
    %495 = vector.shape_cast %489 : vector<16x32xf32> to vector<2x8x32xf32>
    %496 = vector.shape_cast %490 : vector<16x32xf32> to vector<2x8x32xf32>
    %cst_168 = arith.constant 0.000000e+00 : f32
    %497 = vector.broadcast %cst_168 : f32 to vector<16x32xf32>
    %498 = vector.extract_strided_slice %494 {offsets = [0, 0, 0], sizes = [2, 8, 8], strides = [1, 1, 1]} : vector<2x8x32xf32> to vector<2x8x8xf32>
    %499 = vector.extract_strided_slice %495 {offsets = [0, 0, 0], sizes = [2, 8, 8], strides = [1, 1, 1]} : vector<2x8x32xf32> to vector<2x8x8xf32>
    "tpu.trace_start"() <{level = 10 : i32, message = "bqd,bkd->bqk"}> : () -> ()
    %cst_169 = arith.constant dense<0.000000e+00> : vector<2x8x8xf32>
    %500 = tpu.matmul %498, %499, %cst_169 {dimension_numbers = #tpu.dot_dimension_numbers<[2], [2], [1], [1], [0, 0, 0, 1, 1, 1], [0], [0]>} : vector<2x8x8xf32>, vector<2x8x8xf32>, vector<2x8x8xf32> -> vector<2x8x8xf32>
    "tpu.trace_stop"() : () -> ()
    %cst_170 = arith.constant 0.353553385 : f32
    %501 = vector.broadcast %cst_170 : f32 to vector<2x8x8xf32>
    %502 = arith.mulf %500, %501 : vector<2x8x8xf32>
    %503 = vector.broadcast %31 : vector<2x1x8xf32> to vector<2x8x8xf32>
    %504 = arith.addf %502, %503 : vector<2x8x8xf32>
    %cst_171 = arith.constant dense<0xFF800000> : vector<2x8xf32>
    %505 = vector.multi_reduction <maximumf>, %504, %cst_171 [2] : vector<2x8x8xf32> to vector<2x8xf32>
    %506 = vector.shape_cast %505 : vector<2x8xf32> to vector<2x8x1xf32>
    %507 = vector.broadcast %506 : vector<2x8x1xf32> to vector<2x8x8xf32>
    %508 = arith.subf %504, %507 : vector<2x8x8xf32>
    %509 = math.exp %508 : vector<2x8x8xf32>
    %cst_172 = arith.constant dense<0.000000e+00> : vector<2x8xf32>
    %510 = vector.multi_reduction <add>, %509, %cst_172 [2] : vector<2x8x8xf32> to vector<2x8xf32>
    %511 = vector.shape_cast %510 : vector<2x8xf32> to vector<2x8x1xf32>
    %512 = tpu.reciprocal %511 {approx = true} : vector<2x8x1xf32> -> vector<2x8x1xf32>
    %513 = vector.broadcast %512 : vector<2x8x1xf32> to vector<2x8x8xf32>
    %514 = arith.mulf %509, %513 : vector<2x8x8xf32>
    %515 = vector.extract_strided_slice %496 {offsets = [0, 0, 0], sizes = [2, 8, 8], strides = [1, 1, 1]} : vector<2x8x32xf32> to vector<2x8x8xf32>
    "tpu.trace_start"() <{level = 10 : i32, message = "bqk,bkd->bqd"}> : () -> ()
    %cst_173 = arith.constant dense<0.000000e+00> : vector<2x8x8xf32>
    %516 = tpu.matmul %514, %515, %cst_173 {dimension_numbers = #tpu.dot_dimension_numbers<[2], [1], [1], [2], [0, 0, 0, 1, 1, 2], [0], [0]>} : vector<2x8x8xf32>, vector<2x8x8xf32>, vector<2x8x8xf32> -> vector<2x8x8xf32>
    "tpu.trace_stop"() : () -> ()
    %517 = vector.shape_cast %516 : vector<2x8x8xf32> to vector<16x8xf32>
    %518 = vector.extract_strided_slice %492 {offsets = [0, 0], sizes = [8, 32], strides = [1, 1]} : vector<32x32xf32> to vector<8x32xf32>
    %cst_174 = arith.constant dense<0.000000e+00> : vector<16x32xf32>
    %519 = tpu.matmul %517, %518, %cst_174 {dimension_numbers = #tpu.dot_dimension_numbers<[1], [0], [0], [1], [0, 0, 1, 1], [], []>} : vector<16x8xf32>, vector<8x32xf32>, vector<16x32xf32> -> vector<16x32xf32>
    %520 = arith.addf %497, %519 : vector<16x32xf32>
    %521 = vector.extract_strided_slice %494 {offsets = [0, 0, 8], sizes = [2, 8, 8], strides = [1, 1, 1]} : vector<2x8x32xf32> to vector<2x8x8xf32>
    %522 = vector.extract_strided_slice %495 {offsets = [0, 0, 8], sizes = [2, 8, 8], strides = [1, 1, 1]} : vector<2x8x32xf32> to vector<2x8x8xf32>
    "tpu.trace_start"() <{level = 10 : i32, message = "bqd,bkd->bqk"}> : () -> ()
    %cst_175 = arith.constant dense<0.000000e+00> : vector<2x8x8xf32>
    %523 = tpu.matmul %521, %522, %cst_175 {dimension_numbers = #tpu.dot_dimension_numbers<[2], [2], [1], [1], [0, 0, 0, 1, 1, 1], [0], [0]>} : vector<2x8x8xf32>, vector<2x8x8xf32>, vector<2x8x8xf32> -> vector<2x8x8xf32>
    "tpu.trace_stop"() : () -> ()
    %cst_176 = arith.constant 0.353553385 : f32
    %524 = vector.broadcast %cst_176 : f32 to vector<2x8x8xf32>
    %525 = arith.mulf %523, %524 : vector<2x8x8xf32>
    %526 = vector.broadcast %31 : vector<2x1x8xf32> to vector<2x8x8xf32>
    %527 = arith.addf %525, %526 : vector<2x8x8xf32>
    %cst_177 = arith.constant dense<0xFF800000> : vector<2x8xf32>
    %528 = vector.multi_reduction <maximumf>, %527, %cst_177 [2] : vector<2x8x8xf32> to vector<2x8xf32>
    %529 = vector.shape_cast %528 : vector<2x8xf32> to vector<2x8x1xf32>
    %530 = vector.broadcast %529 : vector<2x8x1xf32> to vector<2x8x8xf32>
    %531 = arith.subf %527, %530 : vector<2x8x8xf32>
    %532 = math.exp %531 : vector<2x8x8xf32>
    %cst_178 = arith.constant dense<0.000000e+00> : vector<2x8xf32>
    %533 = vector.multi_reduction <add>, %532, %cst_178 [2] : vector<2x8x8xf32> to vector<2x8xf32>
    %534 = vector.shape_cast %533 : vector<2x8xf32> to vector<2x8x1xf32>
    %535 = tpu.reciprocal %534 {approx = true} : vector<2x8x1xf32> -> vector<2x8x1xf32>
    %536 = vector.broadcast %535 : vector<2x8x1xf32> to vector<2x8x8xf32>
    %537 = arith.mulf %532, %536 : vector<2x8x8xf32>
    %538 = vector.extract_strided_slice %496 {offsets = [0, 0, 8], sizes = [2, 8, 8], strides = [1, 1, 1]} : vector<2x8x32xf32> to vector<2x8x8xf32>
    "tpu.trace_start"() <{level = 10 : i32, message = "bqk,bkd->bqd"}> : () -> ()
    %cst_179 = arith.constant dense<0.000000e+00> : vector<2x8x8xf32>
    %539 = tpu.matmul %537, %538, %cst_179 {dimension_numbers = #tpu.dot_dimension_numbers<[2], [1], [1], [2], [0, 0, 0, 1, 1, 2], [0], [0]>} : vector<2x8x8xf32>, vector<2x8x8xf32>, vector<2x8x8xf32> -> vector<2x8x8xf32>
    "tpu.trace_stop"() : () -> ()
    %540 = vector.shape_cast %539 : vector<2x8x8xf32> to vector<16x8xf32>
    %541 = vector.extract_strided_slice %492 {offsets = [8, 0], sizes = [8, 32], strides = [1, 1]} : vector<32x32xf32> to vector<8x32xf32>
    %cst_180 = arith.constant dense<0.000000e+00> : vector<16x32xf32>
    %542 = tpu.matmul %540, %541, %cst_180 {dimension_numbers = #tpu.dot_dimension_numbers<[1], [0], [0], [1], [0, 0, 1, 1], [], []>} : vector<16x8xf32>, vector<8x32xf32>, vector<16x32xf32> -> vector<16x32xf32>
    %543 = arith.addf %520, %542 : vector<16x32xf32>
    %544 = vector.extract_strided_slice %494 {offsets = [0, 0, 16], sizes = [2, 8, 8], strides = [1, 1, 1]} : vector<2x8x32xf32> to vector<2x8x8xf32>
    %545 = vector.extract_strided_slice %495 {offsets = [0, 0, 16], sizes = [2, 8, 8], strides = [1, 1, 1]} : vector<2x8x32xf32> to vector<2x8x8xf32>
    "tpu.trace_start"() <{level = 10 : i32, message = "bqd,bkd->bqk"}> : () -> ()
    %cst_181 = arith.constant dense<0.000000e+00> : vector<2x8x8xf32>
    %546 = tpu.matmul %544, %545, %cst_181 {dimension_numbers = #tpu.dot_dimension_numbers<[2], [2], [1], [1], [0, 0, 0, 1, 1, 1], [0], [0]>} : vector<2x8x8xf32>, vector<2x8x8xf32>, vector<2x8x8xf32> -> vector<2x8x8xf32>
    "tpu.trace_stop"() : () -> ()
    %cst_182 = arith.constant 0.353553385 : f32
    %547 = vector.broadcast %cst_182 : f32 to vector<2x8x8xf32>
    %548 = arith.mulf %546, %547 : vector<2x8x8xf32>
    %549 = vector.broadcast %31 : vector<2x1x8xf32> to vector<2x8x8xf32>
    %550 = arith.addf %548, %549 : vector<2x8x8xf32>
    %cst_183 = arith.constant dense<0xFF800000> : vector<2x8xf32>
    %551 = vector.multi_reduction <maximumf>, %550, %cst_183 [2] : vector<2x8x8xf32> to vector<2x8xf32>
    %552 = vector.shape_cast %551 : vector<2x8xf32> to vector<2x8x1xf32>
    %553 = vector.broadcast %552 : vector<2x8x1xf32> to vector<2x8x8xf32>
    %554 = arith.subf %550, %553 : vector<2x8x8xf32>
    %555 = math.exp %554 : vector<2x8x8xf32>
    %cst_184 = arith.constant dense<0.000000e+00> : vector<2x8xf32>
    %556 = vector.multi_reduction <add>, %555, %cst_184 [2] : vector<2x8x8xf32> to vector<2x8xf32>
    %557 = vector.shape_cast %556 : vector<2x8xf32> to vector<2x8x1xf32>
    %558 = tpu.reciprocal %557 {approx = true} : vector<2x8x1xf32> -> vector<2x8x1xf32>
    %559 = vector.broadcast %558 : vector<2x8x1xf32> to vector<2x8x8xf32>
    %560 = arith.mulf %555, %559 : vector<2x8x8xf32>
    %561 = vector.extract_strided_slice %496 {offsets = [0, 0, 16], sizes = [2, 8, 8], strides = [1, 1, 1]} : vector<2x8x32xf32> to vector<2x8x8xf32>
    "tpu.trace_start"() <{level = 10 : i32, message = "bqk,bkd->bqd"}> : () -> ()
    %cst_185 = arith.constant dense<0.000000e+00> : vector<2x8x8xf32>
    %562 = tpu.matmul %560, %561, %cst_185 {dimension_numbers = #tpu.dot_dimension_numbers<[2], [1], [1], [2], [0, 0, 0, 1, 1, 2], [0], [0]>} : vector<2x8x8xf32>, vector<2x8x8xf32>, vector<2x8x8xf32> -> vector<2x8x8xf32>
    "tpu.trace_stop"() : () -> ()
    %563 = vector.shape_cast %562 : vector<2x8x8xf32> to vector<16x8xf32>
    %564 = vector.extract_strided_slice %492 {offsets = [16, 0], sizes = [8, 32], strides = [1, 1]} : vector<32x32xf32> to vector<8x32xf32>
    %cst_186 = arith.constant dense<0.000000e+00> : vector<16x32xf32>
    %565 = tpu.matmul %563, %564, %cst_186 {dimension_numbers = #tpu.dot_dimension_numbers<[1], [0], [0], [1], [0, 0, 1, 1], [], []>} : vector<16x8xf32>, vector<8x32xf32>, vector<16x32xf32> -> vector<16x32xf32>
    %566 = arith.addf %543, %565 : vector<16x32xf32>
    %567 = vector.extract_strided_slice %494 {offsets = [0, 0, 24], sizes = [2, 8, 8], strides = [1, 1, 1]} : vector<2x8x32xf32> to vector<2x8x8xf32>
    %568 = vector.extract_strided_slice %495 {offsets = [0, 0, 24], sizes = [2, 8, 8], strides = [1, 1, 1]} : vector<2x8x32xf32> to vector<2x8x8xf32>
    "tpu.trace_start"() <{level = 10 : i32, message = "bqd,bkd->bqk"}> : () -> ()
    %cst_187 = arith.constant dense<0.000000e+00> : vector<2x8x8xf32>
    %569 = tpu.matmul %567, %568, %cst_187 {dimension_numbers = #tpu.dot_dimension_numbers<[2], [2], [1], [1], [0, 0, 0, 1, 1, 1], [0], [0]>} : vector<2x8x8xf32>, vector<2x8x8xf32>, vector<2x8x8xf32> -> vector<2x8x8xf32>
    "tpu.trace_stop"() : () -> ()
    %cst_188 = arith.constant 0.353553385 : f32
    %570 = vector.broadcast %cst_188 : f32 to vector<2x8x8xf32>
    %571 = arith.mulf %569, %570 : vector<2x8x8xf32>
    %572 = vector.broadcast %31 : vector<2x1x8xf32> to vector<2x8x8xf32>
    %573 = arith.addf %571, %572 : vector<2x8x8xf32>
    %cst_189 = arith.constant dense<0xFF800000> : vector<2x8xf32>
    %574 = vector.multi_reduction <maximumf>, %573, %cst_189 [2] : vector<2x8x8xf32> to vector<2x8xf32>
    %575 = vector.shape_cast %574 : vector<2x8xf32> to vector<2x8x1xf32>
    %576 = vector.broadcast %575 : vector<2x8x1xf32> to vector<2x8x8xf32>
    %577 = arith.subf %573, %576 : vector<2x8x8xf32>
    %578 = math.exp %577 : vector<2x8x8xf32>
    %cst_190 = arith.constant dense<0.000000e+00> : vector<2x8xf32>
    %579 = vector.multi_reduction <add>, %578, %cst_190 [2] : vector<2x8x8xf32> to vector<2x8xf32>
    %580 = vector.shape_cast %579 : vector<2x8xf32> to vector<2x8x1xf32>
    %581 = tpu.reciprocal %580 {approx = true} : vector<2x8x1xf32> -> vector<2x8x1xf32>
    %582 = vector.broadcast %581 : vector<2x8x1xf32> to vector<2x8x8xf32>
    %583 = arith.mulf %578, %582 : vector<2x8x8xf32>
    %584 = vector.extract_strided_slice %496 {offsets = [0, 0, 24], sizes = [2, 8, 8], strides = [1, 1, 1]} : vector<2x8x32xf32> to vector<2x8x8xf32>
    "tpu.trace_start"() <{level = 10 : i32, message = "bqk,bkd->bqd"}> : () -> ()
    %cst_191 = arith.constant dense<0.000000e+00> : vector<2x8x8xf32>
    %585 = tpu.matmul %583, %584, %cst_191 {dimension_numbers = #tpu.dot_dimension_numbers<[2], [1], [1], [2], [0, 0, 0, 1, 1, 2], [0], [0]>} : vector<2x8x8xf32>, vector<2x8x8xf32>, vector<2x8x8xf32> -> vector<2x8x8xf32>
    "tpu.trace_stop"() : () -> ()
    %586 = vector.shape_cast %585 : vector<2x8x8xf32> to vector<16x8xf32>
    %587 = vector.extract_strided_slice %492 {offsets = [24, 0], sizes = [8, 32], strides = [1, 1]} : vector<32x32xf32> to vector<8x32xf32>
    %cst_192 = arith.constant dense<0.000000e+00> : vector<16x32xf32>
    %588 = tpu.matmul %586, %587, %cst_192 {dimension_numbers = #tpu.dot_dimension_numbers<[1], [0], [0], [1], [0, 0, 1, 1], [], []>} : vector<16x8xf32>, vector<8x32xf32>, vector<16x32xf32> -> vector<16x32xf32>
    %589 = arith.addf %566, %588 : vector<16x32xf32>
    %590 = vector.broadcast %493 : vector<1x32xf32> to vector<16x32xf32>
    %591 = arith.addf %589, %590 : vector<16x32xf32>
    %592 = arith.addf %476, %591 : vector<16x32xf32>
    %593 = vector.extract_strided_slice %345 {offsets = [7, 0], sizes = [1, 32], strides = [1, 1]} : vector<13x128xf32> to vector<1x32xf32>
    %594 = vector.extract_strided_slice %345 {offsets = [8, 0], sizes = [1, 32], strides = [1, 1]} : vector<13x128xf32> to vector<1x32xf32>
    %cst_193 = arith.constant dense<0.000000e+00> : vector<16xf32>
    %595 = vector.multi_reduction <add>, %592, %cst_193 [1] : vector<16x32xf32> to vector<16xf32>
    %596 = vector.shape_cast %595 : vector<16xf32> to vector<16x1xf32>
    %cst_194 = arith.constant 3.200000e+01 : f32
    %597 = vector.broadcast %cst_194 : f32 to vector<16x1xf32>
    %598 = arith.divf %596, %597 : vector<16x1xf32>
    %599 = vector.broadcast %598 : vector<16x1xf32> to vector<16x32xf32>
    %600 = arith.subf %592, %599 : vector<16x32xf32>
    %601 = arith.mulf %600, %600 : vector<16x32xf32>
    %cst_195 = arith.constant dense<0.000000e+00> : vector<16xf32>
    %602 = vector.multi_reduction <add>, %601, %cst_195 [1] : vector<16x32xf32> to vector<16xf32>
    %603 = vector.shape_cast %602 : vector<16xf32> to vector<16x1xf32>
    %cst_196 = arith.constant 3.200000e+01 : f32
    %604 = vector.broadcast %cst_196 : f32 to vector<16x1xf32>
    %605 = arith.divf %603, %604 : vector<16x1xf32>
    %606 = vector.broadcast %598 : vector<16x1xf32> to vector<16x32xf32>
    %607 = arith.subf %592, %606 : vector<16x32xf32>
    %cst_197 = arith.constant 9.99999974E-6 : f32
    %608 = vector.broadcast %cst_197 : f32 to vector<16x1xf32>
    %609 = arith.addf %605, %608 : vector<16x1xf32>
    %610 = math.rsqrt %609 : vector<16x1xf32>
    %611 = vector.broadcast %610 : vector<16x1xf32> to vector<16x32xf32>
    %612 = arith.mulf %607, %611 : vector<16x32xf32>
    %613 = vector.broadcast %593 : vector<1x32xf32> to vector<16x32xf32>
    %614 = arith.mulf %612, %613 : vector<16x32xf32>
    %615 = vector.broadcast %594 : vector<1x32xf32> to vector<16x32xf32>
    %616 = arith.addf %614, %615 : vector<16x32xf32>
    %c1_198 = arith.constant 1 : index
    %c0_199 = arith.constant 0 : index
    %c0_200 = arith.constant 0 : index
    %617 = vector.load %arg13[%c1_198, %c0_199, %c0_200] : memref<2x32x64xf32, #tpu.memory_space<vmem>>, vector<1x32x64xf32>
    %618 = vector.shape_cast %617 : vector<1x32x64xf32> to vector<32x64xf32>
    %cst_201 = arith.constant dense<0.000000e+00> : vector<16x64xf32>
    %619 = tpu.matmul %616, %618, %cst_201 {dimension_numbers = #tpu.dot_dimension_numbers<[1], [0], [0], [1], [0, 0, 1, 1], [], []>} : vector<16x32xf32>, vector<32x64xf32>, vector<16x64xf32> -> vector<16x64xf32>
    %620 = vector.extract_strided_slice %345 {offsets = [9, 0], sizes = [1, 64], strides = [1, 1]} : vector<13x128xf32> to vector<1x64xf32>
    %621 = vector.broadcast %620 : vector<1x64xf32> to vector<16x64xf32>
    %622 = arith.addf %619, %621 : vector<16x64xf32>
    %cst_202 = arith.constant 0.000000e+00 : f32
    %623 = vector.broadcast %cst_202 : f32 to vector<16x64xf32>
    %624 = arith.maximumf %622, %623 : vector<16x64xf32>
    %c1_203 = arith.constant 1 : index
    %c0_204 = arith.constant 0 : index
    %c0_205 = arith.constant 0 : index
    %625 = vector.load %arg14[%c1_203, %c0_204, %c0_205] : memref<2x64x32xf32, #tpu.memory_space<vmem>>, vector<1x64x32xf32>
    %626 = vector.shape_cast %625 : vector<1x64x32xf32> to vector<64x32xf32>
    %cst_206 = arith.constant dense<0.000000e+00> : vector<16x32xf32>
    %627 = tpu.matmul %624, %626, %cst_206 {dimension_numbers = #tpu.dot_dimension_numbers<[1], [0], [0], [1], [0, 0, 1, 1], [], []>} : vector<16x64xf32>, vector<64x32xf32>, vector<16x32xf32> -> vector<16x32xf32>
    %628 = vector.extract_strided_slice %345 {offsets = [10, 0], sizes = [1, 32], strides = [1, 1]} : vector<13x128xf32> to vector<1x32xf32>
    %629 = vector.broadcast %628 : vector<1x32xf32> to vector<16x32xf32>
    %630 = arith.addf %627, %629 : vector<16x32xf32>
    %631 = arith.addf %616, %630 : vector<16x32xf32>
    %632 = vector.extract_strided_slice %345 {offsets = [11, 0], sizes = [1, 32], strides = [1, 1]} : vector<13x128xf32> to vector<1x32xf32>
    %633 = vector.extract_strided_slice %345 {offsets = [12, 0], sizes = [1, 32], strides = [1, 1]} : vector<13x128xf32> to vector<1x32xf32>
    %cst_207 = arith.constant dense<0.000000e+00> : vector<16xf32>
    %634 = vector.multi_reduction <add>, %631, %cst_207 [1] : vector<16x32xf32> to vector<16xf32>
    %635 = vector.shape_cast %634 : vector<16xf32> to vector<16x1xf32>
    %cst_208 = arith.constant 3.200000e+01 : f32
    %636 = vector.broadcast %cst_208 : f32 to vector<16x1xf32>
    %637 = arith.divf %635, %636 : vector<16x1xf32>
    %638 = vector.broadcast %637 : vector<16x1xf32> to vector<16x32xf32>
    %639 = arith.subf %631, %638 : vector<16x32xf32>
    %640 = arith.mulf %639, %639 : vector<16x32xf32>
    %cst_209 = arith.constant dense<0.000000e+00> : vector<16xf32>
    %641 = vector.multi_reduction <add>, %640, %cst_209 [1] : vector<16x32xf32> to vector<16xf32>
    %642 = vector.shape_cast %641 : vector<16xf32> to vector<16x1xf32>
    %cst_210 = arith.constant 3.200000e+01 : f32
    %643 = vector.broadcast %cst_210 : f32 to vector<16x1xf32>
    %644 = arith.divf %642, %643 : vector<16x1xf32>
    %645 = vector.broadcast %637 : vector<16x1xf32> to vector<16x32xf32>
    %646 = arith.subf %631, %645 : vector<16x32xf32>
    %cst_211 = arith.constant 9.99999974E-6 : f32
    %647 = vector.broadcast %cst_211 : f32 to vector<16x1xf32>
    %648 = arith.addf %644, %647 : vector<16x1xf32>
    %649 = math.rsqrt %648 : vector<16x1xf32>
    %650 = vector.broadcast %649 : vector<16x1xf32> to vector<16x32xf32>
    %651 = arith.mulf %646, %650 : vector<16x32xf32>
    %652 = vector.broadcast %632 : vector<1x32xf32> to vector<16x32xf32>
    %653 = arith.mulf %651, %652 : vector<16x32xf32>
    %654 = vector.broadcast %633 : vector<1x32xf32> to vector<16x32xf32>
    %655 = arith.addf %653, %654 : vector<16x32xf32>
    %656 = vector.shape_cast %18 : vector<16x32xf32> to vector<2x8x32xf32>
    %c0_212 = arith.constant 0 : index
    %c0_213 = arith.constant 0 : index
    %657 = vector.load %arg4[%c0_212, %c0_213] : memref<8x32xf32, #tpu.memory_space<vmem>>, vector<8x32xf32>
    %658 = vector.shape_cast %657 : vector<8x32xf32> to vector<1x8x32xf32>
    %659 = vector.shape_cast %658 : vector<1x8x32xf32> to vector<1x8x32xf32>
    %660 = vector.broadcast %659 : vector<1x8x32xf32> to vector<2x8x32xf32>
    %c0_214 = arith.constant 0 : index
    %c0_215 = arith.constant 0 : index
    %661 = vector.load %arg16[%c0_214, %c0_215] : memref<4x128xf32, #tpu.memory_space<vmem>>, vector<1x128xf32>
    %c1_216 = arith.constant 1 : index
    %c0_217 = arith.constant 0 : index
    %662 = vector.load %arg16[%c1_216, %c0_217] : memref<4x128xf32, #tpu.memory_space<vmem>>, vector<1x128xf32>
    %663 = vector.extract_strided_slice %661 {offsets = [0, 0], sizes = [1, 32], strides = [1, 1]} : vector<1x128xf32> to vector<1x32xf32>
    %664 = vector.extract_strided_slice %661 {offsets = [0, 32], sizes = [1, 32], strides = [1, 1]} : vector<1x128xf32> to vector<1x32xf32>
    %665 = vector.extract_strided_slice %662 {offsets = [0, 0], sizes = [1, 32], strides = [1, 1]} : vector<1x128xf32> to vector<1x32xf32>
    %666 = vector.extract_strided_slice %662 {offsets = [0, 32], sizes = [1, 32], strides = [1, 1]} : vector<1x128xf32> to vector<1x32xf32>
    %667 = vector.broadcast %663 : vector<1x32xf32> to vector<16x32xf32>
    %668 = arith.mulf %667, %655 : vector<16x32xf32>
    %669 = math.tanh %668 : vector<16x32xf32>
    %670 = vector.broadcast %665 : vector<1x32xf32> to vector<16x32xf32>
    %671 = arith.mulf %670, %669 : vector<16x32xf32>
    %cst_218 = arith.constant dense<0.000000e+00> : vector<16xf32>
    %672 = vector.multi_reduction <add>, %671, %cst_218 [1] : vector<16x32xf32> to vector<16xf32>
    %673 = vector.shape_cast %672 : vector<16xf32> to vector<16x1xf32>
    %674 = vector.shape_cast %673 : vector<16x1xf32> to vector<2x8x1xf32>
    %675 = vector.shape_cast %666 : vector<1x32xf32> to vector<1x1x32xf32>
    %676 = vector.shape_cast %675 : vector<1x1x32xf32> to vector<1x1x32xf32>
    %677 = vector.broadcast %676 : vector<1x1x32xf32> to vector<2x8x32xf32>
    %678 = vector.shape_cast %664 : vector<1x32xf32> to vector<1x1x32xf32>
    %679 = vector.broadcast %678 : vector<1x1x32xf32> to vector<2x8x32xf32>
    %680 = arith.mulf %679, %656 : vector<2x8x32xf32>
    %681 = math.tanh %680 : vector<2x8x32xf32>
    "tpu.trace_start"() <{level = 10 : i32, message = "bth,bwh->btw"}> : () -> ()
    %cst_219 = arith.constant dense<0.000000e+00> : vector<2x8x8xf32>
    %682 = tpu.matmul %677, %681, %cst_219 {dimension_numbers = #tpu.dot_dimension_numbers<[2], [2], [1], [1], [0, 0, 0, 1, 1, 1], [0], [0]>} : vector<2x8x32xf32>, vector<2x8x32xf32>, vector<2x8x8xf32> -> vector<2x8x8xf32>
    "tpu.trace_stop"() : () -> ()
    %683 = vector.broadcast %674 : vector<2x8x1xf32> to vector<2x8x8xf32>
    %684 = arith.addf %683, %682 : vector<2x8x8xf32>
    %cst_220 = arith.constant dense<0xFF800000> : vector<2x8xf32>
    %685 = vector.multi_reduction <maximumf>, %684, %cst_220 [2] : vector<2x8x8xf32> to vector<2x8xf32>
    %686 = vector.shape_cast %685 : vector<2x8xf32> to vector<2x8x1xf32>
    %687 = vector.broadcast %686 : vector<2x8x1xf32> to vector<2x8x8xf32>
    %688 = arith.subf %684, %687 : vector<2x8x8xf32>
    %689 = math.exp %688 : vector<2x8x8xf32>
    %cst_221 = arith.constant dense<0.000000e+00> : vector<2x8xf32>
    %690 = vector.multi_reduction <add>, %689, %cst_221 [2] : vector<2x8x8xf32> to vector<2x8xf32>
    %691 = vector.shape_cast %690 : vector<2x8xf32> to vector<2x8x1xf32>
    %692 = tpu.reciprocal %691 {approx = true} : vector<2x8x1xf32> -> vector<2x8x1xf32>
    %693 = vector.broadcast %692 : vector<2x8x1xf32> to vector<2x8x8xf32>
    %694 = arith.mulf %689, %693 : vector<2x8x8xf32>
    "tpu.trace_start"() <{level = 10 : i32, message = "btw,bwh->bth"}> : () -> ()
    %cst_222 = arith.constant dense<0.000000e+00> : vector<2x8x32xf32>
    %695 = tpu.matmul %694, %656, %cst_222 {dimension_numbers = #tpu.dot_dimension_numbers<[2], [1], [1], [2], [0, 0, 0, 1, 1, 2], [0], [0]>} : vector<2x8x8xf32>, vector<2x8x32xf32>, vector<2x8x32xf32> -> vector<2x8x32xf32>
    "tpu.trace_stop"() : () -> ()
    %696 = vector.shape_cast %695 : vector<2x8x32xf32> to vector<16x32xf32>
    %c2 = arith.constant 2 : index
    %c0_223 = arith.constant 0 : index
    %697 = vector.load %arg16[%c2, %c0_223] : memref<4x128xf32, #tpu.memory_space<vmem>>, vector<1x128xf32>
    %c3 = arith.constant 3 : index
    %c0_224 = arith.constant 0 : index
    %698 = vector.load %arg16[%c3, %c0_224] : memref<4x128xf32, #tpu.memory_space<vmem>>, vector<1x128xf32>
    %699 = vector.extract_strided_slice %697 {offsets = [0, 0], sizes = [1, 32], strides = [1, 1]} : vector<1x128xf32> to vector<1x32xf32>
    %700 = vector.extract_strided_slice %697 {offsets = [0, 32], sizes = [1, 32], strides = [1, 1]} : vector<1x128xf32> to vector<1x32xf32>
    %701 = vector.extract_strided_slice %698 {offsets = [0, 0], sizes = [1, 32], strides = [1, 1]} : vector<1x128xf32> to vector<1x32xf32>
    %702 = vector.extract_strided_slice %698 {offsets = [0, 32], sizes = [1, 32], strides = [1, 1]} : vector<1x128xf32> to vector<1x32xf32>
    %703 = vector.broadcast %699 : vector<1x32xf32> to vector<16x32xf32>
    %704 = arith.mulf %703, %655 : vector<16x32xf32>
    %705 = math.tanh %704 : vector<16x32xf32>
    %706 = vector.broadcast %701 : vector<1x32xf32> to vector<16x32xf32>
    %707 = arith.mulf %706, %705 : vector<16x32xf32>
    %cst_225 = arith.constant dense<0.000000e+00> : vector<16xf32>
    %708 = vector.multi_reduction <add>, %707, %cst_225 [1] : vector<16x32xf32> to vector<16xf32>
    %709 = vector.shape_cast %708 : vector<16xf32> to vector<16x1xf32>
    %710 = vector.shape_cast %709 : vector<16x1xf32> to vector<2x8x1xf32>
    %711 = vector.shape_cast %702 : vector<1x32xf32> to vector<1x1x32xf32>
    %712 = vector.shape_cast %711 : vector<1x1x32xf32> to vector<1x1x32xf32>
    %713 = vector.broadcast %712 : vector<1x1x32xf32> to vector<2x8x32xf32>
    %714 = vector.shape_cast %700 : vector<1x32xf32> to vector<1x1x32xf32>
    %715 = vector.broadcast %714 : vector<1x1x32xf32> to vector<2x8x32xf32>
    %716 = arith.mulf %715, %660 : vector<2x8x32xf32>
    %717 = math.tanh %716 : vector<2x8x32xf32>
    "tpu.trace_start"() <{level = 10 : i32, message = "bth,bwh->btw"}> : () -> ()
    %cst_226 = arith.constant dense<0.000000e+00> : vector<2x8x8xf32>
    %718 = tpu.matmul %713, %717, %cst_226 {dimension_numbers = #tpu.dot_dimension_numbers<[2], [2], [1], [1], [0, 0, 0, 1, 1, 1], [0], [0]>} : vector<2x8x32xf32>, vector<2x8x32xf32>, vector<2x8x8xf32> -> vector<2x8x8xf32>
    "tpu.trace_stop"() : () -> ()
    %719 = vector.broadcast %710 : vector<2x8x1xf32> to vector<2x8x8xf32>
    %720 = arith.addf %719, %718 : vector<2x8x8xf32>
    %cst_227 = arith.constant dense<0xFF800000> : vector<2x8xf32>
    %721 = vector.multi_reduction <maximumf>, %720, %cst_227 [2] : vector<2x8x8xf32> to vector<2x8xf32>
    %722 = vector.shape_cast %721 : vector<2x8xf32> to vector<2x8x1xf32>
    %723 = vector.broadcast %722 : vector<2x8x1xf32> to vector<2x8x8xf32>
    %724 = arith.subf %720, %723 : vector<2x8x8xf32>
    %725 = math.exp %724 : vector<2x8x8xf32>
    %cst_228 = arith.constant dense<0.000000e+00> : vector<2x8xf32>
    %726 = vector.multi_reduction <add>, %725, %cst_228 [2] : vector<2x8x8xf32> to vector<2x8xf32>
    %727 = vector.shape_cast %726 : vector<2x8xf32> to vector<2x8x1xf32>
    %728 = tpu.reciprocal %727 {approx = true} : vector<2x8x1xf32> -> vector<2x8x1xf32>
    %729 = vector.broadcast %728 : vector<2x8x1xf32> to vector<2x8x8xf32>
    %730 = arith.mulf %725, %729 : vector<2x8x8xf32>
    "tpu.trace_start"() <{level = 10 : i32, message = "btw,bwh->bth"}> : () -> ()
    %cst_229 = arith.constant dense<0.000000e+00> : vector<2x8x32xf32>
    %731 = tpu.matmul %730, %660, %cst_229 {dimension_numbers = #tpu.dot_dimension_numbers<[2], [1], [1], [2], [0, 0, 0, 1, 1, 2], [0], [0]>} : vector<2x8x8xf32>, vector<2x8x32xf32>, vector<2x8x32xf32> -> vector<2x8x32xf32>
    "tpu.trace_stop"() : () -> ()
    %732 = vector.shape_cast %731 : vector<2x8x32xf32> to vector<16x32xf32>
    %c0_230 = arith.constant 0 : index
    %c0_231 = arith.constant 0 : index
    %733 = vector.load %arg17[%c0_230, %c0_231] : memref<96x32xf32, #tpu.memory_space<vmem>>, vector<96x32xf32>
    %734 = vector.extract_strided_slice %733 {offsets = [0, 0], sizes = [32, 32], strides = [1, 1]} : vector<96x32xf32> to vector<32x32xf32>
    %cst_232 = arith.constant dense<0.000000e+00> : vector<16x32xf32>
    %735 = tpu.matmul %655, %734, %cst_232 {dimension_numbers = #tpu.dot_dimension_numbers<[1], [0], [0], [1], [0, 0, 1, 1], [], []>} : vector<16x32xf32>, vector<32x32xf32>, vector<16x32xf32> -> vector<16x32xf32>
    %736 = vector.extract_strided_slice %733 {offsets = [32, 0], sizes = [32, 32], strides = [1, 1]} : vector<96x32xf32> to vector<32x32xf32>
    %cst_233 = arith.constant dense<0.000000e+00> : vector<16x32xf32>
    %737 = tpu.matmul %696, %736, %cst_233 {dimension_numbers = #tpu.dot_dimension_numbers<[1], [0], [0], [1], [0, 0, 1, 1], [], []>} : vector<16x32xf32>, vector<32x32xf32>, vector<16x32xf32> -> vector<16x32xf32>
    %738 = arith.addf %735, %737 : vector<16x32xf32>
    %739 = vector.extract_strided_slice %733 {offsets = [64, 0], sizes = [32, 32], strides = [1, 1]} : vector<96x32xf32> to vector<32x32xf32>
    %cst_234 = arith.constant dense<0.000000e+00> : vector<16x32xf32>
    %740 = tpu.matmul %732, %739, %cst_234 {dimension_numbers = #tpu.dot_dimension_numbers<[1], [0], [0], [1], [0, 0, 1, 1], [], []>} : vector<16x32xf32>, vector<32x32xf32>, vector<16x32xf32> -> vector<16x32xf32>
    %741 = arith.addf %738, %740 : vector<16x32xf32>
    %742 = math.tanh %741 : vector<16x32xf32>
    "tpu.trace_start"() <{level = 10 : i32, message = "nd,vd->nv"}> : () -> ()
    %cst_235 = arith.constant dense<0.000000e+00> : vector<16x128xf32>
    %743 = tpu.matmul %742, %0, %cst_235 {dimension_numbers = #tpu.dot_dimension_numbers<[1], [1], [0], [0], [0, 0, 1, 0], [], []>} : vector<16x32xf32>, vector<128x32xf32>, vector<16x128xf32> -> vector<16x128xf32>
    "tpu.trace_stop"() : () -> ()
    %c0_236 = arith.constant 0 : index
    %c0_237 = arith.constant 0 : index
    %744 = vector.load %arg18[%c0_236, %c0_237] : memref<16x128xf32, #tpu.memory_space<vmem>>, vector<16x128xf32>
    tpu.vector_store %arg18[%c0_236, %c0_237], %743 {strides = array<i32>} : memref<16x128xf32, #tpu.memory_space<vmem>>, vector<16x128xf32>,
    %cst_238 = arith.constant dense<0xFF800000> : vector<16xf32>
    %745 = vector.multi_reduction <maximumf>, %743, %cst_238 [1] : vector<16x128xf32> to vector<16xf32>
    %746 = vector.shape_cast %745 : vector<16xf32> to vector<16x1xf32>
    %747 = tpu.iota {dimensions = array<i32: 1>} : vector<16x128xi32>
    %748 = arith.sitofp %747 : vector<16x128xi32> to vector<16x128xf32>
    %749 = vector.broadcast %746 : vector<16x1xf32> to vector<16x128xf32>
    %750 = arith.cmpf oge, %743, %749 : vector<16x128xf32>
    %cst_239 = arith.constant 1.280000e+02 : f32
    %751 = vector.broadcast %cst_239 : f32 to vector<16x128xf32>
    %752 = arith.select %750, %748, %751 : vector<16x128xi1>, vector<16x128xf32>
    %cst_240 = arith.constant dense<0x7F800000> : vector<16xf32>
    %753 = vector.multi_reduction <minimumf>, %752, %cst_240 [1] : vector<16x128xf32> to vector<16xf32>
    %754 = vector.shape_cast %753 : vector<16xf32> to vector<16x1xf32>
    %755 = arith.fptosi %754 : vector<16x1xf32> to vector<16x1xi32>
    %c0_241 = arith.constant 0 : index
    %c0_242 = arith.constant 0 : index
    %756 = vector.load %arg19[%c0_241, %c0_242] : memref<16x1xi32, #tpu.memory_space<vmem>>, vector<16x1xi32>
    tpu.vector_store %arg19[%c0_241, %c0_242], %755 {strides = array<i32>} : memref<16x1xi32, #tpu.memory_space<vmem>>, vector<16x1xi32>,
    return
  }
}

</mosaic_0001>

<llo_original>
// kernel: tpu_custom_call.1
$region0: #{tpu_custom_call.1}
  #allocation0 [shape = 'u32[]', space=smem, size = 0x4, offset = 0x4, fixed_abs, tag = 'smem constant byte address 0x4 - core index']
  #allocation1 [shape = 'u32[144,128]{1,0:T(1,128)}', space=vmem, size = 0x12000, scoped, tag = 'internal scratch']
  %s0 = inlined_call_operand.vmem [shape: s32[16,1], index: 0, kind: input, shape index: {}]
  %s1 = inlined_call_operand.vmem [shape: s32[16,1], index: 1, kind: input, shape index: {}]
  %s2 = inlined_call_operand.vmem [shape: f32[128,32], index: 2, kind: input, shape index: {}]
  %s3 = inlined_call_operand.vmem [shape: f32[16,32], index: 3, kind: input, shape index: {}]
  %s4 = inlined_call_operand.hbm [shape: f32[8,32], index: 4, kind: input, shape index: {}]
  %s5 = inlined_call_operand.vmem [shape: f32[16,32], index: 5, kind: input, shape index: {}]
  %s6 = inlined_call_operand.vmem [shape: f32[2,8,8], index: 6, kind: input, shape index: {}]
  %s7 = inlined_call_operand.hbm [shape: f32[2,1,8], index: 7, kind: input, shape index: {}]
  %s8 = inlined_call_operand.vmem [shape: f32[2,32,96], index: 8, kind: input, shape index: {}]
  %s9 = inlined_call_operand.vmem [shape: f32[2,32,32], index: 9, kind: input, shape index: {}]
  %s10 = inlined_call_operand.vmem [shape: f32[2,32,32], index: 10, kind: input, shape index: {}]
  %s11 = inlined_call_operand.vmem [shape: f32[2,32,64], index: 11, kind: input, shape index: {}]
  %s12 = inlined_call_operand.vmem [shape: f32[2,32,32], index: 12, kind: input, shape index: {}]
  %s13 = inlined_call_operand.vmem [shape: f32[2,32,64], index: 13, kind: input, shape index: {}]
  %s14 = inlined_call_operand.vmem [shape: f32[2,64,32], index: 14, kind: input, shape index: {}]
  %s15 = inlined_call_operand.vmem [shape: f32[2,13,128], index: 15, kind: input, shape index: {}]
  %s16 = inlined_call_operand.vmem [shape: f32[4,128], index: 16, kind: input, shape index: {}]
  %s17 = inlined_call_operand.vmem [shape: f32[96,32], index: 17, kind: input, shape index: {}]
  %s18 = inlined_call_operand.hbm [shape: f32[16,128], index: 18, kind: output, shape index: {0}]
  %s19 = inlined_call_operand.vmem [shape: s32[16,1], index: 19, kind: output, shape index: {1}]
  %20 = xla_tuple %s18, %s19
  %s21 = sld [smem:[#allocation0]]
  $region98: #{tpu_custom_call.1} parent=0
    _
  %s23 = ssub.s32 1, %s21
  %s24 = scalar_select 0, %s23, %s21
  $region1: #{tpu_custom_call.1} parent=0
    #allocation2 [shape = 'u8[4096]{0}', space=vmem, size = 0x1000, scoped, tag = 'input window, operand 4, single buffered']
    #allocation3 [shape = 's32[1]{0}', space=sflag, size = 0x4, scoped, tag = 'scoped memory for tpu_custom_call.1']
    #allocation4 [shape = 's32[1]{0}', space=sflag, size = 0x4, scoped, tag = 'scoped memory for tpu_custom_call.1']
    #allocation5 [shape = 'u8[1024]{0}', space=vmem, size = 0x400, scoped, tag = 'input window, operand 7, single buffered']
    #allocation6 [shape = 's32[1]{0}', space=sflag, size = 0x4, scoped, tag = 'scoped memory for tpu_custom_call.1']
    #allocation7 [shape = 'u8[8192]{0}', space=vmem, size = 0x2000, scoped, tag = 'output window, operand 0, single buffered']
    %25 = vsyncpa [#allocation3], 0
    %26 = vsyncpa [#allocation6], 0
    %27 = vsyncpa [#allocation4], 0
    // Predicated region
    $region2: #{tpu_custom_call.1} parent=1 // pred_check
      _
    $region3: #{tpu_custom_call.1} parent=1 // pred_check_branch
      %29 = sbr.rel (0) target = $region5
    $region4: #{tpu_custom_call.1} parent=1 // pred_region
      _
    $region5: #{tpu_custom_call.1} parent=1 // pred_fallthru
      _
    // Predicated region
    $region6: #{tpu_custom_call.1} parent=1 // pred_check
      _
    $region7: #{tpu_custom_call.1} parent=1 // pred_check_branch
      %31 = sbr.rel (0) target = $region9
    $region8: #{tpu_custom_call.1} parent=1 // pred_region
      _
    $region9: #{tpu_custom_call.1} parent=1 // pred_fallthru
      _
    // Predicated region
    $region10: #{tpu_custom_call.1} parent=1 // pred_check
      _
    $region11: #{tpu_custom_call.1} parent=1 // pred_check_branch
      %33 = sbr.rel (0) target = $region13
    $region12: #{tpu_custom_call.1} parent=1 // pred_region
      _
    $region13: #{tpu_custom_call.1} parent=1 // pred_fallthru
      _
    // Predicated region
    $region14: #{tpu_custom_call.1} parent=1 // pred_check
      _
    $region15: #{tpu_custom_call.1} parent=1 // pred_check_branch
      %35 = sbr.rel (0) target = $region17
    $region16: #{tpu_custom_call.1} parent=1 // pred_region
      _
    $region17: #{tpu_custom_call.1} parent=1 // pred_fallthru
      _
    // Predicated region
    $region18: #{tpu_custom_call.1} parent=1 // pred_check
      _
    $region19: #{tpu_custom_call.1} parent=1 // pred_check_branch
      %37 = sbr.rel (0) target = $region21
    $region20: #{tpu_custom_call.1} parent=1 // pred_region
      %s39 = ssub.s32 128, 128
      %40 = vsyncadd [#allocation3], %s39
      %s42 = sshll.u32 [#allocation2], 4
      %s43 = int_to_ptr.vmem [resolvable:$true] %s42
      %45 = dma.hbm_to_vmem [thread:$0]  %s4, 128, %s43, [#allocation3]
    $region21: #{tpu_custom_call.1} parent=1 // pred_fallthru
      _
    // Predicated region
    $region22: #{tpu_custom_call.1} parent=1 // pred_check
      _
    $region23: #{tpu_custom_call.1} parent=1 // pred_check_branch
      %47 = sbr.rel (0) target = $region25
    $region24: #{tpu_custom_call.1} parent=1 // pred_region
      _
    $region25: #{tpu_custom_call.1} parent=1 // pred_fallthru
      _
    // Predicated region
    $region26: #{tpu_custom_call.1} parent=1 // pred_check
      _
    $region27: #{tpu_custom_call.1} parent=1 // pred_check_branch
      %49 = sbr.rel (0) target = $region29
    $region28: #{tpu_custom_call.1} parent=1 // pred_region
      _
    $region29: #{tpu_custom_call.1} parent=1 // pred_fallthru
      _
    // Predicated region
    $region30: #{tpu_custom_call.1} parent=1 // pred_check
      _
    $region31: #{tpu_custom_call.1} parent=1 // pred_check_branch
      %51 = sbr.rel (0) target = $region33
    $region32: #{tpu_custom_call.1} parent=1 // pred_region
      %s53 = ssub.s32 32, 32
      %54 = vsyncadd [#allocation6], %s53
      %s55 = sshll.u32 [#allocation5], 4
      %s56 = int_to_ptr.vmem [resolvable:$true] %s55
      %61 = dma.hbm_to_vmem [thread:$0]  %s7, 32, %s56, [#allocation6], 16, 16, 1
    $region33: #{tpu_custom_call.1} parent=1 // pred_fallthru
      _
    // Predicated region
    $region34: #{tpu_custom_call.1} parent=1 // pred_check
      _
    $region35: #{tpu_custom_call.1} parent=1 // pred_check_branch
      %63 = sbr.rel (0) target = $region37
    $region36: #{tpu_custom_call.1} parent=1 // pred_region
      _
    $region37: #{tpu_custom_call.1} parent=1 // pred_fallthru
      _
    // Predicated region
    $region38: #{tpu_custom_call.1} parent=1 // pred_check
      _
    $region39: #{tpu_custom_call.1} parent=1 // pred_check_branch
      %65 = sbr.rel (0) target = $region41
    $region40: #{tpu_custom_call.1} parent=1 // pred_region
      _
    $region41: #{tpu_custom_call.1} parent=1 // pred_fallthru
      _
    // Predicated region
    $region42: #{tpu_custom_call.1} parent=1 // pred_check
      _
    $region43: #{tpu_custom_call.1} parent=1 // pred_check_branch
      %67 = sbr.rel (0) target = $region45
    $region44: #{tpu_custom_call.1} parent=1 // pred_region
      _
    $region45: #{tpu_custom_call.1} parent=1 // pred_fallthru
      _
    // Predicated region
    $region46: #{tpu_custom_call.1} parent=1 // pred_check
      _
    $region47: #{tpu_custom_call.1} parent=1 // pred_check_branch
      %69 = sbr.rel (0) target = $region49
    $region48: #{tpu_custom_call.1} parent=1 // pred_region
      _
    $region49: #{tpu_custom_call.1} parent=1 // pred_fallthru
      _
    // Predicated region
    $region50: #{tpu_custom_call.1} parent=1 // pred_check
      _
    $region51: #{tpu_custom_call.1} parent=1 // pred_check_branch
      %71 = sbr.rel (0) target = $region53
    $region52: #{tpu_custom_call.1} parent=1 // pred_region
      _
    $region53: #{tpu_custom_call.1} parent=1 // pred_fallthru
      _
    // Predicated region
    $region54: #{tpu_custom_call.1} parent=1 // pred_check
      _
    $region55: #{tpu_custom_call.1} parent=1 // pred_check_branch
      %73 = sbr.rel (0) target = $region57
    $region56: #{tpu_custom_call.1} parent=1 // pred_region
      _
    $region57: #{tpu_custom_call.1} parent=1 // pred_fallthru
      _
    // Predicated region
    $region58: #{tpu_custom_call.1} parent=1 // pred_check
      _
    $region59: #{tpu_custom_call.1} parent=1 // pred_check_branch
      %75 = sbr.rel (0) target = $region61
    $region60: #{tpu_custom_call.1} parent=1 // pred_region
      _
    $region61: #{tpu_custom_call.1} parent=1 // pred_fallthru
      _
    // Predicated region
    $region62: #{tpu_custom_call.1} parent=1 // pred_check
      _
    $region63: #{tpu_custom_call.1} parent=1 // pred_check_branch
      %77 = sbr.rel (0) target = $region65
    $region64: #{tpu_custom_call.1} parent=1 // pred_region
      _
    $region65: #{tpu_custom_call.1} parent=1 // pred_fallthru
      _
    // Predicated region
    $region66: #{tpu_custom_call.1} parent=1 // pred_check
      _
    $region67: #{tpu_custom_call.1} parent=1 // pred_check_branch
      %79 = sbr.rel (0) target = $region69
    $region68: #{tpu_custom_call.1} parent=1 // pred_region
      _
    $region69: #{tpu_custom_call.1} parent=1 // pred_fallthru
      _
    // Predicated region
    $region70: #{tpu_custom_call.1} parent=1 // pred_check
      _
    $region71: #{tpu_custom_call.1} parent=1 // pred_check_branch
      %81 = sbr.rel (0) target = $region73
    $region72: #{tpu_custom_call.1} parent=1 // pred_region
      _
    $region73: #{tpu_custom_call.1} parent=1 // pred_fallthru
      _
    // Predicated region
    $region74: #{tpu_custom_call.1} parent=1 // pred_check
      _
    $region75: #{tpu_custom_call.1} parent=1 // pred_check_branch
      %83 = sbr.rel (0) target = $region77
    $region76: #{tpu_custom_call.1} parent=1 // pred_region
      %84 = dma.done [#allocation3], 128
    $region77: #{tpu_custom_call.1} parent=1 // pred_fallthru
      _
    // Predicated region
    $region78: #{tpu_custom_call.1} parent=1 // pred_check
      _
    $region79: #{tpu_custom_call.1} parent=1 // pred_check_branch
      %86 = sbr.rel (0) target = $region81
    $region80: #{tpu_custom_call.1} parent=1 // pred_region
      %87 = dma.done [#allocation6], 32
    $region81: #{tpu_custom_call.1} parent=1 // pred_fallthru
      _
    %v88 = vld [vmem:[%s2] sm:$0xff]
    %v89 = vld [vmem:[%s2 + $0x8] sm:$0xff]
    %v90 = vld [vmem:[%s2 + $0x10] sm:$0xff]
    %v91 = vld [vmem:[%s2 + $0x18] sm:$0xff]
    %v92 = vld [vmem:[%s2 + $0x20] sm:$0xff]
    %v93 = vld [vmem:[%s2 + $0x28] sm:$0xff]
    %v94 = vld [vmem:[%s2 + $0x30] sm:$0xff]
    %v95 = vld [vmem:[%s2 + $0x38] sm:$0xff]
    %v96 = vld [vmem:[%s2 + $0x40] sm:$0xff]
    %v97 = vld [vmem:[%s2 + $0x48] sm:$0xff]
    %v98 = vld [vmem:[%s2 + $0x50] sm:$0xff]
    %v99 = vld [vmem:[%s2 + $0x58] sm:$0xff]
    %v100 = vld [vmem:[%s2 + $0x60] sm:$0xff]
    %v101 = vld [vmem:[%s2 + $0x68] sm:$0xff]
    %v102 = vld [vmem:[%s2 + $0x70] sm:$0xff]
    %v103 = vld [vmem:[%s2 + $0x78] sm:$0xff]
    %v104 = vlaneseq
    %v105 = vand.u32 %v104, 127
    %v106 = vld [vmem:[%s0] sm:$0xff]
    %v107 = vld [vmem:[%s0 + $0x8] sm:$0xff]
    %108 = vset.pattern.permute.xlu0 0
    %109 = vperm.xlu0 %108, %v106
    %v110 = vpop.permute.xlu0 %109
    %111 = vset.pattern.permute.xlu0 0
    %112 = vperm.xlu0 %111, %v107
    %v113 = vpop.permute.xlu0 %112
    %vm114 = vcmp.eq.s32.totalorder %v110, %v105
    %vm115 = vcmp.eq.s32.totalorder %v113, %v105
    %v116 = vsel %vm114, 1, 0
    %v117 = vsel %vm115, 1, 0
    %v118 = vcvt.s32.f32 %v116
    %v119 = vcvt.s32.f32 %v117
    %120 = vmatprep.subr.mxu0 0.0
    %121 = vmatpush1.msra.mxu0 %v103
    %122 = vmatprep.subr.mxu0 0.0
    %123 = vmatpush1.msra.mxu0 %v102
    %124 = vmatprep.subr.mxu0 0.0
    %125 = vmatpush1.msra.mxu0 %v101
    %126 = vmatprep.subr.mxu0 0.0
    %127 = vmatpush1.msra.mxu0 %v100
    %128 = vmatprep.subr.mxu0 0.0
    %129 = vmatpush1.msra.mxu0 %v99
    %130 = vmatprep.subr.mxu0 0.0
    %131 = vmatpush1.msra.mxu0 %v98
    %132 = vmatprep.subr.mxu0 0.0
    %133 = vmatpush1.msra.mxu0 %v97
    %134 = vmatprep.subr.mxu0 0.0
    %135 = vmatpush1.msra.mxu0 %v96
    %136 = vmatprep.subr.mxu0 0.0
    %137 = vmatpush1.msra.mxu0 %v95
    %138 = vmatprep.subr.mxu0 0.0
    %139 = vmatpush1.msra.mxu0 %v94
    %140 = vmatprep.subr.mxu0 0.0
    %141 = vmatpush1.msra.mxu0 %v93
    %142 = vmatprep.subr.mxu0 0.0
    %143 = vmatpush1.msra.mxu0 %v92
    %144 = vmatprep.subr.mxu0 0.0
    %145 = vmatpush1.msra.mxu0 %v91
    %146 = vmatprep.subr.mxu0 0.0
    %147 = vmatpush1.msra.mxu0 %v90
    %148 = vmatprep.subr.mxu0 0.0
    %149 = vmatpush1.msra.mxu0 %v89
    %150 = vmatprep.subr.mxu0 0.0
    %151 = vmatpush1.msra.mxu0 %v88
    %152 = vmatprep.subr.mxu0 0.0
    %153 = vmatpush2.msra.mxu0 0.0
    %154 = vmatprep.subr.mxu0 0.0
    %155 = vmatpush2.msra.mxu0 0.0
    %156 = vmatprep.subr.mxu0 0.0
    %157 = vmatpush2.msra.mxu0 0.0
    %158 = vmatprep.subr.mxu0 0.0
    %159 = vmatpush2.msra.mxu0 0.0
    %160 = vmatprep.subr.mxu0 0.0
    %161 = vmatpush2.msra.mxu0 0.0
    %162 = vmatprep.subr.mxu0 0.0
    %163 = vmatpush2.msra.mxu0 0.0
    %164 = vmatprep.subr.mxu0 0.0
    %165 = vmatpush2.msra.mxu0 0.0
    %166 = vmatprep.subr.mxu0 0.0
    %167 = vmatpush2.msra.mxu0 0.0
    %168 = vmatprep.subr.mxu0 0.0
    %169 = vmatpush2.msra.mxu0 0.0
    %170 = vmatprep.subr.mxu0 0.0
    %171 = vmatpush2.msra.mxu0 0.0
    %172 = vmatprep.subr.mxu0 0.0
    %173 = vmatpush2.msra.mxu0 0.0
    %174 = vmatprep.subr.mxu0 0.0
    %175 = vmatpush2.msra.mxu0 0.0
    %176 = vmatprep.subr.mxu0 0.0
    %177 = vmatpush2.msra.mxu0 0.0
    %178 = vmatprep.subr.mxu0 0.0
    %179 = vmatpush2.msra.mxu0 0.0
    %180 = vmatprep.subr.mxu0 0.0
    %181 = vmatpush2.msra.mxu0 0.0
    %182 = vmatprep.subr.mxu0 0.0
    %183 = vmatpush2.msra.mxu0 0.0
    %184 = vmatprep.mubr.f32.mxu0 0.0
    %185 = vmatmul.mubr.f32.gmra.mxu0 %v118
    %v186 = vpop.f32.mrf.mxu0
    %v187 = vadd.f32 0.0, %v186
    %v188 = vpop.f32.mrf.mxu0
    %189 = vmatprep.mubr.f32.mxu0 0.0
    %190 = vmatmul.mubr.f32.gmra.mxu0 %v119
    %v191 = vpop.f32.mrf.mxu0
    %v192 = vadd.f32 0.0, %v191
    %v193 = vpop.f32.mrf.mxu0
    %194 = vdwg.mxu0
    %v195 = vmul.f32 %v187, 5.656854
    %v196 = vmul.f32 %v192, 5.656854
    %v197 = vld [vmem:[%s3] sm:$0xff]
    %v198 = vld [vmem:[%s3 + $0x8] sm:$0xff]
    %v199 = vadd.f32 %v195, %v197
    %v200 = vadd.f32 %v196, %v198
    %v201 = vld [vmem:[%s1] sm:$0xff]
    %v202 = vld [vmem:[%s1 + $0x8] sm:$0xff]
    %203 = vset.pattern.permute.xlu0 0
    %204 = vperm.xlu0 %203, %v201
    %v205 = vpop.permute.xlu0 %204
    %206 = vset.pattern.permute.xlu0 0
    %207 = vperm.xlu0 %206, %v202
    %v208 = vpop.permute.xlu0 %207
    %vm209 = vcmp.eq.s32.totalorder %v205, %v105
    %vm210 = vcmp.eq.s32.totalorder %v208, %v105
    %v211 = vsel %vm209, 1, 0
    %v212 = vsel %vm210, 1, 0
    %v213 = vcvt.s32.f32 %v211
    %v214 = vcvt.s32.f32 %v212
    %215 = vmatprep.subr.mxu0 0.0
    %216 = vmatpush1.msra.mxu0 %v103
    %217 = vmatprep.subr.mxu0 0.0
    %218 = vmatpush1.msra.mxu0 %v102
    %219 = vmatprep.subr.mxu0 0.0
    %220 = vmatpush1.msra.mxu0 %v101
    %221 = vmatprep.subr.mxu0 0.0
    %222 = vmatpush1.msra.mxu0 %v100
    %223 = vmatprep.subr.mxu0 0.0
    %224 = vmatpush1.msra.mxu0 %v99
    %225 = vmatprep.subr.mxu0 0.0
    %226 = vmatpush1.msra.mxu0 %v98
    %227 = vmatprep.subr.mxu0 0.0
    %228 = vmatpush1.msra.mxu0 %v97
    %229 = vmatprep.subr.mxu0 0.0
    %230 = vmatpush1.msra.mxu0 %v96
    %231 = vmatprep.subr.mxu0 0.0
    %232 = vmatpush1.msra.mxu0 %v95
    %233 = vmatprep.subr.mxu0 0.0
    %234 = vmatpush1.msra.mxu0 %v94
    %235 = vmatprep.subr.mxu0 0.0
    %236 = vmatpush1.msra.mxu0 %v93
    %237 = vmatprep.subr.mxu0 0.0
    %238 = vmatpush1.msra.mxu0 %v92
    %239 = vmatprep.subr.mxu0 0.0
    %240 = vmatpush1.msra.mxu0 %v91
    %241 = vmatprep.subr.mxu0 0.0
    %242 = vmatpush1.msra.mxu0 %v90
    %243 = vmatprep.subr.mxu0 0.0
    %244 = vmatpush1.msra.mxu0 %v89
    %245 = vmatprep.subr.mxu0 0.0
    %246 = vmatpush1.msra.mxu0 %v88
    %247 = vmatprep.subr.mxu0 0.0
    %248 = vmatpush2.msra.mxu0 0.0
    %249 = vmatprep.subr.mxu0 0.0
    %250 = vmatpush2.msra.mxu0 0.0
    %251 = vmatprep.subr.mxu0 0.0
    %252 = vmatpush2.msra.mxu0 0.0
    %253 = vmatprep.subr.mxu0 0.0
    %254 = vmatpush2.msra.mxu0 0.0
    %255 = vmatprep.subr.mxu0 0.0
    %256 = vmatpush2.msra.mxu0 0.0
    %257 = vmatprep.subr.mxu0 0.0
    %258 = vmatpush2.msra.mxu0 0.0
    %259 = vmatprep.subr.mxu0 0.0
    %260 = vmatpush2.msra.mxu0 0.0
    %261 = vmatprep.subr.mxu0 0.0
    %262 = vmatpush2.msra.mxu0 0.0
    %263 = vmatprep.subr.mxu0 0.0
    %264 = vmatpush2.msra.mxu0 0.0
    %265 = vmatprep.subr.mxu0 0.0
    %266 = vmatpush2.msra.mxu0 0.0
    %267 = vmatprep.subr.mxu0 0.0
    %268 = vmatpush2.msra.mxu0 0.0
    %269 = vmatprep.subr.mxu0 0.0
    %270 = vmatpush2.msra.mxu0 0.0
    %271 = vmatprep.subr.mxu0 0.0
    %272 = vmatpush2.msra.mxu0 0.0
    %273 = vmatprep.subr.mxu0 0.0
    %274 = vmatpush2.msra.mxu0 0.0
    %275 = vmatprep.subr.mxu0 0.0
    %276 = vmatpush2.msra.mxu0 0.0
    %277 = vmatprep.subr.mxu0 0.0
    %278 = vmatpush2.msra.mxu0 0.0
    %279 = vmatprep.mubr.f32.mxu0 0.0
    %280 = vmatmul.mubr.f32.gmra.mxu0 %v213
    %v281 = vpop.f32.mrf.mxu0
    %v282 = vadd.f32 0.0, %v281
    %v283 = vpop.f32.mrf.mxu0
    %284 = vmatprep.mubr.f32.mxu0 0.0
    %285 = vmatmul.mubr.f32.gmra.mxu0 %v214
    %v286 = vpop.f32.mrf.mxu0
    %v287 = vadd.f32 0.0, %v286
    %v288 = vpop.f32.mrf.mxu0
    %289 = vdwg.mxu0
    %v290 = vld [vmem:[%s5] sm:$0xff]
    %v291 = vld [vmem:[%s5 + $0x8] sm:$0xff]
    %v292 = vld [vmem:[%s6] sm:$0xff]
    %v293 = vld [vmem:[%s6 + $0x8] sm:$0xff]
    %vm294 = vcmp.eq.f32.partialorder %v292, 0.0
    %vm295 = vcmp.eq.f32.partialorder %v293, 0.0
    %v296 = vsel %vm294, -1e+10, 0.0
    %v297 = vsel %vm295, -1e+10, 0.0
    %v298 = vld [vmem:[#allocation5] sm:$0x1]
    %v299 = vld [vmem:[#allocation5 + $0x1] sm:$0x1]
    %vm300 = vcmp.eq.f32.partialorder %v298, 0.0
    %vm301 = vcmp.eq.f32.partialorder %v299, 0.0
    %v302 = vsel %vm300, -1e+10, 0.0
    %v303 = vsel %vm301, -1e+10, 0.0
    %v304 = vld [vmem:[%s15] sm:$0xff]
    %v305 = vld [vmem:[%s15 + $0x8] sm:$0x1f]
    %v306 = vld [vmem:[%s8] sm:$0xff]
    %v307 = vld [vmem:[%s8 + $0x8] sm:$0xff]
    %v308 = vld [vmem:[%s8 + $0x10] sm:$0xff]
    %v309 = vld [vmem:[%s8 + $0x18] sm:$0xff]
    %v310 = vlaneseq
    %v311 = vshrl.u32 %v310, 7
    %v312 = vsub.s32 0, %v311
    %v313 = vrot.slane %v304, %v312
    %vm314 = vcmask 261120
    %v316 = vsel %vm314, %v199, 0
    %v319 = vsel %vm314, %v200, 0
    %321 = vmatprep.subr.mxu0 0.0
    %322 = vmatpush1.msra.mxu0 0.0
    %323 = vmatprep.subr.mxu0 0.0
    %324 = vmatpush1.msra.mxu0 0.0
    %325 = vmatprep.subr.mxu0 0.0
    %326 = vmatpush1.msra.mxu0 0.0
    %327 = vmatprep.subr.mxu0 0.0
    %328 = vmatpush1.msra.mxu0 0.0
    %329 = vmatprep.subr.mxu0 0.0
    %330 = vmatpush1.msra.mxu0 0.0
    %331 = vmatprep.subr.mxu0 0.0
    %332 = vmatpush1.msra.mxu0 0.0
    %333 = vmatprep.subr.mxu0 0.0
    %334 = vmatpush1.msra.mxu0 0.0
    %335 = vmatprep.subr.mxu0 0.0
    %336 = vmatpush1.msra.mxu0 0.0
    %337 = vmatprep.subr.mxu0 0.0
    %338 = vmatpush1.msra.mxu0 0.0
    %339 = vmatprep.subr.mxu0 0.0
    %340 = vmatpush1.msra.mxu0 0.0
    %341 = vmatprep.subr.mxu0 0.0
    %342 = vmatpush1.msra.mxu0 0.0
    %343 = vmatprep.subr.mxu0 0.0
    %344 = vmatpush1.msra.mxu0 0.0
    %345 = vmatprep.subr.mxu0 0.0
    %346 = vmatpush1.msra.mxu0 %v309
    %347 = vmatprep.subr.mxu0 0.0
    %348 = vmatpush1.msra.mxu0 %v308
    %349 = vmatprep.subr.mxu0 0.0
    %350 = vmatpush1.msra.mxu0 %v307
    %351 = vmatprep.subr.mxu0 0.0
    %352 = vmatpush1.msra.mxu0 %v306
    %353 = vmatprep.subr.mxu0 0.0
    %354 = vmatpush2.msra.mxu0 0.0
    %355 = vmatprep.subr.mxu0 0.0
    %356 = vmatpush2.msra.mxu0 0.0
    %357 = vmatprep.subr.mxu0 0.0
    %358 = vmatpush2.msra.mxu0 0.0
    %359 = vmatprep.subr.mxu0 0.0
    %360 = vmatpush2.msra.mxu0 0.0
    %361 = vmatprep.subr.mxu0 0.0
    %362 = vmatpush2.msra.mxu0 0.0
    %363 = vmatprep.subr.mxu0 0.0
    %364 = vmatpush2.msra.mxu0 0.0
    %365 = vmatprep.subr.mxu0 0.0
    %366 = vmatpush2.msra.mxu0 0.0
    %367 = vmatprep.subr.mxu0 0.0
    %368 = vmatpush2.msra.mxu0 0.0
    %369 = vmatprep.subr.mxu0 0.0
    %370 = vmatpush2.msra.mxu0 0.0
    %371 = vmatprep.subr.mxu0 0.0
    %372 = vmatpush2.msra.mxu0 0.0
    %373 = vmatprep.subr.mxu0 0.0
    %374 = vmatpush2.msra.mxu0 0.0
    %375 = vmatprep.subr.mxu0 0.0
    %376 = vmatpush2.msra.mxu0 0.0
    %377 = vmatprep.subr.mxu0 0.0
    %378 = vmatpush2.msra.mxu0 0.0
    %379 = vmatprep.subr.mxu0 0.0
    %380 = vmatpush2.msra.mxu0 0.0
    %381 = vmatprep.subr.mxu0 0.0
    %382 = vmatpush2.msra.mxu0 0.0
    %383 = vmatprep.subr.mxu0 0.0
    %384 = vmatpush2.msra.mxu0 0.0
    %385 = vmatprep.mubr.f32.mxu0 0.0
    %386 = vmatmul.mubr.f32.gmra.mxu0 %v316
    %v387 = vpop.f32.mrf.mxu0
    %v388 = vadd.f32 %v313, %v387
    %v389 = vpop.f32.mrf.mxu0
    %390 = vmatprep.mubr.f32.mxu0 0.0
    %391 = vmatmul.mubr.f32.gmra.mxu0 %v319
    %v392 = vpop.f32.mrf.mxu0
    %v393 = vadd.f32 %v313, %v392
    %v394 = vpop.f32.mrf.mxu0
    %395 = vdwg.mxu0
    %v396 = vld [vmem:[%s9] sm:$0xff]
    %v397 = vld [vmem:[%s9 + $0x8] sm:$0xff]
    %v398 = vld [vmem:[%s9 + $0x10] sm:$0xff]
    %v399 = vld [vmem:[%s9 + $0x18] sm:$0xff]
    %401 = vrot.lane.b32.xlu0 %v388, 96
    %v402 = vpop.permute.xlu0 %401
    %vm403 = vcmask 64512
    %v404 = vsel %vm403, %v388, 0
    %v406 = vsel %vm403, %v402, 0
    %408 = vmatprep.subr.mxu0 0.0
    %409 = vmatpush1.xpose.msra.mxu0 0.0
    %410 = vmatprep.subr.mxu0 0.0
    %411 = vmatpush1.xpose.msra.mxu0 0.0
    %412 = vmatprep.subr.mxu0 0.0
    %413 = vmatpush1.xpose.msra.mxu0 0.0
    %414 = vmatprep.subr.mxu0 0.0
    %415 = vmatpush1.xpose.msra.mxu0 0.0
    %416 = vmatprep.subr.mxu0 0.0
    %417 = vmatpush1.xpose.msra.mxu0 0.0
    %418 = vmatprep.subr.mxu0 0.0
    %419 = vmatpush1.xpose.msra.mxu0 0.0
    %420 = vmatprep.subr.mxu0 0.0
    %421 = vmatpush1.xpose.msra.mxu0 0.0
    %422 = vmatprep.subr.mxu0 0.0
    %423 = vmatpush1.xpose.msra.mxu0 0.0
    %424 = vmatprep.subr.mxu0 0.0
    %425 = vmatpush1.xpose.msra.mxu0 0.0
    %426 = vmatprep.subr.mxu0 0.0
    %427 = vmatpush1.xpose.msra.mxu0 0.0
    %428 = vmatprep.subr.mxu0 0.0
    %429 = vmatpush1.xpose.msra.mxu0 0.0
    %430 = vmatprep.subr.mxu0 0.0
    %431 = vmatpush1.xpose.msra.mxu0 0.0
    %432 = vmatprep.subr.mxu0 0.0
    %433 = vmatpush1.xpose.msra.mxu0 0.0
    %434 = vmatprep.subr.mxu0 0.0
    %435 = vmatpush1.xpose.msra.mxu0 0.0
    %436 = vmatprep.subr.mxu0 0.0
    %437 = vmatpush1.xpose.msra.mxu0 0.0
    %438 = vmatprep.subr.mxu0 0.0
    %439 = vmatpush1.xpose.msra.mxu0 %v406
    %440 = vmatprep.subr.mxu0 0.0
    %441 = vmatpush2.xpose.msra.mxu0 0.0
    %442 = vmatprep.subr.mxu0 0.0
    %443 = vmatpush2.xpose.msra.mxu0 0.0
    %444 = vmatprep.subr.mxu0 0.0
    %445 = vmatpush2.xpose.msra.mxu0 0.0
    %446 = vmatprep.subr.mxu0 0.0
    %447 = vmatpush2.xpose.msra.mxu0 0.0
    %448 = vmatprep.subr.mxu0 0.0
    %449 = vmatpush2.xpose.msra.mxu0 0.0
    %450 = vmatprep.subr.mxu0 0.0
    %451 = vmatpush2.xpose.msra.mxu0 0.0
    %452 = vmatprep.subr.mxu0 0.0
    %453 = vmatpush2.xpose.msra.mxu0 0.0
    %454 = vmatprep.subr.mxu0 0.0
    %455 = vmatpush2.xpose.msra.mxu0 0.0
    %456 = vmatprep.subr.mxu0 0.0
    %457 = vmatpush2.xpose.msra.mxu0 0.0
    %458 = vmatprep.subr.mxu0 0.0
    %459 = vmatpush2.xpose.msra.mxu0 0.0
    %460 = vmatprep.subr.mxu0 0.0
    %461 = vmatpush2.xpose.msra.mxu0 0.0
    %462 = vmatprep.subr.mxu0 0.0
    %463 = vmatpush2.xpose.msra.mxu0 0.0
    %464 = vmatprep.subr.mxu0 0.0
    %465 = vmatpush2.xpose.msra.mxu0 0.0
    %466 = vmatprep.subr.mxu0 0.0
    %467 = vmatpush2.xpose.msra.mxu0 0.0
    %468 = vmatprep.subr.mxu0 0.0
    %469 = vmatpush2.xpose.msra.mxu0 0.0
    %470 = vmatprep.subr.mxu0 0.0
    %471 = vmatpush2.xpose.msra.mxu0 0.0
    %472 = vmatprep.mubr.f32.mxu0 0.0
    %473 = vmatmul.mubr.f32.gmra.mxu0 %v404
    %v474 = vpop.f32.mrf.mxu0
    %v475 = vadd.f32 0.0, %v474
    %v476 = vpop.f32.mrf.mxu0
    %477 = vdwg.mxu0
    %479 = vrot.lane.b32.xlu0 %v393, 96
    %v480 = vpop.permute.xlu0 %479
    %v481 = vsel %vm403, %v393, 0
    %v483 = vsel %vm403, %v480, 0
    %485 = vmatprep.subr.mxu0 0.0
    %486 = vmatpush1.xpose.msra.mxu0 0.0
    %487 = vmatprep.subr.mxu0 0.0
    %488 = vmatpush1.xpose.msra.mxu0 0.0
    %489 = vmatprep.subr.mxu0 0.0
    %490 = vmatpush1.xpose.msra.mxu0 0.0
    %491 = vmatprep.subr.mxu0 0.0
    %492 = vmatpush1.xpose.msra.mxu0 0.0
    %493 = vmatprep.subr.mxu0 0.0
    %494 = vmatpush1.xpose.msra.mxu0 0.0
    %495 = vmatprep.subr.mxu0 0.0
    %496 = vmatpush1.xpose.msra.mxu0 0.0
    %497 = vmatprep.subr.mxu0 0.0
    %498 = vmatpush1.xpose.msra.mxu0 0.0
    %499 = vmatprep.subr.mxu0 0.0
    %500 = vmatpush1.xpose.msra.mxu0 0.0
    %501 = vmatprep.subr.mxu0 0.0
    %502 = vmatpush1.xpose.msra.mxu0 0.0
    %503 = vmatprep.subr.mxu0 0.0
    %504 = vmatpush1.xpose.msra.mxu0 0.0
    %505 = vmatprep.subr.mxu0 0.0
    %506 = vmatpush1.xpose.msra.mxu0 0.0
    %507 = vmatprep.subr.mxu0 0.0
    %508 = vmatpush1.xpose.msra.mxu0 0.0
    %509 = vmatprep.subr.mxu0 0.0
    %510 = vmatpush1.xpose.msra.mxu0 0.0
    %511 = vmatprep.subr.mxu0 0.0
    %512 = vmatpush1.xpose.msra.mxu0 0.0
    %513 = vmatprep.subr.mxu0 0.0
    %514 = vmatpush1.xpose.msra.mxu0 0.0
    %515 = vmatprep.subr.mxu0 0.0
    %516 = vmatpush1.xpose.msra.mxu0 %v483
    %517 = vmatprep.subr.mxu0 0.0
    %518 = vmatpush2.xpose.msra.mxu0 0.0
    %519 = vmatprep.subr.mxu0 0.0
    %520 = vmatpush2.xpose.msra.mxu0 0.0
    %521 = vmatprep.subr.mxu0 0.0
    %522 = vmatpush2.xpose.msra.mxu0 0.0
    %523 = vmatprep.subr.mxu0 0.0
    %524 = vmatpush2.xpose.msra.mxu0 0.0
    %525 = vmatprep.subr.mxu0 0.0
    %526 = vmatpush2.xpose.msra.mxu0 0.0
    %527 = vmatprep.subr.mxu0 0.0
    %528 = vmatpush2.xpose.msra.mxu0 0.0
    %529 = vmatprep.subr.mxu0 0.0
    %530 = vmatpush2.xpose.msra.mxu0 0.0
    %531 = vmatprep.subr.mxu0 0.0
    %532 = vmatpush2.xpose.msra.mxu0 0.0
    %533 = vmatprep.subr.mxu0 0.0
    %534 = vmatpush2.xpose.msra.mxu0 0.0
    %535 = vmatprep.subr.mxu0 0.0
    %536 = vmatpush2.xpose.msra.mxu0 0.0
    %537 = vmatprep.subr.mxu0 0.0
    %538 = vmatpush2.xpose.msra.mxu0 0.0
    %539 = vmatprep.subr.mxu0 0.0
    %540 = vmatpush2.xpose.msra.mxu0 0.0
    %541 = vmatprep.subr.mxu0 0.0
    %542 = vmatpush2.xpose.msra.mxu0 0.0
    %543 = vmatprep.subr.mxu0 0.0
    %544 = vmatpush2.xpose.msra.mxu0 0.0
    %545 = vmatprep.subr.mxu0 0.0
    %546 = vmatpush2.xpose.msra.mxu0 0.0
    %547 = vmatprep.subr.mxu0 0.0
    %548 = vmatpush2.xpose.msra.mxu0 0.0
    %549 = vmatprep.mubr.f32.mxu0 0.0
    %550 = vmatmul.mubr.f32.gmra.mxu0 %v481
    %v551 = vpop.f32.mrf.mxu0
    %v552 = vadd.f32 0.0, %v551
    %v553 = vpop.f32.mrf.mxu0
    %554 = vdwg.mxu0
    %v555 = vmul.f32 %v475, 0.35355338
    %v556 = vmul.f32 %v552, 0.35355338
    %v557 = vadd.f32 %v555, %v296
    %v558 = vadd.f32 %v556, %v297
    %v559 = vsel %vm403, %v557, -inf
    %560 = vmax.xlane.f32.xlu0 %v559
    %v561 = vpop.xlane.xlu0 %560
    %v562 = vsel %vm403, %v558, -inf
    %563 = vmax.xlane.f32.xlu0 %v562
    %v564 = vpop.xlane.xlu0 %563
    %v565 = vsub.f32 %v557, %v561
    %v566 = vsub.f32 %v558, %v564
    %v567 = vmul.f32 %v565, 1.442695
    %v568 = vpow.pop %v567
    %v569 = vmul.f32 %v566, 1.442695
    %v570 = vpow.pop %v569
    %v571 = vsel %vm403, %v568, 0.0
    %572 = vadd.xlane.f32.xlu0 %v571
    %v573 = vpop.xlane.xlu0 %572
    %v574 = vsel %vm403, %v570, 0.0
    %575 = vadd.xlane.f32.xlu0 %v574
    %v576 = vpop.xlane.xlu0 %575
    %v577 = vrcp.pop %v573
    %v578 = vrcp.pop %v576
    %v579 = vmul.f32 %v568, %v577
    %v580 = vmul.f32 %v570, %v578
    %581 = vrot.lane.b32.xlu0 %v388, 64
    %v582 = vpop.permute.xlu0 %581
    %v585 = vsel %vm403, %v579, 0
    %587 = vmatprep.subr.mxu0 0.0
    %588 = vmatpush1.msra.mxu0 0.0
    %589 = vmatprep.subr.mxu0 0.0
    %590 = vmatpush1.msra.mxu0 0.0
    %591 = vmatprep.subr.mxu0 0.0
    %592 = vmatpush1.msra.mxu0 0.0
    %593 = vmatprep.subr.mxu0 0.0
    %594 = vmatpush1.msra.mxu0 0.0
    %595 = vmatprep.subr.mxu0 0.0
    %596 = vmatpush1.msra.mxu0 0.0
    %597 = vmatprep.subr.mxu0 0.0
    %598 = vmatpush1.msra.mxu0 0.0
    %599 = vmatprep.subr.mxu0 0.0
    %600 = vmatpush1.msra.mxu0 0.0
    %601 = vmatprep.subr.mxu0 0.0
    %602 = vmatpush1.msra.mxu0 0.0
    %603 = vmatprep.subr.mxu0 0.0
    %604 = vmatpush1.msra.mxu0 0.0
    %605 = vmatprep.subr.mxu0 0.0
    %606 = vmatpush1.msra.mxu0 0.0
    %607 = vmatprep.subr.mxu0 0.0
    %608 = vmatpush1.msra.mxu0 0.0
    %609 = vmatprep.subr.mxu0 0.0
    %610 = vmatpush1.msra.mxu0 0.0
    %611 = vmatprep.subr.mxu0 0.0
    %612 = vmatpush1.msra.mxu0 0.0
    %613 = vmatprep.subr.mxu0 0.0
    %614 = vmatpush1.msra.mxu0 0.0
    %615 = vmatprep.subr.mxu0 0.0
    %616 = vmatpush1.msra.mxu0 0.0
    %617 = vmatprep.subr.mxu0 0.0
    %618 = vmatpush1.msra.mxu0 %v582
    %619 = vmatprep.subr.mxu0 0.0
    %620 = vmatpush2.msra.mxu0 0.0
    %621 = vmatprep.subr.mxu0 0.0
    %622 = vmatpush2.msra.mxu0 0.0
    %623 = vmatprep.subr.mxu0 0.0
    %624 = vmatpush2.msra.mxu0 0.0
    %625 = vmatprep.subr.mxu0 0.0
    %626 = vmatpush2.msra.mxu0 0.0
    %627 = vmatprep.subr.mxu0 0.0
    %628 = vmatpush2.msra.mxu0 0.0
    %629 = vmatprep.subr.mxu0 0.0
    %630 = vmatpush2.msra.mxu0 0.0
    %631 = vmatprep.subr.mxu0 0.0
    %632 = vmatpush2.msra.mxu0 0.0
    %633 = vmatprep.subr.mxu0 0.0
    %634 = vmatpush2.msra.mxu0 0.0
    %635 = vmatprep.subr.mxu0 0.0
    %636 = vmatpush2.msra.mxu0 0.0
    %637 = vmatprep.subr.mxu0 0.0
    %638 = vmatpush2.msra.mxu0 0.0
    %639 = vmatprep.subr.mxu0 0.0
    %640 = vmatpush2.msra.mxu0 0.0
    %641 = vmatprep.subr.mxu0 0.0
    %642 = vmatpush2.msra.mxu0 0.0
    %643 = vmatprep.subr.mxu0 0.0
    %644 = vmatpush2.msra.mxu0 0.0
    %645 = vmatprep.subr.mxu0 0.0
    %646 = vmatpush2.msra.mxu0 0.0
    %647 = vmatprep.subr.mxu0 0.0
    %648 = vmatpush2.msra.mxu0 0.0
    %649 = vmatprep.subr.mxu0 0.0
    %650 = vmatpush2.msra.mxu0 0.0
    %651 = vmatprep.mubr.f32.mxu0 0.0
    %652 = vmatmul.mubr.f32.gmra.mxu0 %v585
    %v653 = vpop.f32.mrf.mxu0
    %v654 = vadd.f32 0.0, %v653
    %v655 = vpop.f32.mrf.mxu0
    %656 = vdwg.mxu0
    %657 = vrot.lane.b32.xlu0 %v393, 64
    %v658 = vpop.permute.xlu0 %657
    %v661 = vsel %vm403, %v580, 0
    %663 = vmatprep.subr.mxu0 0.0
    %664 = vmatpush1.msra.mxu0 0.0
    %665 = vmatprep.subr.mxu0 0.0
    %666 = vmatpush1.msra.mxu0 0.0
    %667 = vmatprep.subr.mxu0 0.0
    %668 = vmatpush1.msra.mxu0 0.0
    %669 = vmatprep.subr.mxu0 0.0
    %670 = vmatpush1.msra.mxu0 0.0
    %671 = vmatprep.subr.mxu0 0.0
    %672 = vmatpush1.msra.mxu0 0.0
    %673 = vmatprep.subr.mxu0 0.0
    %674 = vmatpush1.msra.mxu0 0.0
    %675 = vmatprep.subr.mxu0 0.0
    %676 = vmatpush1.msra.mxu0 0.0
    %677 = vmatprep.subr.mxu0 0.0
    %678 = vmatpush1.msra.mxu0 0.0
    %679 = vmatprep.subr.mxu0 0.0
    %680 = vmatpush1.msra.mxu0 0.0
    %681 = vmatprep.subr.mxu0 0.0
    %682 = vmatpush1.msra.mxu0 0.0
    %683 = vmatprep.subr.mxu0 0.0
    %684 = vmatpush1.msra.mxu0 0.0
    %685 = vmatprep.subr.mxu0 0.0
    %686 = vmatpush1.msra.mxu0 0.0
    %687 = vmatprep.subr.mxu0 0.0
    %688 = vmatpush1.msra.mxu0 0.0
    %689 = vmatprep.subr.mxu0 0.0
    %690 = vmatpush1.msra.mxu0 0.0
    %691 = vmatprep.subr.mxu0 0.0
    %692 = vmatpush1.msra.mxu0 0.0
    %693 = vmatprep.subr.mxu0 0.0
    %694 = vmatpush1.msra.mxu0 %v658
    %695 = vmatprep.subr.mxu0 0.0
    %696 = vmatpush2.msra.mxu0 0.0
    %697 = vmatprep.subr.mxu0 0.0
    %698 = vmatpush2.msra.mxu0 0.0
    %699 = vmatprep.subr.mxu0 0.0
    %700 = vmatpush2.msra.mxu0 0.0
    %701 = vmatprep.subr.mxu0 0.0
    %702 = vmatpush2.msra.mxu0 0.0
    %703 = vmatprep.subr.mxu0 0.0
    %704 = vmatpush2.msra.mxu0 0.0
    %705 = vmatprep.subr.mxu0 0.0
    %706 = vmatpush2.msra.mxu0 0.0
    %707 = vmatprep.subr.mxu0 0.0
    %708 = vmatpush2.msra.mxu0 0.0
    %709 = vmatprep.subr.mxu0 0.0
    %710 = vmatpush2.msra.mxu0 0.0
    %711 = vmatprep.subr.mxu0 0.0
    %712 = vmatpush2.msra.mxu0 0.0
    %713 = vmatprep.subr.mxu0 0.0
    %714 = vmatpush2.msra.mxu0 0.0
    %715 = vmatprep.subr.mxu0 0.0
    %716 = vmatpush2.msra.mxu0 0.0
    %717 = vmatprep.subr.mxu0 0.0
    %718 = vmatpush2.msra.mxu0 0.0
    %719 = vmatprep.subr.mxu0 0.0
    %720 = vmatpush2.msra.mxu0 0.0
    %721 = vmatprep.subr.mxu0 0.0
    %722 = vmatpush2.msra.mxu0 0.0
    %723 = vmatprep.subr.mxu0 0.0
    %724 = vmatpush2.msra.mxu0 0.0
    %725 = vmatprep.subr.mxu0 0.0
    %726 = vmatpush2.msra.mxu0 0.0
    %727 = vmatprep.mubr.f32.mxu0 0.0
    %728 = vmatmul.mubr.f32.gmra.mxu0 %v661
    %v729 = vpop.f32.mrf.mxu0
    %v730 = vadd.f32 0.0, %v729
    %v731 = vpop.f32.mrf.mxu0
    %732 = vdwg.mxu0
    %733 = vrot.lane.b32.xlu0 %v388, 120
    %v734 = vpop.permute.xlu0 %733
    %735 = vrot.lane.b32.xlu0 %v388, 88
    %v736 = vpop.permute.xlu0 %735
    %v737 = vsel %vm403, %v734, 0
    %v739 = vsel %vm403, %v736, 0
    %741 = vmatprep.subr.mxu0 0.0
    %742 = vmatpush1.xpose.msra.mxu0 0.0
    %743 = vmatprep.subr.mxu0 0.0
    %744 = vmatpush1.xpose.msra.mxu0 0.0
    %745 = vmatprep.subr.mxu0 0.0
    %746 = vmatpush1.xpose.msra.mxu0 0.0
    %747 = vmatprep.subr.mxu0 0.0
    %748 = vmatpush1.xpose.msra.mxu0 0.0
    %749 = vmatprep.subr.mxu0 0.0
    %750 = vmatpush1.xpose.msra.mxu0 0.0
    %751 = vmatprep.subr.mxu0 0.0
    %752 = vmatpush1.xpose.msra.mxu0 0.0
    %753 = vmatprep.subr.mxu0 0.0
    %754 = vmatpush1.xpose.msra.mxu0 0.0
    %755 = vmatprep.subr.mxu0 0.0
    %756 = vmatpush1.xpose.msra.mxu0 0.0
    %757 = vmatprep.subr.mxu0 0.0
    %758 = vmatpush1.xpose.msra.mxu0 0.0
    %759 = vmatprep.subr.mxu0 0.0
    %760 = vmatpush1.xpose.msra.mxu0 0.0
    %761 = vmatprep.subr.mxu0 0.0
    %762 = vmatpush1.xpose.msra.mxu0 0.0
    %763 = vmatprep.subr.mxu0 0.0
    %764 = vmatpush1.xpose.msra.mxu0 0.0
    %765 = vmatprep.subr.mxu0 0.0
    %766 = vmatpush1.xpose.msra.mxu0 0.0
    %767 = vmatprep.subr.mxu0 0.0
    %768 = vmatpush1.xpose.msra.mxu0 0.0
    %769 = vmatprep.subr.mxu0 0.0
    %770 = vmatpush1.xpose.msra.mxu0 0.0
    %771 = vmatprep.subr.mxu0 0.0
    %772 = vmatpush1.xpose.msra.mxu0 %v739
    %773 = vmatprep.subr.mxu0 0.0
    %774 = vmatpush2.xpose.msra.mxu0 0.0
    %775 = vmatprep.subr.mxu0 0.0
    %776 = vmatpush2.xpose.msra.mxu0 0.0
    %777 = vmatprep.subr.mxu0 0.0
    %778 = vmatpush2.xpose.msra.mxu0 0.0
    %779 = vmatprep.subr.mxu0 0.0
    %780 = vmatpush2.xpose.msra.mxu0 0.0
    %781 = vmatprep.subr.mxu0 0.0
    %782 = vmatpush2.xpose.msra.mxu0 0.0
    %783 = vmatprep.subr.mxu0 0.0
    %784 = vmatpush2.xpose.msra.mxu0 0.0
    %785 = vmatprep.subr.mxu0 0.0
    %786 = vmatpush2.xpose.msra.mxu0 0.0
    %787 = vmatprep.subr.mxu0 0.0
    %788 = vmatpush2.xpose.msra.mxu0 0.0
    %789 = vmatprep.subr.mxu0 0.0
    %790 = vmatpush2.xpose.msra.mxu0 0.0
    %791 = vmatprep.subr.mxu0 0.0
    %792 = vmatpush2.xpose.msra.mxu0 0.0
    %793 = vmatprep.subr.mxu0 0.0
    %794 = vmatpush2.xpose.msra.mxu0 0.0
    %795 = vmatprep.subr.mxu0 0.0
    %796 = vmatpush2.xpose.msra.mxu0 0.0
    %797 = vmatprep.subr.mxu0 0.0
    %798 = vmatpush2.xpose.msra.mxu0 0.0
    %799 = vmatprep.subr.mxu0 0.0
    %800 = vmatpush2.xpose.msra.mxu0 0.0
    %801 = vmatprep.subr.mxu0 0.0
    %802 = vmatpush2.xpose.msra.mxu0 0.0
    %803 = vmatprep.subr.mxu0 0.0
    %804 = vmatpush2.xpose.msra.mxu0 0.0
    %805 = vmatprep.mubr.f32.mxu0 0.0
    %806 = vmatmul.mubr.f32.gmra.mxu0 %v737
    %v807 = vpop.f32.mrf.mxu0
    %v808 = vadd.f32 0.0, %v807
    %v809 = vpop.f32.mrf.mxu0
    %810 = vdwg.mxu0
    %811 = vrot.lane.b32.xlu0 %v393, 120
    %v812 = vpop.permute.xlu0 %811
    %813 = vrot.lane.b32.xlu0 %v393, 88
    %v814 = vpop.permute.xlu0 %813
    %v815 = vsel %vm403, %v812, 0
    %v817 = vsel %vm403, %v814, 0
    %819 = vmatprep.subr.mxu0 0.0
    %820 = vmatpush1.xpose.msra.mxu0 0.0
    %821 = vmatprep.subr.mxu0 0.0
    %822 = vmatpush1.xpose.msra.mxu0 0.0
    %823 = vmatprep.subr.mxu0 0.0
    %824 = vmatpush1.xpose.msra.mxu0 0.0
    %825 = vmatprep.subr.mxu0 0.0
    %826 = vmatpush1.xpose.msra.mxu0 0.0
    %827 = vmatprep.subr.mxu0 0.0
    %828 = vmatpush1.xpose.msra.mxu0 0.0
    %829 = vmatprep.subr.mxu0 0.0
    %830 = vmatpush1.xpose.msra.mxu0 0.0
    %831 = vmatprep.subr.mxu0 0.0
    %832 = vmatpush1.xpose.msra.mxu0 0.0
    %833 = vmatprep.subr.mxu0 0.0
    %834 = vmatpush1.xpose.msra.mxu0 0.0
    %835 = vmatprep.subr.mxu0 0.0
    %836 = vmatpush1.xpose.msra.mxu0 0.0
    %837 = vmatprep.subr.mxu0 0.0
    %838 = vmatpush1.xpose.msra.mxu0 0.0
    %839 = vmatprep.subr.mxu0 0.0
    %840 = vmatpush1.xpose.msra.mxu0 0.0
    %841 = vmatprep.subr.mxu0 0.0
    %842 = vmatpush1.xpose.msra.mxu0 0.0
    %843 = vmatprep.subr.mxu0 0.0
    %844 = vmatpush1.xpose.msra.mxu0 0.0
    %845 = vmatprep.subr.mxu0 0.0
    %846 = vmatpush1.xpose.msra.mxu0 0.0
    %847 = vmatprep.subr.mxu0 0.0
    %848 = vmatpush1.xpose.msra.mxu0 0.0
    %849 = vmatprep.subr.mxu0 0.0
    %850 = vmatpush1.xpose.msra.mxu0 %v817
    %851 = vmatprep.subr.mxu0 0.0
    %852 = vmatpush2.xpose.msra.mxu0 0.0
    %853 = vmatprep.subr.mxu0 0.0
    %854 = vmatpush2.xpose.msra.mxu0 0.0
    %855 = vmatprep.subr.mxu0 0.0
    %856 = vmatpush2.xpose.msra.mxu0 0.0
    %857 = vmatprep.subr.mxu0 0.0
    %858 = vmatpush2.xpose.msra.mxu0 0.0
    %859 = vmatprep.subr.mxu0 0.0
    %860 = vmatpush2.xpose.msra.mxu0 0.0
    %861 = vmatprep.subr.mxu0 0.0
    %862 = vmatpush2.xpose.msra.mxu0 0.0
    %863 = vmatprep.subr.mxu0 0.0
    %864 = vmatpush2.xpose.msra.mxu0 0.0
    %865 = vmatprep.subr.mxu0 0.0
    %866 = vmatpush2.xpose.msra.mxu0 0.0
    %867 = vmatprep.subr.mxu0 0.0
    %868 = vmatpush2.xpose.msra.mxu0 0.0
    %869 = vmatprep.subr.mxu0 0.0
    %870 = vmatpush2.xpose.msra.mxu0 0.0
    %871 = vmatprep.subr.mxu0 0.0
    %872 = vmatpush2.xpose.msra.mxu0 0.0
    %873 = vmatprep.subr.mxu0 0.0
    %874 = vmatpush2.xpose.msra.mxu0 0.0
    %875 = vmatprep.subr.mxu0 0.0
    %876 = vmatpush2.xpose.msra.mxu0 0.0
    %877 = vmatprep.subr.mxu0 0.0
    %878 = vmatpush2.xpose.msra.mxu0 0.0
    %879 = vmatprep.subr.mxu0 0.0
    %880 = vmatpush2.xpose.msra.mxu0 0.0
    %881 = vmatprep.subr.mxu0 0.0
    %882 = vmatpush2.xpose.msra.mxu0 0.0
    %883 = vmatprep.mubr.f32.mxu0 0.0
    %884 = vmatmul.mubr.f32.gmra.mxu0 %v815
    %v885 = vpop.f32.mrf.mxu0
    %v886 = vadd.f32 0.0, %v885
    %v887 = vpop.f32.mrf.mxu0
    %888 = vdwg.mxu0
    %v889 = vmul.f32 %v808, 0.35355338
    %v890 = vmul.f32 %v886, 0.35355338
    %v891 = vadd.f32 %v889, %v296
    %v892 = vadd.f32 %v890, %v297
    %v893 = vsel %vm403, %v891, -inf
    %894 = vmax.xlane.f32.xlu0 %v893
    %v895 = vpop.xlane.xlu0 %894
    %v896 = vsel %vm403, %v892, -inf
    %897 = vmax.xlane.f32.xlu0 %v896
    %v898 = vpop.xlane.xlu0 %897
    %v899 = vsub.f32 %v891, %v895
    %v900 = vsub.f32 %v892, %v898
    %v901 = vmul.f32 %v899, 1.442695
    %v902 = vpow.pop %v901
    %v903 = vmul.f32 %v900, 1.442695
    %v904 = vpow.pop %v903
    %v905 = vsel %vm403, %v902, 0.0
    %906 = vadd.xlane.f32.xlu0 %v905
    %v907 = vpop.xlane.xlu0 %906
    %v908 = vsel %vm403, %v904, 0.0
    %909 = vadd.xlane.f32.xlu0 %v908
    %v910 = vpop.xlane.xlu0 %909
    %v911 = vrcp.pop %v907
    %v912 = vrcp.pop %v910
    %v913 = vmul.f32 %v902, %v911
    %v914 = vmul.f32 %v904, %v912
    %915 = vrot.lane.b32.xlu0 %v388, 56
    %v916 = vpop.permute.xlu0 %915
    %v919 = vsel %vm403, %v913, 0
    %921 = vmatprep.subr.mxu0 0.0
    %922 = vmatpush1.msra.mxu0 0.0
    %923 = vmatprep.subr.mxu0 0.0
    %924 = vmatpush1.msra.mxu0 0.0
    %925 = vmatprep.subr.mxu0 0.0
    %926 = vmatpush1.msra.mxu0 0.0
    %927 = vmatprep.subr.mxu0 0.0
    %928 = vmatpush1.msra.mxu0 0.0
    %929 = vmatprep.subr.mxu0 0.0
    %930 = vmatpush1.msra.mxu0 0.0
    %931 = vmatprep.subr.mxu0 0.0
    %932 = vmatpush1.msra.mxu0 0.0
    %933 = vmatprep.subr.mxu0 0.0
    %934 = vmatpush1.msra.mxu0 0.0
    %935 = vmatprep.subr.mxu0 0.0
    %936 = vmatpush1.msra.mxu0 0.0
    %937 = vmatprep.subr.mxu0 0.0
    %938 = vmatpush1.msra.mxu0 0.0
    %939 = vmatprep.subr.mxu0 0.0
    %940 = vmatpush1.msra.mxu0 0.0
    %941 = vmatprep.subr.mxu0 0.0
    %942 = vmatpush1.msra.mxu0 0.0
    %943 = vmatprep.subr.mxu0 0.0
    %944 = vmatpush1.msra.mxu0 0.0
    %945 = vmatprep.subr.mxu0 0.0
    %946 = vmatpush1.msra.mxu0 0.0
    %947 = vmatprep.subr.mxu0 0.0
    %948 = vmatpush1.msra.mxu0 0.0
    %949 = vmatprep.subr.mxu0 0.0
    %950 = vmatpush1.msra.mxu0 0.0
    %951 = vmatprep.subr.mxu0 0.0
    %952 = vmatpush1.msra.mxu0 %v916
    %953 = vmatprep.subr.mxu0 0.0
    %954 = vmatpush2.msra.mxu0 0.0
    %955 = vmatprep.subr.mxu0 0.0
    %956 = vmatpush2.msra.mxu0 0.0
    %957 = vmatprep.subr.mxu0 0.0
    %958 = vmatpush2.msra.mxu0 0.0
    %959 = vmatprep.subr.mxu0 0.0
    %960 = vmatpush2.msra.mxu0 0.0
    %961 = vmatprep.subr.mxu0 0.0
    %962 = vmatpush2.msra.mxu0 0.0
    %963 = vmatprep.subr.mxu0 0.0
    %964 = vmatpush2.msra.mxu0 0.0
    %965 = vmatprep.subr.mxu0 0.0
    %966 = vmatpush2.msra.mxu0 0.0
    %967 = vmatprep.subr.mxu0 0.0
    %968 = vmatpush2.msra.mxu0 0.0
    %969 = vmatprep.subr.mxu0 0.0
    %970 = vmatpush2.msra.mxu0 0.0
    %971 = vmatprep.subr.mxu0 0.0
    %972 = vmatpush2.msra.mxu0 0.0
    %973 = vmatprep.subr.mxu0 0.0
    %974 = vmatpush2.msra.mxu0 0.0
    %975 = vmatprep.subr.mxu0 0.0
    %976 = vmatpush2.msra.mxu0 0.0
    %977 = vmatprep.subr.mxu0 0.0
    %978 = vmatpush2.msra.mxu0 0.0
    %979 = vmatprep.subr.mxu0 0.0
    %980 = vmatpush2.msra.mxu0 0.0
    %981 = vmatprep.subr.mxu0 0.0
    %982 = vmatpush2.msra.mxu0 0.0
    %983 = vmatprep.subr.mxu0 0.0
    %984 = vmatpush2.msra.mxu0 0.0
    %985 = vmatprep.mubr.f32.mxu0 0.0
    %986 = vmatmul.mubr.f32.gmra.mxu0 %v919
    %v987 = vpop.f32.mrf.mxu0
    %v988 = vadd.f32 0.0, %v987
    %v989 = vpop.f32.mrf.mxu0
    %990 = vdwg.mxu0
    %991 = vrot.lane.b32.xlu0 %v393, 56
    %v992 = vpop.permute.xlu0 %991
    %v995 = vsel %vm403, %v914, 0
    %997 = vmatprep.subr.mxu0 0.0
    %998 = vmatpush1.msra.mxu0 0.0
    %999 = vmatprep.subr.mxu0 0.0
    %1000 = vmatpush1.msra.mxu0 0.0
    %1001 = vmatprep.subr.mxu0 0.0
    %1002 = vmatpush1.msra.mxu0 0.0
    %1003 = vmatprep.subr.mxu0 0.0
    %1004 = vmatpush1.msra.mxu0 0.0
    %1005 = vmatprep.subr.mxu0 0.0
    %1006 = vmatpush1.msra.mxu0 0.0
    %1007 = vmatprep.subr.mxu0 0.0
    %1008 = vmatpush1.msra.mxu0 0.0
    %1009 = vmatprep.subr.mxu0 0.0
    %1010 = vmatpush1.msra.mxu0 0.0
    %1011 = vmatprep.subr.mxu0 0.0
    %1012 = vmatpush1.msra.mxu0 0.0
    %1013 = vmatprep.subr.mxu0 0.0
    %1014 = vmatpush1.msra.mxu0 0.0
    %1015 = vmatprep.subr.mxu0 0.0
    %1016 = vmatpush1.msra.mxu0 0.0
    %1017 = vmatprep.subr.mxu0 0.0
    %1018 = vmatpush1.msra.mxu0 0.0
    %1019 = vmatprep.subr.mxu0 0.0
    %1020 = vmatpush1.msra.mxu0 0.0
    %1021 = vmatprep.subr.mxu0 0.0
    %1022 = vmatpush1.msra.mxu0 0.0
    %1023 = vmatprep.subr.mxu0 0.0
    %1024 = vmatpush1.msra.mxu0 0.0
    %1025 = vmatprep.subr.mxu0 0.0
    %1026 = vmatpush1.msra.mxu0 0.0
    %1027 = vmatprep.subr.mxu0 0.0
    %1028 = vmatpush1.msra.mxu0 %v992
    %1029 = vmatprep.subr.mxu0 0.0
    %1030 = vmatpush2.msra.mxu0 0.0
    %1031 = vmatprep.subr.mxu0 0.0
    %1032 = vmatpush2.msra.mxu0 0.0
    %1033 = vmatprep.subr.mxu0 0.0
    %1034 = vmatpush2.msra.mxu0 0.0
    %1035 = vmatprep.subr.mxu0 0.0
    %1036 = vmatpush2.msra.mxu0 0.0
    %1037 = vmatprep.subr.mxu0 0.0
    %1038 = vmatpush2.msra.mxu0 0.0
    %1039 = vmatprep.subr.mxu0 0.0
    %1040 = vmatpush2.msra.mxu0 0.0
    %1041 = vmatprep.subr.mxu0 0.0
    %1042 = vmatpush2.msra.mxu0 0.0
    %1043 = vmatprep.subr.mxu0 0.0
    %1044 = vmatpush2.msra.mxu0 0.0
    %1045 = vmatprep.subr.mxu0 0.0
    %1046 = vmatpush2.msra.mxu0 0.0
    %1047 = vmatprep.subr.mxu0 0.0
    %1048 = vmatpush2.msra.mxu0 0.0
    %1049 = vmatprep.subr.mxu0 0.0
    %1050 = vmatpush2.msra.mxu0 0.0
    %1051 = vmatprep.subr.mxu0 0.0
    %1052 = vmatpush2.msra.mxu0 0.0
    %1053 = vmatprep.subr.mxu0 0.0
    %1054 = vmatpush2.msra.mxu0 0.0
    %1055 = vmatprep.subr.mxu0 0.0
    %1056 = vmatpush2.msra.mxu0 0.0
    %1057 = vmatprep.subr.mxu0 0.0
    %1058 = vmatpush2.msra.mxu0 0.0
    %1059 = vmatprep.subr.mxu0 0.0
    %1060 = vmatpush2.msra.mxu0 0.0
    %1061 = vmatprep.mubr.f32.mxu0 0.0
    %1062 = vmatmul.mubr.f32.gmra.mxu0 %v995
    %v1063 = vpop.f32.mrf.mxu0
    %v1064 = vadd.f32 0.0, %v1063
    %v1065 = vpop.f32.mrf.mxu0
    %1066 = vdwg.mxu0
    %v1068 = vsel %vm403, %v988, 0
    %v1071 = vsel %vm403, %v1064, 0
    %1073 = vmatprep.subr.mxu0 0.0
    %1074 = vmatpush1.msra.mxu0 0.0
    %1075 = vmatprep.subr.mxu0 0.0
    %1076 = vmatpush1.msra.mxu0 0.0
    %1077 = vmatprep.subr.mxu0 0.0
    %1078 = vmatpush1.msra.mxu0 0.0
    %1079 = vmatprep.subr.mxu0 0.0
    %1080 = vmatpush1.msra.mxu0 0.0
    %1081 = vmatprep.subr.mxu0 0.0
    %1082 = vmatpush1.msra.mxu0 0.0
    %1083 = vmatprep.subr.mxu0 0.0
    %1084 = vmatpush1.msra.mxu0 0.0
    %1085 = vmatprep.subr.mxu0 0.0
    %1086 = vmatpush1.msra.mxu0 0.0
    %1087 = vmatprep.subr.mxu0 0.0
    %1088 = vmatpush1.msra.mxu0 0.0
    %1089 = vmatprep.subr.mxu0 0.0
    %1090 = vmatpush1.msra.mxu0 0.0
    %1091 = vmatprep.subr.mxu0 0.0
    %1092 = vmatpush1.msra.mxu0 0.0
    %1093 = vmatprep.subr.mxu0 0.0
    %1094 = vmatpush1.msra.mxu0 0.0
    %1095 = vmatprep.subr.mxu0 0.0
    %1096 = vmatpush1.msra.mxu0 0.0
    %1097 = vmatprep.subr.mxu0 0.0
    %1098 = vmatpush1.msra.mxu0 0.0
    %1099 = vmatprep.subr.mxu0 0.0
    %1100 = vmatpush1.msra.mxu0 0.0
    %1101 = vmatprep.subr.mxu0 0.0
    %1102 = vmatpush1.msra.mxu0 0.0
    %1103 = vmatprep.subr.mxu0 0.0
    %1104 = vmatpush1.msra.mxu0 %v397
    %1105 = vmatprep.subr.mxu0 0.0
    %1106 = vmatpush2.msra.mxu0 0.0
    %1107 = vmatprep.subr.mxu0 0.0
    %1108 = vmatpush2.msra.mxu0 0.0
    %1109 = vmatprep.subr.mxu0 0.0
    %1110 = vmatpush2.msra.mxu0 0.0
    %1111 = vmatprep.subr.mxu0 0.0
    %1112 = vmatpush2.msra.mxu0 0.0
    %1113 = vmatprep.subr.mxu0 0.0
    %1114 = vmatpush2.msra.mxu0 0.0
    %1115 = vmatprep.subr.mxu0 0.0
    %1116 = vmatpush2.msra.mxu0 0.0
    %1117 = vmatprep.subr.mxu0 0.0
    %1118 = vmatpush2.msra.mxu0 0.0
    %1119 = vmatprep.subr.mxu0 0.0
    %1120 = vmatpush2.msra.mxu0 0.0
    %1121 = vmatprep.subr.mxu0 0.0
    %1122 = vmatpush2.msra.mxu0 0.0
    %1123 = vmatprep.subr.mxu0 0.0
    %1124 = vmatpush2.msra.mxu0 0.0
    %1125 = vmatprep.subr.mxu0 0.0
    %1126 = vmatpush2.msra.mxu0 0.0
    %1127 = vmatprep.subr.mxu0 0.0
    %1128 = vmatpush2.msra.mxu0 0.0
    %1129 = vmatprep.subr.mxu0 0.0
    %1130 = vmatpush2.msra.mxu0 0.0
    %1131 = vmatprep.subr.mxu0 0.0
    %1132 = vmatpush2.msra.mxu0 0.0
    %1133 = vmatprep.subr.mxu0 0.0
    %1134 = vmatpush2.msra.mxu0 0.0
    %1135 = vmatprep.subr.mxu0 0.0
    %1136 = vmatpush2.msra.mxu0 0.0
    %1137 = vmatprep.mubr.f32.mxu0 0.0
    %1138 = vmatmul.mubr.f32.gmra.mxu0 %v1068
    %v1139 = vpop.f32.mrf.mxu0
    %v1140 = vadd.f32 0.0, %v1139
    %v1141 = vpop.f32.mrf.mxu0
    %1142 = vmatprep.mubr.f32.mxu0 0.0
    %1143 = vmatmul.mubr.f32.gmra.mxu0 %v1071
    %v1144 = vpop.f32.mrf.mxu0
    %v1145 = vadd.f32 0.0, %v1144
    %v1146 = vpop.f32.mrf.mxu0
    %1147 = vdwg.mxu0
    %v1149 = vsel %vm403, %v654, 0
    %v1152 = vsel %vm403, %v730, 0
    %1154 = vmatprep.subr.mxu0 0.0
    %1155 = vmatpush1.msra.mxu0 0.0
    %1156 = vmatprep.subr.mxu0 0.0
    %1157 = vmatpush1.msra.mxu0 0.0
    %1158 = vmatprep.subr.mxu0 0.0
    %1159 = vmatpush1.msra.mxu0 0.0
    %1160 = vmatprep.subr.mxu0 0.0
    %1161 = vmatpush1.msra.mxu0 0.0
    %1162 = vmatprep.subr.mxu0 0.0
    %1163 = vmatpush1.msra.mxu0 0.0
    %1164 = vmatprep.subr.mxu0 0.0
    %1165 = vmatpush1.msra.mxu0 0.0
    %1166 = vmatprep.subr.mxu0 0.0
    %1167 = vmatpush1.msra.mxu0 0.0
    %1168 = vmatprep.subr.mxu0 0.0
    %1169 = vmatpush1.msra.mxu0 0.0
    %1170 = vmatprep.subr.mxu0 0.0
    %1171 = vmatpush1.msra.mxu0 0.0
    %1172 = vmatprep.subr.mxu0 0.0
    %1173 = vmatpush1.msra.mxu0 0.0
    %1174 = vmatprep.subr.mxu0 0.0
    %1175 = vmatpush1.msra.mxu0 0.0
    %1176 = vmatprep.subr.mxu0 0.0
    %1177 = vmatpush1.msra.mxu0 0.0
    %1178 = vmatprep.subr.mxu0 0.0
    %1179 = vmatpush1.msra.mxu0 0.0
    %1180 = vmatprep.subr.mxu0 0.0
    %1181 = vmatpush1.msra.mxu0 0.0
    %1182 = vmatprep.subr.mxu0 0.0
    %1183 = vmatpush1.msra.mxu0 0.0
    %1184 = vmatprep.subr.mxu0 0.0
    %1185 = vmatpush1.msra.mxu0 %v396
    %1186 = vmatprep.subr.mxu0 0.0
    %1187 = vmatpush2.msra.mxu0 0.0
    %1188 = vmatprep.subr.mxu0 0.0
    %1189 = vmatpush2.msra.mxu0 0.0
    %1190 = vmatprep.subr.mxu0 0.0
    %1191 = vmatpush2.msra.mxu0 0.0
    %1192 = vmatprep.subr.mxu0 0.0
    %1193 = vmatpush2.msra.mxu0 0.0
    %1194 = vmatprep.subr.mxu0 0.0
    %1195 = vmatpush2.msra.mxu0 0.0
    %1196 = vmatprep.subr.mxu0 0.0
    %1197 = vmatpush2.msra.mxu0 0.0
    %1198 = vmatprep.subr.mxu0 0.0
    %1199 = vmatpush2.msra.mxu0 0.0
    %1200 = vmatprep.subr.mxu0 0.0
    %1201 = vmatpush2.msra.mxu0 0.0
    %1202 = vmatprep.subr.mxu0 0.0
    %1203 = vmatpush2.msra.mxu0 0.0
    %1204 = vmatprep.subr.mxu0 0.0
    %1205 = vmatpush2.msra.mxu0 0.0
    %1206 = vmatprep.subr.mxu0 0.0
    %1207 = vmatpush2.msra.mxu0 0.0
    %1208 = vmatprep.subr.mxu0 0.0
    %1209 = vmatpush2.msra.mxu0 0.0
    %1210 = vmatprep.subr.mxu0 0.0
    %1211 = vmatpush2.msra.mxu0 0.0
    %1212 = vmatprep.subr.mxu0 0.0
    %1213 = vmatpush2.msra.mxu0 0.0
    %1214 = vmatprep.subr.mxu0 0.0
    %1215 = vmatpush2.msra.mxu0 0.0
    %1216 = vmatprep.subr.mxu0 0.0
    %1217 = vmatpush2.msra.mxu0 0.0
    %1218 = vmatprep.mubr.f32.mxu0 0.0
    %1219 = vmatmul.mubr.f32.gmra.mxu0 %v1149
    %v1220 = vpop.f32.mrf.mxu0
    %v1221 = vadd.f32 %v1140, %v1220
    %v1222 = vpop.f32.mrf.mxu0
    %1223 = vmatprep.mubr.f32.mxu0 0.0
    %1224 = vmatmul.mubr.f32.gmra.mxu0 %v1152
    %v1225 = vpop.f32.mrf.mxu0
    %v1226 = vadd.f32 %v1145, %v1225
    %v1227 = vpop.f32.mrf.mxu0
    %1228 = vdwg.mxu0
    %1229 = vrot.lane.b32.xlu0 %v388, 112
    %v1230 = vpop.permute.xlu0 %1229
    %1231 = vrot.lane.b32.xlu0 %v388, 80
    %v1232 = vpop.permute.xlu0 %1231
    %v1233 = vsel %vm403, %v1230, 0
    %v1235 = vsel %vm403, %v1232, 0
    %1237 = vmatprep.subr.mxu0 0.0
    %1238 = vmatpush1.xpose.msra.mxu0 0.0
    %1239 = vmatprep.subr.mxu0 0.0
    %1240 = vmatpush1.xpose.msra.mxu0 0.0
    %1241 = vmatprep.subr.mxu0 0.0
    %1242 = vmatpush1.xpose.msra.mxu0 0.0
    %1243 = vmatprep.subr.mxu0 0.0
    %1244 = vmatpush1.xpose.msra.mxu0 0.0
    %1245 = vmatprep.subr.mxu0 0.0
    %1246 = vmatpush1.xpose.msra.mxu0 0.0
    %1247 = vmatprep.subr.mxu0 0.0
    %1248 = vmatpush1.xpose.msra.mxu0 0.0
    %1249 = vmatprep.subr.mxu0 0.0
    %1250 = vmatpush1.xpose.msra.mxu0 0.0
    %1251 = vmatprep.subr.mxu0 0.0
    %1252 = vmatpush1.xpose.msra.mxu0 0.0
    %1253 = vmatprep.subr.mxu0 0.0
    %1254 = vmatpush1.xpose.msra.mxu0 0.0
    %1255 = vmatprep.subr.mxu0 0.0
    %1256 = vmatpush1.xpose.msra.mxu0 0.0
    %1257 = vmatprep.subr.mxu0 0.0
    %1258 = vmatpush1.xpose.msra.mxu0 0.0
    %1259 = vmatprep.subr.mxu0 0.0
    %1260 = vmatpush1.xpose.msra.mxu0 0.0
    %1261 = vmatprep.subr.mxu0 0.0
    %1262 = vmatpush1.xpose.msra.mxu0 0.0
    %1263 = vmatprep.subr.mxu0 0.0
    %1264 = vmatpush1.xpose.msra.mxu0 0.0
    %1265 = vmatprep.subr.mxu0 0.0
    %1266 = vmatpush1.xpose.msra.mxu0 0.0
    %1267 = vmatprep.subr.mxu0 0.0
    %1268 = vmatpush1.xpose.msra.mxu0 %v1235
    %1269 = vmatprep.subr.mxu0 0.0
    %1270 = vmatpush2.xpose.msra.mxu0 0.0
    %1271 = vmatprep.subr.mxu0 0.0
    %1272 = vmatpush2.xpose.msra.mxu0 0.0
    %1273 = vmatprep.subr.mxu0 0.0
    %1274 = vmatpush2.xpose.msra.mxu0 0.0
    %1275 = vmatprep.subr.mxu0 0.0
    %1276 = vmatpush2.xpose.msra.mxu0 0.0
    %1277 = vmatprep.subr.mxu0 0.0
    %1278 = vmatpush2.xpose.msra.mxu0 0.0
    %1279 = vmatprep.subr.mxu0 0.0
    %1280 = vmatpush2.xpose.msra.mxu0 0.0
    %1281 = vmatprep.subr.mxu0 0.0
    %1282 = vmatpush2.xpose.msra.mxu0 0.0
    %1283 = vmatprep.subr.mxu0 0.0
    %1284 = vmatpush2.xpose.msra.mxu0 0.0
    %1285 = vmatprep.subr.mxu0 0.0
    %1286 = vmatpush2.xpose.msra.mxu0 0.0
    %1287 = vmatprep.subr.mxu0 0.0
    %1288 = vmatpush2.xpose.msra.mxu0 0.0
    %1289 = vmatprep.subr.mxu0 0.0
    %1290 = vmatpush2.xpose.msra.mxu0 0.0
    %1291 = vmatprep.subr.mxu0 0.0
    %1292 = vmatpush2.xpose.msra.mxu0 0.0
    %1293 = vmatprep.subr.mxu0 0.0
    %1294 = vmatpush2.xpose.msra.mxu0 0.0
    %1295 = vmatprep.subr.mxu0 0.0
    %1296 = vmatpush2.xpose.msra.mxu0 0.0
    %1297 = vmatprep.subr.mxu0 0.0
    %1298 = vmatpush2.xpose.msra.mxu0 0.0
    %1299 = vmatprep.subr.mxu0 0.0
    %1300 = vmatpush2.xpose.msra.mxu0 0.0
    %1301 = vmatprep.mubr.f32.mxu0 0.0
    %1302 = vmatmul.mubr.f32.gmra.mxu0 %v1233
    %v1303 = vpop.f32.mrf.mxu0
    %v1304 = vadd.f32 0.0, %v1303
    %v1305 = vpop.f32.mrf.mxu0
    %1306 = vdwg.mxu0
    %1307 = vrot.lane.b32.xlu0 %v393, 112
    %v1308 = vpop.permute.xlu0 %1307
    %1309 = vrot.lane.b32.xlu0 %v393, 80
    %v1310 = vpop.permute.xlu0 %1309
    %v1311 = vsel %vm403, %v1308, 0
    %v1313 = vsel %vm403, %v1310, 0
    %1315 = vmatprep.subr.mxu0 0.0
    %1316 = vmatpush1.xpose.msra.mxu0 0.0
    %1317 = vmatprep.subr.mxu0 0.0
    %1318 = vmatpush1.xpose.msra.mxu0 0.0
    %1319 = vmatprep.subr.mxu0 0.0
    %1320 = vmatpush1.xpose.msra.mxu0 0.0
    %1321 = vmatprep.subr.mxu0 0.0
    %1322 = vmatpush1.xpose.msra.mxu0 0.0
    %1323 = vmatprep.subr.mxu0 0.0
    %1324 = vmatpush1.xpose.msra.mxu0 0.0
    %1325 = vmatprep.subr.mxu0 0.0
    %1326 = vmatpush1.xpose.msra.mxu0 0.0
    %1327 = vmatprep.subr.mxu0 0.0
    %1328 = vmatpush1.xpose.msra.mxu0 0.0
    %1329 = vmatprep.subr.mxu0 0.0
    %1330 = vmatpush1.xpose.msra.mxu0 0.0
    %1331 = vmatprep.subr.mxu0 0.0
    %1332 = vmatpush1.xpose.msra.mxu0 0.0
    %1333 = vmatprep.subr.mxu0 0.0
    %1334 = vmatpush1.xpose.msra.mxu0 0.0
    %1335 = vmatprep.subr.mxu0 0.0
    %1336 = vmatpush1.xpose.msra.mxu0 0.0
    %1337 = vmatprep.subr.mxu0 0.0
    %1338 = vmatpush1.xpose.msra.mxu0 0.0
    %1339 = vmatprep.subr.mxu0 0.0
    %1340 = vmatpush1.xpose.msra.mxu0 0.0
    %1341 = vmatprep.subr.mxu0 0.0
    %1342 = vmatpush1.xpose.msra.mxu0 0.0
    %1343 = vmatprep.subr.mxu0 0.0
    %1344 = vmatpush1.xpose.msra.mxu0 0.0
    %1345 = vmatprep.subr.mxu0 0.0
    %1346 = vmatpush1.xpose.msra.mxu0 %v1313
    %1347 = vmatprep.subr.mxu0 0.0
    %1348 = vmatpush2.xpose.msra.mxu0 0.0
    %1349 = vmatprep.subr.mxu0 0.0
    %1350 = vmatpush2.xpose.msra.mxu0 0.0
    %1351 = vmatprep.subr.mxu0 0.0
    %1352 = vmatpush2.xpose.msra.mxu0 0.0
    %1353 = vmatprep.subr.mxu0 0.0
    %1354 = vmatpush2.xpose.msra.mxu0 0.0
    %1355 = vmatprep.subr.mxu0 0.0
    %1356 = vmatpush2.xpose.msra.mxu0 0.0
    %1357 = vmatprep.subr.mxu0 0.0
    %1358 = vmatpush2.xpose.msra.mxu0 0.0
    %1359 = vmatprep.subr.mxu0 0.0
    %1360 = vmatpush2.xpose.msra.mxu0 0.0
    %1361 = vmatprep.subr.mxu0 0.0
    %1362 = vmatpush2.xpose.msra.mxu0 0.0
    %1363 = vmatprep.subr.mxu0 0.0
    %1364 = vmatpush2.xpose.msra.mxu0 0.0
    %1365 = vmatprep.subr.mxu0 0.0
    %1366 = vmatpush2.xpose.msra.mxu0 0.0
    %1367 = vmatprep.subr.mxu0 0.0
    %1368 = vmatpush2.xpose.msra.mxu0 0.0
    %1369 = vmatprep.subr.mxu0 0.0
    %1370 = vmatpush2.xpose.msra.mxu0 0.0
    %1371 = vmatprep.subr.mxu0 0.0
    %1372 = vmatpush2.xpose.msra.mxu0 0.0
    %1373 = vmatprep.subr.mxu0 0.0
    %1374 = vmatpush2.xpose.msra.mxu0 0.0
    %1375 = vmatprep.subr.mxu0 0.0
    %1376 = vmatpush2.xpose.msra.mxu0 0.0
    %1377 = vmatprep.subr.mxu0 0.0
    %1378 = vmatpush2.xpose.msra.mxu0 0.0
    %1379 = vmatprep.mubr.f32.mxu0 0.0
    %1380 = vmatmul.mubr.f32.gmra.mxu0 %v1311
    %v1381 = vpop.f32.mrf.mxu0
    %v1382 = vadd.f32 0.0, %v1381
    %v1383 = vpop.f32.mrf.mxu0
    %1384 = vdwg.mxu0
    %v1385 = vmul.f32 %v1304, 0.35355338
    %v1386 = vmul.f32 %v1382, 0.35355338
    %v1387 = vadd.f32 %v1385, %v296
    %v1388 = vadd.f32 %v1386, %v297
    %v1389 = vsel %vm403, %v1387, -inf
    %1390 = vmax.xlane.f32.xlu0 %v1389
    %v1391 = vpop.xlane.xlu0 %1390
    %v1392 = vsel %vm403, %v1388, -inf
    %1393 = vmax.xlane.f32.xlu0 %v1392
    %v1394 = vpop.xlane.xlu0 %1393
    %v1395 = vsub.f32 %v1387, %v1391
    %v1396 = vsub.f32 %v1388, %v1394
    %v1397 = vmul.f32 %v1395, 1.442695
    %v1398 = vpow.pop %v1397
    %v1399 = vmul.f32 %v1396, 1.442695
    %v1400 = vpow.pop %v1399
    %v1401 = vsel %vm403, %v1398, 0.0
    %1402 = vadd.xlane.f32.xlu0 %v1401
    %v1403 = vpop.xlane.xlu0 %1402
    %v1404 = vsel %vm403, %v1400, 0.0
    %1405 = vadd.xlane.f32.xlu0 %v1404
    %v1406 = vpop.xlane.xlu0 %1405
    %v1407 = vrcp.pop %v1403
    %v1408 = vrcp.pop %v1406
    %v1409 = vmul.f32 %v1398, %v1407
    %v1410 = vmul.f32 %v1400, %v1408
    %1411 = vrot.lane.b32.xlu0 %v388, 48
    %v1412 = vpop.permute.xlu0 %1411
    %v1415 = vsel %vm403, %v1409, 0
    %1417 = vmatprep.subr.mxu0 0.0
    %1418 = vmatpush1.msra.mxu0 0.0
    %1419 = vmatprep.subr.mxu0 0.0
    %1420 = vmatpush1.msra.mxu0 0.0
    %1421 = vmatprep.subr.mxu0 0.0
    %1422 = vmatpush1.msra.mxu0 0.0
    %1423 = vmatprep.subr.mxu0 0.0
    %1424 = vmatpush1.msra.mxu0 0.0
    %1425 = vmatprep.subr.mxu0 0.0
    %1426 = vmatpush1.msra.mxu0 0.0
    %1427 = vmatprep.subr.mxu0 0.0
    %1428 = vmatpush1.msra.mxu0 0.0
    %1429 = vmatprep.subr.mxu0 0.0
    %1430 = vmatpush1.msra.mxu0 0.0
    %1431 = vmatprep.subr.mxu0 0.0
    %1432 = vmatpush1.msra.mxu0 0.0
    %1433 = vmatprep.subr.mxu0 0.0
    %1434 = vmatpush1.msra.mxu0 0.0
    %1435 = vmatprep.subr.mxu0 0.0
    %1436 = vmatpush1.msra.mxu0 0.0
    %1437 = vmatprep.subr.mxu0 0.0
    %1438 = vmatpush1.msra.mxu0 0.0
    %1439 = vmatprep.subr.mxu0 0.0
    %1440 = vmatpush1.msra.mxu0 0.0
    %1441 = vmatprep.subr.mxu0 0.0
    %1442 = vmatpush1.msra.mxu0 0.0
    %1443 = vmatprep.subr.mxu0 0.0
    %1444 = vmatpush1.msra.mxu0 0.0
    %1445 = vmatprep.subr.mxu0 0.0
    %1446 = vmatpush1.msra.mxu0 0.0
    %1447 = vmatprep.subr.mxu0 0.0
    %1448 = vmatpush1.msra.mxu0 %v1412
    %1449 = vmatprep.subr.mxu0 0.0
    %1450 = vmatpush2.msra.mxu0 0.0
    %1451 = vmatprep.subr.mxu0 0.0
    %1452 = vmatpush2.msra.mxu0 0.0
    %1453 = vmatprep.subr.mxu0 0.0
    %1454 = vmatpush2.msra.mxu0 0.0
    %1455 = vmatprep.subr.mxu0 0.0
    %1456 = vmatpush2.msra.mxu0 0.0
    %1457 = vmatprep.subr.mxu0 0.0
    %1458 = vmatpush2.msra.mxu0 0.0
    %1459 = vmatprep.subr.mxu0 0.0
    %1460 = vmatpush2.msra.mxu0 0.0
    %1461 = vmatprep.subr.mxu0 0.0
    %1462 = vmatpush2.msra.mxu0 0.0
    %1463 = vmatprep.subr.mxu0 0.0
    %1464 = vmatpush2.msra.mxu0 0.0
    %1465 = vmatprep.subr.mxu0 0.0
    %1466 = vmatpush2.msra.mxu0 0.0
    %1467 = vmatprep.subr.mxu0 0.0
    %1468 = vmatpush2.msra.mxu0 0.0
    %1469 = vmatprep.subr.mxu0 0.0
    %1470 = vmatpush2.msra.mxu0 0.0
    %1471 = vmatprep.subr.mxu0 0.0
    %1472 = vmatpush2.msra.mxu0 0.0
    %1473 = vmatprep.subr.mxu0 0.0
    %1474 = vmatpush2.msra.mxu0 0.0
    %1475 = vmatprep.subr.mxu0 0.0
    %1476 = vmatpush2.msra.mxu0 0.0
    %1477 = vmatprep.subr.mxu0 0.0
    %1478 = vmatpush2.msra.mxu0 0.0
    %1479 = vmatprep.subr.mxu0 0.0
    %1480 = vmatpush2.msra.mxu0 0.0
    %1481 = vmatprep.mubr.f32.mxu0 0.0
    %1482 = vmatmul.mubr.f32.gmra.mxu0 %v1415
    %v1483 = vpop.f32.mrf.mxu0
    %v1484 = vadd.f32 0.0, %v1483
    %v1485 = vpop.f32.mrf.mxu0
    %1486 = vdwg.mxu0
    %1487 = vrot.lane.b32.xlu0 %v393, 48
    %v1488 = vpop.permute.xlu0 %1487
    %v1491 = vsel %vm403, %v1410, 0
    %1493 = vmatprep.subr.mxu0 0.0
    %1494 = vmatpush1.msra.mxu0 0.0
    %1495 = vmatprep.subr.mxu0 0.0
    %1496 = vmatpush1.msra.mxu0 0.0
    %1497 = vmatprep.subr.mxu0 0.0
    %1498 = vmatpush1.msra.mxu0 0.0
    %1499 = vmatprep.subr.mxu0 0.0
    %1500 = vmatpush1.msra.mxu0 0.0
    %1501 = vmatprep.subr.mxu0 0.0
    %1502 = vmatpush1.msra.mxu0 0.0
    %1503 = vmatprep.subr.mxu0 0.0
    %1504 = vmatpush1.msra.mxu0 0.0
    %1505 = vmatprep.subr.mxu0 0.0
    %1506 = vmatpush1.msra.mxu0 0.0
    %1507 = vmatprep.subr.mxu0 0.0
    %1508 = vmatpush1.msra.mxu0 0.0
    %1509 = vmatprep.subr.mxu0 0.0
    %1510 = vmatpush1.msra.mxu0 0.0
    %1511 = vmatprep.subr.mxu0 0.0
    %1512 = vmatpush1.msra.mxu0 0.0
    %1513 = vmatprep.subr.mxu0 0.0
    %1514 = vmatpush1.msra.mxu0 0.0
    %1515 = vmatprep.subr.mxu0 0.0
    %1516 = vmatpush1.msra.mxu0 0.0
    %1517 = vmatprep.subr.mxu0 0.0
    %1518 = vmatpush1.msra.mxu0 0.0
    %1519 = vmatprep.subr.mxu0 0.0
    %1520 = vmatpush1.msra.mxu0 0.0
    %1521 = vmatprep.subr.mxu0 0.0
    %1522 = vmatpush1.msra.mxu0 0.0
    %1523 = vmatprep.subr.mxu0 0.0
    %1524 = vmatpush1.msra.mxu0 %v1488
    %1525 = vmatprep.subr.mxu0 0.0
    %1526 = vmatpush2.msra.mxu0 0.0
    %1527 = vmatprep.subr.mxu0 0.0
    %1528 = vmatpush2.msra.mxu0 0.0
    %1529 = vmatprep.subr.mxu0 0.0
    %1530 = vmatpush2.msra.mxu0 0.0
    %1531 = vmatprep.subr.mxu0 0.0
    %1532 = vmatpush2.msra.mxu0 0.0
    %1533 = vmatprep.subr.mxu0 0.0
    %1534 = vmatpush2.msra.mxu0 0.0
    %1535 = vmatprep.subr.mxu0 0.0
    %1536 = vmatpush2.msra.mxu0 0.0
    %1537 = vmatprep.subr.mxu0 0.0
    %1538 = vmatpush2.msra.mxu0 0.0
    %1539 = vmatprep.subr.mxu0 0.0
    %1540 = vmatpush2.msra.mxu0 0.0
    %1541 = vmatprep.subr.mxu0 0.0
    %1542 = vmatpush2.msra.mxu0 0.0
    %1543 = vmatprep.subr.mxu0 0.0
    %1544 = vmatpush2.msra.mxu0 0.0
    %1545 = vmatprep.subr.mxu0 0.0
    %1546 = vmatpush2.msra.mxu0 0.0
    %1547 = vmatprep.subr.mxu0 0.0
    %1548 = vmatpush2.msra.mxu0 0.0
    %1549 = vmatprep.subr.mxu0 0.0
    %1550 = vmatpush2.msra.mxu0 0.0
    %1551 = vmatprep.subr.mxu0 0.0
    %1552 = vmatpush2.msra.mxu0 0.0
    %1553 = vmatprep.subr.mxu0 0.0
    %1554 = vmatpush2.msra.mxu0 0.0
    %1555 = vmatprep.subr.mxu0 0.0
    %1556 = vmatpush2.msra.mxu0 0.0
    %1557 = vmatprep.mubr.f32.mxu0 0.0
    %1558 = vmatmul.mubr.f32.gmra.mxu0 %v1491
    %v1559 = vpop.f32.mrf.mxu0
    %v1560 = vadd.f32 0.0, %v1559
    %v1561 = vpop.f32.mrf.mxu0
    %1562 = vdwg.mxu0
    %v1564 = vsel %vm403, %v1484, 0
    %v1567 = vsel %vm403, %v1560, 0
    %1569 = vmatprep.subr.mxu0 0.0
    %1570 = vmatpush1.msra.mxu0 0.0
    %1571 = vmatprep.subr.mxu0 0.0
    %1572 = vmatpush1.msra.mxu0 0.0
    %1573 = vmatprep.subr.mxu0 0.0
    %1574 = vmatpush1.msra.mxu0 0.0
    %1575 = vmatprep.subr.mxu0 0.0
    %1576 = vmatpush1.msra.mxu0 0.0
    %1577 = vmatprep.subr.mxu0 0.0
    %1578 = vmatpush1.msra.mxu0 0.0
    %1579 = vmatprep.subr.mxu0 0.0
    %1580 = vmatpush1.msra.mxu0 0.0
    %1581 = vmatprep.subr.mxu0 0.0
    %1582 = vmatpush1.msra.mxu0 0.0
    %1583 = vmatprep.subr.mxu0 0.0
    %1584 = vmatpush1.msra.mxu0 0.0
    %1585 = vmatprep.subr.mxu0 0.0
    %1586 = vmatpush1.msra.mxu0 0.0
    %1587 = vmatprep.subr.mxu0 0.0
    %1588 = vmatpush1.msra.mxu0 0.0
    %1589 = vmatprep.subr.mxu0 0.0
    %1590 = vmatpush1.msra.mxu0 0.0
    %1591 = vmatprep.subr.mxu0 0.0
    %1592 = vmatpush1.msra.mxu0 0.0
    %1593 = vmatprep.subr.mxu0 0.0
    %1594 = vmatpush1.msra.mxu0 0.0
    %1595 = vmatprep.subr.mxu0 0.0
    %1596 = vmatpush1.msra.mxu0 0.0
    %1597 = vmatprep.subr.mxu0 0.0
    %1598 = vmatpush1.msra.mxu0 0.0
    %1599 = vmatprep.subr.mxu0 0.0
    %1600 = vmatpush1.msra.mxu0 %v398
    %1601 = vmatprep.subr.mxu0 0.0
    %1602 = vmatpush2.msra.mxu0 0.0
    %1603 = vmatprep.subr.mxu0 0.0
    %1604 = vmatpush2.msra.mxu0 0.0
    %1605 = vmatprep.subr.mxu0 0.0
    %1606 = vmatpush2.msra.mxu0 0.0
    %1607 = vmatprep.subr.mxu0 0.0
    %1608 = vmatpush2.msra.mxu0 0.0
    %1609 = vmatprep.subr.mxu0 0.0
    %1610 = vmatpush2.msra.mxu0 0.0
    %1611 = vmatprep.subr.mxu0 0.0
    %1612 = vmatpush2.msra.mxu0 0.0
    %1613 = vmatprep.subr.mxu0 0.0
    %1614 = vmatpush2.msra.mxu0 0.0
    %1615 = vmatprep.subr.mxu0 0.0
    %1616 = vmatpush2.msra.mxu0 0.0
    %1617 = vmatprep.subr.mxu0 0.0
    %1618 = vmatpush2.msra.mxu0 0.0
    %1619 = vmatprep.subr.mxu0 0.0
    %1620 = vmatpush2.msra.mxu0 0.0
    %1621 = vmatprep.subr.mxu0 0.0
    %1622 = vmatpush2.msra.mxu0 0.0
    %1623 = vmatprep.subr.mxu0 0.0
    %1624 = vmatpush2.msra.mxu0 0.0
    %1625 = vmatprep.subr.mxu0 0.0
    %1626 = vmatpush2.msra.mxu0 0.0
    %1627 = vmatprep.subr.mxu0 0.0
    %1628 = vmatpush2.msra.mxu0 0.0
    %1629 = vmatprep.subr.mxu0 0.0
    %1630 = vmatpush2.msra.mxu0 0.0
    %1631 = vmatprep.subr.mxu0 0.0
    %1632 = vmatpush2.msra.mxu0 0.0
    %1633 = vmatprep.mubr.f32.mxu0 0.0
    %1634 = vmatmul.mubr.f32.gmra.mxu0 %v1564
    %v1635 = vpop.f32.mrf.mxu0
    %v1636 = vadd.f32 0.0, %v1635
    %v1637 = vpop.f32.mrf.mxu0
    %1638 = vmatprep.mubr.f32.mxu0 0.0
    %1639 = vmatmul.mubr.f32.gmra.mxu0 %v1567
    %v1640 = vpop.f32.mrf.mxu0
    %v1641 = vadd.f32 0.0, %v1640
    %v1642 = vpop.f32.mrf.mxu0
    %1643 = vdwg.mxu0
    %v1644 = vadd.f32 %v1221, %v1636
    %v1645 = vadd.f32 %v1226, %v1641
    %1646 = vrot.lane.b32.xlu0 %v388, 104
    %v1647 = vpop.permute.xlu0 %1646
    %1648 = vrot.lane.b32.xlu0 %v388, 72
    %v1649 = vpop.permute.xlu0 %1648
    %v1650 = vsel %vm403, %v1647, 0
    %v1652 = vsel %vm403, %v1649, 0
    %1654 = vmatprep.subr.mxu0 0.0
    %1655 = vmatpush1.xpose.msra.mxu0 0.0
    %1656 = vmatprep.subr.mxu0 0.0
    %1657 = vmatpush1.xpose.msra.mxu0 0.0
    %1658 = vmatprep.subr.mxu0 0.0
    %1659 = vmatpush1.xpose.msra.mxu0 0.0
    %1660 = vmatprep.subr.mxu0 0.0
    %1661 = vmatpush1.xpose.msra.mxu0 0.0
    %1662 = vmatprep.subr.mxu0 0.0
    %1663 = vmatpush1.xpose.msra.mxu0 0.0
    %1664 = vmatprep.subr.mxu0 0.0
    %1665 = vmatpush1.xpose.msra.mxu0 0.0
    %1666 = vmatprep.subr.mxu0 0.0
    %1667 = vmatpush1.xpose.msra.mxu0 0.0
    %1668 = vmatprep.subr.mxu0 0.0
    %1669 = vmatpush1.xpose.msra.mxu0 0.0
    %1670 = vmatprep.subr.mxu0 0.0
    %1671 = vmatpush1.xpose.msra.mxu0 0.0
    %1672 = vmatprep.subr.mxu0 0.0
    %1673 = vmatpush1.xpose.msra.mxu0 0.0
    %1674 = vmatprep.subr.mxu0 0.0
    %1675 = vmatpush1.xpose.msra.mxu0 0.0
    %1676 = vmatprep.subr.mxu0 0.0
    %1677 = vmatpush1.xpose.msra.mxu0 0.0
    %1678 = vmatprep.subr.mxu0 0.0
    %1679 = vmatpush1.xpose.msra.mxu0 0.0
    %1680 = vmatprep.subr.mxu0 0.0
    %1681 = vmatpush1.xpose.msra.mxu0 0.0
    %1682 = vmatprep.subr.mxu0 0.0
    %1683 = vmatpush1.xpose.msra.mxu0 0.0
    %1684 = vmatprep.subr.mxu0 0.0
    %1685 = vmatpush1.xpose.msra.mxu0 %v1652
    %1686 = vmatprep.subr.mxu0 0.0
    %1687 = vmatpush2.xpose.msra.mxu0 0.0
    %1688 = vmatprep.subr.mxu0 0.0
    %1689 = vmatpush2.xpose.msra.mxu0 0.0
    %1690 = vmatprep.subr.mxu0 0.0
    %1691 = vmatpush2.xpose.msra.mxu0 0.0
    %1692 = vmatprep.subr.mxu0 0.0
    %1693 = vmatpush2.xpose.msra.mxu0 0.0
    %1694 = vmatprep.subr.mxu0 0.0
    %1695 = vmatpush2.xpose.msra.mxu0 0.0
    %1696 = vmatprep.subr.mxu0 0.0
    %1697 = vmatpush2.xpose.msra.mxu0 0.0
    %1698 = vmatprep.subr.mxu0 0.0
    %1699 = vmatpush2.xpose.msra.mxu0 0.0
    %1700 = vmatprep.subr.mxu0 0.0
    %1701 = vmatpush2.xpose.msra.mxu0 0.0
    %1702 = vmatprep.subr.mxu0 0.0
    %1703 = vmatpush2.xpose.msra.mxu0 0.0
    %1704 = vmatprep.subr.mxu0 0.0
    %1705 = vmatpush2.xpose.msra.mxu0 0.0
    %1706 = vmatprep.subr.mxu0 0.0
    %1707 = vmatpush2.xpose.msra.mxu0 0.0
    %1708 = vmatprep.subr.mxu0 0.0
    %1709 = vmatpush2.xpose.msra.mxu0 0.0
    %1710 = vmatprep.subr.mxu0 0.0
    %1711 = vmatpush2.xpose.msra.mxu0 0.0
    %1712 = vmatprep.subr.mxu0 0.0
    %1713 = vmatpush2.xpose.msra.mxu0 0.0
    %1714 = vmatprep.subr.mxu0 0.0
    %1715 = vmatpush2.xpose.msra.mxu0 0.0
    %1716 = vmatprep.subr.mxu0 0.0
    %1717 = vmatpush2.xpose.msra.mxu0 0.0
    %1718 = vmatprep.mubr.f32.mxu0 0.0
    %1719 = vmatmul.mubr.f32.gmra.mxu0 %v1650
    %v1720 = vpop.f32.mrf.mxu0
    %v1721 = vadd.f32 0.0, %v1720
    %v1722 = vpop.f32.mrf.mxu0
    %1723 = vdwg.mxu0
    %1724 = vrot.lane.b32.xlu0 %v393, 104
    %v1725 = vpop.permute.xlu0 %1724
    %1726 = vrot.lane.b32.xlu0 %v393, 72
    %v1727 = vpop.permute.xlu0 %1726
    %v1728 = vsel %vm403, %v1725, 0
    %v1730 = vsel %vm403, %v1727, 0
    %1732 = vmatprep.subr.mxu0 0.0
    %1733 = vmatpush1.xpose.msra.mxu0 0.0
    %1734 = vmatprep.subr.mxu0 0.0
    %1735 = vmatpush1.xpose.msra.mxu0 0.0
    %1736 = vmatprep.subr.mxu0 0.0
    %1737 = vmatpush1.xpose.msra.mxu0 0.0
    %1738 = vmatprep.subr.mxu0 0.0
    %1739 = vmatpush1.xpose.msra.mxu0 0.0
    %1740 = vmatprep.subr.mxu0 0.0
    %1741 = vmatpush1.xpose.msra.mxu0 0.0
    %1742 = vmatprep.subr.mxu0 0.0
    %1743 = vmatpush1.xpose.msra.mxu0 0.0
    %1744 = vmatprep.subr.mxu0 0.0
    %1745 = vmatpush1.xpose.msra.mxu0 0.0
    %1746 = vmatprep.subr.mxu0 0.0
    %1747 = vmatpush1.xpose.msra.mxu0 0.0
    %1748 = vmatprep.subr.mxu0 0.0
    %1749 = vmatpush1.xpose.msra.mxu0 0.0
    %1750 = vmatprep.subr.mxu0 0.0
    %1751 = vmatpush1.xpose.msra.mxu0 0.0
    %1752 = vmatprep.subr.mxu0 0.0
    %1753 = vmatpush1.xpose.msra.mxu0 0.0
    %1754 = vmatprep.subr.mxu0 0.0
    %1755 = vmatpush1.xpose.msra.mxu0 0.0
    %1756 = vmatprep.subr.mxu0 0.0
    %1757 = vmatpush1.xpose.msra.mxu0 0.0
    %1758 = vmatprep.subr.mxu0 0.0
    %1759 = vmatpush1.xpose.msra.mxu0 0.0
    %1760 = vmatprep.subr.mxu0 0.0
    %1761 = vmatpush1.xpose.msra.mxu0 0.0
    %1762 = vmatprep.subr.mxu0 0.0
    %1763 = vmatpush1.xpose.msra.mxu0 %v1730
    %1764 = vmatprep.subr.mxu0 0.0
    %1765 = vmatpush2.xpose.msra.mxu0 0.0
    %1766 = vmatprep.subr.mxu0 0.0
    %1767 = vmatpush2.xpose.msra.mxu0 0.0
    %1768 = vmatprep.subr.mxu0 0.0
    %1769 = vmatpush2.xpose.msra.mxu0 0.0
    %1770 = vmatprep.subr.mxu0 0.0
    %1771 = vmatpush2.xpose.msra.mxu0 0.0
    %1772 = vmatprep.subr.mxu0 0.0
    %1773 = vmatpush2.xpose.msra.mxu0 0.0
    %1774 = vmatprep.subr.mxu0 0.0
    %1775 = vmatpush2.xpose.msra.mxu0 0.0
    %1776 = vmatprep.subr.mxu0 0.0
    %1777 = vmatpush2.xpose.msra.mxu0 0.0
    %1778 = vmatprep.subr.mxu0 0.0
    %1779 = vmatpush2.xpose.msra.mxu0 0.0
    %1780 = vmatprep.subr.mxu0 0.0
    %1781 = vmatpush2.xpose.msra.mxu0 0.0
    %1782 = vmatprep.subr.mxu0 0.0
    %1783 = vmatpush2.xpose.msra.mxu0 0.0
    %1784 = vmatprep.subr.mxu0 0.0
    %1785 = vmatpush2.xpose.msra.mxu0 0.0
    %1786 = vmatprep.subr.mxu0 0.0
    %1787 = vmatpush2.xpose.msra.mxu0 0.0
    %1788 = vmatprep.subr.mxu0 0.0
    %1789 = vmatpush2.xpose.msra.mxu0 0.0
    %1790 = vmatprep.subr.mxu0 0.0
    %1791 = vmatpush2.xpose.msra.mxu0 0.0
    %1792 = vmatprep.subr.mxu0 0.0
    %1793 = vmatpush2.xpose.msra.mxu0 0.0
    %1794 = vmatprep.subr.mxu0 0.0
    %1795 = vmatpush2.xpose.msra.mxu0 0.0
    %1796 = vmatprep.mubr.f32.mxu0 0.0
    %1797 = vmatmul.mubr.f32.gmra.mxu0 %v1728
    %v1798 = vpop.f32.mrf.mxu0
    %v1799 = vadd.f32 0.0, %v1798
    %v1800 = vpop.f32.mrf.mxu0
    %1801 = vdwg.mxu0
    %v1802 = vmul.f32 %v1721, 0.35355338
    %v1803 = vmul.f32 %v1799, 0.35355338
    %v1804 = vadd.f32 %v1802, %v296
    %v1805 = vadd.f32 %v1803, %v297
    %v1806 = vsel %vm403, %v1804, -inf
    %1807 = vmax.xlane.f32.xlu0 %v1806
    %v1808 = vpop.xlane.xlu0 %1807
    %v1809 = vsel %vm403, %v1805, -inf
    %1810 = vmax.xlane.f32.xlu0 %v1809
    %v1811 = vpop.xlane.xlu0 %1810
    %v1812 = vsub.f32 %v1804, %v1808
    %v1813 = vsub.f32 %v1805, %v1811
    %v1814 = vmul.f32 %v1812, 1.442695
    %v1815 = vpow.pop %v1814
    %v1816 = vmul.f32 %v1813, 1.442695
    %v1817 = vpow.pop %v1816
    %v1818 = vsel %vm403, %v1815, 0.0
    %1819 = vadd.xlane.f32.xlu0 %v1818
    %v1820 = vpop.xlane.xlu0 %1819
    %v1821 = vsel %vm403, %v1817, 0.0
    %1822 = vadd.xlane.f32.xlu0 %v1821
    %v1823 = vpop.xlane.xlu0 %1822
    %v1824 = vrcp.pop %v1820
    %v1825 = vrcp.pop %v1823
    %v1826 = vmul.f32 %v1815, %v1824
    %v1827 = vmul.f32 %v1817, %v1825
    %1828 = vrot.lane.b32.xlu0 %v388, 40
    %v1829 = vpop.permute.xlu0 %1828
    %v1832 = vsel %vm403, %v1826, 0
    %1834 = vmatprep.subr.mxu0 0.0
    %1835 = vmatpush1.msra.mxu0 0.0
    %1836 = vmatprep.subr.mxu0 0.0
    %1837 = vmatpush1.msra.mxu0 0.0
    %1838 = vmatprep.subr.mxu0 0.0
    %1839 = vmatpush1.msra.mxu0 0.0
    %1840 = vmatprep.subr.mxu0 0.0
    %1841 = vmatpush1.msra.mxu0 0.0
    %1842 = vmatprep.subr.mxu0 0.0
    %1843 = vmatpush1.msra.mxu0 0.0
    %1844 = vmatprep.subr.mxu0 0.0
    %1845 = vmatpush1.msra.mxu0 0.0
    %1846 = vmatprep.subr.mxu0 0.0
    %1847 = vmatpush1.msra.mxu0 0.0
    %1848 = vmatprep.subr.mxu0 0.0
    %1849 = vmatpush1.msra.mxu0 0.0
    %1850 = vmatprep.subr.mxu0 0.0
    %1851 = vmatpush1.msra.mxu0 0.0
    %1852 = vmatprep.subr.mxu0 0.0
    %1853 = vmatpush1.msra.mxu0 0.0
    %1854 = vmatprep.subr.mxu0 0.0
    %1855 = vmatpush1.msra.mxu0 0.0
    %1856 = vmatprep.subr.mxu0 0.0
    %1857 = vmatpush1.msra.mxu0 0.0
    %1858 = vmatprep.subr.mxu0 0.0
    %1859 = vmatpush1.msra.mxu0 0.0
    %1860 = vmatprep.subr.mxu0 0.0
    %1861 = vmatpush1.msra.mxu0 0.0
    %1862 = vmatprep.subr.mxu0 0.0
    %1863 = vmatpush1.msra.mxu0 0.0
    %1864 = vmatprep.subr.mxu0 0.0
    %1865 = vmatpush1.msra.mxu0 %v1829
    %1866 = vmatprep.subr.mxu0 0.0
    %1867 = vmatpush2.msra.mxu0 0.0
    %1868 = vmatprep.subr.mxu0 0.0
    %1869 = vmatpush2.msra.mxu0 0.0
    %1870 = vmatprep.subr.mxu0 0.0
    %1871 = vmatpush2.msra.mxu0 0.0
    %1872 = vmatprep.subr.mxu0 0.0
    %1873 = vmatpush2.msra.mxu0 0.0
    %1874 = vmatprep.subr.mxu0 0.0
    %1875 = vmatpush2.msra.mxu0 0.0
    %1876 = vmatprep.subr.mxu0 0.0
    %1877 = vmatpush2.msra.mxu0 0.0
    %1878 = vmatprep.subr.mxu0 0.0
    %1879 = vmatpush2.msra.mxu0 0.0
    %1880 = vmatprep.subr.mxu0 0.0
    %1881 = vmatpush2.msra.mxu0 0.0
    %1882 = vmatprep.subr.mxu0 0.0
    %1883 = vmatpush2.msra.mxu0 0.0
    %1884 = vmatprep.subr.mxu0 0.0
    %1885 = vmatpush2.msra.mxu0 0.0
    %1886 = vmatprep.subr.mxu0 0.0
    %1887 = vmatpush2.msra.mxu0 0.0
    %1888 = vmatprep.subr.mxu0 0.0
    %1889 = vmatpush2.msra.mxu0 0.0
    %1890 = vmatprep.subr.mxu0 0.0
    %1891 = vmatpush2.msra.mxu0 0.0
    %1892 = vmatprep.subr.mxu0 0.0
    %1893 = vmatpush2.msra.mxu0 0.0
    %1894 = vmatprep.subr.mxu0 0.0
    %1895 = vmatpush2.msra.mxu0 0.0
    %1896 = vmatprep.subr.mxu0 0.0
    %1897 = vmatpush2.msra.mxu0 0.0
    %1898 = vmatprep.mubr.f32.mxu0 0.0
    %1899 = vmatmul.mubr.f32.gmra.mxu0 %v1832
    %v1900 = vpop.f32.mrf.mxu0
    %v1901 = vadd.f32 0.0, %v1900
    %v1902 = vpop.f32.mrf.mxu0
    %1903 = vdwg.mxu0
    %1904 = vrot.lane.b32.xlu0 %v393, 40
    %v1905 = vpop.permute.xlu0 %1904
    %v1908 = vsel %vm403, %v1827, 0
    %1910 = vmatprep.subr.mxu0 0.0
    %1911 = vmatpush1.msra.mxu0 0.0
    %1912 = vmatprep.subr.mxu0 0.0
    %1913 = vmatpush1.msra.mxu0 0.0
    %1914 = vmatprep.subr.mxu0 0.0
    %1915 = vmatpush1.msra.mxu0 0.0
    %1916 = vmatprep.subr.mxu0 0.0
    %1917 = vmatpush1.msra.mxu0 0.0
    %1918 = vmatprep.subr.mxu0 0.0
    %1919 = vmatpush1.msra.mxu0 0.0
    %1920 = vmatprep.subr.mxu0 0.0
    %1921 = vmatpush1.msra.mxu0 0.0
    %1922 = vmatprep.subr.mxu0 0.0
    %1923 = vmatpush1.msra.mxu0 0.0
    %1924 = vmatprep.subr.mxu0 0.0
    %1925 = vmatpush1.msra.mxu0 0.0
    %1926 = vmatprep.subr.mxu0 0.0
    %1927 = vmatpush1.msra.mxu0 0.0
    %1928 = vmatprep.subr.mxu0 0.0
    %1929 = vmatpush1.msra.mxu0 0.0
    %1930 = vmatprep.subr.mxu0 0.0
    %1931 = vmatpush1.msra.mxu0 0.0
    %1932 = vmatprep.subr.mxu0 0.0
    %1933 = vmatpush1.msra.mxu0 0.0
    %1934 = vmatprep.subr.mxu0 0.0
    %1935 = vmatpush1.msra.mxu0 0.0
    %1936 = vmatprep.subr.mxu0 0.0
    %1937 = vmatpush1.msra.mxu0 0.0
    %1938 = vmatprep.subr.mxu0 0.0
    %1939 = vmatpush1.msra.mxu0 0.0
    %1940 = vmatprep.subr.mxu0 0.0
    %1941 = vmatpush1.msra.mxu0 %v1905
    %1942 = vmatprep.subr.mxu0 0.0
    %1943 = vmatpush2.msra.mxu0 0.0
    %1944 = vmatprep.subr.mxu0 0.0
    %1945 = vmatpush2.msra.mxu0 0.0
    %1946 = vmatprep.subr.mxu0 0.0
    %1947 = vmatpush2.msra.mxu0 0.0
    %1948 = vmatprep.subr.mxu0 0.0
    %1949 = vmatpush2.msra.mxu0 0.0
    %1950 = vmatprep.subr.mxu0 0.0
    %1951 = vmatpush2.msra.mxu0 0.0
    %1952 = vmatprep.subr.mxu0 0.0
    %1953 = vmatpush2.msra.mxu0 0.0
    %1954 = vmatprep.subr.mxu0 0.0
    %1955 = vmatpush2.msra.mxu0 0.0
    %1956 = vmatprep.subr.mxu0 0.0
    %1957 = vmatpush2.msra.mxu0 0.0
    %1958 = vmatprep.subr.mxu0 0.0
    %1959 = vmatpush2.msra.mxu0 0.0
    %1960 = vmatprep.subr.mxu0 0.0
    %1961 = vmatpush2.msra.mxu0 0.0
    %1962 = vmatprep.subr.mxu0 0.0
    %1963 = vmatpush2.msra.mxu0 0.0
    %1964 = vmatprep.subr.mxu0 0.0
    %1965 = vmatpush2.msra.mxu0 0.0
    %1966 = vmatprep.subr.mxu0 0.0
    %1967 = vmatpush2.msra.mxu0 0.0
    %1968 = vmatprep.subr.mxu0 0.0
    %1969 = vmatpush2.msra.mxu0 0.0
    %1970 = vmatprep.subr.mxu0 0.0
    %1971 = vmatpush2.msra.mxu0 0.0
    %1972 = vmatprep.subr.mxu0 0.0
    %1973 = vmatpush2.msra.mxu0 0.0
    %1974 = vmatprep.mubr.f32.mxu0 0.0
    %1975 = vmatmul.mubr.f32.gmra.mxu0 %v1908
    %v1976 = vpop.f32.mrf.mxu0
    %v1977 = vadd.f32 0.0, %v1976
    %v1978 = vpop.f32.mrf.mxu0
    %1979 = vdwg.mxu0
    %v1981 = vsel %vm403, %v1901, 0
    %v1984 = vsel %vm403, %v1977, 0
    %1986 = vmatprep.subr.mxu0 0.0
    %1987 = vmatpush1.msra.mxu0 0.0
    %1988 = vmatprep.subr.mxu0 0.0
    %1989 = vmatpush1.msra.mxu0 0.0
    %1990 = vmatprep.subr.mxu0 0.0
    %1991 = vmatpush1.msra.mxu0 0.0
    %1992 = vmatprep.subr.mxu0 0.0
    %1993 = vmatpush1.msra.mxu0 0.0
    %1994 = vmatprep.subr.mxu0 0.0
    %1995 = vmatpush1.msra.mxu0 0.0
    %1996 = vmatprep.subr.mxu0 0.0
    %1997 = vmatpush1.msra.mxu0 0.0
    %1998 = vmatprep.subr.mxu0 0.0
    %1999 = vmatpush1.msra.mxu0 0.0
    %2000 = vmatprep.subr.mxu0 0.0
    %2001 = vmatpush1.msra.mxu0 0.0
    %2002 = vmatprep.subr.mxu0 0.0
    %2003 = vmatpush1.msra.mxu0 0.0
    %2004 = vmatprep.subr.mxu0 0.0
    %2005 = vmatpush1.msra.mxu0 0.0
    %2006 = vmatprep.subr.mxu0 0.0
    %2007 = vmatpush1.msra.mxu0 0.0
    %2008 = vmatprep.subr.mxu0 0.0
    %2009 = vmatpush1.msra.mxu0 0.0
    %2010 = vmatprep.subr.mxu0 0.0
    %2011 = vmatpush1.msra.mxu0 0.0
    %2012 = vmatprep.subr.mxu0 0.0
    %2013 = vmatpush1.msra.mxu0 0.0
    %2014 = vmatprep.subr.mxu0 0.0
    %2015 = vmatpush1.msra.mxu0 0.0
    %2016 = vmatprep.subr.mxu0 0.0
    %2017 = vmatpush1.msra.mxu0 %v399
    %2018 = vmatprep.subr.mxu0 0.0
    %2019 = vmatpush2.msra.mxu0 0.0
    %2020 = vmatprep.subr.mxu0 0.0
    %2021 = vmatpush2.msra.mxu0 0.0
    %2022 = vmatprep.subr.mxu0 0.0
    %2023 = vmatpush2.msra.mxu0 0.0
    %2024 = vmatprep.subr.mxu0 0.0
    %2025 = vmatpush2.msra.mxu0 0.0
    %2026 = vmatprep.subr.mxu0 0.0
    %2027 = vmatpush2.msra.mxu0 0.0
    %2028 = vmatprep.subr.mxu0 0.0
    %2029 = vmatpush2.msra.mxu0 0.0
    %2030 = vmatprep.subr.mxu0 0.0
    %2031 = vmatpush2.msra.mxu0 0.0
    %2032 = vmatprep.subr.mxu0 0.0
    %2033 = vmatpush2.msra.mxu0 0.0
    %2034 = vmatprep.subr.mxu0 0.0
    %2035 = vmatpush2.msra.mxu0 0.0
    %2036 = vmatprep.subr.mxu0 0.0
    %2037 = vmatpush2.msra.mxu0 0.0
    %2038 = vmatprep.subr.mxu0 0.0
    %2039 = vmatpush2.msra.mxu0 0.0
    %2040 = vmatprep.subr.mxu0 0.0
    %2041 = vmatpush2.msra.mxu0 0.0
    %2042 = vmatprep.subr.mxu0 0.0
    %2043 = vmatpush2.msra.mxu0 0.0
    %2044 = vmatprep.subr.mxu0 0.0
    %2045 = vmatpush2.msra.mxu0 0.0
    %2046 = vmatprep.subr.mxu0 0.0
    %2047 = vmatpush2.msra.mxu0 0.0
    %2048 = vmatprep.subr.mxu0 0.0
    %2049 = vmatpush2.msra.mxu0 0.0
    %2050 = vmatprep.mubr.f32.mxu0 0.0
    %2051 = vmatmul.mubr.f32.gmra.mxu0 %v1981
    %v2052 = vpop.f32.mrf.mxu0
    %v2053 = vadd.f32 0.0, %v2052
    %v2054 = vpop.f32.mrf.mxu0
    %2055 = vmatprep.mubr.f32.mxu0 0.0
    %2056 = vmatmul.mubr.f32.gmra.mxu0 %v1984
    %v2057 = vpop.f32.mrf.mxu0
    %v2058 = vadd.f32 0.0, %v2057
    %v2059 = vpop.f32.mrf.mxu0
    %2060 = vdwg.mxu0
    %v2061 = vadd.f32 %v1644, %v2053
    %v2062 = vadd.f32 %v1645, %v2058
    %v2063 = vlaneseq
    %v2064 = vshrl.u32 %v2063, 7
    %v2065 = vsub.s32 1, %v2064
    %v2066 = vrot.slane %v304, %v2065
    %v2067 = vadd.f32 %v2061, %v2066
    %v2068 = vadd.f32 %v2062, %v2066
    %v2069 = vadd.f32 %v199, %v2067
    %v2070 = vadd.f32 %v200, %v2068
    %v2071 = vsel %vm314, %v2069, 0.0
    %2072 = vadd.xlane.f32.xlu0 %v2071
    %v2073 = vpop.xlane.xlu0 %2072
    %v2074 = vsel %vm314, %v2070, 0.0
    %2075 = vadd.xlane.f32.xlu0 %v2074
    %v2076 = vpop.xlane.xlu0 %2075
    %v2077 = vrcp.pop 32.0
    %v2078 = vmul.f32 %v2073, %v2077
    %v2079 = vmul.f32 %v2076, %v2077
    %v2080 = vsub.f32 %v2069, %v2078
    %v2081 = vsub.f32 %v2070, %v2079
    %v2082 = vmul.f32 %v2080, %v2080
    %v2083 = vmul.f32 %v2081, %v2081
    %v2084 = vsel %vm314, %v2082, 0.0
    %2085 = vadd.xlane.f32.xlu0 %v2084
    %v2086 = vpop.xlane.xlu0 %2085
    %v2087 = vsel %vm314, %v2083, 0.0
    %2088 = vadd.xlane.f32.xlu0 %v2087
    %v2089 = vpop.xlane.xlu0 %2088
    %v2090 = vmul.f32 %v2086, %v2077
    %v2091 = vmul.f32 %v2089, %v2077
    %v2092 = vadd.f32 %v2090, 1e-05
    %v2093 = vadd.f32 %v2091, 1e-05
    %v2094 = vrsqrt.pop %v2092
    %v2095 = vrsqrt.pop %v2093
    %v2096 = vmul.f32 %v2080, %v2094
    %v2097 = vmul.f32 %v2081, %v2095
    %v2098 = vlaneseq
    %v2099 = vshrl.u32 %v2098, 7
    %v2100 = vsub.s32 2, %v2099
    %v2101 = vrot.slane %v304, %v2100
    %v2102 = vmul.f32 %v2096, %v2101
    %v2103 = vmul.f32 %v2097, %v2101
    %v2104 = vlaneseq
    %v2105 = vshrl.u32 %v2104, 7
    %v2106 = vsub.s32 3, %v2105
    %v2107 = vrot.slane %v304, %v2106
    %v2108 = vadd.f32 %v2102, %v2107
    %v2109 = vadd.f32 %v2103, %v2107
    %v2110 = vld [vmem:[%s10] sm:$0xff]
    %v2111 = vld [vmem:[%s10 + $0x8] sm:$0xff]
    %v2112 = vld [vmem:[%s10 + $0x10] sm:$0xff]
    %v2113 = vld [vmem:[%s10 + $0x18] sm:$0xff]
    %v2114 = vlaneseq
    %v2115 = vshrl.u32 %v2114, 7
    %v2116 = vsub.s32 4, %v2115
    %v2117 = vrot.slane %v304, %v2116
    %v2119 = vsel %vm314, %v2108, 0
    %v2122 = vsel %vm314, %v2109, 0
    %2124 = vmatprep.subr.mxu0 0.0
    %2125 = vmatpush1.msra.mxu0 0.0
    %2126 = vmatprep.subr.mxu0 0.0
    %2127 = vmatpush1.msra.mxu0 0.0
    %2128 = vmatprep.subr.mxu0 0.0
    %2129 = vmatpush1.msra.mxu0 0.0
    %2130 = vmatprep.subr.mxu0 0.0
    %2131 = vmatpush1.msra.mxu0 0.0
    %2132 = vmatprep.subr.mxu0 0.0
    %2133 = vmatpush1.msra.mxu0 0.0
    %2134 = vmatprep.subr.mxu0 0.0
    %2135 = vmatpush1.msra.mxu0 0.0
    %2136 = vmatprep.subr.mxu0 0.0
    %2137 = vmatpush1.msra.mxu0 0.0
    %2138 = vmatprep.subr.mxu0 0.0
    %2139 = vmatpush1.msra.mxu0 0.0
    %2140 = vmatprep.subr.mxu0 0.0
    %2141 = vmatpush1.msra.mxu0 0.0
    %2142 = vmatprep.subr.mxu0 0.0
    %2143 = vmatpush1.msra.mxu0 0.0
    %2144 = vmatprep.subr.mxu0 0.0
    %2145 = vmatpush1.msra.mxu0 0.0
    %2146 = vmatprep.subr.mxu0 0.0
    %2147 = vmatpush1.msra.mxu0 0.0
    %2148 = vmatprep.subr.mxu0 0.0
    %2149 = vmatpush1.msra.mxu0 %v2113
    %2150 = vmatprep.subr.mxu0 0.0
    %2151 = vmatpush1.msra.mxu0 %v2112
    %2152 = vmatprep.subr.mxu0 0.0
    %2153 = vmatpush1.msra.mxu0 %v2111
    %2154 = vmatprep.subr.mxu0 0.0
    %2155 = vmatpush1.msra.mxu0 %v2110
    %2156 = vmatprep.subr.mxu0 0.0
    %2157 = vmatpush2.msra.mxu0 0.0
    %2158 = vmatprep.subr.mxu0 0.0
    %2159 = vmatpush2.msra.mxu0 0.0
    %2160 = vmatprep.subr.mxu0 0.0
    %2161 = vmatpush2.msra.mxu0 0.0
    %2162 = vmatprep.subr.mxu0 0.0
    %2163 = vmatpush2.msra.mxu0 0.0
    %2164 = vmatprep.subr.mxu0 0.0
    %2165 = vmatpush2.msra.mxu0 0.0
    %2166 = vmatprep.subr.mxu0 0.0
    %2167 = vmatpush2.msra.mxu0 0.0
    %2168 = vmatprep.subr.mxu0 0.0
    %2169 = vmatpush2.msra.mxu0 0.0
    %2170 = vmatprep.subr.mxu0 0.0
    %2171 = vmatpush2.msra.mxu0 0.0
    %2172 = vmatprep.subr.mxu0 0.0
    %2173 = vmatpush2.msra.mxu0 0.0
    %2174 = vmatprep.subr.mxu0 0.0
    %2175 = vmatpush2.msra.mxu0 0.0
    %2176 = vmatprep.subr.mxu0 0.0
    %2177 = vmatpush2.msra.mxu0 0.0
    %2178 = vmatprep.subr.mxu0 0.0
    %2179 = vmatpush2.msra.mxu0 0.0
    %2180 = vmatprep.subr.mxu0 0.0
    %2181 = vmatpush2.msra.mxu0 0.0
    %2182 = vmatprep.subr.mxu0 0.0
    %2183 = vmatpush2.msra.mxu0 0.0
    %2184 = vmatprep.subr.mxu0 0.0
    %2185 = vmatpush2.msra.mxu0 0.0
    %2186 = vmatprep.subr.mxu0 0.0
    %2187 = vmatpush2.msra.mxu0 0.0
    %2188 = vmatprep.mubr.f32.mxu0 0.0
    %2189 = vmatmul.mubr.f32.gmra.mxu0 %v2119
    %v2190 = vpop.f32.mrf.mxu0
    %v2191 = vadd.f32 %v2117, %v2190
    %v2192 = vpop.f32.mrf.mxu0
    %2193 = vmatprep.mubr.f32.mxu0 0.0
    %2194 = vmatmul.mubr.f32.gmra.mxu0 %v2122
    %v2195 = vpop.f32.mrf.mxu0
    %v2196 = vadd.f32 %v2117, %v2195
    %v2197 = vpop.f32.mrf.mxu0
    %2198 = vdwg.mxu0
    %v2199 = vld [vmem:[%s11] sm:$0xff]
    %v2200 = vld [vmem:[%s11 + $0x8] sm:$0xff]
    %v2201 = vld [vmem:[%s11 + $0x10] sm:$0xff]
    %v2202 = vld [vmem:[%s11 + $0x18] sm:$0xff]
    %v2203 = vlaneseq
    %v2204 = vshrl.u32 %v2203, 7
    %v2205 = vsub.s32 5, %v2204
    %v2206 = vrot.slane %v304, %v2205
    %v2208 = vsel %vm314, %v290, 0
    %v2211 = vsel %vm314, %v291, 0
    %2213 = vmatprep.subr.mxu0 0.0
    %2214 = vmatpush1.msra.mxu0 0.0
    %2215 = vmatprep.subr.mxu0 0.0
    %2216 = vmatpush1.msra.mxu0 0.0
    %2217 = vmatprep.subr.mxu0 0.0
    %2218 = vmatpush1.msra.mxu0 0.0
    %2219 = vmatprep.subr.mxu0 0.0
    %2220 = vmatpush1.msra.mxu0 0.0
    %2221 = vmatprep.subr.mxu0 0.0
    %2222 = vmatpush1.msra.mxu0 0.0
    %2223 = vmatprep.subr.mxu0 0.0
    %2224 = vmatpush1.msra.mxu0 0.0
    %2225 = vmatprep.subr.mxu0 0.0
    %2226 = vmatpush1.msra.mxu0 0.0
    %2227 = vmatprep.subr.mxu0 0.0
    %2228 = vmatpush1.msra.mxu0 0.0
    %2229 = vmatprep.subr.mxu0 0.0
    %2230 = vmatpush1.msra.mxu0 0.0
    %2231 = vmatprep.subr.mxu0 0.0
    %2232 = vmatpush1.msra.mxu0 0.0
    %2233 = vmatprep.subr.mxu0 0.0
    %2234 = vmatpush1.msra.mxu0 0.0
    %2235 = vmatprep.subr.mxu0 0.0
    %2236 = vmatpush1.msra.mxu0 0.0
    %2237 = vmatprep.subr.mxu0 0.0
    %2238 = vmatpush1.msra.mxu0 %v2202
    %2239 = vmatprep.subr.mxu0 0.0
    %2240 = vmatpush1.msra.mxu0 %v2201
    %2241 = vmatprep.subr.mxu0 0.0
    %2242 = vmatpush1.msra.mxu0 %v2200
    %2243 = vmatprep.subr.mxu0 0.0
    %2244 = vmatpush1.msra.mxu0 %v2199
    %2245 = vmatprep.subr.mxu0 0.0
    %2246 = vmatpush2.msra.mxu0 0.0
    %2247 = vmatprep.subr.mxu0 0.0
    %2248 = vmatpush2.msra.mxu0 0.0
    %2249 = vmatprep.subr.mxu0 0.0
    %2250 = vmatpush2.msra.mxu0 0.0
    %2251 = vmatprep.subr.mxu0 0.0
    %2252 = vmatpush2.msra.mxu0 0.0
    %2253 = vmatprep.subr.mxu0 0.0
    %2254 = vmatpush2.msra.mxu0 0.0
    %2255 = vmatprep.subr.mxu0 0.0
    %2256 = vmatpush2.msra.mxu0 0.0
    %2257 = vmatprep.subr.mxu0 0.0
    %2258 = vmatpush2.msra.mxu0 0.0
    %2259 = vmatprep.subr.mxu0 0.0
    %2260 = vmatpush2.msra.mxu0 0.0
    %2261 = vmatprep.subr.mxu0 0.0
    %2262 = vmatpush2.msra.mxu0 0.0
    %2263 = vmatprep.subr.mxu0 0.0
    %2264 = vmatpush2.msra.mxu0 0.0
    %2265 = vmatprep.subr.mxu0 0.0
    %2266 = vmatpush2.msra.mxu0 0.0
    %2267 = vmatprep.subr.mxu0 0.0
    %2268 = vmatpush2.msra.mxu0 0.0
    %2269 = vmatprep.subr.mxu0 0.0
    %2270 = vmatpush2.msra.mxu0 0.0
    %2271 = vmatprep.subr.mxu0 0.0
    %2272 = vmatpush2.msra.mxu0 0.0
    %2273 = vmatprep.subr.mxu0 0.0
    %2274 = vmatpush2.msra.mxu0 0.0
    %2275 = vmatprep.subr.mxu0 0.0
    %2276 = vmatpush2.msra.mxu0 0.0
    %2277 = vmatprep.mubr.f32.mxu0 0.0
    %2278 = vmatmul.mubr.f32.gmra.mxu0 %v2208
    %v2279 = vpop.f32.mrf.mxu0
    %v2280 = vadd.f32 %v2206, %v2279
    %v2281 = vpop.f32.mrf.mxu0
    %2282 = vmatprep.mubr.f32.mxu0 0.0
    %2283 = vmatmul.mubr.f32.gmra.mxu0 %v2211
    %v2284 = vpop.f32.mrf.mxu0
    %v2285 = vadd.f32 %v2206, %v2284
    %v2286 = vpop.f32.mrf.mxu0
    %2287 = vdwg.mxu0
    %v2288 = vld [vmem:[%s12] sm:$0xff]
    %v2289 = vld [vmem:[%s12 + $0x8] sm:$0xff]
    %v2290 = vld [vmem:[%s12 + $0x10] sm:$0xff]
    %v2291 = vld [vmem:[%s12 + $0x18] sm:$0xff]
    %v2293 = vsel %vm403, %v2191, 0
    %v2296 = vsel %vm403, %v2280, 0
    %2298 = vmatprep.subr.mxu0 0.0
    %2299 = vmatpush1.xpose.msra.mxu0 0.0
    %2300 = vmatprep.subr.mxu0 0.0
    %2301 = vmatpush1.xpose.msra.mxu0 0.0
    %2302 = vmatprep.subr.mxu0 0.0
    %2303 = vmatpush1.xpose.msra.mxu0 0.0
    %2304 = vmatprep.subr.mxu0 0.0
    %2305 = vmatpush1.xpose.msra.mxu0 0.0
    %2306 = vmatprep.subr.mxu0 0.0
    %2307 = vmatpush1.xpose.msra.mxu0 0.0
    %2308 = vmatprep.subr.mxu0 0.0
    %2309 = vmatpush1.xpose.msra.mxu0 0.0
    %2310 = vmatprep.subr.mxu0 0.0
    %2311 = vmatpush1.xpose.msra.mxu0 0.0
    %2312 = vmatprep.subr.mxu0 0.0
    %2313 = vmatpush1.xpose.msra.mxu0 0.0
    %2314 = vmatprep.subr.mxu0 0.0
    %2315 = vmatpush1.xpose.msra.mxu0 0.0
    %2316 = vmatprep.subr.mxu0 0.0
    %2317 = vmatpush1.xpose.msra.mxu0 0.0
    %2318 = vmatprep.subr.mxu0 0.0
    %2319 = vmatpush1.xpose.msra.mxu0 0.0
    %2320 = vmatprep.subr.mxu0 0.0
    %2321 = vmatpush1.xpose.msra.mxu0 0.0
    %2322 = vmatprep.subr.mxu0 0.0
    %2323 = vmatpush1.xpose.msra.mxu0 0.0
    %2324 = vmatprep.subr.mxu0 0.0
    %2325 = vmatpush1.xpose.msra.mxu0 0.0
    %2326 = vmatprep.subr.mxu0 0.0
    %2327 = vmatpush1.xpose.msra.mxu0 0.0
    %2328 = vmatprep.subr.mxu0 0.0
    %2329 = vmatpush1.xpose.msra.mxu0 %v2296
    %2330 = vmatprep.subr.mxu0 0.0
    %2331 = vmatpush2.xpose.msra.mxu0 0.0
    %2332 = vmatprep.subr.mxu0 0.0
    %2333 = vmatpush2.xpose.msra.mxu0 0.0
    %2334 = vmatprep.subr.mxu0 0.0
    %2335 = vmatpush2.xpose.msra.mxu0 0.0
    %2336 = vmatprep.subr.mxu0 0.0
    %2337 = vmatpush2.xpose.msra.mxu0 0.0
    %2338 = vmatprep.subr.mxu0 0.0
    %2339 = vmatpush2.xpose.msra.mxu0 0.0
    %2340 = vmatprep.subr.mxu0 0.0
    %2341 = vmatpush2.xpose.msra.mxu0 0.0
    %2342 = vmatprep.subr.mxu0 0.0
    %2343 = vmatpush2.xpose.msra.mxu0 0.0
    %2344 = vmatprep.subr.mxu0 0.0
    %2345 = vmatpush2.xpose.msra.mxu0 0.0
    %2346 = vmatprep.subr.mxu0 0.0
    %2347 = vmatpush2.xpose.msra.mxu0 0.0
    %2348 = vmatprep.subr.mxu0 0.0
    %2349 = vmatpush2.xpose.msra.mxu0 0.0
    %2350 = vmatprep.subr.mxu0 0.0
    %2351 = vmatpush2.xpose.msra.mxu0 0.0
    %2352 = vmatprep.subr.mxu0 0.0
    %2353 = vmatpush2.xpose.msra.mxu0 0.0
    %2354 = vmatprep.subr.mxu0 0.0
    %2355 = vmatpush2.xpose.msra.mxu0 0.0
    %2356 = vmatprep.subr.mxu0 0.0
    %2357 = vmatpush2.xpose.msra.mxu0 0.0
    %2358 = vmatprep.subr.mxu0 0.0
    %2359 = vmatpush2.xpose.msra.mxu0 0.0
    %2360 = vmatprep.subr.mxu0 0.0
    %2361 = vmatpush2.xpose.msra.mxu0 0.0
    %2362 = vmatprep.mubr.f32.mxu0 0.0
    %2363 = vmatmul.mubr.f32.gmra.mxu0 %v2293
    %v2364 = vpop.f32.mrf.mxu0
    %v2365 = vadd.f32 0.0, %v2364
    %v2366 = vpop.f32.mrf.mxu0
    %2367 = vdwg.mxu0
    %v2369 = vsel %vm403, %v2196, 0
    %v2372 = vsel %vm403, %v2285, 0
    %2374 = vmatprep.subr.mxu0 0.0
    %2375 = vmatpush1.xpose.msra.mxu0 0.0
    %2376 = vmatprep.subr.mxu0 0.0
    %2377 = vmatpush1.xpose.msra.mxu0 0.0
    %2378 = vmatprep.subr.mxu0 0.0
    %2379 = vmatpush1.xpose.msra.mxu0 0.0
    %2380 = vmatprep.subr.mxu0 0.0
    %2381 = vmatpush1.xpose.msra.mxu0 0.0
    %2382 = vmatprep.subr.mxu0 0.0
    %2383 = vmatpush1.xpose.msra.mxu0 0.0
    %2384 = vmatprep.subr.mxu0 0.0
    %2385 = vmatpush1.xpose.msra.mxu0 0.0
    %2386 = vmatprep.subr.mxu0 0.0
    %2387 = vmatpush1.xpose.msra.mxu0 0.0
    %2388 = vmatprep.subr.mxu0 0.0
    %2389 = vmatpush1.xpose.msra.mxu0 0.0
    %2390 = vmatprep.subr.mxu0 0.0
    %2391 = vmatpush1.xpose.msra.mxu0 0.0
    %2392 = vmatprep.subr.mxu0 0.0
    %2393 = vmatpush1.xpose.msra.mxu0 0.0
    %2394 = vmatprep.subr.mxu0 0.0
    %2395 = vmatpush1.xpose.msra.mxu0 0.0
    %2396 = vmatprep.subr.mxu0 0.0
    %2397 = vmatpush1.xpose.msra.mxu0 0.0
    %2398 = vmatprep.subr.mxu0 0.0
    %2399 = vmatpush1.xpose.msra.mxu0 0.0
    %2400 = vmatprep.subr.mxu0 0.0
    %2401 = vmatpush1.xpose.msra.mxu0 0.0
    %2402 = vmatprep.subr.mxu0 0.0
    %2403 = vmatpush1.xpose.msra.mxu0 0.0
    %2404 = vmatprep.subr.mxu0 0.0
    %2405 = vmatpush1.xpose.msra.mxu0 %v2372
    %2406 = vmatprep.subr.mxu0 0.0
    %2407 = vmatpush2.xpose.msra.mxu0 0.0
    %2408 = vmatprep.subr.mxu0 0.0
    %2409 = vmatpush2.xpose.msra.mxu0 0.0
    %2410 = vmatprep.subr.mxu0 0.0
    %2411 = vmatpush2.xpose.msra.mxu0 0.0
    %2412 = vmatprep.subr.mxu0 0.0
    %2413 = vmatpush2.xpose.msra.mxu0 0.0
    %2414 = vmatprep.subr.mxu0 0.0
    %2415 = vmatpush2.xpose.msra.mxu0 0.0
    %2416 = vmatprep.subr.mxu0 0.0
    %2417 = vmatpush2.xpose.msra.mxu0 0.0
    %2418 = vmatprep.subr.mxu0 0.0
    %2419 = vmatpush2.xpose.msra.mxu0 0.0
    %2420 = vmatprep.subr.mxu0 0.0
    %2421 = vmatpush2.xpose.msra.mxu0 0.0
    %2422 = vmatprep.subr.mxu0 0.0
    %2423 = vmatpush2.xpose.msra.mxu0 0.0
    %2424 = vmatprep.subr.mxu0 0.0
    %2425 = vmatpush2.xpose.msra.mxu0 0.0
    %2426 = vmatprep.subr.mxu0 0.0
    %2427 = vmatpush2.xpose.msra.mxu0 0.0
    %2428 = vmatprep.subr.mxu0 0.0
    %2429 = vmatpush2.xpose.msra.mxu0 0.0
    %2430 = vmatprep.subr.mxu0 0.0
    %2431 = vmatpush2.xpose.msra.mxu0 0.0
    %2432 = vmatprep.subr.mxu0 0.0
    %2433 = vmatpush2.xpose.msra.mxu0 0.0
    %2434 = vmatprep.subr.mxu0 0.0
    %2435 = vmatpush2.xpose.msra.mxu0 0.0
    %2436 = vmatprep.subr.mxu0 0.0
    %2437 = vmatpush2.xpose.msra.mxu0 0.0
    %2438 = vmatprep.mubr.f32.mxu0 0.0
    %2439 = vmatmul.mubr.f32.gmra.mxu0 %v2369
    %v2440 = vpop.f32.mrf.mxu0
    %v2441 = vadd.f32 0.0, %v2440
    %v2442 = vpop.f32.mrf.mxu0
    %2443 = vdwg.mxu0
    %v2444 = vmul.f32 %v2365, 0.35355338
    %v2445 = vmul.f32 %v2441, 0.35355338
    %v2448 = vlaneseq
    %v2449 = vshrl.u32 %v2448, 7
    %v2450 = vsub.s32 0, %v2449
    %v2451 = vrot.slane %v302, %v2450
    %v2452 = vlaneseq
    %v2453 = vshrl.u32 %v2452, 7
    %v2454 = vsub.s32 0, %v2453
    %v2455 = vrot.slane %v303, %v2454
    %v2458 = vadd.f32 %v2444, %v2451
    %v2459 = vadd.f32 %v2445, %v2455
    %v2460 = vsel %vm403, %v2458, -inf
    %2461 = vmax.xlane.f32.xlu0 %v2460
    %v2462 = vpop.xlane.xlu0 %2461
    %v2463 = vsel %vm403, %v2459, -inf
    %2464 = vmax.xlane.f32.xlu0 %v2463
    %v2465 = vpop.xlane.xlu0 %2464
    %v2466 = vsub.f32 %v2458, %v2462
    %v2467 = vsub.f32 %v2459, %v2465
    %v2468 = vmul.f32 %v2466, 1.442695
    %v2469 = vpow.pop %v2468
    %v2470 = vmul.f32 %v2467, 1.442695
    %v2471 = vpow.pop %v2470
    %v2472 = vsel %vm403, %v2469, 0.0
    %2473 = vadd.xlane.f32.xlu0 %v2472
    %v2474 = vpop.xlane.xlu0 %2473
    %v2475 = vsel %vm403, %v2471, 0.0
    %2476 = vadd.xlane.f32.xlu0 %v2475
    %v2477 = vpop.xlane.xlu0 %2476
    %v2478 = vrcp.pop %v2474
    %v2479 = vrcp.pop %v2477
    %v2480 = vmul.f32 %v2469, %v2478
    %v2481 = vmul.f32 %v2471, %v2479
    %2482 = vrot.lane.b32.xlu0 %v2280, 96
    %v2483 = vpop.permute.xlu0 %2482
    %v2486 = vsel %vm403, %v2480, 0
    %2488 = vmatprep.subr.mxu0 0.0
    %2489 = vmatpush1.msra.mxu0 0.0
    %2490 = vmatprep.subr.mxu0 0.0
    %2491 = vmatpush1.msra.mxu0 0.0
    %2492 = vmatprep.subr.mxu0 0.0
    %2493 = vmatpush1.msra.mxu0 0.0
    %2494 = vmatprep.subr.mxu0 0.0
    %2495 = vmatpush1.msra.mxu0 0.0
    %2496 = vmatprep.subr.mxu0 0.0
    %2497 = vmatpush1.msra.mxu0 0.0
    %2498 = vmatprep.subr.mxu0 0.0
    %2499 = vmatpush1.msra.mxu0 0.0
    %2500 = vmatprep.subr.mxu0 0.0
    %2501 = vmatpush1.msra.mxu0 0.0
    %2502 = vmatprep.subr.mxu0 0.0
    %2503 = vmatpush1.msra.mxu0 0.0
    %2504 = vmatprep.subr.mxu0 0.0
    %2505 = vmatpush1.msra.mxu0 0.0
    %2506 = vmatprep.subr.mxu0 0.0
    %2507 = vmatpush1.msra.mxu0 0.0
    %2508 = vmatprep.subr.mxu0 0.0
    %2509 = vmatpush1.msra.mxu0 0.0
    %2510 = vmatprep.subr.mxu0 0.0
    %2511 = vmatpush1.msra.mxu0 0.0
    %2512 = vmatprep.subr.mxu0 0.0
    %2513 = vmatpush1.msra.mxu0 0.0
    %2514 = vmatprep.subr.mxu0 0.0
    %2515 = vmatpush1.msra.mxu0 0.0
    %2516 = vmatprep.subr.mxu0 0.0
    %2517 = vmatpush1.msra.mxu0 0.0
    %2518 = vmatprep.subr.mxu0 0.0
    %2519 = vmatpush1.msra.mxu0 %v2483
    %2520 = vmatprep.subr.mxu0 0.0
    %2521 = vmatpush2.msra.mxu0 0.0
    %2522 = vmatprep.subr.mxu0 0.0
    %2523 = vmatpush2.msra.mxu0 0.0
    %2524 = vmatprep.subr.mxu0 0.0
    %2525 = vmatpush2.msra.mxu0 0.0
    %2526 = vmatprep.subr.mxu0 0.0
    %2527 = vmatpush2.msra.mxu0 0.0
    %2528 = vmatprep.subr.mxu0 0.0
    %2529 = vmatpush2.msra.mxu0 0.0
    %2530 = vmatprep.subr.mxu0 0.0
    %2531 = vmatpush2.msra.mxu0 0.0
    %2532 = vmatprep.subr.mxu0 0.0
    %2533 = vmatpush2.msra.mxu0 0.0
    %2534 = vmatprep.subr.mxu0 0.0
    %2535 = vmatpush2.msra.mxu0 0.0
    %2536 = vmatprep.subr.mxu0 0.0
    %2537 = vmatpush2.msra.mxu0 0.0
    %2538 = vmatprep.subr.mxu0 0.0
    %2539 = vmatpush2.msra.mxu0 0.0
    %2540 = vmatprep.subr.mxu0 0.0
    %2541 = vmatpush2.msra.mxu0 0.0
    %2542 = vmatprep.subr.mxu0 0.0
    %2543 = vmatpush2.msra.mxu0 0.0
    %2544 = vmatprep.subr.mxu0 0.0
    %2545 = vmatpush2.msra.mxu0 0.0
    %2546 = vmatprep.subr.mxu0 0.0
    %2547 = vmatpush2.msra.mxu0 0.0
    %2548 = vmatprep.subr.mxu0 0.0
    %2549 = vmatpush2.msra.mxu0 0.0
    %2550 = vmatprep.subr.mxu0 0.0
    %2551 = vmatpush2.msra.mxu0 0.0
    %2552 = vmatprep.mubr.f32.mxu0 0.0
    %2553 = vmatmul.mubr.f32.gmra.mxu0 %v2486
    %v2554 = vpop.f32.mrf.mxu0
    %v2555 = vadd.f32 0.0, %v2554
    %v2556 = vpop.f32.mrf.mxu0
    %2557 = vdwg.mxu0
    %2558 = vrot.lane.b32.xlu0 %v2285, 96
    %v2559 = vpop.permute.xlu0 %2558
    %v2562 = vsel %vm403, %v2481, 0
    %2564 = vmatprep.subr.mxu0 0.0
    %2565 = vmatpush1.msra.mxu0 0.0
    %2566 = vmatprep.subr.mxu0 0.0
    %2567 = vmatpush1.msra.mxu0 0.0
    %2568 = vmatprep.subr.mxu0 0.0
    %2569 = vmatpush1.msra.mxu0 0.0
    %2570 = vmatprep.subr.mxu0 0.0
    %2571 = vmatpush1.msra.mxu0 0.0
    %2572 = vmatprep.subr.mxu0 0.0
    %2573 = vmatpush1.msra.mxu0 0.0
    %2574 = vmatprep.subr.mxu0 0.0
    %2575 = vmatpush1.msra.mxu0 0.0
    %2576 = vmatprep.subr.mxu0 0.0
    %2577 = vmatpush1.msra.mxu0 0.0
    %2578 = vmatprep.subr.mxu0 0.0
    %2579 = vmatpush1.msra.mxu0 0.0
    %2580 = vmatprep.subr.mxu0 0.0
    %2581 = vmatpush1.msra.mxu0 0.0
    %2582 = vmatprep.subr.mxu0 0.0
    %2583 = vmatpush1.msra.mxu0 0.0
    %2584 = vmatprep.subr.mxu0 0.0
    %2585 = vmatpush1.msra.mxu0 0.0
    %2586 = vmatprep.subr.mxu0 0.0
    %2587 = vmatpush1.msra.mxu0 0.0
    %2588 = vmatprep.subr.mxu0 0.0
    %2589 = vmatpush1.msra.mxu0 0.0
    %2590 = vmatprep.subr.mxu0 0.0
    %2591 = vmatpush1.msra.mxu0 0.0
    %2592 = vmatprep.subr.mxu0 0.0
    %2593 = vmatpush1.msra.mxu0 0.0
    %2594 = vmatprep.subr.mxu0 0.0
    %2595 = vmatpush1.msra.mxu0 %v2559
    %2596 = vmatprep.subr.mxu0 0.0
    %2597 = vmatpush2.msra.mxu0 0.0
    %2598 = vmatprep.subr.mxu0 0.0
    %2599 = vmatpush2.msra.mxu0 0.0
    %2600 = vmatprep.subr.mxu0 0.0
    %2601 = vmatpush2.msra.mxu0 0.0
    %2602 = vmatprep.subr.mxu0 0.0
    %2603 = vmatpush2.msra.mxu0 0.0
    %2604 = vmatprep.subr.mxu0 0.0
    %2605 = vmatpush2.msra.mxu0 0.0
    %2606 = vmatprep.subr.mxu0 0.0
    %2607 = vmatpush2.msra.mxu0 0.0
    %2608 = vmatprep.subr.mxu0 0.0
    %2609 = vmatpush2.msra.mxu0 0.0
    %2610 = vmatprep.subr.mxu0 0.0
    %2611 = vmatpush2.msra.mxu0 0.0
    %2612 = vmatprep.subr.mxu0 0.0
    %2613 = vmatpush2.msra.mxu0 0.0
    %2614 = vmatprep.subr.mxu0 0.0
    %2615 = vmatpush2.msra.mxu0 0.0
    %2616 = vmatprep.subr.mxu0 0.0
    %2617 = vmatpush2.msra.mxu0 0.0
    %2618 = vmatprep.subr.mxu0 0.0
    %2619 = vmatpush2.msra.mxu0 0.0
    %2620 = vmatprep.subr.mxu0 0.0
    %2621 = vmatpush2.msra.mxu0 0.0
    %2622 = vmatprep.subr.mxu0 0.0
    %2623 = vmatpush2.msra.mxu0 0.0
    %2624 = vmatprep.subr.mxu0 0.0
    %2625 = vmatpush2.msra.mxu0 0.0
    %2626 = vmatprep.subr.mxu0 0.0
    %2627 = vmatpush2.msra.mxu0 0.0
    %2628 = vmatprep.mubr.f32.mxu0 0.0
    %2629 = vmatmul.mubr.f32.gmra.mxu0 %v2562
    %v2630 = vpop.f32.mrf.mxu0
    %v2631 = vadd.f32 0.0, %v2630
    %v2632 = vpop.f32.mrf.mxu0
    %2633 = vdwg.mxu0
    %2634 = vrot.lane.b32.xlu0 %v2191, 120
    %v2635 = vpop.permute.xlu0 %2634
    %2636 = vrot.lane.b32.xlu0 %v2280, 120
    %v2637 = vpop.permute.xlu0 %2636
    %v2638 = vsel %vm403, %v2635, 0
    %v2640 = vsel %vm403, %v2637, 0
    %2642 = vmatprep.subr.mxu0 0.0
    %2643 = vmatpush1.xpose.msra.mxu0 0.0
    %2644 = vmatprep.subr.mxu0 0.0
    %2645 = vmatpush1.xpose.msra.mxu0 0.0
    %2646 = vmatprep.subr.mxu0 0.0
    %2647 = vmatpush1.xpose.msra.mxu0 0.0
    %2648 = vmatprep.subr.mxu0 0.0
    %2649 = vmatpush1.xpose.msra.mxu0 0.0
    %2650 = vmatprep.subr.mxu0 0.0
    %2651 = vmatpush1.xpose.msra.mxu0 0.0
    %2652 = vmatprep.subr.mxu0 0.0
    %2653 = vmatpush1.xpose.msra.mxu0 0.0
    %2654 = vmatprep.subr.mxu0 0.0
    %2655 = vmatpush1.xpose.msra.mxu0 0.0
    %2656 = vmatprep.subr.mxu0 0.0
    %2657 = vmatpush1.xpose.msra.mxu0 0.0
    %2658 = vmatprep.subr.mxu0 0.0
    %2659 = vmatpush1.xpose.msra.mxu0 0.0
    %2660 = vmatprep.subr.mxu0 0.0
    %2661 = vmatpush1.xpose.msra.mxu0 0.0
    %2662 = vmatprep.subr.mxu0 0.0
    %2663 = vmatpush1.xpose.msra.mxu0 0.0
    %2664 = vmatprep.subr.mxu0 0.0
    %2665 = vmatpush1.xpose.msra.mxu0 0.0
    %2666 = vmatprep.subr.mxu0 0.0
    %2667 = vmatpush1.xpose.msra.mxu0 0.0
    %2668 = vmatprep.subr.mxu0 0.0
    %2669 = vmatpush1.xpose.msra.mxu0 0.0
    %2670 = vmatprep.subr.mxu0 0.0
    %2671 = vmatpush1.xpose.msra.mxu0 0.0
    %2672 = vmatprep.subr.mxu0 0.0
    %2673 = vmatpush1.xpose.msra.mxu0 %v2640
    %2674 = vmatprep.subr.mxu0 0.0
    %2675 = vmatpush2.xpose.msra.mxu0 0.0
    %2676 = vmatprep.subr.mxu0 0.0
    %2677 = vmatpush2.xpose.msra.mxu0 0.0
    %2678 = vmatprep.subr.mxu0 0.0
    %2679 = vmatpush2.xpose.msra.mxu0 0.0
    %2680 = vmatprep.subr.mxu0 0.0
    %2681 = vmatpush2.xpose.msra.mxu0 0.0
    %2682 = vmatprep.subr.mxu0 0.0
    %2683 = vmatpush2.xpose.msra.mxu0 0.0
    %2684 = vmatprep.subr.mxu0 0.0
    %2685 = vmatpush2.xpose.msra.mxu0 0.0
    %2686 = vmatprep.subr.mxu0 0.0
    %2687 = vmatpush2.xpose.msra.mxu0 0.0
    %2688 = vmatprep.subr.mxu0 0.0
    %2689 = vmatpush2.xpose.msra.mxu0 0.0
    %2690 = vmatprep.subr.mxu0 0.0
    %2691 = vmatpush2.xpose.msra.mxu0 0.0
    %2692 = vmatprep.subr.mxu0 0.0
    %2693 = vmatpush2.xpose.msra.mxu0 0.0
    %2694 = vmatprep.subr.mxu0 0.0
    %2695 = vmatpush2.xpose.msra.mxu0 0.0
    %2696 = vmatprep.subr.mxu0 0.0
    %2697 = vmatpush2.xpose.msra.mxu0 0.0
    %2698 = vmatprep.subr.mxu0 0.0
    %2699 = vmatpush2.xpose.msra.mxu0 0.0
    %2700 = vmatprep.subr.mxu0 0.0
    %2701 = vmatpush2.xpose.msra.mxu0 0.0
    %2702 = vmatprep.subr.mxu0 0.0
    %2703 = vmatpush2.xpose.msra.mxu0 0.0
    %2704 = vmatprep.subr.mxu0 0.0
    %2705 = vmatpush2.xpose.msra.mxu0 0.0
    %2706 = vmatprep.mubr.f32.mxu0 0.0
    %2707 = vmatmul.mubr.f32.gmra.mxu0 %v2638
    %v2708 = vpop.f32.mrf.mxu0
    %v2709 = vadd.f32 0.0, %v2708
    %v2710 = vpop.f32.mrf.mxu0
    %2711 = vdwg.mxu0
    %2712 = vrot.lane.b32.xlu0 %v2196, 120
    %v2713 = vpop.permute.xlu0 %2712
    %2714 = vrot.lane.b32.xlu0 %v2285, 120
    %v2715 = vpop.permute.xlu0 %2714
    %v2716 = vsel %vm403, %v2713, 0
    %v2718 = vsel %vm403, %v2715, 0
    %2720 = vmatprep.subr.mxu0 0.0
    %2721 = vmatpush1.xpose.msra.mxu0 0.0
    %2722 = vmatprep.subr.mxu0 0.0
    %2723 = vmatpush1.xpose.msra.mxu0 0.0
    %2724 = vmatprep.subr.mxu0 0.0
    %2725 = vmatpush1.xpose.msra.mxu0 0.0
    %2726 = vmatprep.subr.mxu0 0.0
    %2727 = vmatpush1.xpose.msra.mxu0 0.0
    %2728 = vmatprep.subr.mxu0 0.0
    %2729 = vmatpush1.xpose.msra.mxu0 0.0
    %2730 = vmatprep.subr.mxu0 0.0
    %2731 = vmatpush1.xpose.msra.mxu0 0.0
    %2732 = vmatprep.subr.mxu0 0.0
    %2733 = vmatpush1.xpose.msra.mxu0 0.0
    %2734 = vmatprep.subr.mxu0 0.0
    %2735 = vmatpush1.xpose.msra.mxu0 0.0
    %2736 = vmatprep.subr.mxu0 0.0
    %2737 = vmatpush1.xpose.msra.mxu0 0.0
    %2738 = vmatprep.subr.mxu0 0.0
    %2739 = vmatpush1.xpose.msra.mxu0 0.0
    %2740 = vmatprep.subr.mxu0 0.0
    %2741 = vmatpush1.xpose.msra.mxu0 0.0
    %2742 = vmatprep.subr.mxu0 0.0
    %2743 = vmatpush1.xpose.msra.mxu0 0.0
    %2744 = vmatprep.subr.mxu0 0.0
    %2745 = vmatpush1.xpose.msra.mxu0 0.0
    %2746 = vmatprep.subr.mxu0 0.0
    %2747 = vmatpush1.xpose.msra.mxu0 0.0
    %2748 = vmatprep.subr.mxu0 0.0
    %2749 = vmatpush1.xpose.msra.mxu0 0.0
    %2750 = vmatprep.subr.mxu0 0.0
    %2751 = vmatpush1.xpose.msra.mxu0 %v2718
    %2752 = vmatprep.subr.mxu0 0.0
    %2753 = vmatpush2.xpose.msra.mxu0 0.0
    %2754 = vmatprep.subr.mxu0 0.0
    %2755 = vmatpush2.xpose.msra.mxu0 0.0
    %2756 = vmatprep.subr.mxu0 0.0
    %2757 = vmatpush2.xpose.msra.mxu0 0.0
    %2758 = vmatprep.subr.mxu0 0.0
    %2759 = vmatpush2.xpose.msra.mxu0 0.0
    %2760 = vmatprep.subr.mxu0 0.0
    %2761 = vmatpush2.xpose.msra.mxu0 0.0
    %2762 = vmatprep.subr.mxu0 0.0
    %2763 = vmatpush2.xpose.msra.mxu0 0.0
    %2764 = vmatprep.subr.mxu0 0.0
    %2765 = vmatpush2.xpose.msra.mxu0 0.0
    %2766 = vmatprep.subr.mxu0 0.0
    %2767 = vmatpush2.xpose.msra.mxu0 0.0
    %2768 = vmatprep.subr.mxu0 0.0
    %2769 = vmatpush2.xpose.msra.mxu0 0.0
    %2770 = vmatprep.subr.mxu0 0.0
    %2771 = vmatpush2.xpose.msra.mxu0 0.0
    %2772 = vmatprep.subr.mxu0 0.0
    %2773 = vmatpush2.xpose.msra.mxu0 0.0
    %2774 = vmatprep.subr.mxu0 0.0
    %2775 = vmatpush2.xpose.msra.mxu0 0.0
    %2776 = vmatprep.subr.mxu0 0.0
    %2777 = vmatpush2.xpose.msra.mxu0 0.0
    %2778 = vmatprep.subr.mxu0 0.0
    %2779 = vmatpush2.xpose.msra.mxu0 0.0
    %2780 = vmatprep.subr.mxu0 0.0
    %2781 = vmatpush2.xpose.msra.mxu0 0.0
    %2782 = vmatprep.subr.mxu0 0.0
    %2783 = vmatpush2.xpose.msra.mxu0 0.0
    %2784 = vmatprep.mubr.f32.mxu0 0.0
    %2785 = vmatmul.mubr.f32.gmra.mxu0 %v2716
    %v2786 = vpop.f32.mrf.mxu0
    %v2787 = vadd.f32 0.0, %v2786
    %v2788 = vpop.f32.mrf.mxu0
    %2789 = vdwg.mxu0
    %v2790 = vmul.f32 %v2709, 0.35355338
    %v2791 = vmul.f32 %v2787, 0.35355338
    %v2792 = vadd.f32 %v2790, %v2451
    %v2793 = vadd.f32 %v2791, %v2455
    %v2794 = vsel %vm403, %v2792, -inf
    %2795 = vmax.xlane.f32.xlu0 %v2794
    %v2796 = vpop.xlane.xlu0 %2795
    %v2797 = vsel %vm403, %v2793, -inf
    %2798 = vmax.xlane.f32.xlu0 %v2797
    %v2799 = vpop.xlane.xlu0 %2798
    %v2800 = vsub.f32 %v2792, %v2796
    %v2801 = vsub.f32 %v2793, %v2799
    %v2802 = vmul.f32 %v2800, 1.442695
    %v2803 = vpow.pop %v2802
    %v2804 = vmul.f32 %v2801, 1.442695
    %v2805 = vpow.pop %v2804
    %v2806 = vsel %vm403, %v2803, 0.0
    %2807 = vadd.xlane.f32.xlu0 %v2806
    %v2808 = vpop.xlane.xlu0 %2807
    %v2809 = vsel %vm403, %v2805, 0.0
    %2810 = vadd.xlane.f32.xlu0 %v2809
    %v2811 = vpop.xlane.xlu0 %2810
    %v2812 = vrcp.pop %v2808
    %v2813 = vrcp.pop %v2811
    %v2814 = vmul.f32 %v2803, %v2812
    %v2815 = vmul.f32 %v2805, %v2813
    %2816 = vrot.lane.b32.xlu0 %v2280, 88
    %v2817 = vpop.permute.xlu0 %2816
    %v2820 = vsel %vm403, %v2814, 0
    %2822 = vmatprep.subr.mxu0 0.0
    %2823 = vmatpush1.msra.mxu0 0.0
    %2824 = vmatprep.subr.mxu0 0.0
    %2825 = vmatpush1.msra.mxu0 0.0
    %2826 = vmatprep.subr.mxu0 0.0
    %2827 = vmatpush1.msra.mxu0 0.0
    %2828 = vmatprep.subr.mxu0 0.0
    %2829 = vmatpush1.msra.mxu0 0.0
    %2830 = vmatprep.subr.mxu0 0.0
    %2831 = vmatpush1.msra.mxu0 0.0
    %2832 = vmatprep.subr.mxu0 0.0
    %2833 = vmatpush1.msra.mxu0 0.0
    %2834 = vmatprep.subr.mxu0 0.0
    %2835 = vmatpush1.msra.mxu0 0.0
    %2836 = vmatprep.subr.mxu0 0.0
    %2837 = vmatpush1.msra.mxu0 0.0
    %2838 = vmatprep.subr.mxu0 0.0
    %2839 = vmatpush1.msra.mxu0 0.0
    %2840 = vmatprep.subr.mxu0 0.0
    %2841 = vmatpush1.msra.mxu0 0.0
    %2842 = vmatprep.subr.mxu0 0.0
    %2843 = vmatpush1.msra.mxu0 0.0
    %2844 = vmatprep.subr.mxu0 0.0
    %2845 = vmatpush1.msra.mxu0 0.0
    %2846 = vmatprep.subr.mxu0 0.0
    %2847 = vmatpush1.msra.mxu0 0.0
    %2848 = vmatprep.subr.mxu0 0.0
    %2849 = vmatpush1.msra.mxu0 0.0
    %2850 = vmatprep.subr.mxu0 0.0
    %2851 = vmatpush1.msra.mxu0 0.0
    %2852 = vmatprep.subr.mxu0 0.0
    %2853 = vmatpush1.msra.mxu0 %v2817
    %2854 = vmatprep.subr.mxu0 0.0
    %2855 = vmatpush2.msra.mxu0 0.0
    %2856 = vmatprep.subr.mxu0 0.0
    %2857 = vmatpush2.msra.mxu0 0.0
    %2858 = vmatprep.subr.mxu0 0.0
    %2859 = vmatpush2.msra.mxu0 0.0
    %2860 = vmatprep.subr.mxu0 0.0
    %2861 = vmatpush2.msra.mxu0 0.0
    %2862 = vmatprep.subr.mxu0 0.0
    %2863 = vmatpush2.msra.mxu0 0.0
    %2864 = vmatprep.subr.mxu0 0.0
    %2865 = vmatpush2.msra.mxu0 0.0
    %2866 = vmatprep.subr.mxu0 0.0
    %2867 = vmatpush2.msra.mxu0 0.0
    %2868 = vmatprep.subr.mxu0 0.0
    %2869 = vmatpush2.msra.mxu0 0.0
    %2870 = vmatprep.subr.mxu0 0.0
    %2871 = vmatpush2.msra.mxu0 0.0
    %2872 = vmatprep.subr.mxu0 0.0
    %2873 = vmatpush2.msra.mxu0 0.0
    %2874 = vmatprep.subr.mxu0 0.0
    %2875 = vmatpush2.msra.mxu0 0.0
    %2876 = vmatprep.subr.mxu0 0.0
    %2877 = vmatpush2.msra.mxu0 0.0
    %2878 = vmatprep.subr.mxu0 0.0
    %2879 = vmatpush2.msra.mxu0 0.0
    %2880 = vmatprep.subr.mxu0 0.0
    %2881 = vmatpush2.msra.mxu0 0.0
    %2882 = vmatprep.subr.mxu0 0.0
    %2883 = vmatpush2.msra.mxu0 0.0
    %2884 = vmatprep.subr.mxu0 0.0
    %2885 = vmatpush2.msra.mxu0 0.0
    %2886 = vmatprep.mubr.f32.mxu0 0.0
    %2887 = vmatmul.mubr.f32.gmra.mxu0 %v2820
    %v2888 = vpop.f32.mrf.mxu0
    %v2889 = vadd.f32 0.0, %v2888
    %v2890 = vpop.f32.mrf.mxu0
    %2891 = vdwg.mxu0
    %2892 = vrot.lane.b32.xlu0 %v2285, 88
    %v2893 = vpop.permute.xlu0 %2892
    %v2896 = vsel %vm403, %v2815, 0
    %2898 = vmatprep.subr.mxu0 0.0
    %2899 = vmatpush1.msra.mxu0 0.0
    %2900 = vmatprep.subr.mxu0 0.0
    %2901 = vmatpush1.msra.mxu0 0.0
    %2902 = vmatprep.subr.mxu0 0.0
    %2903 = vmatpush1.msra.mxu0 0.0
    %2904 = vmatprep.subr.mxu0 0.0
    %2905 = vmatpush1.msra.mxu0 0.0
    %2906 = vmatprep.subr.mxu0 0.0
    %2907 = vmatpush1.msra.mxu0 0.0
    %2908 = vmatprep.subr.mxu0 0.0
    %2909 = vmatpush1.msra.mxu0 0.0
    %2910 = vmatprep.subr.mxu0 0.0
    %2911 = vmatpush1.msra.mxu0 0.0
    %2912 = vmatprep.subr.mxu0 0.0
    %2913 = vmatpush1.msra.mxu0 0.0
    %2914 = vmatprep.subr.mxu0 0.0
    %2915 = vmatpush1.msra.mxu0 0.0
    %2916 = vmatprep.subr.mxu0 0.0
    %2917 = vmatpush1.msra.mxu0 0.0
    %2918 = vmatprep.subr.mxu0 0.0
    %2919 = vmatpush1.msra.mxu0 0.0
    %2920 = vmatprep.subr.mxu0 0.0
    %2921 = vmatpush1.msra.mxu0 0.0
    %2922 = vmatprep.subr.mxu0 0.0
    %2923 = vmatpush1.msra.mxu0 0.0
    %2924 = vmatprep.subr.mxu0 0.0
    %2925 = vmatpush1.msra.mxu0 0.0
    %2926 = vmatprep.subr.mxu0 0.0
    %2927 = vmatpush1.msra.mxu0 0.0
    %2928 = vmatprep.subr.mxu0 0.0
    %2929 = vmatpush1.msra.mxu0 %v2893
    %2930 = vmatprep.subr.mxu0 0.0
    %2931 = vmatpush2.msra.mxu0 0.0
    %2932 = vmatprep.subr.mxu0 0.0
    %2933 = vmatpush2.msra.mxu0 0.0
    %2934 = vmatprep.subr.mxu0 0.0
    %2935 = vmatpush2.msra.mxu0 0.0
    %2936 = vmatprep.subr.mxu0 0.0
    %2937 = vmatpush2.msra.mxu0 0.0
    %2938 = vmatprep.subr.mxu0 0.0
    %2939 = vmatpush2.msra.mxu0 0.0
    %2940 = vmatprep.subr.mxu0 0.0
    %2941 = vmatpush2.msra.mxu0 0.0
    %2942 = vmatprep.subr.mxu0 0.0
    %2943 = vmatpush2.msra.mxu0 0.0
    %2944 = vmatprep.subr.mxu0 0.0
    %2945 = vmatpush2.msra.mxu0 0.0
    %2946 = vmatprep.subr.mxu0 0.0
    %2947 = vmatpush2.msra.mxu0 0.0
    %2948 = vmatprep.subr.mxu0 0.0
    %2949 = vmatpush2.msra.mxu0 0.0
    %2950 = vmatprep.subr.mxu0 0.0
    %2951 = vmatpush2.msra.mxu0 0.0
    %2952 = vmatprep.subr.mxu0 0.0
    %2953 = vmatpush2.msra.mxu0 0.0
    %2954 = vmatprep.subr.mxu0 0.0
    %2955 = vmatpush2.msra.mxu0 0.0
    %2956 = vmatprep.subr.mxu0 0.0
    %2957 = vmatpush2.msra.mxu0 0.0
    %2958 = vmatprep.subr.mxu0 0.0
    %2959 = vmatpush2.msra.mxu0 0.0
    %2960 = vmatprep.subr.mxu0 0.0
    %2961 = vmatpush2.msra.mxu0 0.0
    %2962 = vmatprep.mubr.f32.mxu0 0.0
    %2963 = vmatmul.mubr.f32.gmra.mxu0 %v2896
    %v2964 = vpop.f32.mrf.mxu0
    %v2965 = vadd.f32 0.0, %v2964
    %v2966 = vpop.f32.mrf.mxu0
    %2967 = vdwg.mxu0
    %v2969 = vsel %vm403, %v2889, 0
    %v2972 = vsel %vm403, %v2965, 0
    %2974 = vmatprep.subr.mxu0 0.0
    %2975 = vmatpush1.msra.mxu0 0.0
    %2976 = vmatprep.subr.mxu0 0.0
    %2977 = vmatpush1.msra.mxu0 0.0
    %2978 = vmatprep.subr.mxu0 0.0
    %2979 = vmatpush1.msra.mxu0 0.0
    %2980 = vmatprep.subr.mxu0 0.0
    %2981 = vmatpush1.msra.mxu0 0.0
    %2982 = vmatprep.subr.mxu0 0.0
    %2983 = vmatpush1.msra.mxu0 0.0
    %2984 = vmatprep.subr.mxu0 0.0
    %2985 = vmatpush1.msra.mxu0 0.0
    %2986 = vmatprep.subr.mxu0 0.0
    %2987 = vmatpush1.msra.mxu0 0.0
    %2988 = vmatprep.subr.mxu0 0.0
    %2989 = vmatpush1.msra.mxu0 0.0
    %2990 = vmatprep.subr.mxu0 0.0
    %2991 = vmatpush1.msra.mxu0 0.0
    %2992 = vmatprep.subr.mxu0 0.0
    %2993 = vmatpush1.msra.mxu0 0.0
    %2994 = vmatprep.subr.mxu0 0.0
    %2995 = vmatpush1.msra.mxu0 0.0
    %2996 = vmatprep.subr.mxu0 0.0
    %2997 = vmatpush1.msra.mxu0 0.0
    %2998 = vmatprep.subr.mxu0 0.0
    %2999 = vmatpush1.msra.mxu0 0.0
    %3000 = vmatprep.subr.mxu0 0.0
    %3001 = vmatpush1.msra.mxu0 0.0
    %3002 = vmatprep.subr.mxu0 0.0
    %3003 = vmatpush1.msra.mxu0 0.0
    %3004 = vmatprep.subr.mxu0 0.0
    %3005 = vmatpush1.msra.mxu0 %v2289
    %3006 = vmatprep.subr.mxu0 0.0
    %3007 = vmatpush2.msra.mxu0 0.0
    %3008 = vmatprep.subr.mxu0 0.0
    %3009 = vmatpush2.msra.mxu0 0.0
    %3010 = vmatprep.subr.mxu0 0.0
    %3011 = vmatpush2.msra.mxu0 0.0
    %3012 = vmatprep.subr.mxu0 0.0
    %3013 = vmatpush2.msra.mxu0 0.0
    %3014 = vmatprep.subr.mxu0 0.0
    %3015 = vmatpush2.msra.mxu0 0.0
    %3016 = vmatprep.subr.mxu0 0.0
    %3017 = vmatpush2.msra.mxu0 0.0
    %3018 = vmatprep.subr.mxu0 0.0
    %3019 = vmatpush2.msra.mxu0 0.0
    %3020 = vmatprep.subr.mxu0 0.0
    %3021 = vmatpush2.msra.mxu0 0.0
    %3022 = vmatprep.subr.mxu0 0.0
    %3023 = vmatpush2.msra.mxu0 0.0
    %3024 = vmatprep.subr.mxu0 0.0
    %3025 = vmatpush2.msra.mxu0 0.0
    %3026 = vmatprep.subr.mxu0 0.0
    %3027 = vmatpush2.msra.mxu0 0.0
    %3028 = vmatprep.subr.mxu0 0.0
    %3029 = vmatpush2.msra.mxu0 0.0
    %3030 = vmatprep.subr.mxu0 0.0
    %3031 = vmatpush2.msra.mxu0 0.0
    %3032 = vmatprep.subr.mxu0 0.0
    %3033 = vmatpush2.msra.mxu0 0.0
    %3034 = vmatprep.subr.mxu0 0.0
    %3035 = vmatpush2.msra.mxu0 0.0
    %3036 = vmatprep.subr.mxu0 0.0
    %3037 = vmatpush2.msra.mxu0 0.0
    %3038 = vmatprep.mubr.f32.mxu0 0.0
    %3039 = vmatmul.mubr.f32.gmra.mxu0 %v2969
    %v3040 = vpop.f32.mrf.mxu0
    %v3041 = vadd.f32 0.0, %v3040
    %v3042 = vpop.f32.mrf.mxu0
    %3043 = vmatprep.mubr.f32.mxu0 0.0
    %3044 = vmatmul.mubr.f32.gmra.mxu0 %v2972
    %v3045 = vpop.f32.mrf.mxu0
    %v3046 = vadd.f32 0.0, %v3045
    %v3047 = vpop.f32.mrf.mxu0
    %3048 = vdwg.mxu0
    %v3050 = vsel %vm403, %v2555, 0
    %v3053 = vsel %vm403, %v2631, 0
    %3055 = vmatprep.subr.mxu0 0.0
    %3056 = vmatpush1.msra.mxu0 0.0
    %3057 = vmatprep.subr.mxu0 0.0
    %3058 = vmatpush1.msra.mxu0 0.0
    %3059 = vmatprep.subr.mxu0 0.0
    %3060 = vmatpush1.msra.mxu0 0.0
    %3061 = vmatprep.subr.mxu0 0.0
    %3062 = vmatpush1.msra.mxu0 0.0
    %3063 = vmatprep.subr.mxu0 0.0
    %3064 = vmatpush1.msra.mxu0 0.0
    %3065 = vmatprep.subr.mxu0 0.0
    %3066 = vmatpush1.msra.mxu0 0.0
    %3067 = vmatprep.subr.mxu0 0.0
    %3068 = vmatpush1.msra.mxu0 0.0
    %3069 = vmatprep.subr.mxu0 0.0
    %3070 = vmatpush1.msra.mxu0 0.0
    %3071 = vmatprep.subr.mxu0 0.0
    %3072 = vmatpush1.msra.mxu0 0.0
    %3073 = vmatprep.subr.mxu0 0.0
    %3074 = vmatpush1.msra.mxu0 0.0
    %3075 = vmatprep.subr.mxu0 0.0
    %3076 = vmatpush1.msra.mxu0 0.0
    %3077 = vmatprep.subr.mxu0 0.0
    %3078 = vmatpush1.msra.mxu0 0.0
    %3079 = vmatprep.subr.mxu0 0.0
    %3080 = vmatpush1.msra.mxu0 0.0
    %3081 = vmatprep.subr.mxu0 0.0
    %3082 = vmatpush1.msra.mxu0 0.0
    %3083 = vmatprep.subr.mxu0 0.0
    %3084 = vmatpush1.msra.mxu0 0.0
    %3085 = vmatprep.subr.mxu0 0.0
    %3086 = vmatpush1.msra.mxu0 %v2288
    %3087 = vmatprep.subr.mxu0 0.0
    %3088 = vmatpush2.msra.mxu0 0.0
    %3089 = vmatprep.subr.mxu0 0.0
    %3090 = vmatpush2.msra.mxu0 0.0
    %3091 = vmatprep.subr.mxu0 0.0
    %3092 = vmatpush2.msra.mxu0 0.0
    %3093 = vmatprep.subr.mxu0 0.0
    %3094 = vmatpush2.msra.mxu0 0.0
    %3095 = vmatprep.subr.mxu0 0.0
    %3096 = vmatpush2.msra.mxu0 0.0
    %3097 = vmatprep.subr.mxu0 0.0
    %3098 = vmatpush2.msra.mxu0 0.0
    %3099 = vmatprep.subr.mxu0 0.0
    %3100 = vmatpush2.msra.mxu0 0.0
    %3101 = vmatprep.subr.mxu0 0.0
    %3102 = vmatpush2.msra.mxu0 0.0
    %3103 = vmatprep.subr.mxu0 0.0
    %3104 = vmatpush2.msra.mxu0 0.0
    %3105 = vmatprep.subr.mxu0 0.0
    %3106 = vmatpush2.msra.mxu0 0.0
    %3107 = vmatprep.subr.mxu0 0.0
    %3108 = vmatpush2.msra.mxu0 0.0
    %3109 = vmatprep.subr.mxu0 0.0
    %3110 = vmatpush2.msra.mxu0 0.0
    %3111 = vmatprep.subr.mxu0 0.0
    %3112 = vmatpush2.msra.mxu0 0.0
    %3113 = vmatprep.subr.mxu0 0.0
    %3114 = vmatpush2.msra.mxu0 0.0
    %3115 = vmatprep.subr.mxu0 0.0
    %3116 = vmatpush2.msra.mxu0 0.0
    %3117 = vmatprep.subr.mxu0 0.0
    %3118 = vmatpush2.msra.mxu0 0.0
    %3119 = vmatprep.mubr.f32.mxu0 0.0
    %3120 = vmatmul.mubr.f32.gmra.mxu0 %v3050
    %v3121 = vpop.f32.mrf.mxu0
    %v3122 = vadd.f32 %v3041, %v3121
    %v3123 = vpop.f32.mrf.mxu0
    %3124 = vmatprep.mubr.f32.mxu0 0.0
    %3125 = vmatmul.mubr.f32.gmra.mxu0 %v3053
    %v3126 = vpop.f32.mrf.mxu0
    %v3127 = vadd.f32 %v3046, %v3126
    %v3128 = vpop.f32.mrf.mxu0
    %3129 = vdwg.mxu0
    %3130 = vrot.lane.b32.xlu0 %v2191, 112
    %v3131 = vpop.permute.xlu0 %3130
    %3132 = vrot.lane.b32.xlu0 %v2280, 112
    %v3133 = vpop.permute.xlu0 %3132
    %v3134 = vsel %vm403, %v3131, 0
    %v3136 = vsel %vm403, %v3133, 0
    %3138 = vmatprep.subr.mxu0 0.0
    %3139 = vmatpush1.xpose.msra.mxu0 0.0
    %3140 = vmatprep.subr.mxu0 0.0
    %3141 = vmatpush1.xpose.msra.mxu0 0.0
    %3142 = vmatprep.subr.mxu0 0.0
    %3143 = vmatpush1.xpose.msra.mxu0 0.0
    %3144 = vmatprep.subr.mxu0 0.0
    %3145 = vmatpush1.xpose.msra.mxu0 0.0
    %3146 = vmatprep.subr.mxu0 0.0
    %3147 = vmatpush1.xpose.msra.mxu0 0.0
    %3148 = vmatprep.subr.mxu0 0.0
    %3149 = vmatpush1.xpose.msra.mxu0 0.0
    %3150 = vmatprep.subr.mxu0 0.0
    %3151 = vmatpush1.xpose.msra.mxu0 0.0
    %3152 = vmatprep.subr.mxu0 0.0
    %3153 = vmatpush1.xpose.msra.mxu0 0.0
    %3154 = vmatprep.subr.mxu0 0.0
    %3155 = vmatpush1.xpose.msra.mxu0 0.0
    %3156 = vmatprep.subr.mxu0 0.0
    %3157 = vmatpush1.xpose.msra.mxu0 0.0
    %3158 = vmatprep.subr.mxu0 0.0
    %3159 = vmatpush1.xpose.msra.mxu0 0.0
    %3160 = vmatprep.subr.mxu0 0.0
    %3161 = vmatpush1.xpose.msra.mxu0 0.0
    %3162 = vmatprep.subr.mxu0 0.0
    %3163 = vmatpush1.xpose.msra.mxu0 0.0
    %3164 = vmatprep.subr.mxu0 0.0
    %3165 = vmatpush1.xpose.msra.mxu0 0.0
    %3166 = vmatprep.subr.mxu0 0.0
    %3167 = vmatpush1.xpose.msra.mxu0 0.0
    %3168 = vmatprep.subr.mxu0 0.0
    %3169 = vmatpush1.xpose.msra.mxu0 %v3136
    %3170 = vmatprep.subr.mxu0 0.0
    %3171 = vmatpush2.xpose.msra.mxu0 0.0
    %3172 = vmatprep.subr.mxu0 0.0
    %3173 = vmatpush2.xpose.msra.mxu0 0.0
    %3174 = vmatprep.subr.mxu0 0.0
    %3175 = vmatpush2.xpose.msra.mxu0 0.0
    %3176 = vmatprep.subr.mxu0 0.0
    %3177 = vmatpush2.xpose.msra.mxu0 0.0
    %3178 = vmatprep.subr.mxu0 0.0
    %3179 = vmatpush2.xpose.msra.mxu0 0.0
    %3180 = vmatprep.subr.mxu0 0.0
    %3181 = vmatpush2.xpose.msra.mxu0 0.0
    %3182 = vmatprep.subr.mxu0 0.0
    %3183 = vmatpush2.xpose.msra.mxu0 0.0
    %3184 = vmatprep.subr.mxu0 0.0
    %3185 = vmatpush2.xpose.msra.mxu0 0.0
    %3186 = vmatprep.subr.mxu0 0.0
    %3187 = vmatpush2.xpose.msra.mxu0 0.0
    %3188 = vmatprep.subr.mxu0 0.0
    %3189 = vmatpush2.xpose.msra.mxu0 0.0
    %3190 = vmatprep.subr.mxu0 0.0
    %3191 = vmatpush2.xpose.msra.mxu0 0.0
    %3192 = vmatprep.subr.mxu0 0.0
    %3193 = vmatpush2.xpose.msra.mxu0 0.0
    %3194 = vmatprep.subr.mxu0 0.0
    %3195 = vmatpush2.xpose.msra.mxu0 0.0
    %3196 = vmatprep.subr.mxu0 0.0
    %3197 = vmatpush2.xpose.msra.mxu0 0.0
    %3198 = vmatprep.subr.mxu0 0.0
    %3199 = vmatpush2.xpose.msra.mxu0 0.0
    %3200 = vmatprep.subr.mxu0 0.0
    %3201 = vmatpush2.xpose.msra.mxu0 0.0
    %3202 = vmatprep.mubr.f32.mxu0 0.0
    %3203 = vmatmul.mubr.f32.gmra.mxu0 %v3134
    %v3204 = vpop.f32.mrf.mxu0
    %v3205 = vadd.f32 0.0, %v3204
    %v3206 = vpop.f32.mrf.mxu0
    %3207 = vdwg.mxu0
    %3208 = vrot.lane.b32.xlu0 %v2196, 112
    %v3209 = vpop.permute.xlu0 %3208
    %3210 = vrot.lane.b32.xlu0 %v2285, 112
    %v3211 = vpop.permute.xlu0 %3210
    %v3212 = vsel %vm403, %v3209, 0
    %v3214 = vsel %vm403, %v3211, 0
    %3216 = vmatprep.subr.mxu0 0.0
    %3217 = vmatpush1.xpose.msra.mxu0 0.0
    %3218 = vmatprep.subr.mxu0 0.0
    %3219 = vmatpush1.xpose.msra.mxu0 0.0
    %3220 = vmatprep.subr.mxu0 0.0
    %3221 = vmatpush1.xpose.msra.mxu0 0.0
    %3222 = vmatprep.subr.mxu0 0.0
    %3223 = vmatpush1.xpose.msra.mxu0 0.0
    %3224 = vmatprep.subr.mxu0 0.0
    %3225 = vmatpush1.xpose.msra.mxu0 0.0
    %3226 = vmatprep.subr.mxu0 0.0
    %3227 = vmatpush1.xpose.msra.mxu0 0.0
    %3228 = vmatprep.subr.mxu0 0.0
    %3229 = vmatpush1.xpose.msra.mxu0 0.0
    %3230 = vmatprep.subr.mxu0 0.0
    %3231 = vmatpush1.xpose.msra.mxu0 0.0
    %3232 = vmatprep.subr.mxu0 0.0
    %3233 = vmatpush1.xpose.msra.mxu0 0.0
    %3234 = vmatprep.subr.mxu0 0.0
    %3235 = vmatpush1.xpose.msra.mxu0 0.0
    %3236 = vmatprep.subr.mxu0 0.0
    %3237 = vmatpush1.xpose.msra.mxu0 0.0
    %3238 = vmatprep.subr.mxu0 0.0
    %3239 = vmatpush1.xpose.msra.mxu0 0.0
    %3240 = vmatprep.subr.mxu0 0.0
    %3241 = vmatpush1.xpose.msra.mxu0 0.0
    %3242 = vmatprep.subr.mxu0 0.0
    %3243 = vmatpush1.xpose.msra.mxu0 0.0
    %3244 = vmatprep.subr.mxu0 0.0
    %3245 = vmatpush1.xpose.msra.mxu0 0.0
    %3246 = vmatprep.subr.mxu0 0.0
    %3247 = vmatpush1.xpose.msra.mxu0 %v3214
    %3248 = vmatprep.subr.mxu0 0.0
    %3249 = vmatpush2.xpose.msra.mxu0 0.0
    %3250 = vmatprep.subr.mxu0 0.0
    %3251 = vmatpush2.xpose.msra.mxu0 0.0
    %3252 = vmatprep.subr.mxu0 0.0
    %3253 = vmatpush2.xpose.msra.mxu0 0.0
    %3254 = vmatprep.subr.mxu0 0.0
    %3255 = vmatpush2.xpose.msra.mxu0 0.0
    %3256 = vmatprep.subr.mxu0 0.0
    %3257 = vmatpush2.xpose.msra.mxu0 0.0
    %3258 = vmatprep.subr.mxu0 0.0
    %3259 = vmatpush2.xpose.msra.mxu0 0.0
    %3260 = vmatprep.subr.mxu0 0.0
    %3261 = vmatpush2.xpose.msra.mxu0 0.0
    %3262 = vmatprep.subr.mxu0 0.0
    %3263 = vmatpush2.xpose.msra.mxu0 0.0
    %3264 = vmatprep.subr.mxu0 0.0
    %3265 = vmatpush2.xpose.msra.mxu0 0.0
    %3266 = vmatprep.subr.mxu0 0.0
    %3267 = vmatpush2.xpose.msra.mxu0 0.0
    %3268 = vmatprep.subr.mxu0 0.0
    %3269 = vmatpush2.xpose.msra.mxu0 0.0
    %3270 = vmatprep.subr.mxu0 0.0
    %3271 = vmatpush2.xpose.msra.mxu0 0.0
    %3272 = vmatprep.subr.mxu0 0.0
    %3273 = vmatpush2.xpose.msra.mxu0 0.0
    %3274 = vmatprep.subr.mxu0 0.0
    %3275 = vmatpush2.xpose.msra.mxu0 0.0
    %3276 = vmatprep.subr.mxu0 0.0
    %3277 = vmatpush2.xpose.msra.mxu0 0.0
    %3278 = vmatprep.subr.mxu0 0.0
    %3279 = vmatpush2.xpose.msra.mxu0 0.0
    %3280 = vmatprep.mubr.f32.mxu0 0.0
    %3281 = vmatmul.mubr.f32.gmra.mxu0 %v3212
    %v3282 = vpop.f32.mrf.mxu0
    %v3283 = vadd.f32 0.0, %v3282
    %v3284 = vpop.f32.mrf.mxu0
    %3285 = vdwg.mxu0
    %v3286 = vmul.f32 %v3205, 0.35355338
    %v3287 = vmul.f32 %v3283, 0.35355338
    %v3288 = vadd.f32 %v3286, %v2451
    %v3289 = vadd.f32 %v3287, %v2455
    %v3290 = vsel %vm403, %v3288, -inf
    %3291 = vmax.xlane.f32.xlu0 %v3290
    %v3292 = vpop.xlane.xlu0 %3291
    %v3293 = vsel %vm403, %v3289, -inf
    %3294 = vmax.xlane.f32.xlu0 %v3293
    %v3295 = vpop.xlane.xlu0 %3294
    %v3296 = vsub.f32 %v3288, %v3292
    %v3297 = vsub.f32 %v3289, %v3295
    %v3298 = vmul.f32 %v3296, 1.442695
    %v3299 = vpow.pop %v3298
    %v3300 = vmul.f32 %v3297, 1.442695
    %v3301 = vpow.pop %v3300
    %v3302 = vsel %vm403, %v3299, 0.0
    %3303 = vadd.xlane.f32.xlu0 %v3302
    %v3304 = vpop.xlane.xlu0 %3303
    %v3305 = vsel %vm403, %v3301, 0.0
    %3306 = vadd.xlane.f32.xlu0 %v3305
    %v3307 = vpop.xlane.xlu0 %3306
    %v3308 = vrcp.pop %v3304
    %v3309 = vrcp.pop %v3307
    %v3310 = vmul.f32 %v3299, %v3308
    %v3311 = vmul.f32 %v3301, %v3309
    %3312 = vrot.lane.b32.xlu0 %v2280, 80
    %v3313 = vpop.permute.xlu0 %3312
    %v3316 = vsel %vm403, %v3310, 0
    %3318 = vmatprep.subr.mxu0 0.0
    %3319 = vmatpush1.msra.mxu0 0.0
    %3320 = vmatprep.subr.mxu0 0.0
    %3321 = vmatpush1.msra.mxu0 0.0
    %3322 = vmatprep.subr.mxu0 0.0
    %3323 = vmatpush1.msra.mxu0 0.0
    %3324 = vmatprep.subr.mxu0 0.0
    %3325 = vmatpush1.msra.mxu0 0.0
    %3326 = vmatprep.subr.mxu0 0.0
    %3327 = vmatpush1.msra.mxu0 0.0
    %3328 = vmatprep.subr.mxu0 0.0
    %3329 = vmatpush1.msra.mxu0 0.0
    %3330 = vmatprep.subr.mxu0 0.0
    %3331 = vmatpush1.msra.mxu0 0.0
    %3332 = vmatprep.subr.mxu0 0.0
    %3333 = vmatpush1.msra.mxu0 0.0
    %3334 = vmatprep.subr.mxu0 0.0
    %3335 = vmatpush1.msra.mxu0 0.0
    %3336 = vmatprep.subr.mxu0 0.0
    %3337 = vmatpush1.msra.mxu0 0.0
    %3338 = vmatprep.subr.mxu0 0.0
    %3339 = vmatpush1.msra.mxu0 0.0
    %3340 = vmatprep.subr.mxu0 0.0
    %3341 = vmatpush1.msra.mxu0 0.0
    %3342 = vmatprep.subr.mxu0 0.0
    %3343 = vmatpush1.msra.mxu0 0.0
    %3344 = vmatprep.subr.mxu0 0.0
    %3345 = vmatpush1.msra.mxu0 0.0
    %3346 = vmatprep.subr.mxu0 0.0
    %3347 = vmatpush1.msra.mxu0 0.0
    %3348 = vmatprep.subr.mxu0 0.0
    %3349 = vmatpush1.msra.mxu0 %v3313
    %3350 = vmatprep.subr.mxu0 0.0
    %3351 = vmatpush2.msra.mxu0 0.0
    %3352 = vmatprep.subr.mxu0 0.0
    %3353 = vmatpush2.msra.mxu0 0.0
    %3354 = vmatprep.subr.mxu0 0.0
    %3355 = vmatpush2.msra.mxu0 0.0
    %3356 = vmatprep.subr.mxu0 0.0
    %3357 = vmatpush2.msra.mxu0 0.0
    %3358 = vmatprep.subr.mxu0 0.0
    %3359 = vmatpush2.msra.mxu0 0.0
    %3360 = vmatprep.subr.mxu0 0.0
    %3361 = vmatpush2.msra.mxu0 0.0
    %3362 = vmatprep.subr.mxu0 0.0
    %3363 = vmatpush2.msra.mxu0 0.0
    %3364 = vmatprep.subr.mxu0 0.0
    %3365 = vmatpush2.msra.mxu0 0.0
    %3366 = vmatprep.subr.mxu0 0.0
    %3367 = vmatpush2.msra.mxu0 0.0
    %3368 = vmatprep.subr.mxu0 0.0
    %3369 = vmatpush2.msra.mxu0 0.0
    %3370 = vmatprep.subr.mxu0 0.0
    %3371 = vmatpush2.msra.mxu0 0.0
    %3372 = vmatprep.subr.mxu0 0.0
    %3373 = vmatpush2.msra.mxu0 0.0
    %3374 = vmatprep.subr.mxu0 0.0
    %3375 = vmatpush2.msra.mxu0 0.0
    %3376 = vmatprep.subr.mxu0 0.0
    %3377 = vmatpush2.msra.mxu0 0.0
    %3378 = vmatprep.subr.mxu0 0.0
    %3379 = vmatpush2.msra.mxu0 0.0
    %3380 = vmatprep.subr.mxu0 0.0
    %3381 = vmatpush2.msra.mxu0 0.0
    %3382 = vmatprep.mubr.f32.mxu0 0.0
    %3383 = vmatmul.mubr.f32.gmra.mxu0 %v3316
    %v3384 = vpop.f32.mrf.mxu0
    %v3385 = vadd.f32 0.0, %v3384
    %v3386 = vpop.f32.mrf.mxu0
    %3387 = vdwg.mxu0
    %3388 = vrot.lane.b32.xlu0 %v2285, 80
    %v3389 = vpop.permute.xlu0 %3388
    %v3392 = vsel %vm403, %v3311, 0
    %3394 = vmatprep.subr.mxu0 0.0
    %3395 = vmatpush1.msra.mxu0 0.0
    %3396 = vmatprep.subr.mxu0 0.0
    %3397 = vmatpush1.msra.mxu0 0.0
    %3398 = vmatprep.subr.mxu0 0.0
    %3399 = vmatpush1.msra.mxu0 0.0
    %3400 = vmatprep.subr.mxu0 0.0
    %3401 = vmatpush1.msra.mxu0 0.0
    %3402 = vmatprep.subr.mxu0 0.0
    %3403 = vmatpush1.msra.mxu0 0.0
    %3404 = vmatprep.subr.mxu0 0.0
    %3405 = vmatpush1.msra.mxu0 0.0
    %3406 = vmatprep.subr.mxu0 0.0
    %3407 = vmatpush1.msra.mxu0 0.0
    %3408 = vmatprep.subr.mxu0 0.0
    %3409 = vmatpush1.msra.mxu0 0.0
    %3410 = vmatprep.subr.mxu0 0.0
    %3411 = vmatpush1.msra.mxu0 0.0
    %3412 = vmatprep.subr.mxu0 0.0
    %3413 = vmatpush1.msra.mxu0 0.0
    %3414 = vmatprep.subr.mxu0 0.0
    %3415 = vmatpush1.msra.mxu0 0.0
    %3416 = vmatprep.subr.mxu0 0.0
    %3417 = vmatpush1.msra.mxu0 0.0
    %3418 = vmatprep.subr.mxu0 0.0
    %3419 = vmatpush1.msra.mxu0 0.0
    %3420 = vmatprep.subr.mxu0 0.0
    %3421 = vmatpush1.msra.mxu0 0.0
    %3422 = vmatprep.subr.mxu0 0.0
    %3423 = vmatpush1.msra.mxu0 0.0
    %3424 = vmatprep.subr.mxu0 0.0
    %3425 = vmatpush1.msra.mxu0 %v3389
    %3426 = vmatprep.subr.mxu0 0.0
    %3427 = vmatpush2.msra.mxu0 0.0
    %3428 = vmatprep.subr.mxu0 0.0
    %3429 = vmatpush2.msra.mxu0 0.0
    %3430 = vmatprep.subr.mxu0 0.0
    %3431 = vmatpush2.msra.mxu0 0.0
    %3432 = vmatprep.subr.mxu0 0.0
    %3433 = vmatpush2.msra.mxu0 0.0
    %3434 = vmatprep.subr.mxu0 0.0
    %3435 = vmatpush2.msra.mxu0 0.0
    %3436 = vmatprep.subr.mxu0 0.0
    %3437 = vmatpush2.msra.mxu0 0.0
    %3438 = vmatprep.subr.mxu0 0.0
    %3439 = vmatpush2.msra.mxu0 0.0
    %3440 = vmatprep.subr.mxu0 0.0
    %3441 = vmatpush2.msra.mxu0 0.0
    %3442 = vmatprep.subr.mxu0 0.0
    %3443 = vmatpush2.msra.mxu0 0.0
    %3444 = vmatprep.subr.mxu0 0.0
    %3445 = vmatpush2.msra.mxu0 0.0
    %3446 = vmatprep.subr.mxu0 0.0
    %3447 = vmatpush2.msra.mxu0 0.0
    %3448 = vmatprep.subr.mxu0 0.0
    %3449 = vmatpush2.msra.mxu0 0.0
    %3450 = vmatprep.subr.mxu0 0.0
    %3451 = vmatpush2.msra.mxu0 0.0
    %3452 = vmatprep.subr.mxu0 0.0
    %3453 = vmatpush2.msra.mxu0 0.0
    %3454 = vmatprep.subr.mxu0 0.0
    %3455 = vmatpush2.msra.mxu0 0.0
    %3456 = vmatprep.subr.mxu0 0.0
    %3457 = vmatpush2.msra.mxu0 0.0
    %3458 = vmatprep.mubr.f32.mxu0 0.0
    %3459 = vmatmul.mubr.f32.gmra.mxu0 %v3392
    %v3460 = vpop.f32.mrf.mxu0
    %v3461 = vadd.f32 0.0, %v3460
    %v3462 = vpop.f32.mrf.mxu0
    %3463 = vdwg.mxu0
    %v3465 = vsel %vm403, %v3385, 0
    %v3468 = vsel %vm403, %v3461, 0
    %3470 = vmatprep.subr.mxu0 0.0
    %3471 = vmatpush1.msra.mxu0 0.0
    %3472 = vmatprep.subr.mxu0 0.0
    %3473 = vmatpush1.msra.mxu0 0.0
    %3474 = vmatprep.subr.mxu0 0.0
    %3475 = vmatpush1.msra.mxu0 0.0
    %3476 = vmatprep.subr.mxu0 0.0
    %3477 = vmatpush1.msra.mxu0 0.0
    %3478 = vmatprep.subr.mxu0 0.0
    %3479 = vmatpush1.msra.mxu0 0.0
    %3480 = vmatprep.subr.mxu0 0.0
    %3481 = vmatpush1.msra.mxu0 0.0
    %3482 = vmatprep.subr.mxu0 0.0
    %3483 = vmatpush1.msra.mxu0 0.0
    %3484 = vmatprep.subr.mxu0 0.0
    %3485 = vmatpush1.msra.mxu0 0.0
    %3486 = vmatprep.subr.mxu0 0.0
    %3487 = vmatpush1.msra.mxu0 0.0
    %3488 = vmatprep.subr.mxu0 0.0
    %3489 = vmatpush1.msra.mxu0 0.0
    %3490 = vmatprep.subr.mxu0 0.0
    %3491 = vmatpush1.msra.mxu0 0.0
    %3492 = vmatprep.subr.mxu0 0.0
    %3493 = vmatpush1.msra.mxu0 0.0
    %3494 = vmatprep.subr.mxu0 0.0
    %3495 = vmatpush1.msra.mxu0 0.0
    %3496 = vmatprep.subr.mxu0 0.0
    %3497 = vmatpush1.msra.mxu0 0.0
    %3498 = vmatprep.subr.mxu0 0.0
    %3499 = vmatpush1.msra.mxu0 0.0
    %3500 = vmatprep.subr.mxu0 0.0
    %3501 = vmatpush1.msra.mxu0 %v2290
    %3502 = vmatprep.subr.mxu0 0.0
    %3503 = vmatpush2.msra.mxu0 0.0
    %3504 = vmatprep.subr.mxu0 0.0
    %3505 = vmatpush2.msra.mxu0 0.0
    %3506 = vmatprep.subr.mxu0 0.0
    %3507 = vmatpush2.msra.mxu0 0.0
    %3508 = vmatprep.subr.mxu0 0.0
    %3509 = vmatpush2.msra.mxu0 0.0
    %3510 = vmatprep.subr.mxu0 0.0
    %3511 = vmatpush2.msra.mxu0 0.0
    %3512 = vmatprep.subr.mxu0 0.0
    %3513 = vmatpush2.msra.mxu0 0.0
    %3514 = vmatprep.subr.mxu0 0.0
    %3515 = vmatpush2.msra.mxu0 0.0
    %3516 = vmatprep.subr.mxu0 0.0
    %3517 = vmatpush2.msra.mxu0 0.0
    %3518 = vmatprep.subr.mxu0 0.0
    %3519 = vmatpush2.msra.mxu0 0.0
    %3520 = vmatprep.subr.mxu0 0.0
    %3521 = vmatpush2.msra.mxu0 0.0
    %3522 = vmatprep.subr.mxu0 0.0
    %3523 = vmatpush2.msra.mxu0 0.0
    %3524 = vmatprep.subr.mxu0 0.0
    %3525 = vmatpush2.msra.mxu0 0.0
    %3526 = vmatprep.subr.mxu0 0.0
    %3527 = vmatpush2.msra.mxu0 0.0
    %3528 = vmatprep.subr.mxu0 0.0
    %3529 = vmatpush2.msra.mxu0 0.0
    %3530 = vmatprep.subr.mxu0 0.0
    %3531 = vmatpush2.msra.mxu0 0.0
    %3532 = vmatprep.subr.mxu0 0.0
    %3533 = vmatpush2.msra.mxu0 0.0
    %3534 = vmatprep.mubr.f32.mxu0 0.0
    %3535 = vmatmul.mubr.f32.gmra.mxu0 %v3465
    %v3536 = vpop.f32.mrf.mxu0
    %v3537 = vadd.f32 0.0, %v3536
    %v3538 = vpop.f32.mrf.mxu0
    %3539 = vmatprep.mubr.f32.mxu0 0.0
    %3540 = vmatmul.mubr.f32.gmra.mxu0 %v3468
    %v3541 = vpop.f32.mrf.mxu0
    %v3542 = vadd.f32 0.0, %v3541
    %v3543 = vpop.f32.mrf.mxu0
    %3544 = vdwg.mxu0
    %v3545 = vadd.f32 %v3122, %v3537
    %v3546 = vadd.f32 %v3127, %v3542
    %3547 = vrot.lane.b32.xlu0 %v2191, 104
    %v3548 = vpop.permute.xlu0 %3547
    %3549 = vrot.lane.b32.xlu0 %v2280, 104
    %v3550 = vpop.permute.xlu0 %3549
    %v3551 = vsel %vm403, %v3548, 0
    %v3553 = vsel %vm403, %v3550, 0
    %3555 = vmatprep.subr.mxu0 0.0
    %3556 = vmatpush1.xpose.msra.mxu0 0.0
    %3557 = vmatprep.subr.mxu0 0.0
    %3558 = vmatpush1.xpose.msra.mxu0 0.0
    %3559 = vmatprep.subr.mxu0 0.0
    %3560 = vmatpush1.xpose.msra.mxu0 0.0
    %3561 = vmatprep.subr.mxu0 0.0
    %3562 = vmatpush1.xpose.msra.mxu0 0.0
    %3563 = vmatprep.subr.mxu0 0.0
    %3564 = vmatpush1.xpose.msra.mxu0 0.0
    %3565 = vmatprep.subr.mxu0 0.0
    %3566 = vmatpush1.xpose.msra.mxu0 0.0
    %3567 = vmatprep.subr.mxu0 0.0
    %3568 = vmatpush1.xpose.msra.mxu0 0.0
    %3569 = vmatprep.subr.mxu0 0.0
    %3570 = vmatpush1.xpose.msra.mxu0 0.0
    %3571 = vmatprep.subr.mxu0 0.0
    %3572 = vmatpush1.xpose.msra.mxu0 0.0
    %3573 = vmatprep.subr.mxu0 0.0
    %3574 = vmatpush1.xpose.msra.mxu0 0.0
    %3575 = vmatprep.subr.mxu0 0.0
    %3576 = vmatpush1.xpose.msra.mxu0 0.0
    %3577 = vmatprep.subr.mxu0 0.0
    %3578 = vmatpush1.xpose.msra.mxu0 0.0
    %3579 = vmatprep.subr.mxu0 0.0
    %3580 = vmatpush1.xpose.msra.mxu0 0.0
    %3581 = vmatprep.subr.mxu0 0.0
    %3582 = vmatpush1.xpose.msra.mxu0 0.0
    %3583 = vmatprep.subr.mxu0 0.0
    %3584 = vmatpush1.xpose.msra.mxu0 0.0
    %3585 = vmatprep.subr.mxu0 0.0
    %3586 = vmatpush1.xpose.msra.mxu0 %v3553
    %3587 = vmatprep.subr.mxu0 0.0
    %3588 = vmatpush2.xpose.msra.mxu0 0.0
    %3589 = vmatprep.subr.mxu0 0.0
    %3590 = vmatpush2.xpose.msra.mxu0 0.0
    %3591 = vmatprep.subr.mxu0 0.0
    %3592 = vmatpush2.xpose.msra.mxu0 0.0
    %3593 = vmatprep.subr.mxu0 0.0
    %3594 = vmatpush2.xpose.msra.mxu0 0.0
    %3595 = vmatprep.subr.mxu0 0.0
    %3596 = vmatpush2.xpose.msra.mxu0 0.0
    %3597 = vmatprep.subr.mxu0 0.0
    %3598 = vmatpush2.xpose.msra.mxu0 0.0
    %3599 = vmatprep.subr.mxu0 0.0
    %3600 = vmatpush2.xpose.msra.mxu0 0.0
    %3601 = vmatprep.subr.mxu0 0.0
    %3602 = vmatpush2.xpose.msra.mxu0 0.0
    %3603 = vmatprep.subr.mxu0 0.0
    %3604 = vmatpush2.xpose.msra.mxu0 0.0
    %3605 = vmatprep.subr.mxu0 0.0
    %3606 = vmatpush2.xpose.msra.mxu0 0.0
    %3607 = vmatprep.subr.mxu0 0.0
    %3608 = vmatpush2.xpose.msra.mxu0 0.0
    %3609 = vmatprep.subr.mxu0 0.0
    %3610 = vmatpush2.xpose.msra.mxu0 0.0
    %3611 = vmatprep.subr.mxu0 0.0
    %3612 = vmatpush2.xpose.msra.mxu0 0.0
    %3613 = vmatprep.subr.mxu0 0.0
    %3614 = vmatpush2.xpose.msra.mxu0 0.0
    %3615 = vmatprep.subr.mxu0 0.0
    %3616 = vmatpush2.xpose.msra.mxu0 0.0
    %3617 = vmatprep.subr.mxu0 0.0
    %3618 = vmatpush2.xpose.msra.mxu0 0.0
    %3619 = vmatprep.mubr.f32.mxu0 0.0
    %3620 = vmatmul.mubr.f32.gmra.mxu0 %v3551
    %v3621 = vpop.f32.mrf.mxu0
    %v3622 = vadd.f32 0.0, %v3621
    %v3623 = vpop.f32.mrf.mxu0
    %3624 = vdwg.mxu0
    %3625 = vrot.lane.b32.xlu0 %v2196, 104
    %v3626 = vpop.permute.xlu0 %3625
    %3627 = vrot.lane.b32.xlu0 %v2285, 104
    %v3628 = vpop.permute.xlu0 %3627
    %v3629 = vsel %vm403, %v3626, 0
    %v3631 = vsel %vm403, %v3628, 0
    %3633 = vmatprep.subr.mxu0 0.0
    %3634 = vmatpush1.xpose.msra.mxu0 0.0
    %3635 = vmatprep.subr.mxu0 0.0
    %3636 = vmatpush1.xpose.msra.mxu0 0.0
    %3637 = vmatprep.subr.mxu0 0.0
    %3638 = vmatpush1.xpose.msra.mxu0 0.0
    %3639 = vmatprep.subr.mxu0 0.0
    %3640 = vmatpush1.xpose.msra.mxu0 0.0
    %3641 = vmatprep.subr.mxu0 0.0
    %3642 = vmatpush1.xpose.msra.mxu0 0.0
    %3643 = vmatprep.subr.mxu0 0.0
    %3644 = vmatpush1.xpose.msra.mxu0 0.0
    %3645 = vmatprep.subr.mxu0 0.0
    %3646 = vmatpush1.xpose.msra.mxu0 0.0
    %3647 = vmatprep.subr.mxu0 0.0
    %3648 = vmatpush1.xpose.msra.mxu0 0.0
    %3649 = vmatprep.subr.mxu0 0.0
    %3650 = vmatpush1.xpose.msra.mxu0 0.0
    %3651 = vmatprep.subr.mxu0 0.0
    %3652 = vmatpush1.xpose.msra.mxu0 0.0
    %3653 = vmatprep.subr.mxu0 0.0
    %3654 = vmatpush1.xpose.msra.mxu0 0.0
    %3655 = vmatprep.subr.mxu0 0.0
    %3656 = vmatpush1.xpose.msra.mxu0 0.0
    %3657 = vmatprep.subr.mxu0 0.0
    %3658 = vmatpush1.xpose.msra.mxu0 0.0
    %3659 = vmatprep.subr.mxu0 0.0
    %3660 = vmatpush1.xpose.msra.mxu0 0.0
    %3661 = vmatprep.subr.mxu0 0.0
    %3662 = vmatpush1.xpose.msra.mxu0 0.0
    %3663 = vmatprep.subr.mxu0 0.0
    %3664 = vmatpush1.xpose.msra.mxu0 %v3631
    %3665 = vmatprep.subr.mxu0 0.0
    %3666 = vmatpush2.xpose.msra.mxu0 0.0
    %3667 = vmatprep.subr.mxu0 0.0
    %3668 = vmatpush2.xpose.msra.mxu0 0.0
    %3669 = vmatprep.subr.mxu0 0.0
    %3670 = vmatpush2.xpose.msra.mxu0 0.0
    %3671 = vmatprep.subr.mxu0 0.0
    %3672 = vmatpush2.xpose.msra.mxu0 0.0
    %3673 = vmatprep.subr.mxu0 0.0
    %3674 = vmatpush2.xpose.msra.mxu0 0.0
    %3675 = vmatprep.subr.mxu0 0.0
    %3676 = vmatpush2.xpose.msra.mxu0 0.0
    %3677 = vmatprep.subr.mxu0 0.0
    %3678 = vmatpush2.xpose.msra.mxu0 0.0
    %3679 = vmatprep.subr.mxu0 0.0
    %3680 = vmatpush2.xpose.msra.mxu0 0.0
    %3681 = vmatprep.subr.mxu0 0.0
    %3682 = vmatpush2.xpose.msra.mxu0 0.0
    %3683 = vmatprep.subr.mxu0 0.0
    %3684 = vmatpush2.xpose.msra.mxu0 0.0
    %3685 = vmatprep.subr.mxu0 0.0
    %3686 = vmatpush2.xpose.msra.mxu0 0.0
    %3687 = vmatprep.subr.mxu0 0.0
    %3688 = vmatpush2.xpose.msra.mxu0 0.0
    %3689 = vmatprep.subr.mxu0 0.0
    %3690 = vmatpush2.xpose.msra.mxu0 0.0
    %3691 = vmatprep.subr.mxu0 0.0
    %3692 = vmatpush2.xpose.msra.mxu0 0.0
    %3693 = vmatprep.subr.mxu0 0.0
    %3694 = vmatpush2.xpose.msra.mxu0 0.0
    %3695 = vmatprep.subr.mxu0 0.0
    %3696 = vmatpush2.xpose.msra.mxu0 0.0
    %3697 = vmatprep.mubr.f32.mxu0 0.0
    %3698 = vmatmul.mubr.f32.gmra.mxu0 %v3629
    %v3699 = vpop.f32.mrf.mxu0
    %v3700 = vadd.f32 0.0, %v3699
    %v3701 = vpop.f32.mrf.mxu0
    %3702 = vdwg.mxu0
    %v3703 = vmul.f32 %v3622, 0.35355338
    %v3704 = vmul.f32 %v3700, 0.35355338
    %v3705 = vadd.f32 %v3703, %v2451
    %v3706 = vadd.f32 %v3704, %v2455
    %v3707 = vsel %vm403, %v3705, -inf
    %3708 = vmax.xlane.f32.xlu0 %v3707
    %v3709 = vpop.xlane.xlu0 %3708
    %v3710 = vsel %vm403, %v3706, -inf
    %3711 = vmax.xlane.f32.xlu0 %v3710
    %v3712 = vpop.xlane.xlu0 %3711
    %v3713 = vsub.f32 %v3705, %v3709
    %v3714 = vsub.f32 %v3706, %v3712
    %v3715 = vmul.f32 %v3713, 1.442695
    %v3716 = vpow.pop %v3715
    %v3717 = vmul.f32 %v3714, 1.442695
    %v3718 = vpow.pop %v3717
    %v3719 = vsel %vm403, %v3716, 0.0
    %3720 = vadd.xlane.f32.xlu0 %v3719
    %v3721 = vpop.xlane.xlu0 %3720
    %v3722 = vsel %vm403, %v3718, 0.0
    %3723 = vadd.xlane.f32.xlu0 %v3722
    %v3724 = vpop.xlane.xlu0 %3723
    %v3725 = vrcp.pop %v3721
    %v3726 = vrcp.pop %v3724
    %v3727 = vmul.f32 %v3716, %v3725
    %v3728 = vmul.f32 %v3718, %v3726
    %3729 = vrot.lane.b32.xlu0 %v2280, 72
    %v3730 = vpop.permute.xlu0 %3729
    %v3733 = vsel %vm403, %v3727, 0
    %3735 = vmatprep.subr.mxu0 0.0
    %3736 = vmatpush1.msra.mxu0 0.0
    %3737 = vmatprep.subr.mxu0 0.0
    %3738 = vmatpush1.msra.mxu0 0.0
    %3739 = vmatprep.subr.mxu0 0.0
    %3740 = vmatpush1.msra.mxu0 0.0
    %3741 = vmatprep.subr.mxu0 0.0
    %3742 = vmatpush1.msra.mxu0 0.0
    %3743 = vmatprep.subr.mxu0 0.0
    %3744 = vmatpush1.msra.mxu0 0.0
    %3745 = vmatprep.subr.mxu0 0.0
    %3746 = vmatpush1.msra.mxu0 0.0
    %3747 = vmatprep.subr.mxu0 0.0
    %3748 = vmatpush1.msra.mxu0 0.0
    %3749 = vmatprep.subr.mxu0 0.0
    %3750 = vmatpush1.msra.mxu0 0.0
    %3751 = vmatprep.subr.mxu0 0.0
    %3752 = vmatpush1.msra.mxu0 0.0
    %3753 = vmatprep.subr.mxu0 0.0
    %3754 = vmatpush1.msra.mxu0 0.0
    %3755 = vmatprep.subr.mxu0 0.0
    %3756 = vmatpush1.msra.mxu0 0.0
    %3757 = vmatprep.subr.mxu0 0.0
    %3758 = vmatpush1.msra.mxu0 0.0
    %3759 = vmatprep.subr.mxu0 0.0
    %3760 = vmatpush1.msra.mxu0 0.0
    %3761 = vmatprep.subr.mxu0 0.0
    %3762 = vmatpush1.msra.mxu0 0.0
    %3763 = vmatprep.subr.mxu0 0.0
    %3764 = vmatpush1.msra.mxu0 0.0
    %3765 = vmatprep.subr.mxu0 0.0
    %3766 = vmatpush1.msra.mxu0 %v3730
    %3767 = vmatprep.subr.mxu0 0.0
    %3768 = vmatpush2.msra.mxu0 0.0
    %3769 = vmatprep.subr.mxu0 0.0
    %3770 = vmatpush2.msra.mxu0 0.0
    %3771 = vmatprep.subr.mxu0 0.0
    %3772 = vmatpush2.msra.mxu0 0.0
    %3773 = vmatprep.subr.mxu0 0.0
    %3774 = vmatpush2.msra.mxu0 0.0
    %3775 = vmatprep.subr.mxu0 0.0
    %3776 = vmatpush2.msra.mxu0 0.0
    %3777 = vmatprep.subr.mxu0 0.0
    %3778 = vmatpush2.msra.mxu0 0.0
    %3779 = vmatprep.subr.mxu0 0.0
    %3780 = vmatpush2.msra.mxu0 0.0
    %3781 = vmatprep.subr.mxu0 0.0
    %3782 = vmatpush2.msra.mxu0 0.0
    %3783 = vmatprep.subr.mxu0 0.0
    %3784 = vmatpush2.msra.mxu0 0.0
    %3785 = vmatprep.subr.mxu0 0.0
    %3786 = vmatpush2.msra.mxu0 0.0
    %3787 = vmatprep.subr.mxu0 0.0
    %3788 = vmatpush2.msra.mxu0 0.0
    %3789 = vmatprep.subr.mxu0 0.0
    %3790 = vmatpush2.msra.mxu0 0.0
    %3791 = vmatprep.subr.mxu0 0.0
    %3792 = vmatpush2.msra.mxu0 0.0
    %3793 = vmatprep.subr.mxu0 0.0
    %3794 = vmatpush2.msra.mxu0 0.0
    %3795 = vmatprep.subr.mxu0 0.0
    %3796 = vmatpush2.msra.mxu0 0.0
    %3797 = vmatprep.subr.mxu0 0.0
    %3798 = vmatpush2.msra.mxu0 0.0
    %3799 = vmatprep.mubr.f32.mxu0 0.0
    %3800 = vmatmul.mubr.f32.gmra.mxu0 %v3733
    %v3801 = vpop.f32.mrf.mxu0
    %v3802 = vadd.f32 0.0, %v3801
    %v3803 = vpop.f32.mrf.mxu0
    %3804 = vdwg.mxu0
    %3805 = vrot.lane.b32.xlu0 %v2285, 72
    %v3806 = vpop.permute.xlu0 %3805
    %v3809 = vsel %vm403, %v3728, 0
    %3811 = vmatprep.subr.mxu0 0.0
    %3812 = vmatpush1.msra.mxu0 0.0
    %3813 = vmatprep.subr.mxu0 0.0
    %3814 = vmatpush1.msra.mxu0 0.0
    %3815 = vmatprep.subr.mxu0 0.0
    %3816 = vmatpush1.msra.mxu0 0.0
    %3817 = vmatprep.subr.mxu0 0.0
    %3818 = vmatpush1.msra.mxu0 0.0
    %3819 = vmatprep.subr.mxu0 0.0
    %3820 = vmatpush1.msra.mxu0 0.0
    %3821 = vmatprep.subr.mxu0 0.0
    %3822 = vmatpush1.msra.mxu0 0.0
    %3823 = vmatprep.subr.mxu0 0.0
    %3824 = vmatpush1.msra.mxu0 0.0
    %3825 = vmatprep.subr.mxu0 0.0
    %3826 = vmatpush1.msra.mxu0 0.0
    %3827 = vmatprep.subr.mxu0 0.0
    %3828 = vmatpush1.msra.mxu0 0.0
    %3829 = vmatprep.subr.mxu0 0.0
    %3830 = vmatpush1.msra.mxu0 0.0
    %3831 = vmatprep.subr.mxu0 0.0
    %3832 = vmatpush1.msra.mxu0 0.0
    %3833 = vmatprep.subr.mxu0 0.0
    %3834 = vmatpush1.msra.mxu0 0.0
    %3835 = vmatprep.subr.mxu0 0.0
    %3836 = vmatpush1.msra.mxu0 0.0
    %3837 = vmatprep.subr.mxu0 0.0
    %3838 = vmatpush1.msra.mxu0 0.0
    %3839 = vmatprep.subr.mxu0 0.0
    %3840 = vmatpush1.msra.mxu0 0.0
    %3841 = vmatprep.subr.mxu0 0.0
    %3842 = vmatpush1.msra.mxu0 %v3806
    %3843 = vmatprep.subr.mxu0 0.0
    %3844 = vmatpush2.msra.mxu0 0.0
    %3845 = vmatprep.subr.mxu0 0.0
    %3846 = vmatpush2.msra.mxu0 0.0
    %3847 = vmatprep.subr.mxu0 0.0
    %3848 = vmatpush2.msra.mxu0 0.0
    %3849 = vmatprep.subr.mxu0 0.0
    %3850 = vmatpush2.msra.mxu0 0.0
    %3851 = vmatprep.subr.mxu0 0.0
    %3852 = vmatpush2.msra.mxu0 0.0
    %3853 = vmatprep.subr.mxu0 0.0
    %3854 = vmatpush2.msra.mxu0 0.0
    %3855 = vmatprep.subr.mxu0 0.0
    %3856 = vmatpush2.msra.mxu0 0.0
    %3857 = vmatprep.subr.mxu0 0.0
    %3858 = vmatpush2.msra.mxu0 0.0
    %3859 = vmatprep.subr.mxu0 0.0
    %3860 = vmatpush2.msra.mxu0 0.0
    %3861 = vmatprep.subr.mxu0 0.0
    %3862 = vmatpush2.msra.mxu0 0.0
    %3863 = vmatprep.subr.mxu0 0.0
    %3864 = vmatpush2.msra.mxu0 0.0
    %3865 = vmatprep.subr.mxu0 0.0
    %3866 = vmatpush2.msra.mxu0 0.0
    %3867 = vmatprep.subr.mxu0 0.0
    %3868 = vmatpush2.msra.mxu0 0.0
    %3869 = vmatprep.subr.mxu0 0.0
    %3870 = vmatpush2.msra.mxu0 0.0
    %3871 = vmatprep.subr.mxu0 0.0
    %3872 = vmatpush2.msra.mxu0 0.0
    %3873 = vmatprep.subr.mxu0 0.0
    %3874 = vmatpush2.msra.mxu0 0.0
    %3875 = vmatprep.mubr.f32.mxu0 0.0
    %3876 = vmatmul.mubr.f32.gmra.mxu0 %v3809
    %v3877 = vpop.f32.mrf.mxu0
    %v3878 = vadd.f32 0.0, %v3877
    %v3879 = vpop.f32.mrf.mxu0
    %3880 = vdwg.mxu0
    %v3882 = vsel %vm403, %v3802, 0
    %v3885 = vsel %vm403, %v3878, 0
    %3887 = vmatprep.subr.mxu0 0.0
    %3888 = vmatpush1.msra.mxu0 0.0
    %3889 = vmatprep.subr.mxu0 0.0
    %3890 = vmatpush1.msra.mxu0 0.0
    %3891 = vmatprep.subr.mxu0 0.0
    %3892 = vmatpush1.msra.mxu0 0.0
    %3893 = vmatprep.subr.mxu0 0.0
    %3894 = vmatpush1.msra.mxu0 0.0
    %3895 = vmatprep.subr.mxu0 0.0
    %3896 = vmatpush1.msra.mxu0 0.0
    %3897 = vmatprep.subr.mxu0 0.0
    %3898 = vmatpush1.msra.mxu0 0.0
    %3899 = vmatprep.subr.mxu0 0.0
    %3900 = vmatpush1.msra.mxu0 0.0
    %3901 = vmatprep.subr.mxu0 0.0
    %3902 = vmatpush1.msra.mxu0 0.0
    %3903 = vmatprep.subr.mxu0 0.0
    %3904 = vmatpush1.msra.mxu0 0.0
    %3905 = vmatprep.subr.mxu0 0.0
    %3906 = vmatpush1.msra.mxu0 0.0
    %3907 = vmatprep.subr.mxu0 0.0
    %3908 = vmatpush1.msra.mxu0 0.0
    %3909 = vmatprep.subr.mxu0 0.0
    %3910 = vmatpush1.msra.mxu0 0.0
    %3911 = vmatprep.subr.mxu0 0.0
    %3912 = vmatpush1.msra.mxu0 0.0
    %3913 = vmatprep.subr.mxu0 0.0
    %3914 = vmatpush1.msra.mxu0 0.0
    %3915 = vmatprep.subr.mxu0 0.0
    %3916 = vmatpush1.msra.mxu0 0.0
    %3917 = vmatprep.subr.mxu0 0.0
    %3918 = vmatpush1.msra.mxu0 %v2291
    %3919 = vmatprep.subr.mxu0 0.0
    %3920 = vmatpush2.msra.mxu0 0.0
    %3921 = vmatprep.subr.mxu0 0.0
    %3922 = vmatpush2.msra.mxu0 0.0
    %3923 = vmatprep.subr.mxu0 0.0
    %3924 = vmatpush2.msra.mxu0 0.0
    %3925 = vmatprep.subr.mxu0 0.0
    %3926 = vmatpush2.msra.mxu0 0.0
    %3927 = vmatprep.subr.mxu0 0.0
    %3928 = vmatpush2.msra.mxu0 0.0
    %3929 = vmatprep.subr.mxu0 0.0
    %3930 = vmatpush2.msra.mxu0 0.0
    %3931 = vmatprep.subr.mxu0 0.0
    %3932 = vmatpush2.msra.mxu0 0.0
    %3933 = vmatprep.subr.mxu0 0.0
    %3934 = vmatpush2.msra.mxu0 0.0
    %3935 = vmatprep.subr.mxu0 0.0
    %3936 = vmatpush2.msra.mxu0 0.0
    %3937 = vmatprep.subr.mxu0 0.0
    %3938 = vmatpush2.msra.mxu0 0.0
    %3939 = vmatprep.subr.mxu0 0.0
    %3940 = vmatpush2.msra.mxu0 0.0
    %3941 = vmatprep.subr.mxu0 0.0
    %3942 = vmatpush2.msra.mxu0 0.0
    %3943 = vmatprep.subr.mxu0 0.0
    %3944 = vmatpush2.msra.mxu0 0.0
    %3945 = vmatprep.subr.mxu0 0.0
    %3946 = vmatpush2.msra.mxu0 0.0
    %3947 = vmatprep.subr.mxu0 0.0
    %3948 = vmatpush2.msra.mxu0 0.0
    %3949 = vmatprep.subr.mxu0 0.0
    %3950 = vmatpush2.msra.mxu0 0.0
    %3951 = vmatprep.mubr.f32.mxu0 0.0
    %3952 = vmatmul.mubr.f32.gmra.mxu0 %v3882
    %v3953 = vpop.f32.mrf.mxu0
    %v3954 = vadd.f32 0.0, %v3953
    %v3955 = vpop.f32.mrf.mxu0
    %3956 = vmatprep.mubr.f32.mxu0 0.0
    %3957 = vmatmul.mubr.f32.gmra.mxu0 %v3885
    %v3958 = vpop.f32.mrf.mxu0
    %v3959 = vadd.f32 0.0, %v3958
    %v3960 = vpop.f32.mrf.mxu0
    %3961 = vdwg.mxu0
    %v3962 = vadd.f32 %v3545, %v3954
    %v3963 = vadd.f32 %v3546, %v3959
    %v3964 = vlaneseq
    %v3965 = vshrl.u32 %v3964, 7
    %v3966 = vsub.s32 6, %v3965
    %v3967 = vrot.slane %v304, %v3966
    %v3968 = vadd.f32 %v3962, %v3967
    %v3969 = vadd.f32 %v3963, %v3967
    %v3970 = vadd.f32 %v2108, %v3968
    %v3971 = vadd.f32 %v2109, %v3969
    %v3972 = vsel %vm314, %v3970, 0.0
    %3973 = vadd.xlane.f32.xlu0 %v3972
    %v3974 = vpop.xlane.xlu0 %3973
    %v3975 = vsel %vm314, %v3971, 0.0
    %3976 = vadd.xlane.f32.xlu0 %v3975
    %v3977 = vpop.xlane.xlu0 %3976
    %v3978 = vmul.f32 %v3974, %v2077
    %v3979 = vmul.f32 %v3977, %v2077
    %v3980 = vsub.f32 %v3970, %v3978
    %v3981 = vsub.f32 %v3971, %v3979
    %v3982 = vmul.f32 %v3980, %v3980
    %v3983 = vmul.f32 %v3981, %v3981
    %v3984 = vsel %vm314, %v3982, 0.0
    %3985 = vadd.xlane.f32.xlu0 %v3984
    %v3986 = vpop.xlane.xlu0 %3985
    %v3987 = vsel %vm314, %v3983, 0.0
    %3988 = vadd.xlane.f32.xlu0 %v3987
    %v3989 = vpop.xlane.xlu0 %3988
    %v3990 = vmul.f32 %v3986, %v2077
    %v3991 = vmul.f32 %v3989, %v2077
    %v3992 = vadd.f32 %v3990, 1e-05
    %v3993 = vadd.f32 %v3991, 1e-05
    %v3994 = vrsqrt.pop %v3992
    %v3995 = vrsqrt.pop %v3993
    %v3996 = vmul.f32 %v3980, %v3994
    %v3997 = vmul.f32 %v3981, %v3995
    %v3998 = vlaneseq
    %v3999 = vshrl.u32 %v3998, 7
    %v4000 = vsub.s32 7, %v3999
    %v4001 = vrot.slane %v304, %v4000
    %v4002 = vmul.f32 %v3996, %v4001
    %v4003 = vmul.f32 %v3997, %v4001
    %v4004 = vlaneseq
    %v4005 = vshrl.u32 %v4004, 7
    %v4006 = vsub.s32 0, %v4005
    %v4007 = vrot.slane %v305, %v4006
    %v4008 = vadd.f32 %v4002, %v4007
    %v4009 = vadd.f32 %v4003, %v4007
    %v4010 = vld [vmem:[%s13] sm:$0xff]
    %v4011 = vld [vmem:[%s13 + $0x8] sm:$0xff]
    %v4012 = vld [vmem:[%s13 + $0x10] sm:$0xff]
    %v4013 = vld [vmem:[%s13 + $0x18] sm:$0xff]
    %v4014 = vlaneseq
    %v4015 = vshrl.u32 %v4014, 7
    %v4016 = vsub.s32 1, %v4015
    %v4017 = vrot.slane %v305, %v4016
    %v4019 = vsel %vm314, %v4008, 0
    %v4022 = vsel %vm314, %v4009, 0
    %4024 = vmatprep.subr.mxu0 0.0
    %4025 = vmatpush1.msra.mxu0 0.0
    %4026 = vmatprep.subr.mxu0 0.0
    %4027 = vmatpush1.msra.mxu0 0.0
    %4028 = vmatprep.subr.mxu0 0.0
    %4029 = vmatpush1.msra.mxu0 0.0
    %4030 = vmatprep.subr.mxu0 0.0
    %4031 = vmatpush1.msra.mxu0 0.0
    %4032 = vmatprep.subr.mxu0 0.0
    %4033 = vmatpush1.msra.mxu0 0.0
    %4034 = vmatprep.subr.mxu0 0.0
    %4035 = vmatpush1.msra.mxu0 0.0
    %4036 = vmatprep.subr.mxu0 0.0
    %4037 = vmatpush1.msra.mxu0 0.0
    %4038 = vmatprep.subr.mxu0 0.0
    %4039 = vmatpush1.msra.mxu0 0.0
    %4040 = vmatprep.subr.mxu0 0.0
    %4041 = vmatpush1.msra.mxu0 0.0
    %4042 = vmatprep.subr.mxu0 0.0
    %4043 = vmatpush1.msra.mxu0 0.0
    %4044 = vmatprep.subr.mxu0 0.0
    %4045 = vmatpush1.msra.mxu0 0.0
    %4046 = vmatprep.subr.mxu0 0.0
    %4047 = vmatpush1.msra.mxu0 0.0
    %4048 = vmatprep.subr.mxu0 0.0
    %4049 = vmatpush1.msra.mxu0 %v4013
    %4050 = vmatprep.subr.mxu0 0.0
    %4051 = vmatpush1.msra.mxu0 %v4012
    %4052 = vmatprep.subr.mxu0 0.0
    %4053 = vmatpush1.msra.mxu0 %v4011
    %4054 = vmatprep.subr.mxu0 0.0
    %4055 = vmatpush1.msra.mxu0 %v4010
    %4056 = vmatprep.subr.mxu0 0.0
    %4057 = vmatpush2.msra.mxu0 0.0
    %4058 = vmatprep.subr.mxu0 0.0
    %4059 = vmatpush2.msra.mxu0 0.0
    %4060 = vmatprep.subr.mxu0 0.0
    %4061 = vmatpush2.msra.mxu0 0.0
    %4062 = vmatprep.subr.mxu0 0.0
    %4063 = vmatpush2.msra.mxu0 0.0
    %4064 = vmatprep.subr.mxu0 0.0
    %4065 = vmatpush2.msra.mxu0 0.0
    %4066 = vmatprep.subr.mxu0 0.0
    %4067 = vmatpush2.msra.mxu0 0.0
    %4068 = vmatprep.subr.mxu0 0.0
    %4069 = vmatpush2.msra.mxu0 0.0
    %4070 = vmatprep.subr.mxu0 0.0
    %4071 = vmatpush2.msra.mxu0 0.0
    %4072 = vmatprep.subr.mxu0 0.0
    %4073 = vmatpush2.msra.mxu0 0.0
    %4074 = vmatprep.subr.mxu0 0.0
    %4075 = vmatpush2.msra.mxu0 0.0
    %4076 = vmatprep.subr.mxu0 0.0
    %4077 = vmatpush2.msra.mxu0 0.0
    %4078 = vmatprep.subr.mxu0 0.0
    %4079 = vmatpush2.msra.mxu0 0.0
    %4080 = vmatprep.subr.mxu0 0.0
    %4081 = vmatpush2.msra.mxu0 0.0
    %4082 = vmatprep.subr.mxu0 0.0
    %4083 = vmatpush2.msra.mxu0 0.0
    %4084 = vmatprep.subr.mxu0 0.0
    %4085 = vmatpush2.msra.mxu0 0.0
    %4086 = vmatprep.subr.mxu0 0.0
    %4087 = vmatpush2.msra.mxu0 0.0
    %4088 = vmatprep.mubr.f32.mxu0 0.0
    %4089 = vmatmul.mubr.f32.gmra.mxu0 %v4019
    %v4090 = vpop.f32.mrf.mxu0
    %v4091 = vadd.f32 %v4017, %v4090
    %v4092 = vpop.f32.mrf.mxu0
    %4093 = vmatprep.mubr.f32.mxu0 0.0
    %4094 = vmatmul.mubr.f32.gmra.mxu0 %v4022
    %v4095 = vpop.f32.mrf.mxu0
    %v4096 = vadd.f32 %v4017, %v4095
    %v4097 = vpop.f32.mrf.mxu0
    %4098 = vdwg.mxu0
    %v4099 = vmax.f32 %v4091, 0.0
    %v4100 = vmax.f32 %v4096, 0.0
    %v4101 = vld [vmem:[%s14] sm:$0xff]
    %v4102 = vld [vmem:[%s14 + $0x8] sm:$0xff]
    %v4103 = vld [vmem:[%s14 + $0x10] sm:$0xff]
    %v4104 = vld [vmem:[%s14 + $0x18] sm:$0xff]
    %v4105 = vld [vmem:[%s14 + $0x20] sm:$0xff]
    %v4106 = vld [vmem:[%s14 + $0x28] sm:$0xff]
    %v4107 = vld [vmem:[%s14 + $0x30] sm:$0xff]
    %v4108 = vld [vmem:[%s14 + $0x38] sm:$0xff]
    %v4109 = vlaneseq
    %v4110 = vshrl.u32 %v4109, 7
    %v4111 = vsub.s32 2, %v4110
    %v4112 = vrot.slane %v305, %v4111
    %vm4113 = vcmask 523264
    %v4115 = vsel %vm4113, %v4099, 0
    %v4118 = vsel %vm4113, %v4100, 0
    %4120 = vmatprep.subr.mxu0 0.0
    %4121 = vmatpush1.msra.mxu0 0.0
    %4122 = vmatprep.subr.mxu0 0.0
    %4123 = vmatpush1.msra.mxu0 0.0
    %4124 = vmatprep.subr.mxu0 0.0
    %4125 = vmatpush1.msra.mxu0 0.0
    %4126 = vmatprep.subr.mxu0 0.0
    %4127 = vmatpush1.msra.mxu0 0.0
    %4128 = vmatprep.subr.mxu0 0.0
    %4129 = vmatpush1.msra.mxu0 0.0
    %4130 = vmatprep.subr.mxu0 0.0
    %4131 = vmatpush1.msra.mxu0 0.0
    %4132 = vmatprep.subr.mxu0 0.0
    %4133 = vmatpush1.msra.mxu0 0.0
    %4134 = vmatprep.subr.mxu0 0.0
    %4135 = vmatpush1.msra.mxu0 0.0
    %4136 = vmatprep.subr.mxu0 0.0
    %4137 = vmatpush1.msra.mxu0 %v4108
    %4138 = vmatprep.subr.mxu0 0.0
    %4139 = vmatpush1.msra.mxu0 %v4107
    %4140 = vmatprep.subr.mxu0 0.0
    %4141 = vmatpush1.msra.mxu0 %v4106
    %4142 = vmatprep.subr.mxu0 0.0
    %4143 = vmatpush1.msra.mxu0 %v4105
    %4144 = vmatprep.subr.mxu0 0.0
    %4145 = vmatpush1.msra.mxu0 %v4104
    %4146 = vmatprep.subr.mxu0 0.0
    %4147 = vmatpush1.msra.mxu0 %v4103
    %4148 = vmatprep.subr.mxu0 0.0
    %4149 = vmatpush1.msra.mxu0 %v4102
    %4150 = vmatprep.subr.mxu0 0.0
    %4151 = vmatpush1.msra.mxu0 %v4101
    %4152 = vmatprep.subr.mxu0 0.0
    %4153 = vmatpush2.msra.mxu0 0.0
    %4154 = vmatprep.subr.mxu0 0.0
    %4155 = vmatpush2.msra.mxu0 0.0
    %4156 = vmatprep.subr.mxu0 0.0
    %4157 = vmatpush2.msra.mxu0 0.0
    %4158 = vmatprep.subr.mxu0 0.0
    %4159 = vmatpush2.msra.mxu0 0.0
    %4160 = vmatprep.subr.mxu0 0.0
    %4161 = vmatpush2.msra.mxu0 0.0
    %4162 = vmatprep.subr.mxu0 0.0
    %4163 = vmatpush2.msra.mxu0 0.0
    %4164 = vmatprep.subr.mxu0 0.0
    %4165 = vmatpush2.msra.mxu0 0.0
    %4166 = vmatprep.subr.mxu0 0.0
    %4167 = vmatpush2.msra.mxu0 0.0
    %4168 = vmatprep.subr.mxu0 0.0
    %4169 = vmatpush2.msra.mxu0 0.0
    %4170 = vmatprep.subr.mxu0 0.0
    %4171 = vmatpush2.msra.mxu0 0.0
    %4172 = vmatprep.subr.mxu0 0.0
    %4173 = vmatpush2.msra.mxu0 0.0
    %4174 = vmatprep.subr.mxu0 0.0
    %4175 = vmatpush2.msra.mxu0 0.0
    %4176 = vmatprep.subr.mxu0 0.0
    %4177 = vmatpush2.msra.mxu0 0.0
    %4178 = vmatprep.subr.mxu0 0.0
    %4179 = vmatpush2.msra.mxu0 0.0
    %4180 = vmatprep.subr.mxu0 0.0
    %4181 = vmatpush2.msra.mxu0 0.0
    %4182 = vmatprep.subr.mxu0 0.0
    %4183 = vmatpush2.msra.mxu0 0.0
    %4184 = vmatprep.mubr.f32.mxu0 0.0
    %4185 = vmatmul.mubr.f32.gmra.mxu0 %v4115
    %v4186 = vpop.f32.mrf.mxu0
    %v4187 = vadd.f32 %v4112, %v4186
    %v4188 = vpop.f32.mrf.mxu0
    %4189 = vmatprep.mubr.f32.mxu0 0.0
    %4190 = vmatmul.mubr.f32.gmra.mxu0 %v4118
    %v4191 = vpop.f32.mrf.mxu0
    %v4192 = vadd.f32 %v4112, %v4191
    %v4193 = vpop.f32.mrf.mxu0
    %4194 = vdwg.mxu0
    %v4195 = vadd.f32 %v4008, %v4187
    %v4196 = vadd.f32 %v4009, %v4192
    %v4197 = vsel %vm314, %v4195, 0.0
    %4198 = vadd.xlane.f32.xlu0 %v4197
    %v4199 = vpop.xlane.xlu0 %4198
    %v4200 = vsel %vm314, %v4196, 0.0
    %4201 = vadd.xlane.f32.xlu0 %v4200
    %v4202 = vpop.xlane.xlu0 %4201
    %v4203 = vmul.f32 %v4199, %v2077
    %v4204 = vmul.f32 %v4202, %v2077
    %v4205 = vsub.f32 %v4195, %v4203
    %v4206 = vsub.f32 %v4196, %v4204
    %v4207 = vmul.f32 %v4205, %v4205
    %v4208 = vmul.f32 %v4206, %v4206
    %v4209 = vsel %vm314, %v4207, 0.0
    %4210 = vadd.xlane.f32.xlu0 %v4209
    %v4211 = vpop.xlane.xlu0 %4210
    %v4212 = vsel %vm314, %v4208, 0.0
    %4213 = vadd.xlane.f32.xlu0 %v4212
    %v4214 = vpop.xlane.xlu0 %4213
    %v4215 = vmul.f32 %v4211, %v2077
    %v4216 = vmul.f32 %v4214, %v2077
    %v4217 = vadd.f32 %v4215, 1e-05
    %v4218 = vadd.f32 %v4216, 1e-05
    %v4219 = vrsqrt.pop %v4217
    %v4220 = vrsqrt.pop %v4218
    %v4221 = vmul.f32 %v4205, %v4219
    %v4222 = vmul.f32 %v4206, %v4220
    %v4223 = vlaneseq
    %v4224 = vshrl.u32 %v4223, 7
    %v4225 = vsub.s32 3, %v4224
    %v4226 = vrot.slane %v305, %v4225
    %v4227 = vmul.f32 %v4221, %v4226
    %v4228 = vmul.f32 %v4222, %v4226
    %v4229 = vlaneseq
    %v4230 = vshrl.u32 %v4229, 7
    %v4231 = vsub.s32 4, %v4230
    %v4232 = vrot.slane %v305, %v4231
    %v4233 = vadd.f32 %v4227, %v4232
    %v4234 = vadd.f32 %v4228, %v4232
    %s4235 = scalar_lea.vmem %s15, 16
    %v4236 = vld [vmem:[%s4235] sm:$0xff]
    %v4237 = vld [vmem:[%s4235 + $0x8] sm:$0x1f]
    %s4238 = scalar_lea.vmem %s8, 32
    %v4239 = vld [vmem:[%s4238] sm:$0xff]
    %v4240 = vld [vmem:[%s4238 + $0x8] sm:$0xff]
    %v4241 = vld [vmem:[%s4238 + $0x10] sm:$0xff]
    %v4242 = vld [vmem:[%s4238 + $0x18] sm:$0xff]
    %v4243 = vlaneseq
    %v4244 = vshrl.u32 %v4243, 7
    %v4245 = vsub.s32 0, %v4244
    %v4246 = vrot.slane %v4236, %v4245
    %v4248 = vsel %vm314, %v4233, 0
    %v4251 = vsel %vm314, %v4234, 0
    %4253 = vmatprep.subr.mxu0 0.0
    %4254 = vmatpush1.msra.mxu0 0.0
    %4255 = vmatprep.subr.mxu0 0.0
    %4256 = vmatpush1.msra.mxu0 0.0
    %4257 = vmatprep.subr.mxu0 0.0
    %4258 = vmatpush1.msra.mxu0 0.0
    %4259 = vmatprep.subr.mxu0 0.0
    %4260 = vmatpush1.msra.mxu0 0.0
    %4261 = vmatprep.subr.mxu0 0.0
    %4262 = vmatpush1.msra.mxu0 0.0
    %4263 = vmatprep.subr.mxu0 0.0
    %4264 = vmatpush1.msra.mxu0 0.0
    %4265 = vmatprep.subr.mxu0 0.0
    %4266 = vmatpush1.msra.mxu0 0.0
    %4267 = vmatprep.subr.mxu0 0.0
    %4268 = vmatpush1.msra.mxu0 0.0
    %4269 = vmatprep.subr.mxu0 0.0
    %4270 = vmatpush1.msra.mxu0 0.0
    %4271 = vmatprep.subr.mxu0 0.0
    %4272 = vmatpush1.msra.mxu0 0.0
    %4273 = vmatprep.subr.mxu0 0.0
    %4274 = vmatpush1.msra.mxu0 0.0
    %4275 = vmatprep.subr.mxu0 0.0
    %4276 = vmatpush1.msra.mxu0 0.0
    %4277 = vmatprep.subr.mxu0 0.0
    %4278 = vmatpush1.msra.mxu0 %v4242
    %4279 = vmatprep.subr.mxu0 0.0
    %4280 = vmatpush1.msra.mxu0 %v4241
    %4281 = vmatprep.subr.mxu0 0.0
    %4282 = vmatpush1.msra.mxu0 %v4240
    %4283 = vmatprep.subr.mxu0 0.0
    %4284 = vmatpush1.msra.mxu0 %v4239
    %4285 = vmatprep.subr.mxu0 0.0
    %4286 = vmatpush2.msra.mxu0 0.0
    %4287 = vmatprep.subr.mxu0 0.0
    %4288 = vmatpush2.msra.mxu0 0.0
    %4289 = vmatprep.subr.mxu0 0.0
    %4290 = vmatpush2.msra.mxu0 0.0
    %4291 = vmatprep.subr.mxu0 0.0
    %4292 = vmatpush2.msra.mxu0 0.0
    %4293 = vmatprep.subr.mxu0 0.0
    %4294 = vmatpush2.msra.mxu0 0.0
    %4295 = vmatprep.subr.mxu0 0.0
    %4296 = vmatpush2.msra.mxu0 0.0
    %4297 = vmatprep.subr.mxu0 0.0
    %4298 = vmatpush2.msra.mxu0 0.0
    %4299 = vmatprep.subr.mxu0 0.0
    %4300 = vmatpush2.msra.mxu0 0.0
    %4301 = vmatprep.subr.mxu0 0.0
    %4302 = vmatpush2.msra.mxu0 0.0
    %4303 = vmatprep.subr.mxu0 0.0
    %4304 = vmatpush2.msra.mxu0 0.0
    %4305 = vmatprep.subr.mxu0 0.0
    %4306 = vmatpush2.msra.mxu0 0.0
    %4307 = vmatprep.subr.mxu0 0.0
    %4308 = vmatpush2.msra.mxu0 0.0
    %4309 = vmatprep.subr.mxu0 0.0
    %4310 = vmatpush2.msra.mxu0 0.0
    %4311 = vmatprep.subr.mxu0 0.0
    %4312 = vmatpush2.msra.mxu0 0.0
    %4313 = vmatprep.subr.mxu0 0.0
    %4314 = vmatpush2.msra.mxu0 0.0
    %4315 = vmatprep.subr.mxu0 0.0
    %4316 = vmatpush2.msra.mxu0 0.0
    %4317 = vmatprep.mubr.f32.mxu0 0.0
    %4318 = vmatmul.mubr.f32.gmra.mxu0 %v4248
    %v4319 = vpop.f32.mrf.mxu0
    %v4320 = vadd.f32 %v4246, %v4319
    %v4321 = vpop.f32.mrf.mxu0
    %4322 = vmatprep.mubr.f32.mxu0 0.0
    %4323 = vmatmul.mubr.f32.gmra.mxu0 %v4251
    %v4324 = vpop.f32.mrf.mxu0
    %v4325 = vadd.f32 %v4246, %v4324
    %v4326 = vpop.f32.mrf.mxu0
    %4327 = vdwg.mxu0
    %s4328 = scalar_lea.vmem %s9, 32
    %v4329 = vld [vmem:[%s4328] sm:$0xff]
    %v4330 = vld [vmem:[%s4328 + $0x8] sm:$0xff]
    %v4331 = vld [vmem:[%s4328 + $0x10] sm:$0xff]
    %v4332 = vld [vmem:[%s4328 + $0x18] sm:$0xff]
    %4334 = vrot.lane.b32.xlu0 %v4320, 96
    %v4335 = vpop.permute.xlu0 %4334
    %v4336 = vsel %vm403, %v4320, 0
    %v4338 = vsel %vm403, %v4335, 0
    %4340 = vmatprep.subr.mxu0 0.0
    %4341 = vmatpush1.xpose.msra.mxu0 0.0
    %4342 = vmatprep.subr.mxu0 0.0
    %4343 = vmatpush1.xpose.msra.mxu0 0.0
    %4344 = vmatprep.subr.mxu0 0.0
    %4345 = vmatpush1.xpose.msra.mxu0 0.0
    %4346 = vmatprep.subr.mxu0 0.0
    %4347 = vmatpush1.xpose.msra.mxu0 0.0
    %4348 = vmatprep.subr.mxu0 0.0
    %4349 = vmatpush1.xpose.msra.mxu0 0.0
    %4350 = vmatprep.subr.mxu0 0.0
    %4351 = vmatpush1.xpose.msra.mxu0 0.0
    %4352 = vmatprep.subr.mxu0 0.0
    %4353 = vmatpush1.xpose.msra.mxu0 0.0
    %4354 = vmatprep.subr.mxu0 0.0
    %4355 = vmatpush1.xpose.msra.mxu0 0.0
    %4356 = vmatprep.subr.mxu0 0.0
    %4357 = vmatpush1.xpose.msra.mxu0 0.0
    %4358 = vmatprep.subr.mxu0 0.0
    %4359 = vmatpush1.xpose.msra.mxu0 0.0
    %4360 = vmatprep.subr.mxu0 0.0
    %4361 = vmatpush1.xpose.msra.mxu0 0.0
    %4362 = vmatprep.subr.mxu0 0.0
    %4363 = vmatpush1.xpose.msra.mxu0 0.0
    %4364 = vmatprep.subr.mxu0 0.0
    %4365 = vmatpush1.xpose.msra.mxu0 0.0
    %4366 = vmatprep.subr.mxu0 0.0
    %4367 = vmatpush1.xpose.msra.mxu0 0.0
    %4368 = vmatprep.subr.mxu0 0.0
    %4369 = vmatpush1.xpose.msra.mxu0 0.0
    %4370 = vmatprep.subr.mxu0 0.0
    %4371 = vmatpush1.xpose.msra.mxu0 %v4338
    %4372 = vmatprep.subr.mxu0 0.0
    %4373 = vmatpush2.xpose.msra.mxu0 0.0
    %4374 = vmatprep.subr.mxu0 0.0
    %4375 = vmatpush2.xpose.msra.mxu0 0.0
    %4376 = vmatprep.subr.mxu0 0.0
    %4377 = vmatpush2.xpose.msra.mxu0 0.0
    %4378 = vmatprep.subr.mxu0 0.0
    %4379 = vmatpush2.xpose.msra.mxu0 0.0
    %4380 = vmatprep.subr.mxu0 0.0
    %4381 = vmatpush2.xpose.msra.mxu0 0.0
    %4382 = vmatprep.subr.mxu0 0.0
    %4383 = vmatpush2.xpose.msra.mxu0 0.0
    %4384 = vmatprep.subr.mxu0 0.0
    %4385 = vmatpush2.xpose.msra.mxu0 0.0
    %4386 = vmatprep.subr.mxu0 0.0
    %4387 = vmatpush2.xpose.msra.mxu0 0.0
    %4388 = vmatprep.subr.mxu0 0.0
    %4389 = vmatpush2.xpose.msra.mxu0 0.0
    %4390 = vmatprep.subr.mxu0 0.0
    %4391 = vmatpush2.xpose.msra.mxu0 0.0
    %4392 = vmatprep.subr.mxu0 0.0
    %4393 = vmatpush2.xpose.msra.mxu0 0.0
    %4394 = vmatprep.subr.mxu0 0.0
    %4395 = vmatpush2.xpose.msra.mxu0 0.0
    %4396 = vmatprep.subr.mxu0 0.0
    %4397 = vmatpush2.xpose.msra.mxu0 0.0
    %4398 = vmatprep.subr.mxu0 0.0
    %4399 = vmatpush2.xpose.msra.mxu0 0.0
    %4400 = vmatprep.subr.mxu0 0.0
    %4401 = vmatpush2.xpose.msra.mxu0 0.0
    %4402 = vmatprep.subr.mxu0 0.0
    %4403 = vmatpush2.xpose.msra.mxu0 0.0
    %4404 = vmatprep.mubr.f32.mxu0 0.0
    %4405 = vmatmul.mubr.f32.gmra.mxu0 %v4336
    %v4406 = vpop.f32.mrf.mxu0
    %v4407 = vadd.f32 0.0, %v4406
    %v4408 = vpop.f32.mrf.mxu0
    %4409 = vdwg.mxu0
    %4411 = vrot.lane.b32.xlu0 %v4325, 96
    %v4412 = vpop.permute.xlu0 %4411
    %v4413 = vsel %vm403, %v4325, 0
    %v4415 = vsel %vm403, %v4412, 0
    %4417 = vmatprep.subr.mxu0 0.0
    %4418 = vmatpush1.xpose.msra.mxu0 0.0
    %4419 = vmatprep.subr.mxu0 0.0
    %4420 = vmatpush1.xpose.msra.mxu0 0.0
    %4421 = vmatprep.subr.mxu0 0.0
    %4422 = vmatpush1.xpose.msra.mxu0 0.0
    %4423 = vmatprep.subr.mxu0 0.0
    %4424 = vmatpush1.xpose.msra.mxu0 0.0
    %4425 = vmatprep.subr.mxu0 0.0
    %4426 = vmatpush1.xpose.msra.mxu0 0.0
    %4427 = vmatprep.subr.mxu0 0.0
    %4428 = vmatpush1.xpose.msra.mxu0 0.0
    %4429 = vmatprep.subr.mxu0 0.0
    %4430 = vmatpush1.xpose.msra.mxu0 0.0
    %4431 = vmatprep.subr.mxu0 0.0
    %4432 = vmatpush1.xpose.msra.mxu0 0.0
    %4433 = vmatprep.subr.mxu0 0.0
    %4434 = vmatpush1.xpose.msra.mxu0 0.0
    %4435 = vmatprep.subr.mxu0 0.0
    %4436 = vmatpush1.xpose.msra.mxu0 0.0
    %4437 = vmatprep.subr.mxu0 0.0
    %4438 = vmatpush1.xpose.msra.mxu0 0.0
    %4439 = vmatprep.subr.mxu0 0.0
    %4440 = vmatpush1.xpose.msra.mxu0 0.0
    %4441 = vmatprep.subr.mxu0 0.0
    %4442 = vmatpush1.xpose.msra.mxu0 0.0
    %4443 = vmatprep.subr.mxu0 0.0
    %4444 = vmatpush1.xpose.msra.mxu0 0.0
    %4445 = vmatprep.subr.mxu0 0.0
    %4446 = vmatpush1.xpose.msra.mxu0 0.0
    %4447 = vmatprep.subr.mxu0 0.0
    %4448 = vmatpush1.xpose.msra.mxu0 %v4415
    %4449 = vmatprep.subr.mxu0 0.0
    %4450 = vmatpush2.xpose.msra.mxu0 0.0
    %4451 = vmatprep.subr.mxu0 0.0
    %4452 = vmatpush2.xpose.msra.mxu0 0.0
    %4453 = vmatprep.subr.mxu0 0.0
    %4454 = vmatpush2.xpose.msra.mxu0 0.0
    %4455 = vmatprep.subr.mxu0 0.0
    %4456 = vmatpush2.xpose.msra.mxu0 0.0
    %4457 = vmatprep.subr.mxu0 0.0
    %4458 = vmatpush2.xpose.msra.mxu0 0.0
    %4459 = vmatprep.subr.mxu0 0.0
    %4460 = vmatpush2.xpose.msra.mxu0 0.0
    %4461 = vmatprep.subr.mxu0 0.0
    %4462 = vmatpush2.xpose.msra.mxu0 0.0
    %4463 = vmatprep.subr.mxu0 0.0
    %4464 = vmatpush2.xpose.msra.mxu0 0.0
    %4465 = vmatprep.subr.mxu0 0.0
    %4466 = vmatpush2.xpose.msra.mxu0 0.0
    %4467 = vmatprep.subr.mxu0 0.0
    %4468 = vmatpush2.xpose.msra.mxu0 0.0
    %4469 = vmatprep.subr.mxu0 0.0
    %4470 = vmatpush2.xpose.msra.mxu0 0.0
    %4471 = vmatprep.subr.mxu0 0.0
    %4472 = vmatpush2.xpose.msra.mxu0 0.0
    %4473 = vmatprep.subr.mxu0 0.0
    %4474 = vmatpush2.xpose.msra.mxu0 0.0
    %4475 = vmatprep.subr.mxu0 0.0
    %4476 = vmatpush2.xpose.msra.mxu0 0.0
    %4477 = vmatprep.subr.mxu0 0.0
    %4478 = vmatpush2.xpose.msra.mxu0 0.0
    %4479 = vmatprep.subr.mxu0 0.0
    %4480 = vmatpush2.xpose.msra.mxu0 0.0
    %4481 = vmatprep.mubr.f32.mxu0 0.0
    %4482 = vmatmul.mubr.f32.gmra.mxu0 %v4413
    %v4483 = vpop.f32.mrf.mxu0
    %v4484 = vadd.f32 0.0, %v4483
    %v4485 = vpop.f32.mrf.mxu0
    %4486 = vdwg.mxu0
    %v4487 = vmul.f32 %v4407, 0.35355338
    %v4488 = vmul.f32 %v4484, 0.35355338
    %v4489 = vadd.f32 %v4487, %v296
    %v4490 = vadd.f32 %v4488, %v297
    %v4491 = vsel %vm403, %v4489, -inf
    %4492 = vmax.xlane.f32.xlu0 %v4491
    %v4493 = vpop.xlane.xlu0 %4492
    %v4494 = vsel %vm403, %v4490, -inf
    %4495 = vmax.xlane.f32.xlu0 %v4494
    %v4496 = vpop.xlane.xlu0 %4495
    %v4497 = vsub.f32 %v4489, %v4493
    %v4498 = vsub.f32 %v4490, %v4496
    %v4499 = vmul.f32 %v4497, 1.442695
    %v4500 = vpow.pop %v4499
    %v4501 = vmul.f32 %v4498, 1.442695
    %v4502 = vpow.pop %v4501
    %v4503 = vsel %vm403, %v4500, 0.0
    %4504 = vadd.xlane.f32.xlu0 %v4503
    %v4505 = vpop.xlane.xlu0 %4504
    %v4506 = vsel %vm403, %v4502, 0.0
    %4507 = vadd.xlane.f32.xlu0 %v4506
    %v4508 = vpop.xlane.xlu0 %4507
    %v4509 = vrcp.pop %v4505
    %v4510 = vrcp.pop %v4508
    %v4511 = vmul.f32 %v4500, %v4509
    %v4512 = vmul.f32 %v4502, %v4510
    %4513 = vrot.lane.b32.xlu0 %v4320, 64
    %v4514 = vpop.permute.xlu0 %4513
    %v4517 = vsel %vm403, %v4511, 0
    %4519 = vmatprep.subr.mxu0 0.0
    %4520 = vmatpush1.msra.mxu0 0.0
    %4521 = vmatprep.subr.mxu0 0.0
    %4522 = vmatpush1.msra.mxu0 0.0
    %4523 = vmatprep.subr.mxu0 0.0
    %4524 = vmatpush1.msra.mxu0 0.0
    %4525 = vmatprep.subr.mxu0 0.0
    %4526 = vmatpush1.msra.mxu0 0.0
    %4527 = vmatprep.subr.mxu0 0.0
    %4528 = vmatpush1.msra.mxu0 0.0
    %4529 = vmatprep.subr.mxu0 0.0
    %4530 = vmatpush1.msra.mxu0 0.0
    %4531 = vmatprep.subr.mxu0 0.0
    %4532 = vmatpush1.msra.mxu0 0.0
    %4533 = vmatprep.subr.mxu0 0.0
    %4534 = vmatpush1.msra.mxu0 0.0
    %4535 = vmatprep.subr.mxu0 0.0
    %4536 = vmatpush1.msra.mxu0 0.0
    %4537 = vmatprep.subr.mxu0 0.0
    %4538 = vmatpush1.msra.mxu0 0.0
    %4539 = vmatprep.subr.mxu0 0.0
    %4540 = vmatpush1.msra.mxu0 0.0
    %4541 = vmatprep.subr.mxu0 0.0
    %4542 = vmatpush1.msra.mxu0 0.0
    %4543 = vmatprep.subr.mxu0 0.0
    %4544 = vmatpush1.msra.mxu0 0.0
    %4545 = vmatprep.subr.mxu0 0.0
    %4546 = vmatpush1.msra.mxu0 0.0
    %4547 = vmatprep.subr.mxu0 0.0
    %4548 = vmatpush1.msra.mxu0 0.0
    %4549 = vmatprep.subr.mxu0 0.0
    %4550 = vmatpush1.msra.mxu0 %v4514
    %4551 = vmatprep.subr.mxu0 0.0
    %4552 = vmatpush2.msra.mxu0 0.0
    %4553 = vmatprep.subr.mxu0 0.0
    %4554 = vmatpush2.msra.mxu0 0.0
    %4555 = vmatprep.subr.mxu0 0.0
    %4556 = vmatpush2.msra.mxu0 0.0
    %4557 = vmatprep.subr.mxu0 0.0
    %4558 = vmatpush2.msra.mxu0 0.0
    %4559 = vmatprep.subr.mxu0 0.0
    %4560 = vmatpush2.msra.mxu0 0.0
    %4561 = vmatprep.subr.mxu0 0.0
    %4562 = vmatpush2.msra.mxu0 0.0
    %4563 = vmatprep.subr.mxu0 0.0
    %4564 = vmatpush2.msra.mxu0 0.0
    %4565 = vmatprep.subr.mxu0 0.0
    %4566 = vmatpush2.msra.mxu0 0.0
    %4567 = vmatprep.subr.mxu0 0.0
    %4568 = vmatpush2.msra.mxu0 0.0
    %4569 = vmatprep.subr.mxu0 0.0
    %4570 = vmatpush2.msra.mxu0 0.0
    %4571 = vmatprep.subr.mxu0 0.0
    %4572 = vmatpush2.msra.mxu0 0.0
    %4573 = vmatprep.subr.mxu0 0.0
    %4574 = vmatpush2.msra.mxu0 0.0
    %4575 = vmatprep.subr.mxu0 0.0
    %4576 = vmatpush2.msra.mxu0 0.0
    %4577 = vmatprep.subr.mxu0 0.0
    %4578 = vmatpush2.msra.mxu0 0.0
    %4579 = vmatprep.subr.mxu0 0.0
    %4580 = vmatpush2.msra.mxu0 0.0
    %4581 = vmatprep.subr.mxu0 0.0
    %4582 = vmatpush2.msra.mxu0 0.0
    %4583 = vmatprep.mubr.f32.mxu0 0.0
    %4584 = vmatmul.mubr.f32.gmra.mxu0 %v4517
    %v4585 = vpop.f32.mrf.mxu0
    %v4586 = vadd.f32 0.0, %v4585
    %v4587 = vpop.f32.mrf.mxu0
    %4588 = vdwg.mxu0
    %4589 = vrot.lane.b32.xlu0 %v4325, 64
    %v4590 = vpop.permute.xlu0 %4589
    %v4593 = vsel %vm403, %v4512, 0
    %4595 = vmatprep.subr.mxu0 0.0
    %4596 = vmatpush1.msra.mxu0 0.0
    %4597 = vmatprep.subr.mxu0 0.0
    %4598 = vmatpush1.msra.mxu0 0.0
    %4599 = vmatprep.subr.mxu0 0.0
    %4600 = vmatpush1.msra.mxu0 0.0
    %4601 = vmatprep.subr.mxu0 0.0
    %4602 = vmatpush1.msra.mxu0 0.0
    %4603 = vmatprep.subr.mxu0 0.0
    %4604 = vmatpush1.msra.mxu0 0.0
    %4605 = vmatprep.subr.mxu0 0.0
    %4606 = vmatpush1.msra.mxu0 0.0
    %4607 = vmatprep.subr.mxu0 0.0
    %4608 = vmatpush1.msra.mxu0 0.0
    %4609 = vmatprep.subr.mxu0 0.0
    %4610 = vmatpush1.msra.mxu0 0.0
    %4611 = vmatprep.subr.mxu0 0.0
    %4612 = vmatpush1.msra.mxu0 0.0
    %4613 = vmatprep.subr.mxu0 0.0
    %4614 = vmatpush1.msra.mxu0 0.0
    %4615 = vmatprep.subr.mxu0 0.0
    %4616 = vmatpush1.msra.mxu0 0.0
    %4617 = vmatprep.subr.mxu0 0.0
    %4618 = vmatpush1.msra.mxu0 0.0
    %4619 = vmatprep.subr.mxu0 0.0
    %4620 = vmatpush1.msra.mxu0 0.0
    %4621 = vmatprep.subr.mxu0 0.0
    %4622 = vmatpush1.msra.mxu0 0.0
    %4623 = vmatprep.subr.mxu0 0.0
    %4624 = vmatpush1.msra.mxu0 0.0
    %4625 = vmatprep.subr.mxu0 0.0
    %4626 = vmatpush1.msra.mxu0 %v4590
    %4627 = vmatprep.subr.mxu0 0.0
    %4628 = vmatpush2.msra.mxu0 0.0
    %4629 = vmatprep.subr.mxu0 0.0
    %4630 = vmatpush2.msra.mxu0 0.0
    %4631 = vmatprep.subr.mxu0 0.0
    %4632 = vmatpush2.msra.mxu0 0.0
    %4633 = vmatprep.subr.mxu0 0.0
    %4634 = vmatpush2.msra.mxu0 0.0
    %4635 = vmatprep.subr.mxu0 0.0
    %4636 = vmatpush2.msra.mxu0 0.0
    %4637 = vmatprep.subr.mxu0 0.0
    %4638 = vmatpush2.msra.mxu0 0.0
    %4639 = vmatprep.subr.mxu0 0.0
    %4640 = vmatpush2.msra.mxu0 0.0
    %4641 = vmatprep.subr.mxu0 0.0
    %4642 = vmatpush2.msra.mxu0 0.0
    %4643 = vmatprep.subr.mxu0 0.0
    %4644 = vmatpush2.msra.mxu0 0.0
    %4645 = vmatprep.subr.mxu0 0.0
    %4646 = vmatpush2.msra.mxu0 0.0
    %4647 = vmatprep.subr.mxu0 0.0
    %4648 = vmatpush2.msra.mxu0 0.0
    %4649 = vmatprep.subr.mxu0 0.0
    %4650 = vmatpush2.msra.mxu0 0.0
    %4651 = vmatprep.subr.mxu0 0.0
    %4652 = vmatpush2.msra.mxu0 0.0
    %4653 = vmatprep.subr.mxu0 0.0
    %4654 = vmatpush2.msra.mxu0 0.0
    %4655 = vmatprep.subr.mxu0 0.0
    %4656 = vmatpush2.msra.mxu0 0.0
    %4657 = vmatprep.subr.mxu0 0.0
    %4658 = vmatpush2.msra.mxu0 0.0
    %4659 = vmatprep.mubr.f32.mxu0 0.0
    %4660 = vmatmul.mubr.f32.gmra.mxu0 %v4593
    %v4661 = vpop.f32.mrf.mxu0
    %v4662 = vadd.f32 0.0, %v4661
    %v4663 = vpop.f32.mrf.mxu0
    %4664 = vdwg.mxu0
    %4665 = vrot.lane.b32.xlu0 %v4320, 120
    %v4666 = vpop.permute.xlu0 %4665
    %4667 = vrot.lane.b32.xlu0 %v4320, 88
    %v4668 = vpop.permute.xlu0 %4667
    %v4669 = vsel %vm403, %v4666, 0
    %v4671 = vsel %vm403, %v4668, 0
    %4673 = vmatprep.subr.mxu0 0.0
    %4674 = vmatpush1.xpose.msra.mxu0 0.0
    %4675 = vmatprep.subr.mxu0 0.0
    %4676 = vmatpush1.xpose.msra.mxu0 0.0
    %4677 = vmatprep.subr.mxu0 0.0
    %4678 = vmatpush1.xpose.msra.mxu0 0.0
    %4679 = vmatprep.subr.mxu0 0.0
    %4680 = vmatpush1.xpose.msra.mxu0 0.0
    %4681 = vmatprep.subr.mxu0 0.0
    %4682 = vmatpush1.xpose.msra.mxu0 0.0
    %4683 = vmatprep.subr.mxu0 0.0
    %4684 = vmatpush1.xpose.msra.mxu0 0.0
    %4685 = vmatprep.subr.mxu0 0.0
    %4686 = vmatpush1.xpose.msra.mxu0 0.0
    %4687 = vmatprep.subr.mxu0 0.0
    %4688 = vmatpush1.xpose.msra.mxu0 0.0
    %4689 = vmatprep.subr.mxu0 0.0
    %4690 = vmatpush1.xpose.msra.mxu0 0.0
    %4691 = vmatprep.subr.mxu0 0.0
    %4692 = vmatpush1.xpose.msra.mxu0 0.0
    %4693 = vmatprep.subr.mxu0 0.0
    %4694 = vmatpush1.xpose.msra.mxu0 0.0
    %4695 = vmatprep.subr.mxu0 0.0
    %4696 = vmatpush1.xpose.msra.mxu0 0.0
    %4697 = vmatprep.subr.mxu0 0.0
    %4698 = vmatpush1.xpose.msra.mxu0 0.0
    %4699 = vmatprep.subr.mxu0 0.0
    %4700 = vmatpush1.xpose.msra.mxu0 0.0
    %4701 = vmatprep.subr.mxu0 0.0
    %4702 = vmatpush1.xpose.msra.mxu0 0.0
    %4703 = vmatprep.subr.mxu0 0.0
    %4704 = vmatpush1.xpose.msra.mxu0 %v4671
    %4705 = vmatprep.subr.mxu0 0.0
    %4706 = vmatpush2.xpose.msra.mxu0 0.0
    %4707 = vmatprep.subr.mxu0 0.0
    %4708 = vmatpush2.xpose.msra.mxu0 0.0
    %4709 = vmatprep.subr.mxu0 0.0
    %4710 = vmatpush2.xpose.msra.mxu0 0.0
    %4711 = vmatprep.subr.mxu0 0.0
    %4712 = vmatpush2.xpose.msra.mxu0 0.0
    %4713 = vmatprep.subr.mxu0 0.0
    %4714 = vmatpush2.xpose.msra.mxu0 0.0
    %4715 = vmatprep.subr.mxu0 0.0
    %4716 = vmatpush2.xpose.msra.mxu0 0.0
    %4717 = vmatprep.subr.mxu0 0.0
    %4718 = vmatpush2.xpose.msra.mxu0 0.0
    %4719 = vmatprep.subr.mxu0 0.0
    %4720 = vmatpush2.xpose.msra.mxu0 0.0
    %4721 = vmatprep.subr.mxu0 0.0
    %4722 = vmatpush2.xpose.msra.mxu0 0.0
    %4723 = vmatprep.subr.mxu0 0.0
    %4724 = vmatpush2.xpose.msra.mxu0 0.0
    %4725 = vmatprep.subr.mxu0 0.0
    %4726 = vmatpush2.xpose.msra.mxu0 0.0
    %4727 = vmatprep.subr.mxu0 0.0
    %4728 = vmatpush2.xpose.msra.mxu0 0.0
    %4729 = vmatprep.subr.mxu0 0.0
    %4730 = vmatpush2.xpose.msra.mxu0 0.0
    %4731 = vmatprep.subr.mxu0 0.0
    %4732 = vmatpush2.xpose.msra.mxu0 0.0
    %4733 = vmatprep.subr.mxu0 0.0
    %4734 = vmatpush2.xpose.msra.mxu0 0.0
    %4735 = vmatprep.subr.mxu0 0.0
    %4736 = vmatpush2.xpose.msra.mxu0 0.0
    %4737 = vmatprep.mubr.f32.mxu0 0.0
    %4738 = vmatmul.mubr.f32.gmra.mxu0 %v4669
    %v4739 = vpop.f32.mrf.mxu0
    %v4740 = vadd.f32 0.0, %v4739
    %v4741 = vpop.f32.mrf.mxu0
    %4742 = vdwg.mxu0
    %4743 = vrot.lane.b32.xlu0 %v4325, 120
    %v4744 = vpop.permute.xlu0 %4743
    %4745 = vrot.lane.b32.xlu0 %v4325, 88
    %v4746 = vpop.permute.xlu0 %4745
    %v4747 = vsel %vm403, %v4744, 0
    %v4749 = vsel %vm403, %v4746, 0
    %4751 = vmatprep.subr.mxu0 0.0
    %4752 = vmatpush1.xpose.msra.mxu0 0.0
    %4753 = vmatprep.subr.mxu0 0.0
    %4754 = vmatpush1.xpose.msra.mxu0 0.0
    %4755 = vmatprep.subr.mxu0 0.0
    %4756 = vmatpush1.xpose.msra.mxu0 0.0
    %4757 = vmatprep.subr.mxu0 0.0
    %4758 = vmatpush1.xpose.msra.mxu0 0.0
    %4759 = vmatprep.subr.mxu0 0.0
    %4760 = vmatpush1.xpose.msra.mxu0 0.0
    %4761 = vmatprep.subr.mxu0 0.0
    %4762 = vmatpush1.xpose.msra.mxu0 0.0
    %4763 = vmatprep.subr.mxu0 0.0
    %4764 = vmatpush1.xpose.msra.mxu0 0.0
    %4765 = vmatprep.subr.mxu0 0.0
    %4766 = vmatpush1.xpose.msra.mxu0 0.0
    %4767 = vmatprep.subr.mxu0 0.0
    %4768 = vmatpush1.xpose.msra.mxu0 0.0
    %4769 = vmatprep.subr.mxu0 0.0
    %4770 = vmatpush1.xpose.msra.mxu0 0.0
    %4771 = vmatprep.subr.mxu0 0.0
    %4772 = vmatpush1.xpose.msra.mxu0 0.0
    %4773 = vmatprep.subr.mxu0 0.0
    %4774 = vmatpush1.xpose.msra.mxu0 0.0
    %4775 = vmatprep.subr.mxu0 0.0
    %4776 = vmatpush1.xpose.msra.mxu0 0.0
    %4777 = vmatprep.subr.mxu0 0.0
    %4778 = vmatpush1.xpose.msra.mxu0 0.0
    %4779 = vmatprep.subr.mxu0 0.0
    %4780 = vmatpush1.xpose.msra.mxu0 0.0
    %4781 = vmatprep.subr.mxu0 0.0
    %4782 = vmatpush1.xpose.msra.mxu0 %v4749
    %4783 = vmatprep.subr.mxu0 0.0
    %4784 = vmatpush2.xpose.msra.mxu0 0.0
    %4785 = vmatprep.subr.mxu0 0.0
    %4786 = vmatpush2.xpose.msra.mxu0 0.0
    %4787 = vmatprep.subr.mxu0 0.0
    %4788 = vmatpush2.xpose.msra.mxu0 0.0
    %4789 = vmatprep.subr.mxu0 0.0
    %4790 = vmatpush2.xpose.msra.mxu0 0.0
    %4791 = vmatprep.subr.mxu0 0.0
    %4792 = vmatpush2.xpose.msra.mxu0 0.0
    %4793 = vmatprep.subr.mxu0 0.0
    %4794 = vmatpush2.xpose.msra.mxu0 0.0
    %4795 = vmatprep.subr.mxu0 0.0
    %4796 = vmatpush2.xpose.msra.mxu0 0.0
    %4797 = vmatprep.subr.mxu0 0.0
    %4798 = vmatpush2.xpose.msra.mxu0 0.0
    %4799 = vmatprep.subr.mxu0 0.0
    %4800 = vmatpush2.xpose.msra.mxu0 0.0
    %4801 = vmatprep.subr.mxu0 0.0
    %4802 = vmatpush2.xpose.msra.mxu0 0.0
    %4803 = vmatprep.subr.mxu0 0.0
    %4804 = vmatpush2.xpose.msra.mxu0 0.0
    %4805 = vmatprep.subr.mxu0 0.0
    %4806 = vmatpush2.xpose.msra.mxu0 0.0
    %4807 = vmatprep.subr.mxu0 0.0
    %4808 = vmatpush2.xpose.msra.mxu0 0.0
    %4809 = vmatprep.subr.mxu0 0.0
    %4810 = vmatpush2.xpose.msra.mxu0 0.0
    %4811 = vmatprep.subr.mxu0 0.0
    %4812 = vmatpush2.xpose.msra.mxu0 0.0
    %4813 = vmatprep.subr.mxu0 0.0
    %4814 = vmatpush2.xpose.msra.mxu0 0.0
    %4815 = vmatprep.mubr.f32.mxu0 0.0
    %4816 = vmatmul.mubr.f32.gmra.mxu0 %v4747
    %v4817 = vpop.f32.mrf.mxu0
    %v4818 = vadd.f32 0.0, %v4817
    %v4819 = vpop.f32.mrf.mxu0
    %4820 = vdwg.mxu0
    %v4821 = vmul.f32 %v4740, 0.35355338
    %v4822 = vmul.f32 %v4818, 0.35355338
    %v4823 = vadd.f32 %v4821, %v296
    %v4824 = vadd.f32 %v4822, %v297
    %v4825 = vsel %vm403, %v4823, -inf
    %4826 = vmax.xlane.f32.xlu0 %v4825
    %v4827 = vpop.xlane.xlu0 %4826
    %v4828 = vsel %vm403, %v4824, -inf
    %4829 = vmax.xlane.f32.xlu0 %v4828
    %v4830 = vpop.xlane.xlu0 %4829
    %v4831 = vsub.f32 %v4823, %v4827
    %v4832 = vsub.f32 %v4824, %v4830
    %v4833 = vmul.f32 %v4831, 1.442695
    %v4834 = vpow.pop %v4833
    %v4835 = vmul.f32 %v4832, 1.442695
    %v4836 = vpow.pop %v4835
    %v4837 = vsel %vm403, %v4834, 0.0
    %4838 = vadd.xlane.f32.xlu0 %v4837
    %v4839 = vpop.xlane.xlu0 %4838
    %v4840 = vsel %vm403, %v4836, 0.0
    %4841 = vadd.xlane.f32.xlu0 %v4840
    %v4842 = vpop.xlane.xlu0 %4841
    %v4843 = vrcp.pop %v4839
    %v4844 = vrcp.pop %v4842
    %v4845 = vmul.f32 %v4834, %v4843
    %v4846 = vmul.f32 %v4836, %v4844
    %4847 = vrot.lane.b32.xlu0 %v4320, 56
    %v4848 = vpop.permute.xlu0 %4847
    %v4851 = vsel %vm403, %v4845, 0
    %4853 = vmatprep.subr.mxu0 0.0
    %4854 = vmatpush1.msra.mxu0 0.0
    %4855 = vmatprep.subr.mxu0 0.0
    %4856 = vmatpush1.msra.mxu0 0.0
    %4857 = vmatprep.subr.mxu0 0.0
    %4858 = vmatpush1.msra.mxu0 0.0
    %4859 = vmatprep.subr.mxu0 0.0
    %4860 = vmatpush1.msra.mxu0 0.0
    %4861 = vmatprep.subr.mxu0 0.0
    %4862 = vmatpush1.msra.mxu0 0.0
    %4863 = vmatprep.subr.mxu0 0.0
    %4864 = vmatpush1.msra.mxu0 0.0
    %4865 = vmatprep.subr.mxu0 0.0
    %4866 = vmatpush1.msra.mxu0 0.0
    %4867 = vmatprep.subr.mxu0 0.0
    %4868 = vmatpush1.msra.mxu0 0.0
    %4869 = vmatprep.subr.mxu0 0.0
    %4870 = vmatpush1.msra.mxu0 0.0
    %4871 = vmatprep.subr.mxu0 0.0
    %4872 = vmatpush1.msra.mxu0 0.0
    %4873 = vmatprep.subr.mxu0 0.0
    %4874 = vmatpush1.msra.mxu0 0.0
    %4875 = vmatprep.subr.mxu0 0.0
    %4876 = vmatpush1.msra.mxu0 0.0
    %4877 = vmatprep.subr.mxu0 0.0
    %4878 = vmatpush1.msra.mxu0 0.0
    %4879 = vmatprep.subr.mxu0 0.0
    %4880 = vmatpush1.msra.mxu0 0.0
    %4881 = vmatprep.subr.mxu0 0.0
    %4882 = vmatpush1.msra.mxu0 0.0
    %4883 = vmatprep.subr.mxu0 0.0
    %4884 = vmatpush1.msra.mxu0 %v4848
    %4885 = vmatprep.subr.mxu0 0.0
    %4886 = vmatpush2.msra.mxu0 0.0
    %4887 = vmatprep.subr.mxu0 0.0
    %4888 = vmatpush2.msra.mxu0 0.0
    %4889 = vmatprep.subr.mxu0 0.0
    %4890 = vmatpush2.msra.mxu0 0.0
    %4891 = vmatprep.subr.mxu0 0.0
    %4892 = vmatpush2.msra.mxu0 0.0
    %4893 = vmatprep.subr.mxu0 0.0
    %4894 = vmatpush2.msra.mxu0 0.0
    %4895 = vmatprep.subr.mxu0 0.0
    %4896 = vmatpush2.msra.mxu0 0.0
    %4897 = vmatprep.subr.mxu0 0.0
    %4898 = vmatpush2.msra.mxu0 0.0
    %4899 = vmatprep.subr.mxu0 0.0
    %4900 = vmatpush2.msra.mxu0 0.0
    %4901 = vmatprep.subr.mxu0 0.0
    %4902 = vmatpush2.msra.mxu0 0.0
    %4903 = vmatprep.subr.mxu0 0.0
    %4904 = vmatpush2.msra.mxu0 0.0
    %4905 = vmatprep.subr.mxu0 0.0
    %4906 = vmatpush2.msra.mxu0 0.0
    %4907 = vmatprep.subr.mxu0 0.0
    %4908 = vmatpush2.msra.mxu0 0.0
    %4909 = vmatprep.subr.mxu0 0.0
    %4910 = vmatpush2.msra.mxu0 0.0
    %4911 = vmatprep.subr.mxu0 0.0
    %4912 = vmatpush2.msra.mxu0 0.0
    %4913 = vmatprep.subr.mxu0 0.0
    %4914 = vmatpush2.msra.mxu0 0.0
    %4915 = vmatprep.subr.mxu0 0.0
    %4916 = vmatpush2.msra.mxu0 0.0
    %4917 = vmatprep.mubr.f32.mxu0 0.0
    %4918 = vmatmul.mubr.f32.gmra.mxu0 %v4851
    %v4919 = vpop.f32.mrf.mxu0
    %v4920 = vadd.f32 0.0, %v4919
    %v4921 = vpop.f32.mrf.mxu0
    %4922 = vdwg.mxu0
    %4923 = vrot.lane.b32.xlu0 %v4325, 56
    %v4924 = vpop.permute.xlu0 %4923
    %v4927 = vsel %vm403, %v4846, 0
    %4929 = vmatprep.subr.mxu0 0.0
    %4930 = vmatpush1.msra.mxu0 0.0
    %4931 = vmatprep.subr.mxu0 0.0
    %4932 = vmatpush1.msra.mxu0 0.0
    %4933 = vmatprep.subr.mxu0 0.0
    %4934 = vmatpush1.msra.mxu0 0.0
    %4935 = vmatprep.subr.mxu0 0.0
    %4936 = vmatpush1.msra.mxu0 0.0
    %4937 = vmatprep.subr.mxu0 0.0
    %4938 = vmatpush1.msra.mxu0 0.0
    %4939 = vmatprep.subr.mxu0 0.0
    %4940 = vmatpush1.msra.mxu0 0.0
    %4941 = vmatprep.subr.mxu0 0.0
    %4942 = vmatpush1.msra.mxu0 0.0
    %4943 = vmatprep.subr.mxu0 0.0
    %4944 = vmatpush1.msra.mxu0 0.0
    %4945 = vmatprep.subr.mxu0 0.0
    %4946 = vmatpush1.msra.mxu0 0.0
    %4947 = vmatprep.subr.mxu0 0.0
    %4948 = vmatpush1.msra.mxu0 0.0
    %4949 = vmatprep.subr.mxu0 0.0
    %4950 = vmatpush1.msra.mxu0 0.0
    %4951 = vmatprep.subr.mxu0 0.0
    %4952 = vmatpush1.msra.mxu0 0.0
    %4953 = vmatprep.subr.mxu0 0.0
    %4954 = vmatpush1.msra.mxu0 0.0
    %4955 = vmatprep.subr.mxu0 0.0
    %4956 = vmatpush1.msra.mxu0 0.0
    %4957 = vmatprep.subr.mxu0 0.0
    %4958 = vmatpush1.msra.mxu0 0.0
    %4959 = vmatprep.subr.mxu0 0.0
    %4960 = vmatpush1.msra.mxu0 %v4924
    %4961 = vmatprep.subr.mxu0 0.0
    %4962 = vmatpush2.msra.mxu0 0.0
    %4963 = vmatprep.subr.mxu0 0.0
    %4964 = vmatpush2.msra.mxu0 0.0
    %4965 = vmatprep.subr.mxu0 0.0
    %4966 = vmatpush2.msra.mxu0 0.0
    %4967 = vmatprep.subr.mxu0 0.0
    %4968 = vmatpush2.msra.mxu0 0.0
    %4969 = vmatprep.subr.mxu0 0.0
    %4970 = vmatpush2.msra.mxu0 0.0
    %4971 = vmatprep.subr.mxu0 0.0
    %4972 = vmatpush2.msra.mxu0 0.0
    %4973 = vmatprep.subr.mxu0 0.0
    %4974 = vmatpush2.msra.mxu0 0.0
    %4975 = vmatprep.subr.mxu0 0.0
    %4976 = vmatpush2.msra.mxu0 0.0
    %4977 = vmatprep.subr.mxu0 0.0
    %4978 = vmatpush2.msra.mxu0 0.0
    %4979 = vmatprep.subr.mxu0 0.0
    %4980 = vmatpush2.msra.mxu0 0.0
    %4981 = vmatprep.subr.mxu0 0.0
    %4982 = vmatpush2.msra.mxu0 0.0
    %4983 = vmatprep.subr.mxu0 0.0
    %4984 = vmatpush2.msra.mxu0 0.0
    %4985 = vmatprep.subr.mxu0 0.0
    %4986 = vmatpush2.msra.mxu0 0.0
    %4987 = vmatprep.subr.mxu0 0.0
    %4988 = vmatpush2.msra.mxu0 0.0
    %4989 = vmatprep.subr.mxu0 0.0
    %4990 = vmatpush2.msra.mxu0 0.0
    %4991 = vmatprep.subr.mxu0 0.0
    %4992 = vmatpush2.msra.mxu0 0.0
    %4993 = vmatprep.mubr.f32.mxu0 0.0
    %4994 = vmatmul.mubr.f32.gmra.mxu0 %v4927
    %v4995 = vpop.f32.mrf.mxu0
    %v4996 = vadd.f32 0.0, %v4995
    %v4997 = vpop.f32.mrf.mxu0
    %4998 = vdwg.mxu0
    %v5000 = vsel %vm403, %v4920, 0
    %v5003 = vsel %vm403, %v4996, 0
    %5005 = vmatprep.subr.mxu0 0.0
    %5006 = vmatpush1.msra.mxu0 0.0
    %5007 = vmatprep.subr.mxu0 0.0
    %5008 = vmatpush1.msra.mxu0 0.0
    %5009 = vmatprep.subr.mxu0 0.0
    %5010 = vmatpush1.msra.mxu0 0.0
    %5011 = vmatprep.subr.mxu0 0.0
    %5012 = vmatpush1.msra.mxu0 0.0
    %5013 = vmatprep.subr.mxu0 0.0
    %5014 = vmatpush1.msra.mxu0 0.0
    %5015 = vmatprep.subr.mxu0 0.0
    %5016 = vmatpush1.msra.mxu0 0.0
    %5017 = vmatprep.subr.mxu0 0.0
    %5018 = vmatpush1.msra.mxu0 0.0
    %5019 = vmatprep.subr.mxu0 0.0
    %5020 = vmatpush1.msra.mxu0 0.0
    %5021 = vmatprep.subr.mxu0 0.0
    %5022 = vmatpush1.msra.mxu0 0.0
    %5023 = vmatprep.subr.mxu0 0.0
    %5024 = vmatpush1.msra.mxu0 0.0
    %5025 = vmatprep.subr.mxu0 0.0
    %5026 = vmatpush1.msra.mxu0 0.0
    %5027 = vmatprep.subr.mxu0 0.0
    %5028 = vmatpush1.msra.mxu0 0.0
    %5029 = vmatprep.subr.mxu0 0.0
    %5030 = vmatpush1.msra.mxu0 0.0
    %5031 = vmatprep.subr.mxu0 0.0
    %5032 = vmatpush1.msra.mxu0 0.0
    %5033 = vmatprep.subr.mxu0 0.0
    %5034 = vmatpush1.msra.mxu0 0.0
    %5035 = vmatprep.subr.mxu0 0.0
    %5036 = vmatpush1.msra.mxu0 %v4330
    %5037 = vmatprep.subr.mxu0 0.0
    %5038 = vmatpush2.msra.mxu0 0.0
    %5039 = vmatprep.subr.mxu0 0.0
    %5040 = vmatpush2.msra.mxu0 0.0
    %5041 = vmatprep.subr.mxu0 0.0
    %5042 = vmatpush2.msra.mxu0 0.0
    %5043 = vmatprep.subr.mxu0 0.0
    %5044 = vmatpush2.msra.mxu0 0.0
    %5045 = vmatprep.subr.mxu0 0.0
    %5046 = vmatpush2.msra.mxu0 0.0
    %5047 = vmatprep.subr.mxu0 0.0
    %5048 = vmatpush2.msra.mxu0 0.0
    %5049 = vmatprep.subr.mxu0 0.0
    %5050 = vmatpush2.msra.mxu0 0.0
    %5051 = vmatprep.subr.mxu0 0.0
    %5052 = vmatpush2.msra.mxu0 0.0
    %5053 = vmatprep.subr.mxu0 0.0
    %5054 = vmatpush2.msra.mxu0 0.0
    %5055 = vmatprep.subr.mxu0 0.0
    %5056 = vmatpush2.msra.mxu0 0.0
    %5057 = vmatprep.subr.mxu0 0.0
    %5058 = vmatpush2.msra.mxu0 0.0
    %5059 = vmatprep.subr.mxu0 0.0
    %5060 = vmatpush2.msra.mxu0 0.0
    %5061 = vmatprep.subr.mxu0 0.0
    %5062 = vmatpush2.msra.mxu0 0.0
    %5063 = vmatprep.subr.mxu0 0.0
    %5064 = vmatpush2.msra.mxu0 0.0
    %5065 = vmatprep.subr.mxu0 0.0
    %5066 = vmatpush2.msra.mxu0 0.0
    %5067 = vmatprep.subr.mxu0 0.0
    %5068 = vmatpush2.msra.mxu0 0.0
    %5069 = vmatprep.mubr.f32.mxu0 0.0
    %5070 = vmatmul.mubr.f32.gmra.mxu0 %v5000
    %v5071 = vpop.f32.mrf.mxu0
    %v5072 = vadd.f32 0.0, %v5071
    %v5073 = vpop.f32.mrf.mxu0
    %5074 = vmatprep.mubr.f32.mxu0 0.0
    %5075 = vmatmul.mubr.f32.gmra.mxu0 %v5003
    %v5076 = vpop.f32.mrf.mxu0
    %v5077 = vadd.f32 0.0, %v5076
    %v5078 = vpop.f32.mrf.mxu0
    %5079 = vdwg.mxu0
    %v5081 = vsel %vm403, %v4586, 0
    %v5084 = vsel %vm403, %v4662, 0
    %5086 = vmatprep.subr.mxu0 0.0
    %5087 = vmatpush1.msra.mxu0 0.0
    %5088 = vmatprep.subr.mxu0 0.0
    %5089 = vmatpush1.msra.mxu0 0.0
    %5090 = vmatprep.subr.mxu0 0.0
    %5091 = vmatpush1.msra.mxu0 0.0
    %5092 = vmatprep.subr.mxu0 0.0
    %5093 = vmatpush1.msra.mxu0 0.0
    %5094 = vmatprep.subr.mxu0 0.0
    %5095 = vmatpush1.msra.mxu0 0.0
    %5096 = vmatprep.subr.mxu0 0.0
    %5097 = vmatpush1.msra.mxu0 0.0
    %5098 = vmatprep.subr.mxu0 0.0
    %5099 = vmatpush1.msra.mxu0 0.0
    %5100 = vmatprep.subr.mxu0 0.0
    %5101 = vmatpush1.msra.mxu0 0.0
    %5102 = vmatprep.subr.mxu0 0.0
    %5103 = vmatpush1.msra.mxu0 0.0
    %5104 = vmatprep.subr.mxu0 0.0
    %5105 = vmatpush1.msra.mxu0 0.0
    %5106 = vmatprep.subr.mxu0 0.0
    %5107 = vmatpush1.msra.mxu0 0.0
    %5108 = vmatprep.subr.mxu0 0.0
    %5109 = vmatpush1.msra.mxu0 0.0
    %5110 = vmatprep.subr.mxu0 0.0
    %5111 = vmatpush1.msra.mxu0 0.0
    %5112 = vmatprep.subr.mxu0 0.0
    %5113 = vmatpush1.msra.mxu0 0.0
    %5114 = vmatprep.subr.mxu0 0.0
    %5115 = vmatpush1.msra.mxu0 0.0
    %5116 = vmatprep.subr.mxu0 0.0
    %5117 = vmatpush1.msra.mxu0 %v4329
    %5118 = vmatprep.subr.mxu0 0.0
    %5119 = vmatpush2.msra.mxu0 0.0
    %5120 = vmatprep.subr.mxu0 0.0
    %5121 = vmatpush2.msra.mxu0 0.0
    %5122 = vmatprep.subr.mxu0 0.0
    %5123 = vmatpush2.msra.mxu0 0.0
    %5124 = vmatprep.subr.mxu0 0.0
    %5125 = vmatpush2.msra.mxu0 0.0
    %5126 = vmatprep.subr.mxu0 0.0
    %5127 = vmatpush2.msra.mxu0 0.0
    %5128 = vmatprep.subr.mxu0 0.0
    %5129 = vmatpush2.msra.mxu0 0.0
    %5130 = vmatprep.subr.mxu0 0.0
    %5131 = vmatpush2.msra.mxu0 0.0
    %5132 = vmatprep.subr.mxu0 0.0
    %5133 = vmatpush2.msra.mxu0 0.0
    %5134 = vmatprep.subr.mxu0 0.0
    %5135 = vmatpush2.msra.mxu0 0.0
    %5136 = vmatprep.subr.mxu0 0.0
    %5137 = vmatpush2.msra.mxu0 0.0
    %5138 = vmatprep.subr.mxu0 0.0
    %5139 = vmatpush2.msra.mxu0 0.0
    %5140 = vmatprep.subr.mxu0 0.0
    %5141 = vmatpush2.msra.mxu0 0.0
    %5142 = vmatprep.subr.mxu0 0.0
    %5143 = vmatpush2.msra.mxu0 0.0
    %5144 = vmatprep.subr.mxu0 0.0
    %5145 = vmatpush2.msra.mxu0 0.0
    %5146 = vmatprep.subr.mxu0 0.0
    %5147 = vmatpush2.msra.mxu0 0.0
    %5148 = vmatprep.subr.mxu0 0.0
    %5149 = vmatpush2.msra.mxu0 0.0
    %5150 = vmatprep.mubr.f32.mxu0 0.0
    %5151 = vmatmul.mubr.f32.gmra.mxu0 %v5081
    %v5152 = vpop.f32.mrf.mxu0
    %v5153 = vadd.f32 %v5072, %v5152
    %v5154 = vpop.f32.mrf.mxu0
    %5155 = vmatprep.mubr.f32.mxu0 0.0
    %5156 = vmatmul.mubr.f32.gmra.mxu0 %v5084
    %v5157 = vpop.f32.mrf.mxu0
    %v5158 = vadd.f32 %v5077, %v5157
    %v5159 = vpop.f32.mrf.mxu0
    %5160 = vdwg.mxu0
    %5161 = vrot.lane.b32.xlu0 %v4320, 112
    %v5162 = vpop.permute.xlu0 %5161
    %5163 = vrot.lane.b32.xlu0 %v4320, 80
    %v5164 = vpop.permute.xlu0 %5163
    %v5165 = vsel %vm403, %v5162, 0
    %v5167 = vsel %vm403, %v5164, 0
    %5169 = vmatprep.subr.mxu0 0.0
    %5170 = vmatpush1.xpose.msra.mxu0 0.0
    %5171 = vmatprep.subr.mxu0 0.0
    %5172 = vmatpush1.xpose.msra.mxu0 0.0
    %5173 = vmatprep.subr.mxu0 0.0
    %5174 = vmatpush1.xpose.msra.mxu0 0.0
    %5175 = vmatprep.subr.mxu0 0.0
    %5176 = vmatpush1.xpose.msra.mxu0 0.0
    %5177 = vmatprep.subr.mxu0 0.0
    %5178 = vmatpush1.xpose.msra.mxu0 0.0
    %5179 = vmatprep.subr.mxu0 0.0
    %5180 = vmatpush1.xpose.msra.mxu0 0.0
    %5181 = vmatprep.subr.mxu0 0.0
    %5182 = vmatpush1.xpose.msra.mxu0 0.0
    %5183 = vmatprep.subr.mxu0 0.0
    %5184 = vmatpush1.xpose.msra.mxu0 0.0
    %5185 = vmatprep.subr.mxu0 0.0
    %5186 = vmatpush1.xpose.msra.mxu0 0.0
    %5187 = vmatprep.subr.mxu0 0.0
    %5188 = vmatpush1.xpose.msra.mxu0 0.0
    %5189 = vmatprep.subr.mxu0 0.0
    %5190 = vmatpush1.xpose.msra.mxu0 0.0
    %5191 = vmatprep.subr.mxu0 0.0
    %5192 = vmatpush1.xpose.msra.mxu0 0.0
    %5193 = vmatprep.subr.mxu0 0.0
    %5194 = vmatpush1.xpose.msra.mxu0 0.0
    %5195 = vmatprep.subr.mxu0 0.0
    %5196 = vmatpush1.xpose.msra.mxu0 0.0
    %5197 = vmatprep.subr.mxu0 0.0
    %5198 = vmatpush1.xpose.msra.mxu0 0.0
    %5199 = vmatprep.subr.mxu0 0.0
    %5200 = vmatpush1.xpose.msra.mxu0 %v5167
    %5201 = vmatprep.subr.mxu0 0.0
    %5202 = vmatpush2.xpose.msra.mxu0 0.0
    %5203 = vmatprep.subr.mxu0 0.0
    %5204 = vmatpush2.xpose.msra.mxu0 0.0
    %5205 = vmatprep.subr.mxu0 0.0
    %5206 = vmatpush2.xpose.msra.mxu0 0.0
    %5207 = vmatprep.subr.mxu0 0.0
    %5208 = vmatpush2.xpose.msra.mxu0 0.0
    %5209 = vmatprep.subr.mxu0 0.0
    %5210 = vmatpush2.xpose.msra.mxu0 0.0
    %5211 = vmatprep.subr.mxu0 0.0
    %5212 = vmatpush2.xpose.msra.mxu0 0.0
    %5213 = vmatprep.subr.mxu0 0.0
    %5214 = vmatpush2.xpose.msra.mxu0 0.0
    %5215 = vmatprep.subr.mxu0 0.0
    %5216 = vmatpush2.xpose.msra.mxu0 0.0
    %5217 = vmatprep.subr.mxu0 0.0
    %5218 = vmatpush2.xpose.msra.mxu0 0.0
    %5219 = vmatprep.subr.mxu0 0.0
    %5220 = vmatpush2.xpose.msra.mxu0 0.0
    %5221 = vmatprep.subr.mxu0 0.0
    %5222 = vmatpush2.xpose.msra.mxu0 0.0
    %5223 = vmatprep.subr.mxu0 0.0
    %5224 = vmatpush2.xpose.msra.mxu0 0.0
    %5225 = vmatprep.subr.mxu0 0.0
    %5226 = vmatpush2.xpose.msra.mxu0 0.0
    %5227 = vmatprep.subr.mxu0 0.0
    %5228 = vmatpush2.xpose.msra.mxu0 0.0
    %5229 = vmatprep.subr.mxu0 0.0
    %5230 = vmatpush2.xpose.msra.mxu0 0.0
    %5231 = vmatprep.subr.mxu0 0.0
    %5232 = vmatpush2.xpose.msra.mxu0 0.0
    %5233 = vmatprep.mubr.f32.mxu0 0.0
    %5234 = vmatmul.mubr.f32.gmra.mxu0 %v5165
    %v5235 = vpop.f32.mrf.mxu0
    %v5236 = vadd.f32 0.0, %v5235
    %v5237 = vpop.f32.mrf.mxu0
    %5238 = vdwg.mxu0
    %5239 = vrot.lane.b32.xlu0 %v4325, 112
    %v5240 = vpop.permute.xlu0 %5239
    %5241 = vrot.lane.b32.xlu0 %v4325, 80
    %v5242 = vpop.permute.xlu0 %5241
    %v5243 = vsel %vm403, %v5240, 0
    %v5245 = vsel %vm403, %v5242, 0
    %5247 = vmatprep.subr.mxu0 0.0
    %5248 = vmatpush1.xpose.msra.mxu0 0.0
    %5249 = vmatprep.subr.mxu0 0.0
    %5250 = vmatpush1.xpose.msra.mxu0 0.0
    %5251 = vmatprep.subr.mxu0 0.0
    %5252 = vmatpush1.xpose.msra.mxu0 0.0
    %5253 = vmatprep.subr.mxu0 0.0
    %5254 = vmatpush1.xpose.msra.mxu0 0.0
    %5255 = vmatprep.subr.mxu0 0.0
    %5256 = vmatpush1.xpose.msra.mxu0 0.0
    %5257 = vmatprep.subr.mxu0 0.0
    %5258 = vmatpush1.xpose.msra.mxu0 0.0
    %5259 = vmatprep.subr.mxu0 0.0
    %5260 = vmatpush1.xpose.msra.mxu0 0.0
    %5261 = vmatprep.subr.mxu0 0.0
    %5262 = vmatpush1.xpose.msra.mxu0 0.0
    %5263 = vmatprep.subr.mxu0 0.0
    %5264 = vmatpush1.xpose.msra.mxu0 0.0
    %5265 = vmatprep.subr.mxu0 0.0
    %5266 = vmatpush1.xpose.msra.mxu0 0.0
    %5267 = vmatprep.subr.mxu0 0.0
    %5268 = vmatpush1.xpose.msra.mxu0 0.0
    %5269 = vmatprep.subr.mxu0 0.0
    %5270 = vmatpush1.xpose.msra.mxu0 0.0
    %5271 = vmatprep.subr.mxu0 0.0
    %5272 = vmatpush1.xpose.msra.mxu0 0.0
    %5273 = vmatprep.subr.mxu0 0.0
    %5274 = vmatpush1.xpose.msra.mxu0 0.0
    %5275 = vmatprep.subr.mxu0 0.0
    %5276 = vmatpush1.xpose.msra.mxu0 0.0
    %5277 = vmatprep.subr.mxu0 0.0
    %5278 = vmatpush1.xpose.msra.mxu0 %v5245
    %5279 = vmatprep.subr.mxu0 0.0
    %5280 = vmatpush2.xpose.msra.mxu0 0.0
    %5281 = vmatprep.subr.mxu0 0.0
    %5282 = vmatpush2.xpose.msra.mxu0 0.0
    %5283 = vmatprep.subr.mxu0 0.0
    %5284 = vmatpush2.xpose.msra.mxu0 0.0
    %5285 = vmatprep.subr.mxu0 0.0
    %5286 = vmatpush2.xpose.msra.mxu0 0.0
    %5287 = vmatprep.subr.mxu0 0.0
    %5288 = vmatpush2.xpose.msra.mxu0 0.0
    %5289 = vmatprep.subr.mxu0 0.0
    %5290 = vmatpush2.xpose.msra.mxu0 0.0
    %5291 = vmatprep.subr.mxu0 0.0
    %5292 = vmatpush2.xpose.msra.mxu0 0.0
    %5293 = vmatprep.subr.mxu0 0.0
    %5294 = vmatpush2.xpose.msra.mxu0 0.0
    %5295 = vmatprep.subr.mxu0 0.0
    %5296 = vmatpush2.xpose.msra.mxu0 0.0
    %5297 = vmatprep.subr.mxu0 0.0
    %5298 = vmatpush2.xpose.msra.mxu0 0.0
    %5299 = vmatprep.subr.mxu0 0.0
    %5300 = vmatpush2.xpose.msra.mxu0 0.0
    %5301 = vmatprep.subr.mxu0 0.0
    %5302 = vmatpush2.xpose.msra.mxu0 0.0
    %5303 = vmatprep.subr.mxu0 0.0
    %5304 = vmatpush2.xpose.msra.mxu0 0.0
    %5305 = vmatprep.subr.mxu0 0.0
    %5306 = vmatpush2.xpose.msra.mxu0 0.0
    %5307 = vmatprep.subr.mxu0 0.0
    %5308 = vmatpush2.xpose.msra.mxu0 0.0
    %5309 = vmatprep.subr.mxu0 0.0
    %5310 = vmatpush2.xpose.msra.mxu0 0.0
    %5311 = vmatprep.mubr.f32.mxu0 0.0
    %5312 = vmatmul.mubr.f32.gmra.mxu0 %v5243
    %v5313 = vpop.f32.mrf.mxu0
    %v5314 = vadd.f32 0.0, %v5313
    %v5315 = vpop.f32.mrf.mxu0
    %5316 = vdwg.mxu0
    %v5317 = vmul.f32 %v5236, 0.35355338
    %v5318 = vmul.f32 %v5314, 0.35355338
    %v5319 = vadd.f32 %v5317, %v296
    %v5320 = vadd.f32 %v5318, %v297
    %v5321 = vsel %vm403, %v5319, -inf
    %5322 = vmax.xlane.f32.xlu0 %v5321
    %v5323 = vpop.xlane.xlu0 %5322
    %v5324 = vsel %vm403, %v5320, -inf
    %5325 = vmax.xlane.f32.xlu0 %v5324
    %v5326 = vpop.xlane.xlu0 %5325
    %v5327 = vsub.f32 %v5319, %v5323
    %v5328 = vsub.f32 %v5320, %v5326
    %v5329 = vmul.f32 %v5327, 1.442695
    %v5330 = vpow.pop %v5329
    %v5331 = vmul.f32 %v5328, 1.442695
    %v5332 = vpow.pop %v5331
    %v5333 = vsel %vm403, %v5330, 0.0
    %5334 = vadd.xlane.f32.xlu0 %v5333
    %v5335 = vpop.xlane.xlu0 %5334
    %v5336 = vsel %vm403, %v5332, 0.0
    %5337 = vadd.xlane.f32.xlu0 %v5336
    %v5338 = vpop.xlane.xlu0 %5337
    %v5339 = vrcp.pop %v5335
    %v5340 = vrcp.pop %v5338
    %v5341 = vmul.f32 %v5330, %v5339
    %v5342 = vmul.f32 %v5332, %v5340
    %5343 = vrot.lane.b32.xlu0 %v4320, 48
    %v5344 = vpop.permute.xlu0 %5343
    %v5347 = vsel %vm403, %v5341, 0
    %5349 = vmatprep.subr.mxu0 0.0
    %5350 = vmatpush1.msra.mxu0 0.0
    %5351 = vmatprep.subr.mxu0 0.0
    %5352 = vmatpush1.msra.mxu0 0.0
    %5353 = vmatprep.subr.mxu0 0.0
    %5354 = vmatpush1.msra.mxu0 0.0
    %5355 = vmatprep.subr.mxu0 0.0
    %5356 = vmatpush1.msra.mxu0 0.0
    %5357 = vmatprep.subr.mxu0 0.0
    %5358 = vmatpush1.msra.mxu0 0.0
    %5359 = vmatprep.subr.mxu0 0.0
    %5360 = vmatpush1.msra.mxu0 0.0
    %5361 = vmatprep.subr.mxu0 0.0
    %5362 = vmatpush1.msra.mxu0 0.0
    %5363 = vmatprep.subr.mxu0 0.0
    %5364 = vmatpush1.msra.mxu0 0.0
    %5365 = vmatprep.subr.mxu0 0.0
    %5366 = vmatpush1.msra.mxu0 0.0
    %5367 = vmatprep.subr.mxu0 0.0
    %5368 = vmatpush1.msra.mxu0 0.0
    %5369 = vmatprep.subr.mxu0 0.0
    %5370 = vmatpush1.msra.mxu0 0.0
    %5371 = vmatprep.subr.mxu0 0.0
    %5372 = vmatpush1.msra.mxu0 0.0
    %5373 = vmatprep.subr.mxu0 0.0
    %5374 = vmatpush1.msra.mxu0 0.0
    %5375 = vmatprep.subr.mxu0 0.0
    %5376 = vmatpush1.msra.mxu0 0.0
    %5377 = vmatprep.subr.mxu0 0.0
    %5378 = vmatpush1.msra.mxu0 0.0
    %5379 = vmatprep.subr.mxu0 0.0
    %5380 = vmatpush1.msra.mxu0 %v5344
    %5381 = vmatprep.subr.mxu0 0.0
    %5382 = vmatpush2.msra.mxu0 0.0
    %5383 = vmatprep.subr.mxu0 0.0
    %5384 = vmatpush2.msra.mxu0 0.0
    %5385 = vmatprep.subr.mxu0 0.0
    %5386 = vmatpush2.msra.mxu0 0.0
    %5387 = vmatprep.subr.mxu0 0.0
    %5388 = vmatpush2.msra.mxu0 0.0
    %5389 = vmatprep.subr.mxu0 0.0
    %5390 = vmatpush2.msra.mxu0 0.0
    %5391 = vmatprep.subr.mxu0 0.0
    %5392 = vmatpush2.msra.mxu0 0.0
    %5393 = vmatprep.subr.mxu0 0.0
    %5394 = vmatpush2.msra.mxu0 0.0
    %5395 = vmatprep.subr.mxu0 0.0
    %5396 = vmatpush2.msra.mxu0 0.0
    %5397 = vmatprep.subr.mxu0 0.0
    %5398 = vmatpush2.msra.mxu0 0.0
    %5399 = vmatprep.subr.mxu0 0.0
    %5400 = vmatpush2.msra.mxu0 0.0
    %5401 = vmatprep.subr.mxu0 0.0
    %5402 = vmatpush2.msra.mxu0 0.0
    %5403 = vmatprep.subr.mxu0 0.0
    %5404 = vmatpush2.msra.mxu0 0.0
    %5405 = vmatprep.subr.mxu0 0.0
    %5406 = vmatpush2.msra.mxu0 0.0
    %5407 = vmatprep.subr.mxu0 0.0
    %5408 = vmatpush2.msra.mxu0 0.0
    %5409 = vmatprep.subr.mxu0 0.0
    %5410 = vmatpush2.msra.mxu0 0.0
    %5411 = vmatprep.subr.mxu0 0.0
    %5412 = vmatpush2.msra.mxu0 0.0
    %5413 = vmatprep.mubr.f32.mxu0 0.0
    %5414 = vmatmul.mubr.f32.gmra.mxu0 %v5347
    %v5415 = vpop.f32.mrf.mxu0
    %v5416 = vadd.f32 0.0, %v5415
    %v5417 = vpop.f32.mrf.mxu0
    %5418 = vdwg.mxu0
    %5419 = vrot.lane.b32.xlu0 %v4325, 48
    %v5420 = vpop.permute.xlu0 %5419
    %v5423 = vsel %vm403, %v5342, 0
    %5425 = vmatprep.subr.mxu0 0.0
    %5426 = vmatpush1.msra.mxu0 0.0
    %5427 = vmatprep.subr.mxu0 0.0
    %5428 = vmatpush1.msra.mxu0 0.0
    %5429 = vmatprep.subr.mxu0 0.0
    %5430 = vmatpush1.msra.mxu0 0.0
    %5431 = vmatprep.subr.mxu0 0.0
    %5432 = vmatpush1.msra.mxu0 0.0
    %5433 = vmatprep.subr.mxu0 0.0
    %5434 = vmatpush1.msra.mxu0 0.0
    %5435 = vmatprep.subr.mxu0 0.0
    %5436 = vmatpush1.msra.mxu0 0.0
    %5437 = vmatprep.subr.mxu0 0.0
    %5438 = vmatpush1.msra.mxu0 0.0
    %5439 = vmatprep.subr.mxu0 0.0
    %5440 = vmatpush1.msra.mxu0 0.0
    %5441 = vmatprep.subr.mxu0 0.0
    %5442 = vmatpush1.msra.mxu0 0.0
    %5443 = vmatprep.subr.mxu0 0.0
    %5444 = vmatpush1.msra.mxu0 0.0
    %5445 = vmatprep.subr.mxu0 0.0
    %5446 = vmatpush1.msra.mxu0 0.0
    %5447 = vmatprep.subr.mxu0 0.0
    %5448 = vmatpush1.msra.mxu0 0.0
    %5449 = vmatprep.subr.mxu0 0.0
    %5450 = vmatpush1.msra.mxu0 0.0
    %5451 = vmatprep.subr.mxu0 0.0
    %5452 = vmatpush1.msra.mxu0 0.0
    %5453 = vmatprep.subr.mxu0 0.0
    %5454 = vmatpush1.msra.mxu0 0.0
    %5455 = vmatprep.subr.mxu0 0.0
    %5456 = vmatpush1.msra.mxu0 %v5420
    %5457 = vmatprep.subr.mxu0 0.0
    %5458 = vmatpush2.msra.mxu0 0.0
    %5459 = vmatprep.subr.mxu0 0.0
    %5460 = vmatpush2.msra.mxu0 0.0
    %5461 = vmatprep.subr.mxu0 0.0
    %5462 = vmatpush2.msra.mxu0 0.0
    %5463 = vmatprep.subr.mxu0 0.0
    %5464 = vmatpush2.msra.mxu0 0.0
    %5465 = vmatprep.subr.mxu0 0.0
    %5466 = vmatpush2.msra.mxu0 0.0
    %5467 = vmatprep.subr.mxu0 0.0
    %5468 = vmatpush2.msra.mxu0 0.0
    %5469 = vmatprep.subr.mxu0 0.0
    %5470 = vmatpush2.msra.mxu0 0.0
    %5471 = vmatprep.subr.mxu0 0.0
    %5472 = vmatpush2.msra.mxu0 0.0
    %5473 = vmatprep.subr.mxu0 0.0
    %5474 = vmatpush2.msra.mxu0 0.0
    %5475 = vmatprep.subr.mxu0 0.0
    %5476 = vmatpush2.msra.mxu0 0.0
    %5477 = vmatprep.subr.mxu0 0.0
    %5478 = vmatpush2.msra.mxu0 0.0
    %5479 = vmatprep.subr.mxu0 0.0
    %5480 = vmatpush2.msra.mxu0 0.0
    %5481 = vmatprep.subr.mxu0 0.0
    %5482 = vmatpush2.msra.mxu0 0.0
    %5483 = vmatprep.subr.mxu0 0.0
    %5484 = vmatpush2.msra.mxu0 0.0
    %5485 = vmatprep.subr.mxu0 0.0
    %5486 = vmatpush2.msra.mxu0 0.0
    %5487 = vmatprep.subr.mxu0 0.0
    %5488 = vmatpush2.msra.mxu0 0.0
    %5489 = vmatprep.mubr.f32.mxu0 0.0
    %5490 = vmatmul.mubr.f32.gmra.mxu0 %v5423
    %v5491 = vpop.f32.mrf.mxu0
    %v5492 = vadd.f32 0.0, %v5491
    %v5493 = vpop.f32.mrf.mxu0
    %5494 = vdwg.mxu0
    %v5496 = vsel %vm403, %v5416, 0
    %v5499 = vsel %vm403, %v5492, 0
    %5501 = vmatprep.subr.mxu0 0.0
    %5502 = vmatpush1.msra.mxu0 0.0
    %5503 = vmatprep.subr.mxu0 0.0
    %5504 = vmatpush1.msra.mxu0 0.0
    %5505 = vmatprep.subr.mxu0 0.0
    %5506 = vmatpush1.msra.mxu0 0.0
    %5507 = vmatprep.subr.mxu0 0.0
    %5508 = vmatpush1.msra.mxu0 0.0
    %5509 = vmatprep.subr.mxu0 0.0
    %5510 = vmatpush1.msra.mxu0 0.0
    %5511 = vmatprep.subr.mxu0 0.0
    %5512 = vmatpush1.msra.mxu0 0.0
    %5513 = vmatprep.subr.mxu0 0.0
    %5514 = vmatpush1.msra.mxu0 0.0
    %5515 = vmatprep.subr.mxu0 0.0
    %5516 = vmatpush1.msra.mxu0 0.0
    %5517 = vmatprep.subr.mxu0 0.0
    %5518 = vmatpush1.msra.mxu0 0.0
    %5519 = vmatprep.subr.mxu0 0.0
    %5520 = vmatpush1.msra.mxu0 0.0
    %5521 = vmatprep.subr.mxu0 0.0
    %5522 = vmatpush1.msra.mxu0 0.0
    %5523 = vmatprep.subr.mxu0 0.0
    %5524 = vmatpush1.msra.mxu0 0.0
    %5525 = vmatprep.subr.mxu0 0.0
    %5526 = vmatpush1.msra.mxu0 0.0
    %5527 = vmatprep.subr.mxu0 0.0
    %5528 = vmatpush1.msra.mxu0 0.0
    %5529 = vmatprep.subr.mxu0 0.0
    %5530 = vmatpush1.msra.mxu0 0.0
    %5531 = vmatprep.subr.mxu0 0.0
    %5532 = vmatpush1.msra.mxu0 %v4331
    %5533 = vmatprep.subr.mxu0 0.0
    %5534 = vmatpush2.msra.mxu0 0.0
    %5535 = vmatprep.subr.mxu0 0.0
    %5536 = vmatpush2.msra.mxu0 0.0
    %5537 = vmatprep.subr.mxu0 0.0
    %5538 = vmatpush2.msra.mxu0 0.0
    %5539 = vmatprep.subr.mxu0 0.0
    %5540 = vmatpush2.msra.mxu0 0.0
    %5541 = vmatprep.subr.mxu0 0.0
    %5542 = vmatpush2.msra.mxu0 0.0
    %5543 = vmatprep.subr.mxu0 0.0
    %5544 = vmatpush2.msra.mxu0 0.0
    %5545 = vmatprep.subr.mxu0 0.0
    %5546 = vmatpush2.msra.mxu0 0.0
    %5547 = vmatprep.subr.mxu0 0.0
    %5548 = vmatpush2.msra.mxu0 0.0
    %5549 = vmatprep.subr.mxu0 0.0
    %5550 = vmatpush2.msra.mxu0 0.0
    %5551 = vmatprep.subr.mxu0 0.0
    %5552 = vmatpush2.msra.mxu0 0.0
    %5553 = vmatprep.subr.mxu0 0.0
    %5554 = vmatpush2.msra.mxu0 0.0
    %5555 = vmatprep.subr.mxu0 0.0
    %5556 = vmatpush2.msra.mxu0 0.0
    %5557 = vmatprep.subr.mxu0 0.0
    %5558 = vmatpush2.msra.mxu0 0.0
    %5559 = vmatprep.subr.mxu0 0.0
    %5560 = vmatpush2.msra.mxu0 0.0
    %5561 = vmatprep.subr.mxu0 0.0
    %5562 = vmatpush2.msra.mxu0 0.0
    %5563 = vmatprep.subr.mxu0 0.0
    %5564 = vmatpush2.msra.mxu0 0.0
    %5565 = vmatprep.mubr.f32.mxu0 0.0
    %5566 = vmatmul.mubr.f32.gmra.mxu0 %v5496
    %v5567 = vpop.f32.mrf.mxu0
    %v5568 = vadd.f32 0.0, %v5567
    %v5569 = vpop.f32.mrf.mxu0
    %5570 = vmatprep.mubr.f32.mxu0 0.0
    %5571 = vmatmul.mubr.f32.gmra.mxu0 %v5499
    %v5572 = vpop.f32.mrf.mxu0
    %v5573 = vadd.f32 0.0, %v5572
    %v5574 = vpop.f32.mrf.mxu0
    %5575 = vdwg.mxu0
    %v5576 = vadd.f32 %v5153, %v5568
    %v5577 = vadd.f32 %v5158, %v5573
    %5578 = vrot.lane.b32.xlu0 %v4320, 104
    %v5579 = vpop.permute.xlu0 %5578
    %5580 = vrot.lane.b32.xlu0 %v4320, 72
    %v5581 = vpop.permute.xlu0 %5580
    %v5582 = vsel %vm403, %v5579, 0
    %v5584 = vsel %vm403, %v5581, 0
    %5586 = vmatprep.subr.mxu0 0.0
    %5587 = vmatpush1.xpose.msra.mxu0 0.0
    %5588 = vmatprep.subr.mxu0 0.0
    %5589 = vmatpush1.xpose.msra.mxu0 0.0
    %5590 = vmatprep.subr.mxu0 0.0
    %5591 = vmatpush1.xpose.msra.mxu0 0.0
    %5592 = vmatprep.subr.mxu0 0.0
    %5593 = vmatpush1.xpose.msra.mxu0 0.0
    %5594 = vmatprep.subr.mxu0 0.0
    %5595 = vmatpush1.xpose.msra.mxu0 0.0
    %5596 = vmatprep.subr.mxu0 0.0
    %5597 = vmatpush1.xpose.msra.mxu0 0.0
    %5598 = vmatprep.subr.mxu0 0.0
    %5599 = vmatpush1.xpose.msra.mxu0 0.0
    %5600 = vmatprep.subr.mxu0 0.0
    %5601 = vmatpush1.xpose.msra.mxu0 0.0
    %5602 = vmatprep.subr.mxu0 0.0
    %5603 = vmatpush1.xpose.msra.mxu0 0.0
    %5604 = vmatprep.subr.mxu0 0.0
    %5605 = vmatpush1.xpose.msra.mxu0 0.0
    %5606 = vmatprep.subr.mxu0 0.0
    %5607 = vmatpush1.xpose.msra.mxu0 0.0
    %5608 = vmatprep.subr.mxu0 0.0
    %5609 = vmatpush1.xpose.msra.mxu0 0.0
    %5610 = vmatprep.subr.mxu0 0.0
    %5611 = vmatpush1.xpose.msra.mxu0 0.0
    %5612 = vmatprep.subr.mxu0 0.0
    %5613 = vmatpush1.xpose.msra.mxu0 0.0
    %5614 = vmatprep.subr.mxu0 0.0
    %5615 = vmatpush1.xpose.msra.mxu0 0.0
    %5616 = vmatprep.subr.mxu0 0.0
    %5617 = vmatpush1.xpose.msra.mxu0 %v5584
    %5618 = vmatprep.subr.mxu0 0.0
    %5619 = vmatpush2.xpose.msra.mxu0 0.0
    %5620 = vmatprep.subr.mxu0 0.0
    %5621 = vmatpush2.xpose.msra.mxu0 0.0
    %5622 = vmatprep.subr.mxu0 0.0
    %5623 = vmatpush2.xpose.msra.mxu0 0.0
    %5624 = vmatprep.subr.mxu0 0.0
    %5625 = vmatpush2.xpose.msra.mxu0 0.0
    %5626 = vmatprep.subr.mxu0 0.0
    %5627 = vmatpush2.xpose.msra.mxu0 0.0
    %5628 = vmatprep.subr.mxu0 0.0
    %5629 = vmatpush2.xpose.msra.mxu0 0.0
    %5630 = vmatprep.subr.mxu0 0.0
    %5631 = vmatpush2.xpose.msra.mxu0 0.0
    %5632 = vmatprep.subr.mxu0 0.0
    %5633 = vmatpush2.xpose.msra.mxu0 0.0
    %5634 = vmatprep.subr.mxu0 0.0
    %5635 = vmatpush2.xpose.msra.mxu0 0.0
    %5636 = vmatprep.subr.mxu0 0.0
    %5637 = vmatpush2.xpose.msra.mxu0 0.0
    %5638 = vmatprep.subr.mxu0 0.0
    %5639 = vmatpush2.xpose.msra.mxu0 0.0
    %5640 = vmatprep.subr.mxu0 0.0
    %5641 = vmatpush2.xpose.msra.mxu0 0.0
    %5642 = vmatprep.subr.mxu0 0.0
    %5643 = vmatpush2.xpose.msra.mxu0 0.0
    %5644 = vmatprep.subr.mxu0 0.0
    %5645 = vmatpush2.xpose.msra.mxu0 0.0
    %5646 = vmatprep.subr.mxu0 0.0
    %5647 = vmatpush2.xpose.msra.mxu0 0.0
    %5648 = vmatprep.subr.mxu0 0.0
    %5649 = vmatpush2.xpose.msra.mxu0 0.0
    %5650 = vmatprep.mubr.f32.mxu0 0.0
    %5651 = vmatmul.mubr.f32.gmra.mxu0 %v5582
    %v5652 = vpop.f32.mrf.mxu0
    %v5653 = vadd.f32 0.0, %v5652
    %v5654 = vpop.f32.mrf.mxu0
    %5655 = vdwg.mxu0
    %5656 = vrot.lane.b32.xlu0 %v4325, 104
    %v5657 = vpop.permute.xlu0 %5656
    %5658 = vrot.lane.b32.xlu0 %v4325, 72
    %v5659 = vpop.permute.xlu0 %5658
    %v5660 = vsel %vm403, %v5657, 0
    %v5662 = vsel %vm403, %v5659, 0
    %5664 = vmatprep.subr.mxu0 0.0
    %5665 = vmatpush1.xpose.msra.mxu0 0.0
    %5666 = vmatprep.subr.mxu0 0.0
    %5667 = vmatpush1.xpose.msra.mxu0 0.0
    %5668 = vmatprep.subr.mxu0 0.0
    %5669 = vmatpush1.xpose.msra.mxu0 0.0
    %5670 = vmatprep.subr.mxu0 0.0
    %5671 = vmatpush1.xpose.msra.mxu0 0.0
    %5672 = vmatprep.subr.mxu0 0.0
    %5673 = vmatpush1.xpose.msra.mxu0 0.0
    %5674 = vmatprep.subr.mxu0 0.0
    %5675 = vmatpush1.xpose.msra.mxu0 0.0
    %5676 = vmatprep.subr.mxu0 0.0
    %5677 = vmatpush1.xpose.msra.mxu0 0.0
    %5678 = vmatprep.subr.mxu0 0.0
    %5679 = vmatpush1.xpose.msra.mxu0 0.0
    %5680 = vmatprep.subr.mxu0 0.0
    %5681 = vmatpush1.xpose.msra.mxu0 0.0
    %5682 = vmatprep.subr.mxu0 0.0
    %5683 = vmatpush1.xpose.msra.mxu0 0.0
    %5684 = vmatprep.subr.mxu0 0.0
    %5685 = vmatpush1.xpose.msra.mxu0 0.0
    %5686 = vmatprep.subr.mxu0 0.0
    %5687 = vmatpush1.xpose.msra.mxu0 0.0
    %5688 = vmatprep.subr.mxu0 0.0
    %5689 = vmatpush1.xpose.msra.mxu0 0.0
    %5690 = vmatprep.subr.mxu0 0.0
    %5691 = vmatpush1.xpose.msra.mxu0 0.0
    %5692 = vmatprep.subr.mxu0 0.0
    %5693 = vmatpush1.xpose.msra.mxu0 0.0
    %5694 = vmatprep.subr.mxu0 0.0
    %5695 = vmatpush1.xpose.msra.mxu0 %v5662
    %5696 = vmatprep.subr.mxu0 0.0
    %5697 = vmatpush2.xpose.msra.mxu0 0.0
    %5698 = vmatprep.subr.mxu0 0.0
    %5699 = vmatpush2.xpose.msra.mxu0 0.0
    %5700 = vmatprep.subr.mxu0 0.0
    %5701 = vmatpush2.xpose.msra.mxu0 0.0
    %5702 = vmatprep.subr.mxu0 0.0
    %5703 = vmatpush2.xpose.msra.mxu0 0.0
    %5704 = vmatprep.subr.mxu0 0.0
    %5705 = vmatpush2.xpose.msra.mxu0 0.0
    %5706 = vmatprep.subr.mxu0 0.0
    %5707 = vmatpush2.xpose.msra.mxu0 0.0
    %5708 = vmatprep.subr.mxu0 0.0
    %5709 = vmatpush2.xpose.msra.mxu0 0.0
    %5710 = vmatprep.subr.mxu0 0.0
    %5711 = vmatpush2.xpose.msra.mxu0 0.0
    %5712 = vmatprep.subr.mxu0 0.0
    %5713 = vmatpush2.xpose.msra.mxu0 0.0
    %5714 = vmatprep.subr.mxu0 0.0
    %5715 = vmatpush2.xpose.msra.mxu0 0.0
    %5716 = vmatprep.subr.mxu0 0.0
    %5717 = vmatpush2.xpose.msra.mxu0 0.0
    %5718 = vmatprep.subr.mxu0 0.0
    %5719 = vmatpush2.xpose.msra.mxu0 0.0
    %5720 = vmatprep.subr.mxu0 0.0
    %5721 = vmatpush2.xpose.msra.mxu0 0.0
    %5722 = vmatprep.subr.mxu0 0.0
    %5723 = vmatpush2.xpose.msra.mxu0 0.0
    %5724 = vmatprep.subr.mxu0 0.0
    %5725 = vmatpush2.xpose.msra.mxu0 0.0
    %5726 = vmatprep.subr.mxu0 0.0
    %5727 = vmatpush2.xpose.msra.mxu0 0.0
    %5728 = vmatprep.mubr.f32.mxu0 0.0
    %5729 = vmatmul.mubr.f32.gmra.mxu0 %v5660
    %v5730 = vpop.f32.mrf.mxu0
    %v5731 = vadd.f32 0.0, %v5730
    %v5732 = vpop.f32.mrf.mxu0
    %5733 = vdwg.mxu0
    %v5734 = vmul.f32 %v5653, 0.35355338
    %v5735 = vmul.f32 %v5731, 0.35355338
    %v5736 = vadd.f32 %v5734, %v296
    %v5737 = vadd.f32 %v5735, %v297
    %v5738 = vsel %vm403, %v5736, -inf
    %5739 = vmax.xlane.f32.xlu0 %v5738
    %v5740 = vpop.xlane.xlu0 %5739
    %v5741 = vsel %vm403, %v5737, -inf
    %5742 = vmax.xlane.f32.xlu0 %v5741
    %v5743 = vpop.xlane.xlu0 %5742
    %v5744 = vsub.f32 %v5736, %v5740
    %v5745 = vsub.f32 %v5737, %v5743
    %v5746 = vmul.f32 %v5744, 1.442695
    %v5747 = vpow.pop %v5746
    %v5748 = vmul.f32 %v5745, 1.442695
    %v5749 = vpow.pop %v5748
    %v5750 = vsel %vm403, %v5747, 0.0
    %5751 = vadd.xlane.f32.xlu0 %v5750
    %v5752 = vpop.xlane.xlu0 %5751
    %v5753 = vsel %vm403, %v5749, 0.0
    %5754 = vadd.xlane.f32.xlu0 %v5753
    %v5755 = vpop.xlane.xlu0 %5754
    %v5756 = vrcp.pop %v5752
    %v5757 = vrcp.pop %v5755
    %v5758 = vmul.f32 %v5747, %v5756
    %v5759 = vmul.f32 %v5749, %v5757
    %5760 = vrot.lane.b32.xlu0 %v4320, 40
    %v5761 = vpop.permute.xlu0 %5760
    %v5764 = vsel %vm403, %v5758, 0
    %5766 = vmatprep.subr.mxu0 0.0
    %5767 = vmatpush1.msra.mxu0 0.0
    %5768 = vmatprep.subr.mxu0 0.0
    %5769 = vmatpush1.msra.mxu0 0.0
    %5770 = vmatprep.subr.mxu0 0.0
    %5771 = vmatpush1.msra.mxu0 0.0
    %5772 = vmatprep.subr.mxu0 0.0
    %5773 = vmatpush1.msra.mxu0 0.0
    %5774 = vmatprep.subr.mxu0 0.0
    %5775 = vmatpush1.msra.mxu0 0.0
    %5776 = vmatprep.subr.mxu0 0.0
    %5777 = vmatpush1.msra.mxu0 0.0
    %5778 = vmatprep.subr.mxu0 0.0
    %5779 = vmatpush1.msra.mxu0 0.0
    %5780 = vmatprep.subr.mxu0 0.0
    %5781 = vmatpush1.msra.mxu0 0.0
    %5782 = vmatprep.subr.mxu0 0.0
    %5783 = vmatpush1.msra.mxu0 0.0
    %5784 = vmatprep.subr.mxu0 0.0
    %5785 = vmatpush1.msra.mxu0 0.0
    %5786 = vmatprep.subr.mxu0 0.0
    %5787 = vmatpush1.msra.mxu0 0.0
    %5788 = vmatprep.subr.mxu0 0.0
    %5789 = vmatpush1.msra.mxu0 0.0
    %5790 = vmatprep.subr.mxu0 0.0
    %5791 = vmatpush1.msra.mxu0 0.0
    %5792 = vmatprep.subr.mxu0 0.0
    %5793 = vmatpush1.msra.mxu0 0.0
    %5794 = vmatprep.subr.mxu0 0.0
    %5795 = vmatpush1.msra.mxu0 0.0
    %5796 = vmatprep.subr.mxu0 0.0
    %5797 = vmatpush1.msra.mxu0 %v5761
    %5798 = vmatprep.subr.mxu0 0.0
    %5799 = vmatpush2.msra.mxu0 0.0
    %5800 = vmatprep.subr.mxu0 0.0
    %5801 = vmatpush2.msra.mxu0 0.0
    %5802 = vmatprep.subr.mxu0 0.0
    %5803 = vmatpush2.msra.mxu0 0.0
    %5804 = vmatprep.subr.mxu0 0.0
    %5805 = vmatpush2.msra.mxu0 0.0
    %5806 = vmatprep.subr.mxu0 0.0
    %5807 = vmatpush2.msra.mxu0 0.0
    %5808 = vmatprep.subr.mxu0 0.0
    %5809 = vmatpush2.msra.mxu0 0.0
    %5810 = vmatprep.subr.mxu0 0.0
    %5811 = vmatpush2.msra.mxu0 0.0
    %5812 = vmatprep.subr.mxu0 0.0
    %5813 = vmatpush2.msra.mxu0 0.0
    %5814 = vmatprep.subr.mxu0 0.0
    %5815 = vmatpush2.msra.mxu0 0.0
    %5816 = vmatprep.subr.mxu0 0.0
    %5817 = vmatpush2.msra.mxu0 0.0
    %5818 = vmatprep.subr.mxu0 0.0
    %5819 = vmatpush2.msra.mxu0 0.0
    %5820 = vmatprep.subr.mxu0 0.0
    %5821 = vmatpush2.msra.mxu0 0.0
    %5822 = vmatprep.subr.mxu0 0.0
    %5823 = vmatpush2.msra.mxu0 0.0
    %5824 = vmatprep.subr.mxu0 0.0
    %5825 = vmatpush2.msra.mxu0 0.0
    %5826 = vmatprep.subr.mxu0 0.0
    %5827 = vmatpush2.msra.mxu0 0.0
    %5828 = vmatprep.subr.mxu0 0.0
    %5829 = vmatpush2.msra.mxu0 0.0
    %5830 = vmatprep.mubr.f32.mxu0 0.0
    %5831 = vmatmul.mubr.f32.gmra.mxu0 %v5764
    %v5832 = vpop.f32.mrf.mxu0
    %v5833 = vadd.f32 0.0, %v5832
    %v5834 = vpop.f32.mrf.mxu0
    %5835 = vdwg.mxu0
    %5836 = vrot.lane.b32.xlu0 %v4325, 40
    %v5837 = vpop.permute.xlu0 %5836
    %v5840 = vsel %vm403, %v5759, 0
    %5842 = vmatprep.subr.mxu0 0.0
    %5843 = vmatpush1.msra.mxu0 0.0
    %5844 = vmatprep.subr.mxu0 0.0
    %5845 = vmatpush1.msra.mxu0 0.0
    %5846 = vmatprep.subr.mxu0 0.0
    %5847 = vmatpush1.msra.mxu0 0.0
    %5848 = vmatprep.subr.mxu0 0.0
    %5849 = vmatpush1.msra.mxu0 0.0
    %5850 = vmatprep.subr.mxu0 0.0
    %5851 = vmatpush1.msra.mxu0 0.0
    %5852 = vmatprep.subr.mxu0 0.0
    %5853 = vmatpush1.msra.mxu0 0.0
    %5854 = vmatprep.subr.mxu0 0.0
    %5855 = vmatpush1.msra.mxu0 0.0
    %5856 = vmatprep.subr.mxu0 0.0
    %5857 = vmatpush1.msra.mxu0 0.0
    %5858 = vmatprep.subr.mxu0 0.0
    %5859 = vmatpush1.msra.mxu0 0.0
    %5860 = vmatprep.subr.mxu0 0.0
    %5861 = vmatpush1.msra.mxu0 0.0
    %5862 = vmatprep.subr.mxu0 0.0
    %5863 = vmatpush1.msra.mxu0 0.0
    %5864 = vmatprep.subr.mxu0 0.0
    %5865 = vmatpush1.msra.mxu0 0.0
    %5866 = vmatprep.subr.mxu0 0.0
    %5867 = vmatpush1.msra.mxu0 0.0
    %5868 = vmatprep.subr.mxu0 0.0
    %5869 = vmatpush1.msra.mxu0 0.0
    %5870 = vmatprep.subr.mxu0 0.0
    %5871 = vmatpush1.msra.mxu0 0.0
    %5872 = vmatprep.subr.mxu0 0.0
    %5873 = vmatpush1.msra.mxu0 %v5837
    %5874 = vmatprep.subr.mxu0 0.0
    %5875 = vmatpush2.msra.mxu0 0.0
    %5876 = vmatprep.subr.mxu0 0.0
    %5877 = vmatpush2.msra.mxu0 0.0
    %5878 = vmatprep.subr.mxu0 0.0
    %5879 = vmatpush2.msra.mxu0 0.0
    %5880 = vmatprep.subr.mxu0 0.0
    %5881 = vmatpush2.msra.mxu0 0.0
    %5882 = vmatprep.subr.mxu0 0.0
    %5883 = vmatpush2.msra.mxu0 0.0
    %5884 = vmatprep.subr.mxu0 0.0
    %5885 = vmatpush2.msra.mxu0 0.0
    %5886 = vmatprep.subr.mxu0 0.0
    %5887 = vmatpush2.msra.mxu0 0.0
    %5888 = vmatprep.subr.mxu0 0.0
    %5889 = vmatpush2.msra.mxu0 0.0
    %5890 = vmatprep.subr.mxu0 0.0
    %5891 = vmatpush2.msra.mxu0 0.0
    %5892 = vmatprep.subr.mxu0 0.0
    %5893 = vmatpush2.msra.mxu0 0.0
    %5894 = vmatprep.subr.mxu0 0.0
    %5895 = vmatpush2.msra.mxu0 0.0
    %5896 = vmatprep.subr.mxu0 0.0
    %5897 = vmatpush2.msra.mxu0 0.0
    %5898 = vmatprep.subr.mxu0 0.0
    %5899 = vmatpush2.msra.mxu0 0.0
    %5900 = vmatprep.subr.mxu0 0.0
    %5901 = vmatpush2.msra.mxu0 0.0
    %5902 = vmatprep.subr.mxu0 0.0
    %5903 = vmatpush2.msra.mxu0 0.0
    %5904 = vmatprep.subr.mxu0 0.0
    %5905 = vmatpush2.msra.mxu0 0.0
    %5906 = vmatprep.mubr.f32.mxu0 0.0
    %5907 = vmatmul.mubr.f32.gmra.mxu0 %v5840
    %v5908 = vpop.f32.mrf.mxu0
    %v5909 = vadd.f32 0.0, %v5908
    %v5910 = vpop.f32.mrf.mxu0
    %5911 = vdwg.mxu0
    %v5913 = vsel %vm403, %v5833, 0
    %v5916 = vsel %vm403, %v5909, 0
    %5918 = vmatprep.subr.mxu0 0.0
    %5919 = vmatpush1.msra.mxu0 0.0
    %5920 = vmatprep.subr.mxu0 0.0
    %5921 = vmatpush1.msra.mxu0 0.0
    %5922 = vmatprep.subr.mxu0 0.0
    %5923 = vmatpush1.msra.mxu0 0.0
    %5924 = vmatprep.subr.mxu0 0.0
    %5925 = vmatpush1.msra.mxu0 0.0
    %5926 = vmatprep.subr.mxu0 0.0
    %5927 = vmatpush1.msra.mxu0 0.0
    %5928 = vmatprep.subr.mxu0 0.0
    %5929 = vmatpush1.msra.mxu0 0.0
    %5930 = vmatprep.subr.mxu0 0.0
    %5931 = vmatpush1.msra.mxu0 0.0
    %5932 = vmatprep.subr.mxu0 0.0
    %5933 = vmatpush1.msra.mxu0 0.0
    %5934 = vmatprep.subr.mxu0 0.0
    %5935 = vmatpush1.msra.mxu0 0.0
    %5936 = vmatprep.subr.mxu0 0.0
    %5937 = vmatpush1.msra.mxu0 0.0
    %5938 = vmatprep.subr.mxu0 0.0
    %5939 = vmatpush1.msra.mxu0 0.0
    %5940 = vmatprep.subr.mxu0 0.0
    %5941 = vmatpush1.msra.mxu0 0.0
    %5942 = vmatprep.subr.mxu0 0.0
    %5943 = vmatpush1.msra.mxu0 0.0
    %5944 = vmatprep.subr.mxu0 0.0
    %5945 = vmatpush1.msra.mxu0 0.0
    %5946 = vmatprep.subr.mxu0 0.0
    %5947 = vmatpush1.msra.mxu0 0.0
    %5948 = vmatprep.subr.mxu0 0.0
    %5949 = vmatpush1.msra.mxu0 %v4332
    %5950 = vmatprep.subr.mxu0 0.0
    %5951 = vmatpush2.msra.mxu0 0.0
    %5952 = vmatprep.subr.mxu0 0.0
    %5953 = vmatpush2.msra.mxu0 0.0
    %5954 = vmatprep.subr.mxu0 0.0
    %5955 = vmatpush2.msra.mxu0 0.0
    %5956 = vmatprep.subr.mxu0 0.0
    %5957 = vmatpush2.msra.mxu0 0.0
    %5958 = vmatprep.subr.mxu0 0.0
    %5959 = vmatpush2.msra.mxu0 0.0
    %5960 = vmatprep.subr.mxu0 0.0
    %5961 = vmatpush2.msra.mxu0 0.0
    %5962 = vmatprep.subr.mxu0 0.0
    %5963 = vmatpush2.msra.mxu0 0.0
    %5964 = vmatprep.subr.mxu0 0.0
    %5965 = vmatpush2.msra.mxu0 0.0
    %5966 = vmatprep.subr.mxu0 0.0
    %5967 = vmatpush2.msra.mxu0 0.0
    %5968 = vmatprep.subr.mxu0 0.0
    %5969 = vmatpush2.msra.mxu0 0.0
    %5970 = vmatprep.subr.mxu0 0.0
    %5971 = vmatpush2.msra.mxu0 0.0
    %5972 = vmatprep.subr.mxu0 0.0
    %5973 = vmatpush2.msra.mxu0 0.0
    %5974 = vmatprep.subr.mxu0 0.0
    %5975 = vmatpush2.msra.mxu0 0.0
    %5976 = vmatprep.subr.mxu0 0.0
    %5977 = vmatpush2.msra.mxu0 0.0
    %5978 = vmatprep.subr.mxu0 0.0
    %5979 = vmatpush2.msra.mxu0 0.0
    %5980 = vmatprep.subr.mxu0 0.0
    %5981 = vmatpush2.msra.mxu0 0.0
    %5982 = vmatprep.mubr.f32.mxu0 0.0
    %5983 = vmatmul.mubr.f32.gmra.mxu0 %v5913
    %v5984 = vpop.f32.mrf.mxu0
    %v5985 = vadd.f32 0.0, %v5984
    %v5986 = vpop.f32.mrf.mxu0
    %5987 = vmatprep.mubr.f32.mxu0 0.0
    %5988 = vmatmul.mubr.f32.gmra.mxu0 %v5916
    %v5989 = vpop.f32.mrf.mxu0
    %v5990 = vadd.f32 0.0, %v5989
    %v5991 = vpop.f32.mrf.mxu0
    %5992 = vdwg.mxu0
    %v5993 = vadd.f32 %v5576, %v5985
    %v5994 = vadd.f32 %v5577, %v5990
    %v5995 = vlaneseq
    %v5996 = vshrl.u32 %v5995, 7
    %v5997 = vsub.s32 1, %v5996
    %v5998 = vrot.slane %v4236, %v5997
    %v5999 = vadd.f32 %v5993, %v5998
    %v6000 = vadd.f32 %v5994, %v5998
    %v6001 = vadd.f32 %v4233, %v5999
    %v6002 = vadd.f32 %v4234, %v6000
    %v6003 = vsel %vm314, %v6001, 0.0
    %6004 = vadd.xlane.f32.xlu0 %v6003
    %v6005 = vpop.xlane.xlu0 %6004
    %v6006 = vsel %vm314, %v6002, 0.0
    %6007 = vadd.xlane.f32.xlu0 %v6006
    %v6008 = vpop.xlane.xlu0 %6007
    %v6009 = vmul.f32 %v6005, %v2077
    %v6010 = vmul.f32 %v6008, %v2077
    %v6011 = vsub.f32 %v6001, %v6009
    %v6012 = vsub.f32 %v6002, %v6010
    %v6013 = vmul.f32 %v6011, %v6011
    %v6014 = vmul.f32 %v6012, %v6012
    %v6015 = vsel %vm314, %v6013, 0.0
    %6016 = vadd.xlane.f32.xlu0 %v6015
    %v6017 = vpop.xlane.xlu0 %6016
    %v6018 = vsel %vm314, %v6014, 0.0
    %6019 = vadd.xlane.f32.xlu0 %v6018
    %v6020 = vpop.xlane.xlu0 %6019
    %v6021 = vmul.f32 %v6017, %v2077
    %v6022 = vmul.f32 %v6020, %v2077
    %v6023 = vadd.f32 %v6021, 1e-05
    %v6024 = vadd.f32 %v6022, 1e-05
    %v6025 = vrsqrt.pop %v6023
    %v6026 = vrsqrt.pop %v6024
    %v6027 = vmul.f32 %v6011, %v6025
    %v6028 = vmul.f32 %v6012, %v6026
    %v6029 = vlaneseq
    %v6030 = vshrl.u32 %v6029, 7
    %v6031 = vsub.s32 2, %v6030
    %v6032 = vrot.slane %v4236, %v6031
    %v6033 = vmul.f32 %v6027, %v6032
    %v6034 = vmul.f32 %v6028, %v6032
    %v6035 = vlaneseq
    %v6036 = vshrl.u32 %v6035, 7
    %v6037 = vsub.s32 3, %v6036
    %v6038 = vrot.slane %v4236, %v6037
    %v6039 = vadd.f32 %v6033, %v6038
    %v6040 = vadd.f32 %v6034, %v6038
    %s6041 = scalar_lea.vmem %s10, 32
    %v6042 = vld [vmem:[%s6041] sm:$0xff]
    %v6043 = vld [vmem:[%s6041 + $0x8] sm:$0xff]
    %v6044 = vld [vmem:[%s6041 + $0x10] sm:$0xff]
    %v6045 = vld [vmem:[%s6041 + $0x18] sm:$0xff]
    %v6046 = vlaneseq
    %v6047 = vshrl.u32 %v6046, 7
    %v6048 = vsub.s32 4, %v6047
    %v6049 = vrot.slane %v4236, %v6048
    %v6051 = vsel %vm314, %v6039, 0
    %v6054 = vsel %vm314, %v6040, 0
    %6056 = vmatprep.subr.mxu0 0.0
    %6057 = vmatpush1.msra.mxu0 0.0
    %6058 = vmatprep.subr.mxu0 0.0
    %6059 = vmatpush1.msra.mxu0 0.0
    %6060 = vmatprep.subr.mxu0 0.0
    %6061 = vmatpush1.msra.mxu0 0.0
    %6062 = vmatprep.subr.mxu0 0.0
    %6063 = vmatpush1.msra.mxu0 0.0
    %6064 = vmatprep.subr.mxu0 0.0
    %6065 = vmatpush1.msra.mxu0 0.0
    %6066 = vmatprep.subr.mxu0 0.0
    %6067 = vmatpush1.msra.mxu0 0.0
    %6068 = vmatprep.subr.mxu0 0.0
    %6069 = vmatpush1.msra.mxu0 0.0
    %6070 = vmatprep.subr.mxu0 0.0
    %6071 = vmatpush1.msra.mxu0 0.0
    %6072 = vmatprep.subr.mxu0 0.0
    %6073 = vmatpush1.msra.mxu0 0.0
    %6074 = vmatprep.subr.mxu0 0.0
    %6075 = vmatpush1.msra.mxu0 0.0
    %6076 = vmatprep.subr.mxu0 0.0
    %6077 = vmatpush1.msra.mxu0 0.0
    %6078 = vmatprep.subr.mxu0 0.0
    %6079 = vmatpush1.msra.mxu0 0.0
    %6080 = vmatprep.subr.mxu0 0.0
    %6081 = vmatpush1.msra.mxu0 %v6045
    %6082 = vmatprep.subr.mxu0 0.0
    %6083 = vmatpush1.msra.mxu0 %v6044
    %6084 = vmatprep.subr.mxu0 0.0
    %6085 = vmatpush1.msra.mxu0 %v6043
    %6086 = vmatprep.subr.mxu0 0.0
    %6087 = vmatpush1.msra.mxu0 %v6042
    %6088 = vmatprep.subr.mxu0 0.0
    %6089 = vmatpush2.msra.mxu0 0.0
    %6090 = vmatprep.subr.mxu0 0.0
    %6091 = vmatpush2.msra.mxu0 0.0
    %6092 = vmatprep.subr.mxu0 0.0
    %6093 = vmatpush2.msra.mxu0 0.0
    %6094 = vmatprep.subr.mxu0 0.0
    %6095 = vmatpush2.msra.mxu0 0.0
    %6096 = vmatprep.subr.mxu0 0.0
    %6097 = vmatpush2.msra.mxu0 0.0
    %6098 = vmatprep.subr.mxu0 0.0
    %6099 = vmatpush2.msra.mxu0 0.0
    %6100 = vmatprep.subr.mxu0 0.0
    %6101 = vmatpush2.msra.mxu0 0.0
    %6102 = vmatprep.subr.mxu0 0.0
    %6103 = vmatpush2.msra.mxu0 0.0
    %6104 = vmatprep.subr.mxu0 0.0
    %6105 = vmatpush2.msra.mxu0 0.0
    %6106 = vmatprep.subr.mxu0 0.0
    %6107 = vmatpush2.msra.mxu0 0.0
    %6108 = vmatprep.subr.mxu0 0.0
    %6109 = vmatpush2.msra.mxu0 0.0
    %6110 = vmatprep.subr.mxu0 0.0
    %6111 = vmatpush2.msra.mxu0 0.0
    %6112 = vmatprep.subr.mxu0 0.0
    %6113 = vmatpush2.msra.mxu0 0.0
    %6114 = vmatprep.subr.mxu0 0.0
    %6115 = vmatpush2.msra.mxu0 0.0
    %6116 = vmatprep.subr.mxu0 0.0
    %6117 = vmatpush2.msra.mxu0 0.0
    %6118 = vmatprep.subr.mxu0 0.0
    %6119 = vmatpush2.msra.mxu0 0.0
    %6120 = vmatprep.mubr.f32.mxu0 0.0
    %6121 = vmatmul.mubr.f32.gmra.mxu0 %v6051
    %v6122 = vpop.f32.mrf.mxu0
    %v6123 = vadd.f32 %v6049, %v6122
    %v6124 = vpop.f32.mrf.mxu0
    %6125 = vmatprep.mubr.f32.mxu0 0.0
    %6126 = vmatmul.mubr.f32.gmra.mxu0 %v6054
    %v6127 = vpop.f32.mrf.mxu0
    %v6128 = vadd.f32 %v6049, %v6127
    %v6129 = vpop.f32.mrf.mxu0
    %6130 = vdwg.mxu0
    %s6131 = scalar_lea.vmem %s11, 32
    %v6132 = vld [vmem:[%s6131] sm:$0xff]
    %v6133 = vld [vmem:[%s6131 + $0x8] sm:$0xff]
    %v6134 = vld [vmem:[%s6131 + $0x10] sm:$0xff]
    %v6135 = vld [vmem:[%s6131 + $0x18] sm:$0xff]
    %v6136 = vlaneseq
    %v6137 = vshrl.u32 %v6136, 7
    %v6138 = vsub.s32 5, %v6137
    %v6139 = vrot.slane %v4236, %v6138
    %6140 = vmatprep.subr.mxu0 0.0
    %6141 = vmatpush1.msra.mxu0 0.0
    %6142 = vmatprep.subr.mxu0 0.0
    %6143 = vmatpush1.msra.mxu0 0.0
    %6144 = vmatprep.subr.mxu0 0.0
    %6145 = vmatpush1.msra.mxu0 0.0
    %6146 = vmatprep.subr.mxu0 0.0
    %6147 = vmatpush1.msra.mxu0 0.0
    %6148 = vmatprep.subr.mxu0 0.0
    %6149 = vmatpush1.msra.mxu0 0.0
    %6150 = vmatprep.subr.mxu0 0.0
    %6151 = vmatpush1.msra.mxu0 0.0
    %6152 = vmatprep.subr.mxu0 0.0
    %6153 = vmatpush1.msra.mxu0 0.0
    %6154 = vmatprep.subr.mxu0 0.0
    %6155 = vmatpush1.msra.mxu0 0.0
    %6156 = vmatprep.subr.mxu0 0.0
    %6157 = vmatpush1.msra.mxu0 0.0
    %6158 = vmatprep.subr.mxu0 0.0
    %6159 = vmatpush1.msra.mxu0 0.0
    %6160 = vmatprep.subr.mxu0 0.0
    %6161 = vmatpush1.msra.mxu0 0.0
    %6162 = vmatprep.subr.mxu0 0.0
    %6163 = vmatpush1.msra.mxu0 0.0
    %6164 = vmatprep.subr.mxu0 0.0
    %6165 = vmatpush1.msra.mxu0 %v6135
    %6166 = vmatprep.subr.mxu0 0.0
    %6167 = vmatpush1.msra.mxu0 %v6134
    %6168 = vmatprep.subr.mxu0 0.0
    %6169 = vmatpush1.msra.mxu0 %v6133
    %6170 = vmatprep.subr.mxu0 0.0
    %6171 = vmatpush1.msra.mxu0 %v6132
    %6172 = vmatprep.subr.mxu0 0.0
    %6173 = vmatpush2.msra.mxu0 0.0
    %6174 = vmatprep.subr.mxu0 0.0
    %6175 = vmatpush2.msra.mxu0 0.0
    %6176 = vmatprep.subr.mxu0 0.0
    %6177 = vmatpush2.msra.mxu0 0.0
    %6178 = vmatprep.subr.mxu0 0.0
    %6179 = vmatpush2.msra.mxu0 0.0
    %6180 = vmatprep.subr.mxu0 0.0
    %6181 = vmatpush2.msra.mxu0 0.0
    %6182 = vmatprep.subr.mxu0 0.0
    %6183 = vmatpush2.msra.mxu0 0.0
    %6184 = vmatprep.subr.mxu0 0.0
    %6185 = vmatpush2.msra.mxu0 0.0
    %6186 = vmatprep.subr.mxu0 0.0
    %6187 = vmatpush2.msra.mxu0 0.0
    %6188 = vmatprep.subr.mxu0 0.0
    %6189 = vmatpush2.msra.mxu0 0.0
    %6190 = vmatprep.subr.mxu0 0.0
    %6191 = vmatpush2.msra.mxu0 0.0
    %6192 = vmatprep.subr.mxu0 0.0
    %6193 = vmatpush2.msra.mxu0 0.0
    %6194 = vmatprep.subr.mxu0 0.0
    %6195 = vmatpush2.msra.mxu0 0.0
    %6196 = vmatprep.subr.mxu0 0.0
    %6197 = vmatpush2.msra.mxu0 0.0
    %6198 = vmatprep.subr.mxu0 0.0
    %6199 = vmatpush2.msra.mxu0 0.0
    %6200 = vmatprep.subr.mxu0 0.0
    %6201 = vmatpush2.msra.mxu0 0.0
    %6202 = vmatprep.subr.mxu0 0.0
    %6203 = vmatpush2.msra.mxu0 0.0
    %6204 = vmatprep.mubr.f32.mxu0 0.0
    %6205 = vmatmul.mubr.f32.gmra.mxu0 %v2208
    %v6206 = vpop.f32.mrf.mxu0
    %v6207 = vadd.f32 %v6139, %v6206
    %v6208 = vpop.f32.mrf.mxu0
    %6209 = vmatprep.mubr.f32.mxu0 0.0
    %6210 = vmatmul.mubr.f32.gmra.mxu0 %v2211
    %v6211 = vpop.f32.mrf.mxu0
    %v6212 = vadd.f32 %v6139, %v6211
    %v6213 = vpop.f32.mrf.mxu0
    %6214 = vdwg.mxu0
    %s6215 = scalar_lea.vmem %s12, 32
    %v6216 = vld [vmem:[%s6215] sm:$0xff]
    %v6217 = vld [vmem:[%s6215 + $0x8] sm:$0xff]
    %v6218 = vld [vmem:[%s6215 + $0x10] sm:$0xff]
    %v6219 = vld [vmem:[%s6215 + $0x18] sm:$0xff]
    %v6221 = vsel %vm403, %v6123, 0
    %v6224 = vsel %vm403, %v6207, 0
    %6226 = vmatprep.subr.mxu0 0.0
    %6227 = vmatpush1.xpose.msra.mxu0 0.0
    %6228 = vmatprep.subr.mxu0 0.0
    %6229 = vmatpush1.xpose.msra.mxu0 0.0
    %6230 = vmatprep.subr.mxu0 0.0
    %6231 = vmatpush1.xpose.msra.mxu0 0.0
    %6232 = vmatprep.subr.mxu0 0.0
    %6233 = vmatpush1.xpose.msra.mxu0 0.0
    %6234 = vmatprep.subr.mxu0 0.0
    %6235 = vmatpush1.xpose.msra.mxu0 0.0
    %6236 = vmatprep.subr.mxu0 0.0
    %6237 = vmatpush1.xpose.msra.mxu0 0.0
    %6238 = vmatprep.subr.mxu0 0.0
    %6239 = vmatpush1.xpose.msra.mxu0 0.0
    %6240 = vmatprep.subr.mxu0 0.0
    %6241 = vmatpush1.xpose.msra.mxu0 0.0
    %6242 = vmatprep.subr.mxu0 0.0
    %6243 = vmatpush1.xpose.msra.mxu0 0.0
    %6244 = vmatprep.subr.mxu0 0.0
    %6245 = vmatpush1.xpose.msra.mxu0 0.0
    %6246 = vmatprep.subr.mxu0 0.0
    %6247 = vmatpush1.xpose.msra.mxu0 0.0
    %6248 = vmatprep.subr.mxu0 0.0
    %6249 = vmatpush1.xpose.msra.mxu0 0.0
    %6250 = vmatprep.subr.mxu0 0.0
    %6251 = vmatpush1.xpose.msra.mxu0 0.0
    %6252 = vmatprep.subr.mxu0 0.0
    %6253 = vmatpush1.xpose.msra.mxu0 0.0
    %6254 = vmatprep.subr.mxu0 0.0
    %6255 = vmatpush1.xpose.msra.mxu0 0.0
    %6256 = vmatprep.subr.mxu0 0.0
    %6257 = vmatpush1.xpose.msra.mxu0 %v6224
    %6258 = vmatprep.subr.mxu0 0.0
    %6259 = vmatpush2.xpose.msra.mxu0 0.0
    %6260 = vmatprep.subr.mxu0 0.0
    %6261 = vmatpush2.xpose.msra.mxu0 0.0
    %6262 = vmatprep.subr.mxu0 0.0
    %6263 = vmatpush2.xpose.msra.mxu0 0.0
    %6264 = vmatprep.subr.mxu0 0.0
    %6265 = vmatpush2.xpose.msra.mxu0 0.0
    %6266 = vmatprep.subr.mxu0 0.0
    %6267 = vmatpush2.xpose.msra.mxu0 0.0
    %6268 = vmatprep.subr.mxu0 0.0
    %6269 = vmatpush2.xpose.msra.mxu0 0.0
    %6270 = vmatprep.subr.mxu0 0.0
    %6271 = vmatpush2.xpose.msra.mxu0 0.0
    %6272 = vmatprep.subr.mxu0 0.0
    %6273 = vmatpush2.xpose.msra.mxu0 0.0
    %6274 = vmatprep.subr.mxu0 0.0
    %6275 = vmatpush2.xpose.msra.mxu0 0.0
    %6276 = vmatprep.subr.mxu0 0.0
    %6277 = vmatpush2.xpose.msra.mxu0 0.0
    %6278 = vmatprep.subr.mxu0 0.0
    %6279 = vmatpush2.xpose.msra.mxu0 0.0
    %6280 = vmatprep.subr.mxu0 0.0
    %6281 = vmatpush2.xpose.msra.mxu0 0.0
    %6282 = vmatprep.subr.mxu0 0.0
    %6283 = vmatpush2.xpose.msra.mxu0 0.0
    %6284 = vmatprep.subr.mxu0 0.0
    %6285 = vmatpush2.xpose.msra.mxu0 0.0
    %6286 = vmatprep.subr.mxu0 0.0
    %6287 = vmatpush2.xpose.msra.mxu0 0.0
    %6288 = vmatprep.subr.mxu0 0.0
    %6289 = vmatpush2.xpose.msra.mxu0 0.0
    %6290 = vmatprep.mubr.f32.mxu0 0.0
    %6291 = vmatmul.mubr.f32.gmra.mxu0 %v6221
    %v6292 = vpop.f32.mrf.mxu0
    %v6293 = vadd.f32 0.0, %v6292
    %v6294 = vpop.f32.mrf.mxu0
    %6295 = vdwg.mxu0
    %v6297 = vsel %vm403, %v6128, 0
    %v6300 = vsel %vm403, %v6212, 0
    %6302 = vmatprep.subr.mxu0 0.0
    %6303 = vmatpush1.xpose.msra.mxu0 0.0
    %6304 = vmatprep.subr.mxu0 0.0
    %6305 = vmatpush1.xpose.msra.mxu0 0.0
    %6306 = vmatprep.subr.mxu0 0.0
    %6307 = vmatpush1.xpose.msra.mxu0 0.0
    %6308 = vmatprep.subr.mxu0 0.0
    %6309 = vmatpush1.xpose.msra.mxu0 0.0
    %6310 = vmatprep.subr.mxu0 0.0
    %6311 = vmatpush1.xpose.msra.mxu0 0.0
    %6312 = vmatprep.subr.mxu0 0.0
    %6313 = vmatpush1.xpose.msra.mxu0 0.0
    %6314 = vmatprep.subr.mxu0 0.0
    %6315 = vmatpush1.xpose.msra.mxu0 0.0
    %6316 = vmatprep.subr.mxu0 0.0
    %6317 = vmatpush1.xpose.msra.mxu0 0.0
    %6318 = vmatprep.subr.mxu0 0.0
    %6319 = vmatpush1.xpose.msra.mxu0 0.0
    %6320 = vmatprep.subr.mxu0 0.0
    %6321 = vmatpush1.xpose.msra.mxu0 0.0
    %6322 = vmatprep.subr.mxu0 0.0
    %6323 = vmatpush1.xpose.msra.mxu0 0.0
    %6324 = vmatprep.subr.mxu0 0.0
    %6325 = vmatpush1.xpose.msra.mxu0 0.0
    %6326 = vmatprep.subr.mxu0 0.0
    %6327 = vmatpush1.xpose.msra.mxu0 0.0
    %6328 = vmatprep.subr.mxu0 0.0
    %6329 = vmatpush1.xpose.msra.mxu0 0.0
    %6330 = vmatprep.subr.mxu0 0.0
    %6331 = vmatpush1.xpose.msra.mxu0 0.0
    %6332 = vmatprep.subr.mxu0 0.0
    %6333 = vmatpush1.xpose.msra.mxu0 %v6300
    %6334 = vmatprep.subr.mxu0 0.0
    %6335 = vmatpush2.xpose.msra.mxu0 0.0
    %6336 = vmatprep.subr.mxu0 0.0
    %6337 = vmatpush2.xpose.msra.mxu0 0.0
    %6338 = vmatprep.subr.mxu0 0.0
    %6339 = vmatpush2.xpose.msra.mxu0 0.0
    %6340 = vmatprep.subr.mxu0 0.0
    %6341 = vmatpush2.xpose.msra.mxu0 0.0
    %6342 = vmatprep.subr.mxu0 0.0
    %6343 = vmatpush2.xpose.msra.mxu0 0.0
    %6344 = vmatprep.subr.mxu0 0.0
    %6345 = vmatpush2.xpose.msra.mxu0 0.0
    %6346 = vmatprep.subr.mxu0 0.0
    %6347 = vmatpush2.xpose.msra.mxu0 0.0
    %6348 = vmatprep.subr.mxu0 0.0
    %6349 = vmatpush2.xpose.msra.mxu0 0.0
    %6350 = vmatprep.subr.mxu0 0.0
    %6351 = vmatpush2.xpose.msra.mxu0 0.0
    %6352 = vmatprep.subr.mxu0 0.0
    %6353 = vmatpush2.xpose.msra.mxu0 0.0
    %6354 = vmatprep.subr.mxu0 0.0
    %6355 = vmatpush2.xpose.msra.mxu0 0.0
    %6356 = vmatprep.subr.mxu0 0.0
    %6357 = vmatpush2.xpose.msra.mxu0 0.0
    %6358 = vmatprep.subr.mxu0 0.0
    %6359 = vmatpush2.xpose.msra.mxu0 0.0
    %6360 = vmatprep.subr.mxu0 0.0
    %6361 = vmatpush2.xpose.msra.mxu0 0.0
    %6362 = vmatprep.subr.mxu0 0.0
    %6363 = vmatpush2.xpose.msra.mxu0 0.0
    %6364 = vmatprep.subr.mxu0 0.0
    %6365 = vmatpush2.xpose.msra.mxu0 0.0
    %6366 = vmatprep.mubr.f32.mxu0 0.0
    %6367 = vmatmul.mubr.f32.gmra.mxu0 %v6297
    %v6368 = vpop.f32.mrf.mxu0
    %v6369 = vadd.f32 0.0, %v6368
    %v6370 = vpop.f32.mrf.mxu0
    %6371 = vdwg.mxu0
    %v6372 = vmul.f32 %v6293, 0.35355338
    %v6373 = vmul.f32 %v6369, 0.35355338
    %v6374 = vadd.f32 %v6372, %v2451
    %v6375 = vadd.f32 %v6373, %v2455
    %v6376 = vsel %vm403, %v6374, -inf
    %6377 = vmax.xlane.f32.xlu0 %v6376
    %v6378 = vpop.xlane.xlu0 %6377
    %v6379 = vsel %vm403, %v6375, -inf
    %6380 = vmax.xlane.f32.xlu0 %v6379
    %v6381 = vpop.xlane.xlu0 %6380
    %v6382 = vsub.f32 %v6374, %v6378
    %v6383 = vsub.f32 %v6375, %v6381
    %v6384 = vmul.f32 %v6382, 1.442695
    %v6385 = vpow.pop %v6384
    %v6386 = vmul.f32 %v6383, 1.442695
    %v6387 = vpow.pop %v6386
    %v6388 = vsel %vm403, %v6385, 0.0
    %6389 = vadd.xlane.f32.xlu0 %v6388
    %v6390 = vpop.xlane.xlu0 %6389
    %v6391 = vsel %vm403, %v6387, 0.0
    %6392 = vadd.xlane.f32.xlu0 %v6391
    %v6393 = vpop.xlane.xlu0 %6392
    %v6394 = vrcp.pop %v6390
    %v6395 = vrcp.pop %v6393
    %v6396 = vmul.f32 %v6385, %v6394
    %v6397 = vmul.f32 %v6387, %v6395
    %6398 = vrot.lane.b32.xlu0 %v6207, 96
    %v6399 = vpop.permute.xlu0 %6398
    %v6402 = vsel %vm403, %v6396, 0
    %6404 = vmatprep.subr.mxu0 0.0
    %6405 = vmatpush1.msra.mxu0 0.0
    %6406 = vmatprep.subr.mxu0 0.0
    %6407 = vmatpush1.msra.mxu0 0.0
    %6408 = vmatprep.subr.mxu0 0.0
    %6409 = vmatpush1.msra.mxu0 0.0
    %6410 = vmatprep.subr.mxu0 0.0
    %6411 = vmatpush1.msra.mxu0 0.0
    %6412 = vmatprep.subr.mxu0 0.0
    %6413 = vmatpush1.msra.mxu0 0.0
    %6414 = vmatprep.subr.mxu0 0.0
    %6415 = vmatpush1.msra.mxu0 0.0
    %6416 = vmatprep.subr.mxu0 0.0
    %6417 = vmatpush1.msra.mxu0 0.0
    %6418 = vmatprep.subr.mxu0 0.0
    %6419 = vmatpush1.msra.mxu0 0.0
    %6420 = vmatprep.subr.mxu0 0.0
    %6421 = vmatpush1.msra.mxu0 0.0
    %6422 = vmatprep.subr.mxu0 0.0
    %6423 = vmatpush1.msra.mxu0 0.0
    %6424 = vmatprep.subr.mxu0 0.0
    %6425 = vmatpush1.msra.mxu0 0.0
    %6426 = vmatprep.subr.mxu0 0.0
    %6427 = vmatpush1.msra.mxu0 0.0
    %6428 = vmatprep.subr.mxu0 0.0
    %6429 = vmatpush1.msra.mxu0 0.0
    %6430 = vmatprep.subr.mxu0 0.0
    %6431 = vmatpush1.msra.mxu0 0.0
    %6432 = vmatprep.subr.mxu0 0.0
    %6433 = vmatpush1.msra.mxu0 0.0
    %6434 = vmatprep.subr.mxu0 0.0
    %6435 = vmatpush1.msra.mxu0 %v6399
    %6436 = vmatprep.subr.mxu0 0.0
    %6437 = vmatpush2.msra.mxu0 0.0
    %6438 = vmatprep.subr.mxu0 0.0
    %6439 = vmatpush2.msra.mxu0 0.0
    %6440 = vmatprep.subr.mxu0 0.0
    %6441 = vmatpush2.msra.mxu0 0.0
    %6442 = vmatprep.subr.mxu0 0.0
    %6443 = vmatpush2.msra.mxu0 0.0
    %6444 = vmatprep.subr.mxu0 0.0
    %6445 = vmatpush2.msra.mxu0 0.0
    %6446 = vmatprep.subr.mxu0 0.0
    %6447 = vmatpush2.msra.mxu0 0.0
    %6448 = vmatprep.subr.mxu0 0.0
    %6449 = vmatpush2.msra.mxu0 0.0
    %6450 = vmatprep.subr.mxu0 0.0
    %6451 = vmatpush2.msra.mxu0 0.0
    %6452 = vmatprep.subr.mxu0 0.0
    %6453 = vmatpush2.msra.mxu0 0.0
    %6454 = vmatprep.subr.mxu0 0.0
    %6455 = vmatpush2.msra.mxu0 0.0
    %6456 = vmatprep.subr.mxu0 0.0
    %6457 = vmatpush2.msra.mxu0 0.0
    %6458 = vmatprep.subr.mxu0 0.0
    %6459 = vmatpush2.msra.mxu0 0.0
    %6460 = vmatprep.subr.mxu0 0.0
    %6461 = vmatpush2.msra.mxu0 0.0
    %6462 = vmatprep.subr.mxu0 0.0
    %6463 = vmatpush2.msra.mxu0 0.0
    %6464 = vmatprep.subr.mxu0 0.0
    %6465 = vmatpush2.msra.mxu0 0.0
    %6466 = vmatprep.subr.mxu0 0.0
    %6467 = vmatpush2.msra.mxu0 0.0
    %6468 = vmatprep.mubr.f32.mxu0 0.0
    %6469 = vmatmul.mubr.f32.gmra.mxu0 %v6402
    %v6470 = vpop.f32.mrf.mxu0
    %v6471 = vadd.f32 0.0, %v6470
    %v6472 = vpop.f32.mrf.mxu0
    %6473 = vdwg.mxu0
    %6474 = vrot.lane.b32.xlu0 %v6212, 96
    %v6475 = vpop.permute.xlu0 %6474
    %v6478 = vsel %vm403, %v6397, 0
    %6480 = vmatprep.subr.mxu0 0.0
    %6481 = vmatpush1.msra.mxu0 0.0
    %6482 = vmatprep.subr.mxu0 0.0
    %6483 = vmatpush1.msra.mxu0 0.0
    %6484 = vmatprep.subr.mxu0 0.0
    %6485 = vmatpush1.msra.mxu0 0.0
    %6486 = vmatprep.subr.mxu0 0.0
    %6487 = vmatpush1.msra.mxu0 0.0
    %6488 = vmatprep.subr.mxu0 0.0
    %6489 = vmatpush1.msra.mxu0 0.0
    %6490 = vmatprep.subr.mxu0 0.0
    %6491 = vmatpush1.msra.mxu0 0.0
    %6492 = vmatprep.subr.mxu0 0.0
    %6493 = vmatpush1.msra.mxu0 0.0
    %6494 = vmatprep.subr.mxu0 0.0
    %6495 = vmatpush1.msra.mxu0 0.0
    %6496 = vmatprep.subr.mxu0 0.0
    %6497 = vmatpush1.msra.mxu0 0.0
    %6498 = vmatprep.subr.mxu0 0.0
    %6499 = vmatpush1.msra.mxu0 0.0
    %6500 = vmatprep.subr.mxu0 0.0
    %6501 = vmatpush1.msra.mxu0 0.0
    %6502 = vmatprep.subr.mxu0 0.0
    %6503 = vmatpush1.msra.mxu0 0.0
    %6504 = vmatprep.subr.mxu0 0.0
    %6505 = vmatpush1.msra.mxu0 0.0
    %6506 = vmatprep.subr.mxu0 0.0
    %6507 = vmatpush1.msra.mxu0 0.0
    %6508 = vmatprep.subr.mxu0 0.0
    %6509 = vmatpush1.msra.mxu0 0.0
    %6510 = vmatprep.subr.mxu0 0.0
    %6511 = vmatpush1.msra.mxu0 %v6475
    %6512 = vmatprep.subr.mxu0 0.0
    %6513 = vmatpush2.msra.mxu0 0.0
    %6514 = vmatprep.subr.mxu0 0.0
    %6515 = vmatpush2.msra.mxu0 0.0
    %6516 = vmatprep.subr.mxu0 0.0
    %6517 = vmatpush2.msra.mxu0 0.0
    %6518 = vmatprep.subr.mxu0 0.0
    %6519 = vmatpush2.msra.mxu0 0.0
    %6520 = vmatprep.subr.mxu0 0.0
    %6521 = vmatpush2.msra.mxu0 0.0
    %6522 = vmatprep.subr.mxu0 0.0
    %6523 = vmatpush2.msra.mxu0 0.0
    %6524 = vmatprep.subr.mxu0 0.0
    %6525 = vmatpush2.msra.mxu0 0.0
    %6526 = vmatprep.subr.mxu0 0.0
    %6527 = vmatpush2.msra.mxu0 0.0
    %6528 = vmatprep.subr.mxu0 0.0
    %6529 = vmatpush2.msra.mxu0 0.0
    %6530 = vmatprep.subr.mxu0 0.0
    %6531 = vmatpush2.msra.mxu0 0.0
    %6532 = vmatprep.subr.mxu0 0.0
    %6533 = vmatpush2.msra.mxu0 0.0
    %6534 = vmatprep.subr.mxu0 0.0
    %6535 = vmatpush2.msra.mxu0 0.0
    %6536 = vmatprep.subr.mxu0 0.0
    %6537 = vmatpush2.msra.mxu0 0.0
    %6538 = vmatprep.subr.mxu0 0.0
    %6539 = vmatpush2.msra.mxu0 0.0
    %6540 = vmatprep.subr.mxu0 0.0
    %6541 = vmatpush2.msra.mxu0 0.0
    %6542 = vmatprep.subr.mxu0 0.0
    %6543 = vmatpush2.msra.mxu0 0.0
    %6544 = vmatprep.mubr.f32.mxu0 0.0
    %6545 = vmatmul.mubr.f32.gmra.mxu0 %v6478
    %v6546 = vpop.f32.mrf.mxu0
    %v6547 = vadd.f32 0.0, %v6546
    %v6548 = vpop.f32.mrf.mxu0
    %6549 = vdwg.mxu0
    %6550 = vrot.lane.b32.xlu0 %v6123, 120
    %v6551 = vpop.permute.xlu0 %6550
    %6552 = vrot.lane.b32.xlu0 %v6207, 120
    %v6553 = vpop.permute.xlu0 %6552
    %v6554 = vsel %vm403, %v6551, 0
    %v6556 = vsel %vm403, %v6553, 0
    %6558 = vmatprep.subr.mxu0 0.0
    %6559 = vmatpush1.xpose.msra.mxu0 0.0
    %6560 = vmatprep.subr.mxu0 0.0
    %6561 = vmatpush1.xpose.msra.mxu0 0.0
    %6562 = vmatprep.subr.mxu0 0.0
    %6563 = vmatpush1.xpose.msra.mxu0 0.0
    %6564 = vmatprep.subr.mxu0 0.0
    %6565 = vmatpush1.xpose.msra.mxu0 0.0
    %6566 = vmatprep.subr.mxu0 0.0
    %6567 = vmatpush1.xpose.msra.mxu0 0.0
    %6568 = vmatprep.subr.mxu0 0.0
    %6569 = vmatpush1.xpose.msra.mxu0 0.0
    %6570 = vmatprep.subr.mxu0 0.0
    %6571 = vmatpush1.xpose.msra.mxu0 0.0
    %6572 = vmatprep.subr.mxu0 0.0
    %6573 = vmatpush1.xpose.msra.mxu0 0.0
    %6574 = vmatprep.subr.mxu0 0.0
    %6575 = vmatpush1.xpose.msra.mxu0 0.0
    %6576 = vmatprep.subr.mxu0 0.0
    %6577 = vmatpush1.xpose.msra.mxu0 0.0
    %6578 = vmatprep.subr.mxu0 0.0
    %6579 = vmatpush1.xpose.msra.mxu0 0.0
    %6580 = vmatprep.subr.mxu0 0.0
    %6581 = vmatpush1.xpose.msra.mxu0 0.0
    %6582 = vmatprep.subr.mxu0 0.0
    %6583 = vmatpush1.xpose.msra.mxu0 0.0
    %6584 = vmatprep.subr.mxu0 0.0
    %6585 = vmatpush1.xpose.msra.mxu0 0.0
    %6586 = vmatprep.subr.mxu0 0.0
    %6587 = vmatpush1.xpose.msra.mxu0 0.0
    %6588 = vmatprep.subr.mxu0 0.0
    %6589 = vmatpush1.xpose.msra.mxu0 %v6556
    %6590 = vmatprep.subr.mxu0 0.0
    %6591 = vmatpush2.xpose.msra.mxu0 0.0
    %6592 = vmatprep.subr.mxu0 0.0
    %6593 = vmatpush2.xpose.msra.mxu0 0.0
    %6594 = vmatprep.subr.mxu0 0.0
    %6595 = vmatpush2.xpose.msra.mxu0 0.0
    %6596 = vmatprep.subr.mxu0 0.0
    %6597 = vmatpush2.xpose.msra.mxu0 0.0
    %6598 = vmatprep.subr.mxu0 0.0
    %6599 = vmatpush2.xpose.msra.mxu0 0.0
    %6600 = vmatprep.subr.mxu0 0.0
    %6601 = vmatpush2.xpose.msra.mxu0 0.0
    %6602 = vmatprep.subr.mxu0 0.0
    %6603 = vmatpush2.xpose.msra.mxu0 0.0
    %6604 = vmatprep.subr.mxu0 0.0
    %6605 = vmatpush2.xpose.msra.mxu0 0.0
    %6606 = vmatprep.subr.mxu0 0.0
    %6607 = vmatpush2.xpose.msra.mxu0 0.0
    %6608 = vmatprep.subr.mxu0 0.0
    %6609 = vmatpush2.xpose.msra.mxu0 0.0
    %6610 = vmatprep.subr.mxu0 0.0
    %6611 = vmatpush2.xpose.msra.mxu0 0.0
    %6612 = vmatprep.subr.mxu0 0.0
    %6613 = vmatpush2.xpose.msra.mxu0 0.0
    %6614 = vmatprep.subr.mxu0 0.0
    %6615 = vmatpush2.xpose.msra.mxu0 0.0
    %6616 = vmatprep.subr.mxu0 0.0
    %6617 = vmatpush2.xpose.msra.mxu0 0.0
    %6618 = vmatprep.subr.mxu0 0.0
    %6619 = vmatpush2.xpose.msra.mxu0 0.0
    %6620 = vmatprep.subr.mxu0 0.0
    %6621 = vmatpush2.xpose.msra.mxu0 0.0
    %6622 = vmatprep.mubr.f32.mxu0 0.0
    %6623 = vmatmul.mubr.f32.gmra.mxu0 %v6554
    %v6624 = vpop.f32.mrf.mxu0
    %v6625 = vadd.f32 0.0, %v6624
    %v6626 = vpop.f32.mrf.mxu0
    %6627 = vdwg.mxu0
    %6628 = vrot.lane.b32.xlu0 %v6128, 120
    %v6629 = vpop.permute.xlu0 %6628
    %6630 = vrot.lane.b32.xlu0 %v6212, 120
    %v6631 = vpop.permute.xlu0 %6630
    %v6632 = vsel %vm403, %v6629, 0
    %v6634 = vsel %vm403, %v6631, 0
    %6636 = vmatprep.subr.mxu0 0.0
    %6637 = vmatpush1.xpose.msra.mxu0 0.0
    %6638 = vmatprep.subr.mxu0 0.0
    %6639 = vmatpush1.xpose.msra.mxu0 0.0
    %6640 = vmatprep.subr.mxu0 0.0
    %6641 = vmatpush1.xpose.msra.mxu0 0.0
    %6642 = vmatprep.subr.mxu0 0.0
    %6643 = vmatpush1.xpose.msra.mxu0 0.0
    %6644 = vmatprep.subr.mxu0 0.0
    %6645 = vmatpush1.xpose.msra.mxu0 0.0
    %6646 = vmatprep.subr.mxu0 0.0
    %6647 = vmatpush1.xpose.msra.mxu0 0.0
    %6648 = vmatprep.subr.mxu0 0.0
    %6649 = vmatpush1.xpose.msra.mxu0 0.0
    %6650 = vmatprep.subr.mxu0 0.0
    %6651 = vmatpush1.xpose.msra.mxu0 0.0
    %6652 = vmatprep.subr.mxu0 0.0
    %6653 = vmatpush1.xpose.msra.mxu0 0.0
    %6654 = vmatprep.subr.mxu0 0.0
    %6655 = vmatpush1.xpose.msra.mxu0 0.0
    %6656 = vmatprep.subr.mxu0 0.0
    %6657 = vmatpush1.xpose.msra.mxu0 0.0
    %6658 = vmatprep.subr.mxu0 0.0
    %6659 = vmatpush1.xpose.msra.mxu0 0.0
    %6660 = vmatprep.subr.mxu0 0.0
    %6661 = vmatpush1.xpose.msra.mxu0 0.0
    %6662 = vmatprep.subr.mxu0 0.0
    %6663 = vmatpush1.xpose.msra.mxu0 0.0
    %6664 = vmatprep.subr.mxu0 0.0
    %6665 = vmatpush1.xpose.msra.mxu0 0.0
    %6666 = vmatprep.subr.mxu0 0.0
    %6667 = vmatpush1.xpose.msra.mxu0 %v6634
    %6668 = vmatprep.subr.mxu0 0.0
    %6669 = vmatpush2.xpose.msra.mxu0 0.0
    %6670 = vmatprep.subr.mxu0 0.0
    %6671 = vmatpush2.xpose.msra.mxu0 0.0
    %6672 = vmatprep.subr.mxu0 0.0
    %6673 = vmatpush2.xpose.msra.mxu0 0.0
    %6674 = vmatprep.subr.mxu0 0.0
    %6675 = vmatpush2.xpose.msra.mxu0 0.0
    %6676 = vmatprep.subr.mxu0 0.0
    %6677 = vmatpush2.xpose.msra.mxu0 0.0
    %6678 = vmatprep.subr.mxu0 0.0
    %6679 = vmatpush2.xpose.msra.mxu0 0.0
    %6680 = vmatprep.subr.mxu0 0.0
    %6681 = vmatpush2.xpose.msra.mxu0 0.0
    %6682 = vmatprep.subr.mxu0 0.0
    %6683 = vmatpush2.xpose.msra.mxu0 0.0
    %6684 = vmatprep.subr.mxu0 0.0
    %6685 = vmatpush2.xpose.msra.mxu0 0.0
    %6686 = vmatprep.subr.mxu0 0.0
    %6687 = vmatpush2.xpose.msra.mxu0 0.0
    %6688 = vmatprep.subr.mxu0 0.0
    %6689 = vmatpush2.xpose.msra.mxu0 0.0
    %6690 = vmatprep.subr.mxu0 0.0
    %6691 = vmatpush2.xpose.msra.mxu0 0.0
    %6692 = vmatprep.subr.mxu0 0.0
    %6693 = vmatpush2.xpose.msra.mxu0 0.0
    %6694 = vmatprep.subr.mxu0 0.0
    %6695 = vmatpush2.xpose.msra.mxu0 0.0
    %6696 = vmatprep.subr.mxu0 0.0
    %6697 = vmatpush2.xpose.msra.mxu0 0.0
    %6698 = vmatprep.subr.mxu0 0.0
    %6699 = vmatpush2.xpose.msra.mxu0 0.0
    %6700 = vmatprep.mubr.f32.mxu0 0.0
    %6701 = vmatmul.mubr.f32.gmra.mxu0 %v6632
    %v6702 = vpop.f32.mrf.mxu0
    %v6703 = vadd.f32 0.0, %v6702
    %v6704 = vpop.f32.mrf.mxu0
    %6705 = vdwg.mxu0
    %v6706 = vmul.f32 %v6625, 0.35355338
    %v6707 = vmul.f32 %v6703, 0.35355338
    %v6708 = vadd.f32 %v6706, %v2451
    %v6709 = vadd.f32 %v6707, %v2455
    %v6710 = vsel %vm403, %v6708, -inf
    %6711 = vmax.xlane.f32.xlu0 %v6710
    %v6712 = vpop.xlane.xlu0 %6711
    %v6713 = vsel %vm403, %v6709, -inf
    %6714 = vmax.xlane.f32.xlu0 %v6713
    %v6715 = vpop.xlane.xlu0 %6714
    %v6716 = vsub.f32 %v6708, %v6712
    %v6717 = vsub.f32 %v6709, %v6715
    %v6718 = vmul.f32 %v6716, 1.442695
    %v6719 = vpow.pop %v6718
    %v6720 = vmul.f32 %v6717, 1.442695
    %v6721 = vpow.pop %v6720
    %v6722 = vsel %vm403, %v6719, 0.0
    %6723 = vadd.xlane.f32.xlu0 %v6722
    %v6724 = vpop.xlane.xlu0 %6723
    %v6725 = vsel %vm403, %v6721, 0.0
    %6726 = vadd.xlane.f32.xlu0 %v6725
    %v6727 = vpop.xlane.xlu0 %6726
    %v6728 = vrcp.pop %v6724
    %v6729 = vrcp.pop %v6727
    %v6730 = vmul.f32 %v6719, %v6728
    %v6731 = vmul.f32 %v6721, %v6729
    %6732 = vrot.lane.b32.xlu0 %v6207, 88
    %v6733 = vpop.permute.xlu0 %6732
    %v6736 = vsel %vm403, %v6730, 0
    %6738 = vmatprep.subr.mxu0 0.0
    %6739 = vmatpush1.msra.mxu0 0.0
    %6740 = vmatprep.subr.mxu0 0.0
    %6741 = vmatpush1.msra.mxu0 0.0
    %6742 = vmatprep.subr.mxu0 0.0
    %6743 = vmatpush1.msra.mxu0 0.0
    %6744 = vmatprep.subr.mxu0 0.0
    %6745 = vmatpush1.msra.mxu0 0.0
    %6746 = vmatprep.subr.mxu0 0.0
    %6747 = vmatpush1.msra.mxu0 0.0
    %6748 = vmatprep.subr.mxu0 0.0
    %6749 = vmatpush1.msra.mxu0 0.0
    %6750 = vmatprep.subr.mxu0 0.0
    %6751 = vmatpush1.msra.mxu0 0.0
    %6752 = vmatprep.subr.mxu0 0.0
    %6753 = vmatpush1.msra.mxu0 0.0
    %6754 = vmatprep.subr.mxu0 0.0
    %6755 = vmatpush1.msra.mxu0 0.0
    %6756 = vmatprep.subr.mxu0 0.0
    %6757 = vmatpush1.msra.mxu0 0.0
    %6758 = vmatprep.subr.mxu0 0.0
    %6759 = vmatpush1.msra.mxu0 0.0
    %6760 = vmatprep.subr.mxu0 0.0
    %6761 = vmatpush1.msra.mxu0 0.0
    %6762 = vmatprep.subr.mxu0 0.0
    %6763 = vmatpush1.msra.mxu0 0.0
    %6764 = vmatprep.subr.mxu0 0.0
    %6765 = vmatpush1.msra.mxu0 0.0
    %6766 = vmatprep.subr.mxu0 0.0
    %6767 = vmatpush1.msra.mxu0 0.0
    %6768 = vmatprep.subr.mxu0 0.0
    %6769 = vmatpush1.msra.mxu0 %v6733
    %6770 = vmatprep.subr.mxu0 0.0
    %6771 = vmatpush2.msra.mxu0 0.0
    %6772 = vmatprep.subr.mxu0 0.0
    %6773 = vmatpush2.msra.mxu0 0.0
    %6774 = vmatprep.subr.mxu0 0.0
    %6775 = vmatpush2.msra.mxu0 0.0
    %6776 = vmatprep.subr.mxu0 0.0
    %6777 = vmatpush2.msra.mxu0 0.0
    %6778 = vmatprep.subr.mxu0 0.0
    %6779 = vmatpush2.msra.mxu0 0.0
    %6780 = vmatprep.subr.mxu0 0.0
    %6781 = vmatpush2.msra.mxu0 0.0
    %6782 = vmatprep.subr.mxu0 0.0
    %6783 = vmatpush2.msra.mxu0 0.0
    %6784 = vmatprep.subr.mxu0 0.0
    %6785 = vmatpush2.msra.mxu0 0.0
    %6786 = vmatprep.subr.mxu0 0.0
    %6787 = vmatpush2.msra.mxu0 0.0
    %6788 = vmatprep.subr.mxu0 0.0
    %6789 = vmatpush2.msra.mxu0 0.0
    %6790 = vmatprep.subr.mxu0 0.0
    %6791 = vmatpush2.msra.mxu0 0.0
    %6792 = vmatprep.subr.mxu0 0.0
    %6793 = vmatpush2.msra.mxu0 0.0
    %6794 = vmatprep.subr.mxu0 0.0
    %6795 = vmatpush2.msra.mxu0 0.0
    %6796 = vmatprep.subr.mxu0 0.0
    %6797 = vmatpush2.msra.mxu0 0.0
    %6798 = vmatprep.subr.mxu0 0.0
    %6799 = vmatpush2.msra.mxu0 0.0
    %6800 = vmatprep.subr.mxu0 0.0
    %6801 = vmatpush2.msra.mxu0 0.0
    %6802 = vmatprep.mubr.f32.mxu0 0.0
    %6803 = vmatmul.mubr.f32.gmra.mxu0 %v6736
    %v6804 = vpop.f32.mrf.mxu0
    %v6805 = vadd.f32 0.0, %v6804
    %v6806 = vpop.f32.mrf.mxu0
    %6807 = vdwg.mxu0
    %6808 = vrot.lane.b32.xlu0 %v6212, 88
    %v6809 = vpop.permute.xlu0 %6808
    %v6812 = vsel %vm403, %v6731, 0
    %6814 = vmatprep.subr.mxu0 0.0
    %6815 = vmatpush1.msra.mxu0 0.0
    %6816 = vmatprep.subr.mxu0 0.0
    %6817 = vmatpush1.msra.mxu0 0.0
    %6818 = vmatprep.subr.mxu0 0.0
    %6819 = vmatpush1.msra.mxu0 0.0
    %6820 = vmatprep.subr.mxu0 0.0
    %6821 = vmatpush1.msra.mxu0 0.0
    %6822 = vmatprep.subr.mxu0 0.0
    %6823 = vmatpush1.msra.mxu0 0.0
    %6824 = vmatprep.subr.mxu0 0.0
    %6825 = vmatpush1.msra.mxu0 0.0
    %6826 = vmatprep.subr.mxu0 0.0
    %6827 = vmatpush1.msra.mxu0 0.0
    %6828 = vmatprep.subr.mxu0 0.0
    %6829 = vmatpush1.msra.mxu0 0.0
    %6830 = vmatprep.subr.mxu0 0.0
    %6831 = vmatpush1.msra.mxu0 0.0
    %6832 = vmatprep.subr.mxu0 0.0
    %6833 = vmatpush1.msra.mxu0 0.0
    %6834 = vmatprep.subr.mxu0 0.0
    %6835 = vmatpush1.msra.mxu0 0.0
    %6836 = vmatprep.subr.mxu0 0.0
    %6837 = vmatpush1.msra.mxu0 0.0
    %6838 = vmatprep.subr.mxu0 0.0
    %6839 = vmatpush1.msra.mxu0 0.0
    %6840 = vmatprep.subr.mxu0 0.0
    %6841 = vmatpush1.msra.mxu0 0.0
    %6842 = vmatprep.subr.mxu0 0.0
    %6843 = vmatpush1.msra.mxu0 0.0
    %6844 = vmatprep.subr.mxu0 0.0
    %6845 = vmatpush1.msra.mxu0 %v6809
    %6846 = vmatprep.subr.mxu0 0.0
    %6847 = vmatpush2.msra.mxu0 0.0
    %6848 = vmatprep.subr.mxu0 0.0
    %6849 = vmatpush2.msra.mxu0 0.0
    %6850 = vmatprep.subr.mxu0 0.0
    %6851 = vmatpush2.msra.mxu0 0.0
    %6852 = vmatprep.subr.mxu0 0.0
    %6853 = vmatpush2.msra.mxu0 0.0
    %6854 = vmatprep.subr.mxu0 0.0
    %6855 = vmatpush2.msra.mxu0 0.0
    %6856 = vmatprep.subr.mxu0 0.0
    %6857 = vmatpush2.msra.mxu0 0.0
    %6858 = vmatprep.subr.mxu0 0.0
    %6859 = vmatpush2.msra.mxu0 0.0
    %6860 = vmatprep.subr.mxu0 0.0
    %6861 = vmatpush2.msra.mxu0 0.0
    %6862 = vmatprep.subr.mxu0 0.0
    %6863 = vmatpush2.msra.mxu0 0.0
    %6864 = vmatprep.subr.mxu0 0.0
    %6865 = vmatpush2.msra.mxu0 0.0
    %6866 = vmatprep.subr.mxu0 0.0
    %6867 = vmatpush2.msra.mxu0 0.0
    %6868 = vmatprep.subr.mxu0 0.0
    %6869 = vmatpush2.msra.mxu0 0.0
    %6870 = vmatprep.subr.mxu0 0.0
    %6871 = vmatpush2.msra.mxu0 0.0
    %6872 = vmatprep.subr.mxu0 0.0
    %6873 = vmatpush2.msra.mxu0 0.0
    %6874 = vmatprep.subr.mxu0 0.0
    %6875 = vmatpush2.msra.mxu0 0.0
    %6876 = vmatprep.subr.mxu0 0.0
    %6877 = vmatpush2.msra.mxu0 0.0
    %6878 = vmatprep.mubr.f32.mxu0 0.0
    %6879 = vmatmul.mubr.f32.gmra.mxu0 %v6812
    %v6880 = vpop.f32.mrf.mxu0
    %v6881 = vadd.f32 0.0, %v6880
    %v6882 = vpop.f32.mrf.mxu0
    %6883 = vdwg.mxu0
    %v6885 = vsel %vm403, %v6805, 0
    %v6888 = vsel %vm403, %v6881, 0
    %6890 = vmatprep.subr.mxu0 0.0
    %6891 = vmatpush1.msra.mxu0 0.0
    %6892 = vmatprep.subr.mxu0 0.0
    %6893 = vmatpush1.msra.mxu0 0.0
    %6894 = vmatprep.subr.mxu0 0.0
    %6895 = vmatpush1.msra.mxu0 0.0
    %6896 = vmatprep.subr.mxu0 0.0
    %6897 = vmatpush1.msra.mxu0 0.0
    %6898 = vmatprep.subr.mxu0 0.0
    %6899 = vmatpush1.msra.mxu0 0.0
    %6900 = vmatprep.subr.mxu0 0.0
    %6901 = vmatpush1.msra.mxu0 0.0
    %6902 = vmatprep.subr.mxu0 0.0
    %6903 = vmatpush1.msra.mxu0 0.0
    %6904 = vmatprep.subr.mxu0 0.0
    %6905 = vmatpush1.msra.mxu0 0.0
    %6906 = vmatprep.subr.mxu0 0.0
    %6907 = vmatpush1.msra.mxu0 0.0
    %6908 = vmatprep.subr.mxu0 0.0
    %6909 = vmatpush1.msra.mxu0 0.0
    %6910 = vmatprep.subr.mxu0 0.0
    %6911 = vmatpush1.msra.mxu0 0.0
    %6912 = vmatprep.subr.mxu0 0.0
    %6913 = vmatpush1.msra.mxu0 0.0
    %6914 = vmatprep.subr.mxu0 0.0
    %6915 = vmatpush1.msra.mxu0 0.0
    %6916 = vmatprep.subr.mxu0 0.0
    %6917 = vmatpush1.msra.mxu0 0.0
    %6918 = vmatprep.subr.mxu0 0.0
    %6919 = vmatpush1.msra.mxu0 0.0
    %6920 = vmatprep.subr.mxu0 0.0
    %6921 = vmatpush1.msra.mxu0 %v6217
    %6922 = vmatprep.subr.mxu0 0.0
    %6923 = vmatpush2.msra.mxu0 0.0
    %6924 = vmatprep.subr.mxu0 0.0
    %6925 = vmatpush2.msra.mxu0 0.0
    %6926 = vmatprep.subr.mxu0 0.0
    %6927 = vmatpush2.msra.mxu0 0.0
    %6928 = vmatprep.subr.mxu0 0.0
    %6929 = vmatpush2.msra.mxu0 0.0
    %6930 = vmatprep.subr.mxu0 0.0
    %6931 = vmatpush2.msra.mxu0 0.0
    %6932 = vmatprep.subr.mxu0 0.0
    %6933 = vmatpush2.msra.mxu0 0.0
    %6934 = vmatprep.subr.mxu0 0.0
    %6935 = vmatpush2.msra.mxu0 0.0
    %6936 = vmatprep.subr.mxu0 0.0
    %6937 = vmatpush2.msra.mxu0 0.0
    %6938 = vmatprep.subr.mxu0 0.0
    %6939 = vmatpush2.msra.mxu0 0.0
    %6940 = vmatprep.subr.mxu0 0.0
    %6941 = vmatpush2.msra.mxu0 0.0
    %6942 = vmatprep.subr.mxu0 0.0
    %6943 = vmatpush2.msra.mxu0 0.0
    %6944 = vmatprep.subr.mxu0 0.0
    %6945 = vmatpush2.msra.mxu0 0.0
    %6946 = vmatprep.subr.mxu0 0.0
    %6947 = vmatpush2.msra.mxu0 0.0
    %6948 = vmatprep.subr.mxu0 0.0
    %6949 = vmatpush2.msra.mxu0 0.0
    %6950 = vmatprep.subr.mxu0 0.0
    %6951 = vmatpush2.msra.mxu0 0.0
    %6952 = vmatprep.subr.mxu0 0.0
    %6953 = vmatpush2.msra.mxu0 0.0
    %6954 = vmatprep.mubr.f32.mxu0 0.0
    %6955 = vmatmul.mubr.f32.gmra.mxu0 %v6885
    %v6956 = vpop.f32.mrf.mxu0
    %v6957 = vadd.f32 0.0, %v6956
    %v6958 = vpop.f32.mrf.mxu0
    %6959 = vmatprep.mubr.f32.mxu0 0.0
    %6960 = vmatmul.mubr.f32.gmra.mxu0 %v6888
    %v6961 = vpop.f32.mrf.mxu0
    %v6962 = vadd.f32 0.0, %v6961
    %v6963 = vpop.f32.mrf.mxu0
    %6964 = vdwg.mxu0
    %v6966 = vsel %vm403, %v6471, 0
    %v6969 = vsel %vm403, %v6547, 0
    %6971 = vmatprep.subr.mxu0 0.0
    %6972 = vmatpush1.msra.mxu0 0.0
    %6973 = vmatprep.subr.mxu0 0.0
    %6974 = vmatpush1.msra.mxu0 0.0
    %6975 = vmatprep.subr.mxu0 0.0
    %6976 = vmatpush1.msra.mxu0 0.0
    %6977 = vmatprep.subr.mxu0 0.0
    %6978 = vmatpush1.msra.mxu0 0.0
    %6979 = vmatprep.subr.mxu0 0.0
    %6980 = vmatpush1.msra.mxu0 0.0
    %6981 = vmatprep.subr.mxu0 0.0
    %6982 = vmatpush1.msra.mxu0 0.0
    %6983 = vmatprep.subr.mxu0 0.0
    %6984 = vmatpush1.msra.mxu0 0.0
    %6985 = vmatprep.subr.mxu0 0.0
    %6986 = vmatpush1.msra.mxu0 0.0
    %6987 = vmatprep.subr.mxu0 0.0
    %6988 = vmatpush1.msra.mxu0 0.0
    %6989 = vmatprep.subr.mxu0 0.0
    %6990 = vmatpush1.msra.mxu0 0.0
    %6991 = vmatprep.subr.mxu0 0.0
    %6992 = vmatpush1.msra.mxu0 0.0
    %6993 = vmatprep.subr.mxu0 0.0
    %6994 = vmatpush1.msra.mxu0 0.0
    %6995 = vmatprep.subr.mxu0 0.0
    %6996 = vmatpush1.msra.mxu0 0.0
    %6997 = vmatprep.subr.mxu0 0.0
    %6998 = vmatpush1.msra.mxu0 0.0
    %6999 = vmatprep.subr.mxu0 0.0
    %7000 = vmatpush1.msra.mxu0 0.0
    %7001 = vmatprep.subr.mxu0 0.0
    %7002 = vmatpush1.msra.mxu0 %v6216
    %7003 = vmatprep.subr.mxu0 0.0
    %7004 = vmatpush2.msra.mxu0 0.0
    %7005 = vmatprep.subr.mxu0 0.0
    %7006 = vmatpush2.msra.mxu0 0.0
    %7007 = vmatprep.subr.mxu0 0.0
    %7008 = vmatpush2.msra.mxu0 0.0
    %7009 = vmatprep.subr.mxu0 0.0
    %7010 = vmatpush2.msra.mxu0 0.0
    %7011 = vmatprep.subr.mxu0 0.0
    %7012 = vmatpush2.msra.mxu0 0.0
    %7013 = vmatprep.subr.mxu0 0.0
    %7014 = vmatpush2.msra.mxu0 0.0
    %7015 = vmatprep.subr.mxu0 0.0
    %7016 = vmatpush2.msra.mxu0 0.0
    %7017 = vmatprep.subr.mxu0 0.0
    %7018 = vmatpush2.msra.mxu0 0.0
    %7019 = vmatprep.subr.mxu0 0.0
    %7020 = vmatpush2.msra.mxu0 0.0
    %7021 = vmatprep.subr.mxu0 0.0
    %7022 = vmatpush2.msra.mxu0 0.0
    %7023 = vmatprep.subr.mxu0 0.0
    %7024 = vmatpush2.msra.mxu0 0.0
    %7025 = vmatprep.subr.mxu0 0.0
    %7026 = vmatpush2.msra.mxu0 0.0
    %7027 = vmatprep.subr.mxu0 0.0
    %7028 = vmatpush2.msra.mxu0 0.0
    %7029 = vmatprep.subr.mxu0 0.0
    %7030 = vmatpush2.msra.mxu0 0.0
    %7031 = vmatprep.subr.mxu0 0.0
    %7032 = vmatpush2.msra.mxu0 0.0
    %7033 = vmatprep.subr.mxu0 0.0
    %7034 = vmatpush2.msra.mxu0 0.0
    %7035 = vmatprep.mubr.f32.mxu0 0.0
    %7036 = vmatmul.mubr.f32.gmra.mxu0 %v6966
    %v7037 = vpop.f32.mrf.mxu0
    %v7038 = vadd.f32 %v6957, %v7037
    %v7039 = vpop.f32.mrf.mxu0
    %7040 = vmatprep.mubr.f32.mxu0 0.0
    %7041 = vmatmul.mubr.f32.gmra.mxu0 %v6969
    %v7042 = vpop.f32.mrf.mxu0
    %v7043 = vadd.f32 %v6962, %v7042
    %v7044 = vpop.f32.mrf.mxu0
    %7045 = vdwg.mxu0
    %7046 = vrot.lane.b32.xlu0 %v6123, 112
    %v7047 = vpop.permute.xlu0 %7046
    %7048 = vrot.lane.b32.xlu0 %v6207, 112
    %v7049 = vpop.permute.xlu0 %7048
    %v7050 = vsel %vm403, %v7047, 0
    %v7052 = vsel %vm403, %v7049, 0
    %7054 = vmatprep.subr.mxu0 0.0
    %7055 = vmatpush1.xpose.msra.mxu0 0.0
    %7056 = vmatprep.subr.mxu0 0.0
    %7057 = vmatpush1.xpose.msra.mxu0 0.0
    %7058 = vmatprep.subr.mxu0 0.0
    %7059 = vmatpush1.xpose.msra.mxu0 0.0
    %7060 = vmatprep.subr.mxu0 0.0
    %7061 = vmatpush1.xpose.msra.mxu0 0.0
    %7062 = vmatprep.subr.mxu0 0.0
    %7063 = vmatpush1.xpose.msra.mxu0 0.0
    %7064 = vmatprep.subr.mxu0 0.0
    %7065 = vmatpush1.xpose.msra.mxu0 0.0
    %7066 = vmatprep.subr.mxu0 0.0
    %7067 = vmatpush1.xpose.msra.mxu0 0.0
    %7068 = vmatprep.subr.mxu0 0.0
    %7069 = vmatpush1.xpose.msra.mxu0 0.0
    %7070 = vmatprep.subr.mxu0 0.0
    %7071 = vmatpush1.xpose.msra.mxu0 0.0
    %7072 = vmatprep.subr.mxu0 0.0
    %7073 = vmatpush1.xpose.msra.mxu0 0.0
    %7074 = vmatprep.subr.mxu0 0.0
    %7075 = vmatpush1.xpose.msra.mxu0 0.0
    %7076 = vmatprep.subr.mxu0 0.0
    %7077 = vmatpush1.xpose.msra.mxu0 0.0
    %7078 = vmatprep.subr.mxu0 0.0
    %7079 = vmatpush1.xpose.msra.mxu0 0.0
    %7080 = vmatprep.subr.mxu0 0.0
    %7081 = vmatpush1.xpose.msra.mxu0 0.0
    %7082 = vmatprep.subr.mxu0 0.0
    %7083 = vmatpush1.xpose.msra.mxu0 0.0
    %7084 = vmatprep.subr.mxu0 0.0
    %7085 = vmatpush1.xpose.msra.mxu0 %v7052
    %7086 = vmatprep.subr.mxu0 0.0
    %7087 = vmatpush2.xpose.msra.mxu0 0.0
    %7088 = vmatprep.subr.mxu0 0.0
    %7089 = vmatpush2.xpose.msra.mxu0 0.0
    %7090 = vmatprep.subr.mxu0 0.0
    %7091 = vmatpush2.xpose.msra.mxu0 0.0
    %7092 = vmatprep.subr.mxu0 0.0
    %7093 = vmatpush2.xpose.msra.mxu0 0.0
    %7094 = vmatprep.subr.mxu0 0.0
    %7095 = vmatpush2.xpose.msra.mxu0 0.0
    %7096 = vmatprep.subr.mxu0 0.0
    %7097 = vmatpush2.xpose.msra.mxu0 0.0
    %7098 = vmatprep.subr.mxu0 0.0
    %7099 = vmatpush2.xpose.msra.mxu0 0.0
    %7100 = vmatprep.subr.mxu0 0.0
    %7101 = vmatpush2.xpose.msra.mxu0 0.0
    %7102 = vmatprep.subr.mxu0 0.0
    %7103 = vmatpush2.xpose.msra.mxu0 0.0
    %7104 = vmatprep.subr.mxu0 0.0
    %7105 = vmatpush2.xpose.msra.mxu0 0.0
    %7106 = vmatprep.subr.mxu0 0.0
    %7107 = vmatpush2.xpose.msra.mxu0 0.0
    %7108 = vmatprep.subr.mxu0 0.0
    %7109 = vmatpush2.xpose.msra.mxu0 0.0
    %7110 = vmatprep.subr.mxu0 0.0
    %7111 = vmatpush2.xpose.msra.mxu0 0.0
    %7112 = vmatprep.subr.mxu0 0.0
    %7113 = vmatpush2.xpose.msra.mxu0 0.0
    %7114 = vmatprep.subr.mxu0 0.0
    %7115 = vmatpush2.xpose.msra.mxu0 0.0
    %7116 = vmatprep.subr.mxu0 0.0
    %7117 = vmatpush2.xpose.msra.mxu0 0.0
    %7118 = vmatprep.mubr.f32.mxu0 0.0
    %7119 = vmatmul.mubr.f32.gmra.mxu0 %v7050
    %v7120 = vpop.f32.mrf.mxu0
    %v7121 = vadd.f32 0.0, %v7120
    %v7122 = vpop.f32.mrf.mxu0
    %7123 = vdwg.mxu0
    %7124 = vrot.lane.b32.xlu0 %v6128, 112
    %v7125 = vpop.permute.xlu0 %7124
    %7126 = vrot.lane.b32.xlu0 %v6212, 112
    %v7127 = vpop.permute.xlu0 %7126
    %v7128 = vsel %vm403, %v7125, 0
    %v7130 = vsel %vm403, %v7127, 0
    %7132 = vmatprep.subr.mxu0 0.0
    %7133 = vmatpush1.xpose.msra.mxu0 0.0
    %7134 = vmatprep.subr.mxu0 0.0
    %7135 = vmatpush1.xpose.msra.mxu0 0.0
    %7136 = vmatprep.subr.mxu0 0.0
    %7137 = vmatpush1.xpose.msra.mxu0 0.0
    %7138 = vmatprep.subr.mxu0 0.0
    %7139 = vmatpush1.xpose.msra.mxu0 0.0
    %7140 = vmatprep.subr.mxu0 0.0
    %7141 = vmatpush1.xpose.msra.mxu0 0.0
    %7142 = vmatprep.subr.mxu0 0.0
    %7143 = vmatpush1.xpose.msra.mxu0 0.0
    %7144 = vmatprep.subr.mxu0 0.0
    %7145 = vmatpush1.xpose.msra.mxu0 0.0
    %7146 = vmatprep.subr.mxu0 0.0
    %7147 = vmatpush1.xpose.msra.mxu0 0.0
    %7148 = vmatprep.subr.mxu0 0.0
    %7149 = vmatpush1.xpose.msra.mxu0 0.0
    %7150 = vmatprep.subr.mxu0 0.0
    %7151 = vmatpush1.xpose.msra.mxu0 0.0
    %7152 = vmatprep.subr.mxu0 0.0
    %7153 = vmatpush1.xpose.msra.mxu0 0.0
    %7154 = vmatprep.subr.mxu0 0.0
    %7155 = vmatpush1.xpose.msra.mxu0 0.0
    %7156 = vmatprep.subr.mxu0 0.0
    %7157 = vmatpush1.xpose.msra.mxu0 0.0
    %7158 = vmatprep.subr.mxu0 0.0
    %7159 = vmatpush1.xpose.msra.mxu0 0.0
    %7160 = vmatprep.subr.mxu0 0.0
    %7161 = vmatpush1.xpose.msra.mxu0 0.0
    %7162 = vmatprep.subr.mxu0 0.0
    %7163 = vmatpush1.xpose.msra.mxu0 %v7130
    %7164 = vmatprep.subr.mxu0 0.0
    %7165 = vmatpush2.xpose.msra.mxu0 0.0
    %7166 = vmatprep.subr.mxu0 0.0
    %7167 = vmatpush2.xpose.msra.mxu0 0.0
    %7168 = vmatprep.subr.mxu0 0.0
    %7169 = vmatpush2.xpose.msra.mxu0 0.0
    %7170 = vmatprep.subr.mxu0 0.0
    %7171 = vmatpush2.xpose.msra.mxu0 0.0
    %7172 = vmatprep.subr.mxu0 0.0
    %7173 = vmatpush2.xpose.msra.mxu0 0.0
    %7174 = vmatprep.subr.mxu0 0.0
    %7175 = vmatpush2.xpose.msra.mxu0 0.0
    %7176 = vmatprep.subr.mxu0 0.0
    %7177 = vmatpush2.xpose.msra.mxu0 0.0
    %7178 = vmatprep.subr.mxu0 0.0
    %7179 = vmatpush2.xpose.msra.mxu0 0.0
    %7180 = vmatprep.subr.mxu0 0.0
    %7181 = vmatpush2.xpose.msra.mxu0 0.0
    %7182 = vmatprep.subr.mxu0 0.0
    %7183 = vmatpush2.xpose.msra.mxu0 0.0
    %7184 = vmatprep.subr.mxu0 0.0
    %7185 = vmatpush2.xpose.msra.mxu0 0.0
    %7186 = vmatprep.subr.mxu0 0.0
    %7187 = vmatpush2.xpose.msra.mxu0 0.0
    %7188 = vmatprep.subr.mxu0 0.0
    %7189 = vmatpush2.xpose.msra.mxu0 0.0
    %7190 = vmatprep.subr.mxu0 0.0
    %7191 = vmatpush2.xpose.msra.mxu0 0.0
    %7192 = vmatprep.subr.mxu0 0.0
    %7193 = vmatpush2.xpose.msra.mxu0 0.0
    %7194 = vmatprep.subr.mxu0 0.0
    %7195 = vmatpush2.xpose.msra.mxu0 0.0
    %7196 = vmatprep.mubr.f32.mxu0 0.0
    %7197 = vmatmul.mubr.f32.gmra.mxu0 %v7128
    %v7198 = vpop.f32.mrf.mxu0
    %v7199 = vadd.f32 0.0, %v7198
    %v7200 = vpop.f32.mrf.mxu0
    %7201 = vdwg.mxu0
    %v7202 = vmul.f32 %v7121, 0.35355338
    %v7203 = vmul.f32 %v7199, 0.35355338
    %v7204 = vadd.f32 %v7202, %v2451
    %v7205 = vadd.f32 %v7203, %v2455
    %v7206 = vsel %vm403, %v7204, -inf
    %7207 = vmax.xlane.f32.xlu0 %v7206
    %v7208 = vpop.xlane.xlu0 %7207
    %v7209 = vsel %vm403, %v7205, -inf
    %7210 = vmax.xlane.f32.xlu0 %v7209
    %v7211 = vpop.xlane.xlu0 %7210
    %v7212 = vsub.f32 %v7204, %v7208
    %v7213 = vsub.f32 %v7205, %v7211
    %v7214 = vmul.f32 %v7212, 1.442695
    %v7215 = vpow.pop %v7214
    %v7216 = vmul.f32 %v7213, 1.442695
    %v7217 = vpow.pop %v7216
    %v7218 = vsel %vm403, %v7215, 0.0
    %7219 = vadd.xlane.f32.xlu0 %v7218
    %v7220 = vpop.xlane.xlu0 %7219
    %v7221 = vsel %vm403, %v7217, 0.0
    %7222 = vadd.xlane.f32.xlu0 %v7221
    %v7223 = vpop.xlane.xlu0 %7222
    %v7224 = vrcp.pop %v7220
    %v7225 = vrcp.pop %v7223
    %v7226 = vmul.f32 %v7215, %v7224
    %v7227 = vmul.f32 %v7217, %v7225
    %7228 = vrot.lane.b32.xlu0 %v6207, 80
    %v7229 = vpop.permute.xlu0 %7228
    %v7232 = vsel %vm403, %v7226, 0
    %7234 = vmatprep.subr.mxu0 0.0
    %7235 = vmatpush1.msra.mxu0 0.0
    %7236 = vmatprep.subr.mxu0 0.0
    %7237 = vmatpush1.msra.mxu0 0.0
    %7238 = vmatprep.subr.mxu0 0.0
    %7239 = vmatpush1.msra.mxu0 0.0
    %7240 = vmatprep.subr.mxu0 0.0
    %7241 = vmatpush1.msra.mxu0 0.0
    %7242 = vmatprep.subr.mxu0 0.0
    %7243 = vmatpush1.msra.mxu0 0.0
    %7244 = vmatprep.subr.mxu0 0.0
    %7245 = vmatpush1.msra.mxu0 0.0
    %7246 = vmatprep.subr.mxu0 0.0
    %7247 = vmatpush1.msra.mxu0 0.0
    %7248 = vmatprep.subr.mxu0 0.0
    %7249 = vmatpush1.msra.mxu0 0.0
    %7250 = vmatprep.subr.mxu0 0.0
    %7251 = vmatpush1.msra.mxu0 0.0
    %7252 = vmatprep.subr.mxu0 0.0
    %7253 = vmatpush1.msra.mxu0 0.0
    %7254 = vmatprep.subr.mxu0 0.0
    %7255 = vmatpush1.msra.mxu0 0.0
    %7256 = vmatprep.subr.mxu0 0.0
    %7257 = vmatpush1.msra.mxu0 0.0
    %7258 = vmatprep.subr.mxu0 0.0
    %7259 = vmatpush1.msra.mxu0 0.0
    %7260 = vmatprep.subr.mxu0 0.0
    %7261 = vmatpush1.msra.mxu0 0.0
    %7262 = vmatprep.subr.mxu0 0.0
    %7263 = vmatpush1.msra.mxu0 0.0
    %7264 = vmatprep.subr.mxu0 0.0
    %7265 = vmatpush1.msra.mxu0 %v7229
    %7266 = vmatprep.subr.mxu0 0.0
    %7267 = vmatpush2.msra.mxu0 0.0
    %7268 = vmatprep.subr.mxu0 0.0
    %7269 = vmatpush2.msra.mxu0 0.0
    %7270 = vmatprep.subr.mxu0 0.0
    %7271 = vmatpush2.msra.mxu0 0.0
    %7272 = vmatprep.subr.mxu0 0.0
    %7273 = vmatpush2.msra.mxu0 0.0
    %7274 = vmatprep.subr.mxu0 0.0
    %7275 = vmatpush2.msra.mxu0 0.0
    %7276 = vmatprep.subr.mxu0 0.0
    %7277 = vmatpush2.msra.mxu0 0.0
    %7278 = vmatprep.subr.mxu0 0.0
    %7279 = vmatpush2.msra.mxu0 0.0
    %7280 = vmatprep.subr.mxu0 0.0
    %7281 = vmatpush2.msra.mxu0 0.0
    %7282 = vmatprep.subr.mxu0 0.0
    %7283 = vmatpush2.msra.mxu0 0.0
    %7284 = vmatprep.subr.mxu0 0.0
    %7285 = vmatpush2.msra.mxu0 0.0
    %7286 = vmatprep.subr.mxu0 0.0
    %7287 = vmatpush2.msra.mxu0 0.0
    %7288 = vmatprep.subr.mxu0 0.0
    %7289 = vmatpush2.msra.mxu0 0.0
    %7290 = vmatprep.subr.mxu0 0.0
    %7291 = vmatpush2.msra.mxu0 0.0
    %7292 = vmatprep.subr.mxu0 0.0
    %7293 = vmatpush2.msra.mxu0 0.0
    %7294 = vmatprep.subr.mxu0 0.0
    %7295 = vmatpush2.msra.mxu0 0.0
    %7296 = vmatprep.subr.mxu0 0.0
    %7297 = vmatpush2.msra.mxu0 0.0
    %7298 = vmatprep.mubr.f32.mxu0 0.0
    %7299 = vmatmul.mubr.f32.gmra.mxu0 %v7232
    %v7300 = vpop.f32.mrf.mxu0
    %v7301 = vadd.f32 0.0, %v7300
    %v7302 = vpop.f32.mrf.mxu0
    %7303 = vdwg.mxu0
    %7304 = vrot.lane.b32.xlu0 %v6212, 80
    %v7305 = vpop.permute.xlu0 %7304
    %v7308 = vsel %vm403, %v7227, 0
    %7310 = vmatprep.subr.mxu0 0.0
    %7311 = vmatpush1.msra.mxu0 0.0
    %7312 = vmatprep.subr.mxu0 0.0
    %7313 = vmatpush1.msra.mxu0 0.0
    %7314 = vmatprep.subr.mxu0 0.0
    %7315 = vmatpush1.msra.mxu0 0.0
    %7316 = vmatprep.subr.mxu0 0.0
    %7317 = vmatpush1.msra.mxu0 0.0
    %7318 = vmatprep.subr.mxu0 0.0
    %7319 = vmatpush1.msra.mxu0 0.0
    %7320 = vmatprep.subr.mxu0 0.0
    %7321 = vmatpush1.msra.mxu0 0.0
    %7322 = vmatprep.subr.mxu0 0.0
    %7323 = vmatpush1.msra.mxu0 0.0
    %7324 = vmatprep.subr.mxu0 0.0
    %7325 = vmatpush1.msra.mxu0 0.0
    %7326 = vmatprep.subr.mxu0 0.0
    %7327 = vmatpush1.msra.mxu0 0.0
    %7328 = vmatprep.subr.mxu0 0.0
    %7329 = vmatpush1.msra.mxu0 0.0
    %7330 = vmatprep.subr.mxu0 0.0
    %7331 = vmatpush1.msra.mxu0 0.0
    %7332 = vmatprep.subr.mxu0 0.0
    %7333 = vmatpush1.msra.mxu0 0.0
    %7334 = vmatprep.subr.mxu0 0.0
    %7335 = vmatpush1.msra.mxu0 0.0
    %7336 = vmatprep.subr.mxu0 0.0
    %7337 = vmatpush1.msra.mxu0 0.0
    %7338 = vmatprep.subr.mxu0 0.0
    %7339 = vmatpush1.msra.mxu0 0.0
    %7340 = vmatprep.subr.mxu0 0.0
    %7341 = vmatpush1.msra.mxu0 %v7305
    %7342 = vmatprep.subr.mxu0 0.0
    %7343 = vmatpush2.msra.mxu0 0.0
    %7344 = vmatprep.subr.mxu0 0.0
    %7345 = vmatpush2.msra.mxu0 0.0
    %7346 = vmatprep.subr.mxu0 0.0
    %7347 = vmatpush2.msra.mxu0 0.0
    %7348 = vmatprep.subr.mxu0 0.0
    %7349 = vmatpush2.msra.mxu0 0.0
    %7350 = vmatprep.subr.mxu0 0.0
    %7351 = vmatpush2.msra.mxu0 0.0
    %7352 = vmatprep.subr.mxu0 0.0
    %7353 = vmatpush2.msra.mxu0 0.0
    %7354 = vmatprep.subr.mxu0 0.0
    %7355 = vmatpush2.msra.mxu0 0.0
    %7356 = vmatprep.subr.mxu0 0.0
    %7357 = vmatpush2.msra.mxu0 0.0
    %7358 = vmatprep.subr.mxu0 0.0
    %7359 = vmatpush2.msra.mxu0 0.0
    %7360 = vmatprep.subr.mxu0 0.0
    %7361 = vmatpush2.msra.mxu0 0.0
    %7362 = vmatprep.subr.mxu0 0.0
    %7363 = vmatpush2.msra.mxu0 0.0
    %7364 = vmatprep.subr.mxu0 0.0
    %7365 = vmatpush2.msra.mxu0 0.0
    %7366 = vmatprep.subr.mxu0 0.0
    %7367 = vmatpush2.msra.mxu0 0.0
    %7368 = vmatprep.subr.mxu0 0.0
    %7369 = vmatpush2.msra.mxu0 0.0
    %7370 = vmatprep.subr.mxu0 0.0
    %7371 = vmatpush2.msra.mxu0 0.0
    %7372 = vmatprep.subr.mxu0 0.0
    %7373 = vmatpush2.msra.mxu0 0.0
    %7374 = vmatprep.mubr.f32.mxu0 0.0
    %7375 = vmatmul.mubr.f32.gmra.mxu0 %v7308
    %v7376 = vpop.f32.mrf.mxu0
    %v7377 = vadd.f32 0.0, %v7376
    %v7378 = vpop.f32.mrf.mxu0
    %7379 = vdwg.mxu0
    %v7381 = vsel %vm403, %v7301, 0
    %v7384 = vsel %vm403, %v7377, 0
    %7386 = vmatprep.subr.mxu0 0.0
    %7387 = vmatpush1.msra.mxu0 0.0
    %7388 = vmatprep.subr.mxu0 0.0
    %7389 = vmatpush1.msra.mxu0 0.0
    %7390 = vmatprep.subr.mxu0 0.0
    %7391 = vmatpush1.msra.mxu0 0.0
    %7392 = vmatprep.subr.mxu0 0.0
    %7393 = vmatpush1.msra.mxu0 0.0
    %7394 = vmatprep.subr.mxu0 0.0
    %7395 = vmatpush1.msra.mxu0 0.0
    %7396 = vmatprep.subr.mxu0 0.0
    %7397 = vmatpush1.msra.mxu0 0.0
    %7398 = vmatprep.subr.mxu0 0.0
    %7399 = vmatpush1.msra.mxu0 0.0
    %7400 = vmatprep.subr.mxu0 0.0
    %7401 = vmatpush1.msra.mxu0 0.0
    %7402 = vmatprep.subr.mxu0 0.0
    %7403 = vmatpush1.msra.mxu0 0.0
    %7404 = vmatprep.subr.mxu0 0.0
    %7405 = vmatpush1.msra.mxu0 0.0
    %7406 = vmatprep.subr.mxu0 0.0
    %7407 = vmatpush1.msra.mxu0 0.0
    %7408 = vmatprep.subr.mxu0 0.0
    %7409 = vmatpush1.msra.mxu0 0.0
    %7410 = vmatprep.subr.mxu0 0.0
    %7411 = vmatpush1.msra.mxu0 0.0
    %7412 = vmatprep.subr.mxu0 0.0
    %7413 = vmatpush1.msra.mxu0 0.0
    %7414 = vmatprep.subr.mxu0 0.0
    %7415 = vmatpush1.msra.mxu0 0.0
    %7416 = vmatprep.subr.mxu0 0.0
    %7417 = vmatpush1.msra.mxu0 %v6218
    %7418 = vmatprep.subr.mxu0 0.0
    %7419 = vmatpush2.msra.mxu0 0.0
    %7420 = vmatprep.subr.mxu0 0.0
    %7421 = vmatpush2.msra.mxu0 0.0
    %7422 = vmatprep.subr.mxu0 0.0
    %7423 = vmatpush2.msra.mxu0 0.0
    %7424 = vmatprep.subr.mxu0 0.0
    %7425 = vmatpush2.msra.mxu0 0.0
    %7426 = vmatprep.subr.mxu0 0.0
    %7427 = vmatpush2.msra.mxu0 0.0
    %7428 = vmatprep.subr.mxu0 0.0
    %7429 = vmatpush2.msra.mxu0 0.0
    %7430 = vmatprep.subr.mxu0 0.0
    %7431 = vmatpush2.msra.mxu0 0.0
    %7432 = vmatprep.subr.mxu0 0.0
    %7433 = vmatpush2.msra.mxu0 0.0
    %7434 = vmatprep.subr.mxu0 0.0
    %7435 = vmatpush2.msra.mxu0 0.0
    %7436 = vmatprep.subr.mxu0 0.0
    %7437 = vmatpush2.msra.mxu0 0.0
    %7438 = vmatprep.subr.mxu0 0.0
    %7439 = vmatpush2.msra.mxu0 0.0
    %7440 = vmatprep.subr.mxu0 0.0
    %7441 = vmatpush2.msra.mxu0 0.0
    %7442 = vmatprep.subr.mxu0 0.0
    %7443 = vmatpush2.msra.mxu0 0.0
    %7444 = vmatprep.subr.mxu0 0.0
    %7445 = vmatpush2.msra.mxu0 0.0
    %7446 = vmatprep.subr.mxu0 0.0
    %7447 = vmatpush2.msra.mxu0 0.0
    %7448 = vmatprep.subr.mxu0 0.0
    %7449 = vmatpush2.msra.mxu0 0.0
    %7450 = vmatprep.mubr.f32.mxu0 0.0
    %7451 = vmatmul.mubr.f32.gmra.mxu0 %v7381
    %v7452 = vpop.f32.mrf.mxu0
    %v7453 = vadd.f32 0.0, %v7452
    %v7454 = vpop.f32.mrf.mxu0
    %7455 = vmatprep.mubr.f32.mxu0 0.0
    %7456 = vmatmul.mubr.f32.gmra.mxu0 %v7384
    %v7457 = vpop.f32.mrf.mxu0
    %v7458 = vadd.f32 0.0, %v7457
    %v7459 = vpop.f32.mrf.mxu0
    %7460 = vdwg.mxu0
    %v7461 = vadd.f32 %v7038, %v7453
    %v7462 = vadd.f32 %v7043, %v7458
    %7463 = vrot.lane.b32.xlu0 %v6123, 104
    %v7464 = vpop.permute.xlu0 %7463
    %7465 = vrot.lane.b32.xlu0 %v6207, 104
    %v7466 = vpop.permute.xlu0 %7465
    %v7467 = vsel %vm403, %v7464, 0
    %v7469 = vsel %vm403, %v7466, 0
    %7471 = vmatprep.subr.mxu0 0.0
    %7472 = vmatpush1.xpose.msra.mxu0 0.0
    %7473 = vmatprep.subr.mxu0 0.0
    %7474 = vmatpush1.xpose.msra.mxu0 0.0
    %7475 = vmatprep.subr.mxu0 0.0
    %7476 = vmatpush1.xpose.msra.mxu0 0.0
    %7477 = vmatprep.subr.mxu0 0.0
    %7478 = vmatpush1.xpose.msra.mxu0 0.0
    %7479 = vmatprep.subr.mxu0 0.0
    %7480 = vmatpush1.xpose.msra.mxu0 0.0
    %7481 = vmatprep.subr.mxu0 0.0
    %7482 = vmatpush1.xpose.msra.mxu0 0.0
    %7483 = vmatprep.subr.mxu0 0.0
    %7484 = vmatpush1.xpose.msra.mxu0 0.0
    %7485 = vmatprep.subr.mxu0 0.0
    %7486 = vmatpush1.xpose.msra.mxu0 0.0
    %7487 = vmatprep.subr.mxu0 0.0
    %7488 = vmatpush1.xpose.msra.mxu0 0.0
    %7489 = vmatprep.subr.mxu0 0.0
    %7490 = vmatpush1.xpose.msra.mxu0 0.0
    %7491 = vmatprep.subr.mxu0 0.0
    %7492 = vmatpush1.xpose.msra.mxu0 0.0
    %7493 = vmatprep.subr.mxu0 0.0
    %7494 = vmatpush1.xpose.msra.mxu0 0.0
    %7495 = vmatprep.subr.mxu0 0.0
    %7496 = vmatpush1.xpose.msra.mxu0 0.0
    %7497 = vmatprep.subr.mxu0 0.0
    %7498 = vmatpush1.xpose.msra.mxu0 0.0
    %7499 = vmatprep.subr.mxu0 0.0
    %7500 = vmatpush1.xpose.msra.mxu0 0.0
    %7501 = vmatprep.subr.mxu0 0.0
    %7502 = vmatpush1.xpose.msra.mxu0 %v7469
    %7503 = vmatprep.subr.mxu0 0.0
    %7504 = vmatpush2.xpose.msra.mxu0 0.0
    %7505 = vmatprep.subr.mxu0 0.0
    %7506 = vmatpush2.xpose.msra.mxu0 0.0
    %7507 = vmatprep.subr.mxu0 0.0
    %7508 = vmatpush2.xpose.msra.mxu0 0.0
    %7509 = vmatprep.subr.mxu0 0.0
    %7510 = vmatpush2.xpose.msra.mxu0 0.0
    %7511 = vmatprep.subr.mxu0 0.0
    %7512 = vmatpush2.xpose.msra.mxu0 0.0
    %7513 = vmatprep.subr.mxu0 0.0
    %7514 = vmatpush2.xpose.msra.mxu0 0.0
    %7515 = vmatprep.subr.mxu0 0.0
    %7516 = vmatpush2.xpose.msra.mxu0 0.0
    %7517 = vmatprep.subr.mxu0 0.0
    %7518 = vmatpush2.xpose.msra.mxu0 0.0
    %7519 = vmatprep.subr.mxu0 0.0
    %7520 = vmatpush2.xpose.msra.mxu0 0.0
    %7521 = vmatprep.subr.mxu0 0.0
    %7522 = vmatpush2.xpose.msra.mxu0 0.0
    %7523 = vmatprep.subr.mxu0 0.0
    %7524 = vmatpush2.xpose.msra.mxu0 0.0
    %7525 = vmatprep.subr.mxu0 0.0
    %7526 = vmatpush2.xpose.msra.mxu0 0.0
    %7527 = vmatprep.subr.mxu0 0.0
    %7528 = vmatpush2.xpose.msra.mxu0 0.0
    %7529 = vmatprep.subr.mxu0 0.0
    %7530 = vmatpush2.xpose.msra.mxu0 0.0
    %7531 = vmatprep.subr.mxu0 0.0
    %7532 = vmatpush2.xpose.msra.mxu0 0.0
    %7533 = vmatprep.subr.mxu0 0.0
    %7534 = vmatpush2.xpose.msra.mxu0 0.0
    %7535 = vmatprep.mubr.f32.mxu0 0.0
    %7536 = vmatmul.mubr.f32.gmra.mxu0 %v7467
    %v7537 = vpop.f32.mrf.mxu0
    %v7538 = vadd.f32 0.0, %v7537
    %v7539 = vpop.f32.mrf.mxu0
    %7540 = vdwg.mxu0
    %7541 = vrot.lane.b32.xlu0 %v6128, 104
    %v7542 = vpop.permute.xlu0 %7541
    %7543 = vrot.lane.b32.xlu0 %v6212, 104
    %v7544 = vpop.permute.xlu0 %7543
    %v7545 = vsel %vm403, %v7542, 0
    %v7547 = vsel %vm403, %v7544, 0
    %7549 = vmatprep.subr.mxu0 0.0
    %7550 = vmatpush1.xpose.msra.mxu0 0.0
    %7551 = vmatprep.subr.mxu0 0.0
    %7552 = vmatpush1.xpose.msra.mxu0 0.0
    %7553 = vmatprep.subr.mxu0 0.0
    %7554 = vmatpush1.xpose.msra.mxu0 0.0
    %7555 = vmatprep.subr.mxu0 0.0
    %7556 = vmatpush1.xpose.msra.mxu0 0.0
    %7557 = vmatprep.subr.mxu0 0.0
    %7558 = vmatpush1.xpose.msra.mxu0 0.0
    %7559 = vmatprep.subr.mxu0 0.0
    %7560 = vmatpush1.xpose.msra.mxu0 0.0
    %7561 = vmatprep.subr.mxu0 0.0
    %7562 = vmatpush1.xpose.msra.mxu0 0.0
    %7563 = vmatprep.subr.mxu0 0.0
    %7564 = vmatpush1.xpose.msra.mxu0 0.0
    %7565 = vmatprep.subr.mxu0 0.0
    %7566 = vmatpush1.xpose.msra.mxu0 0.0
    %7567 = vmatprep.subr.mxu0 0.0
    %7568 = vmatpush1.xpose.msra.mxu0 0.0
    %7569 = vmatprep.subr.mxu0 0.0
    %7570 = vmatpush1.xpose.msra.mxu0 0.0
    %7571 = vmatprep.subr.mxu0 0.0
    %7572 = vmatpush1.xpose.msra.mxu0 0.0
    %7573 = vmatprep.subr.mxu0 0.0
    %7574 = vmatpush1.xpose.msra.mxu0 0.0
    %7575 = vmatprep.subr.mxu0 0.0
    %7576 = vmatpush1.xpose.msra.mxu0 0.0
    %7577 = vmatprep.subr.mxu0 0.0
    %7578 = vmatpush1.xpose.msra.mxu0 0.0
    %7579 = vmatprep.subr.mxu0 0.0
    %7580 = vmatpush1.xpose.msra.mxu0 %v7547
    %7581 = vmatprep.subr.mxu0 0.0
    %7582 = vmatpush2.xpose.msra.mxu0 0.0
    %7583 = vmatprep.subr.mxu0 0.0
    %7584 = vmatpush2.xpose.msra.mxu0 0.0
    %7585 = vmatprep.subr.mxu0 0.0
    %7586 = vmatpush2.xpose.msra.mxu0 0.0
    %7587 = vmatprep.subr.mxu0 0.0
    %7588 = vmatpush2.xpose.msra.mxu0 0.0
    %7589 = vmatprep.subr.mxu0 0.0
    %7590 = vmatpush2.xpose.msra.mxu0 0.0
    %7591 = vmatprep.subr.mxu0 0.0
    %7592 = vmatpush2.xpose.msra.mxu0 0.0
    %7593 = vmatprep.subr.mxu0 0.0
    %7594 = vmatpush2.xpose.msra.mxu0 0.0
    %7595 = vmatprep.subr.mxu0 0.0
    %7596 = vmatpush2.xpose.msra.mxu0 0.0
    %7597 = vmatprep.subr.mxu0 0.0
    %7598 = vmatpush2.xpose.msra.mxu0 0.0
    %7599 = vmatprep.subr.mxu0 0.0
    %7600 = vmatpush2.xpose.msra.mxu0 0.0
    %7601 = vmatprep.subr.mxu0 0.0
    %7602 = vmatpush2.xpose.msra.mxu0 0.0
    %7603 = vmatprep.subr.mxu0 0.0
    %7604 = vmatpush2.xpose.msra.mxu0 0.0
    %7605 = vmatprep.subr.mxu0 0.0
    %7606 = vmatpush2.xpose.msra.mxu0 0.0
    %7607 = vmatprep.subr.mxu0 0.0
    %7608 = vmatpush2.xpose.msra.mxu0 0.0
    %7609 = vmatprep.subr.mxu0 0.0
    %7610 = vmatpush2.xpose.msra.mxu0 0.0
    %7611 = vmatprep.subr.mxu0 0.0
    %7612 = vmatpush2.xpose.msra.mxu0 0.0
    %7613 = vmatprep.mubr.f32.mxu0 0.0
    %7614 = vmatmul.mubr.f32.gmra.mxu0 %v7545
    %v7615 = vpop.f32.mrf.mxu0
    %v7616 = vadd.f32 0.0, %v7615
    %v7617 = vpop.f32.mrf.mxu0
    %7618 = vdwg.mxu0
    %v7619 = vmul.f32 %v7538, 0.35355338
    %v7620 = vmul.f32 %v7616, 0.35355338
    %v7621 = vadd.f32 %v7619, %v2451
    %v7622 = vadd.f32 %v7620, %v2455
    %v7623 = vsel %vm403, %v7621, -inf
    %7624 = vmax.xlane.f32.xlu0 %v7623
    %v7625 = vpop.xlane.xlu0 %7624
    %v7626 = vsel %vm403, %v7622, -inf
    %7627 = vmax.xlane.f32.xlu0 %v7626
    %v7628 = vpop.xlane.xlu0 %7627
    %v7629 = vsub.f32 %v7621, %v7625
    %v7630 = vsub.f32 %v7622, %v7628
    %v7631 = vmul.f32 %v7629, 1.442695
    %v7632 = vpow.pop %v7631
    %v7633 = vmul.f32 %v7630, 1.442695
    %v7634 = vpow.pop %v7633
    %v7635 = vsel %vm403, %v7632, 0.0
    %7636 = vadd.xlane.f32.xlu0 %v7635
    %v7637 = vpop.xlane.xlu0 %7636
    %v7638 = vsel %vm403, %v7634, 0.0
    %7639 = vadd.xlane.f32.xlu0 %v7638
    %v7640 = vpop.xlane.xlu0 %7639
    %v7641 = vrcp.pop %v7637
    %v7642 = vrcp.pop %v7640
    %v7643 = vmul.f32 %v7632, %v7641
    %v7644 = vmul.f32 %v7634, %v7642
    %7645 = vrot.lane.b32.xlu0 %v6207, 72
    %v7646 = vpop.permute.xlu0 %7645
    %v7649 = vsel %vm403, %v7643, 0
    %7651 = vmatprep.subr.mxu0 0.0
    %7652 = vmatpush1.msra.mxu0 0.0
    %7653 = vmatprep.subr.mxu0 0.0
    %7654 = vmatpush1.msra.mxu0 0.0
    %7655 = vmatprep.subr.mxu0 0.0
    %7656 = vmatpush1.msra.mxu0 0.0
    %7657 = vmatprep.subr.mxu0 0.0
    %7658 = vmatpush1.msra.mxu0 0.0
    %7659 = vmatprep.subr.mxu0 0.0
    %7660 = vmatpush1.msra.mxu0 0.0
    %7661 = vmatprep.subr.mxu0 0.0
    %7662 = vmatpush1.msra.mxu0 0.0
    %7663 = vmatprep.subr.mxu0 0.0
    %7664 = vmatpush1.msra.mxu0 0.0
    %7665 = vmatprep.subr.mxu0 0.0
    %7666 = vmatpush1.msra.mxu0 0.0
    %7667 = vmatprep.subr.mxu0 0.0
    %7668 = vmatpush1.msra.mxu0 0.0
    %7669 = vmatprep.subr.mxu0 0.0
    %7670 = vmatpush1.msra.mxu0 0.0
    %7671 = vmatprep.subr.mxu0 0.0
    %7672 = vmatpush1.msra.mxu0 0.0
    %7673 = vmatprep.subr.mxu0 0.0
    %7674 = vmatpush1.msra.mxu0 0.0
    %7675 = vmatprep.subr.mxu0 0.0
    %7676 = vmatpush1.msra.mxu0 0.0
    %7677 = vmatprep.subr.mxu0 0.0
    %7678 = vmatpush1.msra.mxu0 0.0
    %7679 = vmatprep.subr.mxu0 0.0
    %7680 = vmatpush1.msra.mxu0 0.0
    %7681 = vmatprep.subr.mxu0 0.0
    %7682 = vmatpush1.msra.mxu0 %v7646
    %7683 = vmatprep.subr.mxu0 0.0
    %7684 = vmatpush2.msra.mxu0 0.0
    %7685 = vmatprep.subr.mxu0 0.0
    %7686 = vmatpush2.msra.mxu0 0.0
    %7687 = vmatprep.subr.mxu0 0.0
    %7688 = vmatpush2.msra.mxu0 0.0
    %7689 = vmatprep.subr.mxu0 0.0
    %7690 = vmatpush2.msra.mxu0 0.0
    %7691 = vmatprep.subr.mxu0 0.0
    %7692 = vmatpush2.msra.mxu0 0.0
    %7693 = vmatprep.subr.mxu0 0.0
    %7694 = vmatpush2.msra.mxu0 0.0
    %7695 = vmatprep.subr.mxu0 0.0
    %7696 = vmatpush2.msra.mxu0 0.0
    %7697 = vmatprep.subr.mxu0 0.0
    %7698 = vmatpush2.msra.mxu0 0.0
    %7699 = vmatprep.subr.mxu0 0.0
    %7700 = vmatpush2.msra.mxu0 0.0
    %7701 = vmatprep.subr.mxu0 0.0
    %7702 = vmatpush2.msra.mxu0 0.0
    %7703 = vmatprep.subr.mxu0 0.0
    %7704 = vmatpush2.msra.mxu0 0.0
    %7705 = vmatprep.subr.mxu0 0.0
    %7706 = vmatpush2.msra.mxu0 0.0
    %7707 = vmatprep.subr.mxu0 0.0
    %7708 = vmatpush2.msra.mxu0 0.0
    %7709 = vmatprep.subr.mxu0 0.0
    %7710 = vmatpush2.msra.mxu0 0.0
    %7711 = vmatprep.subr.mxu0 0.0
    %7712 = vmatpush2.msra.mxu0 0.0
    %7713 = vmatprep.subr.mxu0 0.0
    %7714 = vmatpush2.msra.mxu0 0.0
    %7715 = vmatprep.mubr.f32.mxu0 0.0
    %7716 = vmatmul.mubr.f32.gmra.mxu0 %v7649
    %v7717 = vpop.f32.mrf.mxu0
    %v7718 = vadd.f32 0.0, %v7717
    %v7719 = vpop.f32.mrf.mxu0
    %7720 = vdwg.mxu0
    %7721 = vrot.lane.b32.xlu0 %v6212, 72
    %v7722 = vpop.permute.xlu0 %7721
    %v7725 = vsel %vm403, %v7644, 0
    %7727 = vmatprep.subr.mxu0 0.0
    %7728 = vmatpush1.msra.mxu0 0.0
    %7729 = vmatprep.subr.mxu0 0.0
    %7730 = vmatpush1.msra.mxu0 0.0
    %7731 = vmatprep.subr.mxu0 0.0
    %7732 = vmatpush1.msra.mxu0 0.0
    %7733 = vmatprep.subr.mxu0 0.0
    %7734 = vmatpush1.msra.mxu0 0.0
    %7735 = vmatprep.subr.mxu0 0.0
    %7736 = vmatpush1.msra.mxu0 0.0
    %7737 = vmatprep.subr.mxu0 0.0
    %7738 = vmatpush1.msra.mxu0 0.0
    %7739 = vmatprep.subr.mxu0 0.0
    %7740 = vmatpush1.msra.mxu0 0.0
    %7741 = vmatprep.subr.mxu0 0.0
    %7742 = vmatpush1.msra.mxu0 0.0
    %7743 = vmatprep.subr.mxu0 0.0
    %7744 = vmatpush1.msra.mxu0 0.0
    %7745 = vmatprep.subr.mxu0 0.0
    %7746 = vmatpush1.msra.mxu0 0.0
    %7747 = vmatprep.subr.mxu0 0.0
    %7748 = vmatpush1.msra.mxu0 0.0
    %7749 = vmatprep.subr.mxu0 0.0
    %7750 = vmatpush1.msra.mxu0 0.0
    %7751 = vmatprep.subr.mxu0 0.0
    %7752 = vmatpush1.msra.mxu0 0.0
    %7753 = vmatprep.subr.mxu0 0.0
    %7754 = vmatpush1.msra.mxu0 0.0
    %7755 = vmatprep.subr.mxu0 0.0
    %7756 = vmatpush1.msra.mxu0 0.0
    %7757 = vmatprep.subr.mxu0 0.0
    %7758 = vmatpush1.msra.mxu0 %v7722
    %7759 = vmatprep.subr.mxu0 0.0
    %7760 = vmatpush2.msra.mxu0 0.0
    %7761 = vmatprep.subr.mxu0 0.0
    %7762 = vmatpush2.msra.mxu0 0.0
    %7763 = vmatprep.subr.mxu0 0.0
    %7764 = vmatpush2.msra.mxu0 0.0
    %7765 = vmatprep.subr.mxu0 0.0
    %7766 = vmatpush2.msra.mxu0 0.0
    %7767 = vmatprep.subr.mxu0 0.0
    %7768 = vmatpush2.msra.mxu0 0.0
    %7769 = vmatprep.subr.mxu0 0.0
    %7770 = vmatpush2.msra.mxu0 0.0
    %7771 = vmatprep.subr.mxu0 0.0
    %7772 = vmatpush2.msra.mxu0 0.0
    %7773 = vmatprep.subr.mxu0 0.0
    %7774 = vmatpush2.msra.mxu0 0.0
    %7775 = vmatprep.subr.mxu0 0.0
    %7776 = vmatpush2.msra.mxu0 0.0
    %7777 = vmatprep.subr.mxu0 0.0
    %7778 = vmatpush2.msra.mxu0 0.0
    %7779 = vmatprep.subr.mxu0 0.0
    %7780 = vmatpush2.msra.mxu0 0.0
    %7781 = vmatprep.subr.mxu0 0.0
    %7782 = vmatpush2.msra.mxu0 0.0
    %7783 = vmatprep.subr.mxu0 0.0
    %7784 = vmatpush2.msra.mxu0 0.0
    %7785 = vmatprep.subr.mxu0 0.0
    %7786 = vmatpush2.msra.mxu0 0.0
    %7787 = vmatprep.subr.mxu0 0.0
    %7788 = vmatpush2.msra.mxu0 0.0
    %7789 = vmatprep.subr.mxu0 0.0
    %7790 = vmatpush2.msra.mxu0 0.0
    %7791 = vmatprep.mubr.f32.mxu0 0.0
    %7792 = vmatmul.mubr.f32.gmra.mxu0 %v7725
    %v7793 = vpop.f32.mrf.mxu0
    %v7794 = vadd.f32 0.0, %v7793
    %v7795 = vpop.f32.mrf.mxu0
    %7796 = vdwg.mxu0
    %v7798 = vsel %vm403, %v7718, 0
    %v7801 = vsel %vm403, %v7794, 0
    %7803 = vmatprep.subr.mxu0 0.0
    %7804 = vmatpush1.msra.mxu0 0.0
    %7805 = vmatprep.subr.mxu0 0.0
    %7806 = vmatpush1.msra.mxu0 0.0
    %7807 = vmatprep.subr.mxu0 0.0
    %7808 = vmatpush1.msra.mxu0 0.0
    %7809 = vmatprep.subr.mxu0 0.0
    %7810 = vmatpush1.msra.mxu0 0.0
    %7811 = vmatprep.subr.mxu0 0.0
    %7812 = vmatpush1.msra.mxu0 0.0
    %7813 = vmatprep.subr.mxu0 0.0
    %7814 = vmatpush1.msra.mxu0 0.0
    %7815 = vmatprep.subr.mxu0 0.0
    %7816 = vmatpush1.msra.mxu0 0.0
    %7817 = vmatprep.subr.mxu0 0.0
    %7818 = vmatpush1.msra.mxu0 0.0
    %7819 = vmatprep.subr.mxu0 0.0
    %7820 = vmatpush1.msra.mxu0 0.0
    %7821 = vmatprep.subr.mxu0 0.0
    %7822 = vmatpush1.msra.mxu0 0.0
    %7823 = vmatprep.subr.mxu0 0.0
    %7824 = vmatpush1.msra.mxu0 0.0
    %7825 = vmatprep.subr.mxu0 0.0
    %7826 = vmatpush1.msra.mxu0 0.0
    %7827 = vmatprep.subr.mxu0 0.0
    %7828 = vmatpush1.msra.mxu0 0.0
    %7829 = vmatprep.subr.mxu0 0.0
    %7830 = vmatpush1.msra.mxu0 0.0
    %7831 = vmatprep.subr.mxu0 0.0
    %7832 = vmatpush1.msra.mxu0 0.0
    %7833 = vmatprep.subr.mxu0 0.0
    %7834 = vmatpush1.msra.mxu0 %v6219
    %7835 = vmatprep.subr.mxu0 0.0
    %7836 = vmatpush2.msra.mxu0 0.0
    %7837 = vmatprep.subr.mxu0 0.0
    %7838 = vmatpush2.msra.mxu0 0.0
    %7839 = vmatprep.subr.mxu0 0.0
    %7840 = vmatpush2.msra.mxu0 0.0
    %7841 = vmatprep.subr.mxu0 0.0
    %7842 = vmatpush2.msra.mxu0 0.0
    %7843 = vmatprep.subr.mxu0 0.0
    %7844 = vmatpush2.msra.mxu0 0.0
    %7845 = vmatprep.subr.mxu0 0.0
    %7846 = vmatpush2.msra.mxu0 0.0
    %7847 = vmatprep.subr.mxu0 0.0
    %7848 = vmatpush2.msra.mxu0 0.0
    %7849 = vmatprep.subr.mxu0 0.0
    %7850 = vmatpush2.msra.mxu0 0.0
    %7851 = vmatprep.subr.mxu0 0.0
    %7852 = vmatpush2.msra.mxu0 0.0
    %7853 = vmatprep.subr.mxu0 0.0
    %7854 = vmatpush2.msra.mxu0 0.0
    %7855 = vmatprep.subr.mxu0 0.0
    %7856 = vmatpush2.msra.mxu0 0.0
    %7857 = vmatprep.subr.mxu0 0.0
    %7858 = vmatpush2.msra.mxu0 0.0
    %7859 = vmatprep.subr.mxu0 0.0
    %7860 = vmatpush2.msra.mxu0 0.0
    %7861 = vmatprep.subr.mxu0 0.0
    %7862 = vmatpush2.msra.mxu0 0.0
    %7863 = vmatprep.subr.mxu0 0.0
    %7864 = vmatpush2.msra.mxu0 0.0
    %7865 = vmatprep.subr.mxu0 0.0
    %7866 = vmatpush2.msra.mxu0 0.0
    %7867 = vmatprep.mubr.f32.mxu0 0.0
    %7868 = vmatmul.mubr.f32.gmra.mxu0 %v7798
    %v7869 = vpop.f32.mrf.mxu0
    %v7870 = vadd.f32 0.0, %v7869
    %v7871 = vpop.f32.mrf.mxu0
    %7872 = vmatprep.mubr.f32.mxu0 0.0
    %7873 = vmatmul.mubr.f32.gmra.mxu0 %v7801
    %v7874 = vpop.f32.mrf.mxu0
    %v7875 = vadd.f32 0.0, %v7874
    %v7876 = vpop.f32.mrf.mxu0
    %7877 = vdwg.mxu0
    %v7878 = vadd.f32 %v7461, %v7870
    %v7879 = vadd.f32 %v7462, %v7875
    %v7880 = vlaneseq
    %v7881 = vshrl.u32 %v7880, 7
    %v7882 = vsub.s32 6, %v7881
    %v7883 = vrot.slane %v4236, %v7882
    %v7884 = vadd.f32 %v7878, %v7883
    %v7885 = vadd.f32 %v7879, %v7883
    %v7886 = vadd.f32 %v6039, %v7884
    %v7887 = vadd.f32 %v6040, %v7885
    %v7888 = vsel %vm314, %v7886, 0.0
    %7889 = vadd.xlane.f32.xlu0 %v7888
    %v7890 = vpop.xlane.xlu0 %7889
    %v7891 = vsel %vm314, %v7887, 0.0
    %7892 = vadd.xlane.f32.xlu0 %v7891
    %v7893 = vpop.xlane.xlu0 %7892
    %v7894 = vmul.f32 %v7890, %v2077
    %v7895 = vmul.f32 %v7893, %v2077
    %v7896 = vsub.f32 %v7886, %v7894
    %v7897 = vsub.f32 %v7887, %v7895
    %v7898 = vmul.f32 %v7896, %v7896
    %v7899 = vmul.f32 %v7897, %v7897
    %v7900 = vsel %vm314, %v7898, 0.0
    %7901 = vadd.xlane.f32.xlu0 %v7900
    %v7902 = vpop.xlane.xlu0 %7901
    %v7903 = vsel %vm314, %v7899, 0.0
    %7904 = vadd.xlane.f32.xlu0 %v7903
    %v7905 = vpop.xlane.xlu0 %7904
    %v7906 = vmul.f32 %v7902, %v2077
    %v7907 = vmul.f32 %v7905, %v2077
    %v7908 = vadd.f32 %v7906, 1e-05
    %v7909 = vadd.f32 %v7907, 1e-05
    %v7910 = vrsqrt.pop %v7908
    %v7911 = vrsqrt.pop %v7909
    %v7912 = vmul.f32 %v7896, %v7910
    %v7913 = vmul.f32 %v7897, %v7911
    %v7914 = vlaneseq
    %v7915 = vshrl.u32 %v7914, 7
    %v7916 = vsub.s32 7, %v7915
    %v7917 = vrot.slane %v4236, %v7916
    %v7918 = vmul.f32 %v7912, %v7917
    %v7919 = vmul.f32 %v7913, %v7917
    %v7920 = vlaneseq
    %v7921 = vshrl.u32 %v7920, 7
    %v7922 = vsub.s32 0, %v7921
    %v7923 = vrot.slane %v4237, %v7922
    %v7924 = vadd.f32 %v7918, %v7923
    %v7925 = vadd.f32 %v7919, %v7923
    %s7926 = scalar_lea.vmem %s13, 32
    %v7927 = vld [vmem:[%s7926] sm:$0xff]
    %v7928 = vld [vmem:[%s7926 + $0x8] sm:$0xff]
    %v7929 = vld [vmem:[%s7926 + $0x10] sm:$0xff]
    %v7930 = vld [vmem:[%s7926 + $0x18] sm:$0xff]
    %v7931 = vlaneseq
    %v7932 = vshrl.u32 %v7931, 7
    %v7933 = vsub.s32 1, %v7932
    %v7934 = vrot.slane %v4237, %v7933
    %v7936 = vsel %vm314, %v7924, 0
    %v7939 = vsel %vm314, %v7925, 0
    %7941 = vmatprep.subr.mxu0 0.0
    %7942 = vmatpush1.msra.mxu0 0.0
    %7943 = vmatprep.subr.mxu0 0.0
    %7944 = vmatpush1.msra.mxu0 0.0
    %7945 = vmatprep.subr.mxu0 0.0
    %7946 = vmatpush1.msra.mxu0 0.0
    %7947 = vmatprep.subr.mxu0 0.0
    %7948 = vmatpush1.msra.mxu0 0.0
    %7949 = vmatprep.subr.mxu0 0.0
    %7950 = vmatpush1.msra.mxu0 0.0
    %7951 = vmatprep.subr.mxu0 0.0
    %7952 = vmatpush1.msra.mxu0 0.0
    %7953 = vmatprep.subr.mxu0 0.0
    %7954 = vmatpush1.msra.mxu0 0.0
    %7955 = vmatprep.subr.mxu0 0.0
    %7956 = vmatpush1.msra.mxu0 0.0
    %7957 = vmatprep.subr.mxu0 0.0
    %7958 = vmatpush1.msra.mxu0 0.0
    %7959 = vmatprep.subr.mxu0 0.0
    %7960 = vmatpush1.msra.mxu0 0.0
    %7961 = vmatprep.subr.mxu0 0.0
    %7962 = vmatpush1.msra.mxu0 0.0
    %7963 = vmatprep.subr.mxu0 0.0
    %7964 = vmatpush1.msra.mxu0 0.0
    %7965 = vmatprep.subr.mxu0 0.0
    %7966 = vmatpush1.msra.mxu0 %v7930
    %7967 = vmatprep.subr.mxu0 0.0
    %7968 = vmatpush1.msra.mxu0 %v7929
    %7969 = vmatprep.subr.mxu0 0.0
    %7970 = vmatpush1.msra.mxu0 %v7928
    %7971 = vmatprep.subr.mxu0 0.0
    %7972 = vmatpush1.msra.mxu0 %v7927
    %7973 = vmatprep.subr.mxu0 0.0
    %7974 = vmatpush2.msra.mxu0 0.0
    %7975 = vmatprep.subr.mxu0 0.0
    %7976 = vmatpush2.msra.mxu0 0.0
    %7977 = vmatprep.subr.mxu0 0.0
    %7978 = vmatpush2.msra.mxu0 0.0
    %7979 = vmatprep.subr.mxu0 0.0
    %7980 = vmatpush2.msra.mxu0 0.0
    %7981 = vmatprep.subr.mxu0 0.0
    %7982 = vmatpush2.msra.mxu0 0.0
    %7983 = vmatprep.subr.mxu0 0.0
    %7984 = vmatpush2.msra.mxu0 0.0
    %7985 = vmatprep.subr.mxu0 0.0
    %7986 = vmatpush2.msra.mxu0 0.0
    %7987 = vmatprep.subr.mxu0 0.0
    %7988 = vmatpush2.msra.mxu0 0.0
    %7989 = vmatprep.subr.mxu0 0.0
    %7990 = vmatpush2.msra.mxu0 0.0
    %7991 = vmatprep.subr.mxu0 0.0
    %7992 = vmatpush2.msra.mxu0 0.0
    %7993 = vmatprep.subr.mxu0 0.0
    %7994 = vmatpush2.msra.mxu0 0.0
    %7995 = vmatprep.subr.mxu0 0.0
    %7996 = vmatpush2.msra.mxu0 0.0
    %7997 = vmatprep.subr.mxu0 0.0
    %7998 = vmatpush2.msra.mxu0 0.0
    %7999 = vmatprep.subr.mxu0 0.0
    %8000 = vmatpush2.msra.mxu0 0.0
    %8001 = vmatprep.subr.mxu0 0.0
    %8002 = vmatpush2.msra.mxu0 0.0
    %8003 = vmatprep.subr.mxu0 0.0
    %8004 = vmatpush2.msra.mxu0 0.0
    %8005 = vmatprep.mubr.f32.mxu0 0.0
    %8006 = vmatmul.mubr.f32.gmra.mxu0 %v7936
    %v8007 = vpop.f32.mrf.mxu0
    %v8008 = vadd.f32 %v7934, %v8007
    %v8009 = vpop.f32.mrf.mxu0
    %8010 = vmatprep.mubr.f32.mxu0 0.0
    %8011 = vmatmul.mubr.f32.gmra.mxu0 %v7939
    %v8012 = vpop.f32.mrf.mxu0
    %v8013 = vadd.f32 %v7934, %v8012
    %v8014 = vpop.f32.mrf.mxu0
    %8015 = vdwg.mxu0
    %v8016 = vmax.f32 %v8008, 0.0
    %v8017 = vmax.f32 %v8013, 0.0
    %s8018 = scalar_lea.vmem %s14, 64
    %v8019 = vld [vmem:[%s8018] sm:$0xff]
    %v8020 = vld [vmem:[%s8018 + $0x8] sm:$0xff]
    %v8021 = vld [vmem:[%s8018 + $0x10] sm:$0xff]
    %v8022 = vld [vmem:[%s8018 + $0x18] sm:$0xff]
    %v8023 = vld [vmem:[%s8018 + $0x20] sm:$0xff]
    %v8024 = vld [vmem:[%s8018 + $0x28] sm:$0xff]
    %v8025 = vld [vmem:[%s8018 + $0x30] sm:$0xff]
    %v8026 = vld [vmem:[%s8018 + $0x38] sm:$0xff]
    %v8027 = vlaneseq
    %v8028 = vshrl.u32 %v8027, 7
    %v8029 = vsub.s32 2, %v8028
    %v8030 = vrot.slane %v4237, %v8029
    %v8032 = vsel %vm4113, %v8016, 0
    %v8035 = vsel %vm4113, %v8017, 0
    %8037 = vmatprep.subr.mxu0 0.0
    %8038 = vmatpush1.msra.mxu0 0.0
    %8039 = vmatprep.subr.mxu0 0.0
    %8040 = vmatpush1.msra.mxu0 0.0
    %8041 = vmatprep.subr.mxu0 0.0
    %8042 = vmatpush1.msra.mxu0 0.0
    %8043 = vmatprep.subr.mxu0 0.0
    %8044 = vmatpush1.msra.mxu0 0.0
    %8045 = vmatprep.subr.mxu0 0.0
    %8046 = vmatpush1.msra.mxu0 0.0
    %8047 = vmatprep.subr.mxu0 0.0
    %8048 = vmatpush1.msra.mxu0 0.0
    %8049 = vmatprep.subr.mxu0 0.0
    %8050 = vmatpush1.msra.mxu0 0.0
    %8051 = vmatprep.subr.mxu0 0.0
    %8052 = vmatpush1.msra.mxu0 0.0
    %8053 = vmatprep.subr.mxu0 0.0
    %8054 = vmatpush1.msra.mxu0 %v8026
    %8055 = vmatprep.subr.mxu0 0.0
    %8056 = vmatpush1.msra.mxu0 %v8025
    %8057 = vmatprep.subr.mxu0 0.0
    %8058 = vmatpush1.msra.mxu0 %v8024
    %8059 = vmatprep.subr.mxu0 0.0
    %8060 = vmatpush1.msra.mxu0 %v8023
    %8061 = vmatprep.subr.mxu0 0.0
    %8062 = vmatpush1.msra.mxu0 %v8022
    %8063 = vmatprep.subr.mxu0 0.0
    %8064 = vmatpush1.msra.mxu0 %v8021
    %8065 = vmatprep.subr.mxu0 0.0
    %8066 = vmatpush1.msra.mxu0 %v8020
    %8067 = vmatprep.subr.mxu0 0.0
    %8068 = vmatpush1.msra.mxu0 %v8019
    %8069 = vmatprep.subr.mxu0 0.0
    %8070 = vmatpush2.msra.mxu0 0.0
    %8071 = vmatprep.subr.mxu0 0.0
    %8072 = vmatpush2.msra.mxu0 0.0
    %8073 = vmatprep.subr.mxu0 0.0
    %8074 = vmatpush2.msra.mxu0 0.0
    %8075 = vmatprep.subr.mxu0 0.0
    %8076 = vmatpush2.msra.mxu0 0.0
    %8077 = vmatprep.subr.mxu0 0.0
    %8078 = vmatpush2.msra.mxu0 0.0
    %8079 = vmatprep.subr.mxu0 0.0
    %8080 = vmatpush2.msra.mxu0 0.0
    %8081 = vmatprep.subr.mxu0 0.0
    %8082 = vmatpush2.msra.mxu0 0.0
    %8083 = vmatprep.subr.mxu0 0.0
    %8084 = vmatpush2.msra.mxu0 0.0
    %8085 = vmatprep.subr.mxu0 0.0
    %8086 = vmatpush2.msra.mxu0 0.0
    %8087 = vmatprep.subr.mxu0 0.0
    %8088 = vmatpush2.msra.mxu0 0.0
    %8089 = vmatprep.subr.mxu0 0.0
    %8090 = vmatpush2.msra.mxu0 0.0
    %8091 = vmatprep.subr.mxu0 0.0
    %8092 = vmatpush2.msra.mxu0 0.0
    %8093 = vmatprep.subr.mxu0 0.0
    %8094 = vmatpush2.msra.mxu0 0.0
    %8095 = vmatprep.subr.mxu0 0.0
    %8096 = vmatpush2.msra.mxu0 0.0
    %8097 = vmatprep.subr.mxu0 0.0
    %8098 = vmatpush2.msra.mxu0 0.0
    %8099 = vmatprep.subr.mxu0 0.0
    %8100 = vmatpush2.msra.mxu0 0.0
    %8101 = vmatprep.mubr.f32.mxu0 0.0
    %8102 = vmatmul.mubr.f32.gmra.mxu0 %v8032
    %v8103 = vpop.f32.mrf.mxu0
    %v8104 = vadd.f32 %v8030, %v8103
    %v8105 = vpop.f32.mrf.mxu0
    %8106 = vmatprep.mubr.f32.mxu0 0.0
    %8107 = vmatmul.mubr.f32.gmra.mxu0 %v8035
    %v8108 = vpop.f32.mrf.mxu0
    %v8109 = vadd.f32 %v8030, %v8108
    %v8110 = vpop.f32.mrf.mxu0
    %8111 = vdwg.mxu0
    %v8112 = vadd.f32 %v7924, %v8104
    %v8113 = vadd.f32 %v7925, %v8109
    %v8114 = vsel %vm314, %v8112, 0.0
    %8115 = vadd.xlane.f32.xlu0 %v8114
    %v8116 = vpop.xlane.xlu0 %8115
    %v8117 = vsel %vm314, %v8113, 0.0
    %8118 = vadd.xlane.f32.xlu0 %v8117
    %v8119 = vpop.xlane.xlu0 %8118
    %v8120 = vmul.f32 %v8116, %v2077
    %v8121 = vmul.f32 %v8119, %v2077
    %v8122 = vsub.f32 %v8112, %v8120
    %v8123 = vsub.f32 %v8113, %v8121
    %v8124 = vmul.f32 %v8122, %v8122
    %v8125 = vmul.f32 %v8123, %v8123
    %v8126 = vsel %vm314, %v8124, 0.0
    %8127 = vadd.xlane.f32.xlu0 %v8126
    %v8128 = vpop.xlane.xlu0 %8127
    %v8129 = vsel %vm314, %v8125, 0.0
    %8130 = vadd.xlane.f32.xlu0 %v8129
    %v8131 = vpop.xlane.xlu0 %8130
    %v8132 = vmul.f32 %v8128, %v2077
    %v8133 = vmul.f32 %v8131, %v2077
    %v8134 = vadd.f32 %v8132, 1e-05
    %v8135 = vadd.f32 %v8133, 1e-05
    %v8136 = vrsqrt.pop %v8134
    %v8137 = vrsqrt.pop %v8135
    %v8138 = vmul.f32 %v8122, %v8136
    %v8139 = vmul.f32 %v8123, %v8137
    %v8140 = vlaneseq
    %v8141 = vshrl.u32 %v8140, 7
    %v8142 = vsub.s32 3, %v8141
    %v8143 = vrot.slane %v4237, %v8142
    %v8144 = vmul.f32 %v8138, %v8143
    %v8145 = vmul.f32 %v8139, %v8143
    %v8146 = vlaneseq
    %v8147 = vshrl.u32 %v8146, 7
    %v8148 = vsub.s32 4, %v8147
    %v8149 = vrot.slane %v4237, %v8148
    %v8150 = vadd.f32 %v8144, %v8149
    %v8151 = vadd.f32 %v8145, %v8149
    %v8152 = vld [vmem:[#allocation2] sm:$0xff]
    %v8153 = vld [vmem:[%s16] sm:$0x1]
    %v8154 = vld [vmem:[%s16 + $0x1] sm:$0x1]
    %v8155 = vlaneseq
    %v8156 = vshrl.u32 %v8155, 7
    %v8157 = vsub.s32 0, %v8156
    %v8158 = vrot.slane %v8153, %v8157
    %v8159 = vmul.f32 %v8158, %v8150
    %v8160 = vmul.f32 %v8158, %v8151
    %v8161 = vtanh.pop %v8159
    %v8162 = vtanh.pop %v8160
    %v8163 = vlaneseq
    %v8164 = vshrl.u32 %v8163, 7
    %v8165 = vsub.s32 0, %v8164
    %v8166 = vrot.slane %v8154, %v8165
    %v8167 = vmul.f32 %v8166, %v8161
    %v8168 = vmul.f32 %v8166, %v8162
    %v8169 = vsel %vm314, %v8167, 0.0
    %8170 = vadd.xlane.f32.xlu0 %v8169
    %v8171 = vpop.xlane.xlu0 %8170
    %v8172 = vsel %vm314, %v8168, 0.0
    %8173 = vadd.xlane.f32.xlu0 %v8172
    %v8174 = vpop.xlane.xlu0 %8173
    %8177 = vrot.lane.b32.xlu0 %v282, 32
    %v8178 = vpop.permute.xlu0 %8177
    %8179 = vrot.lane.b32.xlu0 %v287, 32
    %v8180 = vpop.permute.xlu0 %8179
    %v8183 = vmul.f32 %v8158, %v8178
    %v8184 = vmul.f32 %v8158, %v8180
    %v8185 = vtanh.pop %v8183
    %v8186 = vtanh.pop %v8184
    %8188 = vrot.lane.b32.xlu0 %v8166, 96
    %v8189 = vpop.permute.xlu0 %8188
    %8191 = vrot.lane.b32.xlu0 %v8185, 96
    %v8192 = vpop.permute.xlu0 %8191
    %v8193 = vsel %vm314, %v8189, 0
    %v8195 = vsel %vm314, %v8192, 0
    %8197 = vmatprep.subr.mxu0 0.0
    %8198 = vmatpush1.xpose.msra.mxu0 0.0
    %8199 = vmatprep.subr.mxu0 0.0
    %8200 = vmatpush1.xpose.msra.mxu0 0.0
    %8201 = vmatprep.subr.mxu0 0.0
    %8202 = vmatpush1.xpose.msra.mxu0 0.0
    %8203 = vmatprep.subr.mxu0 0.0
    %8204 = vmatpush1.xpose.msra.mxu0 0.0
    %8205 = vmatprep.subr.mxu0 0.0
    %8206 = vmatpush1.xpose.msra.mxu0 0.0
    %8207 = vmatprep.subr.mxu0 0.0
    %8208 = vmatpush1.xpose.msra.mxu0 0.0
    %8209 = vmatprep.subr.mxu0 0.0
    %8210 = vmatpush1.xpose.msra.mxu0 0.0
    %8211 = vmatprep.subr.mxu0 0.0
    %8212 = vmatpush1.xpose.msra.mxu0 0.0
    %8213 = vmatprep.subr.mxu0 0.0
    %8214 = vmatpush1.xpose.msra.mxu0 0.0
    %8215 = vmatprep.subr.mxu0 0.0
    %8216 = vmatpush1.xpose.msra.mxu0 0.0
    %8217 = vmatprep.subr.mxu0 0.0
    %8218 = vmatpush1.xpose.msra.mxu0 0.0
    %8219 = vmatprep.subr.mxu0 0.0
    %8220 = vmatpush1.xpose.msra.mxu0 0.0
    %8221 = vmatprep.subr.mxu0 0.0
    %8222 = vmatpush1.xpose.msra.mxu0 0.0
    %8223 = vmatprep.subr.mxu0 0.0
    %8224 = vmatpush1.xpose.msra.mxu0 0.0
    %8225 = vmatprep.subr.mxu0 0.0
    %8226 = vmatpush1.xpose.msra.mxu0 0.0
    %8227 = vmatprep.subr.mxu0 0.0
    %8228 = vmatpush1.xpose.msra.mxu0 %v8195
    %8229 = vmatprep.subr.mxu0 0.0
    %8230 = vmatpush2.xpose.msra.mxu0 0.0
    %8231 = vmatprep.subr.mxu0 0.0
    %8232 = vmatpush2.xpose.msra.mxu0 0.0
    %8233 = vmatprep.subr.mxu0 0.0
    %8234 = vmatpush2.xpose.msra.mxu0 0.0
    %8235 = vmatprep.subr.mxu0 0.0
    %8236 = vmatpush2.xpose.msra.mxu0 0.0
    %8237 = vmatprep.subr.mxu0 0.0
    %8238 = vmatpush2.xpose.msra.mxu0 0.0
    %8239 = vmatprep.subr.mxu0 0.0
    %8240 = vmatpush2.xpose.msra.mxu0 0.0
    %8241 = vmatprep.subr.mxu0 0.0
    %8242 = vmatpush2.xpose.msra.mxu0 0.0
    %8243 = vmatprep.subr.mxu0 0.0
    %8244 = vmatpush2.xpose.msra.mxu0 0.0
    %8245 = vmatprep.subr.mxu0 0.0
    %8246 = vmatpush2.xpose.msra.mxu0 0.0
    %8247 = vmatprep.subr.mxu0 0.0
    %8248 = vmatpush2.xpose.msra.mxu0 0.0
    %8249 = vmatprep.subr.mxu0 0.0
    %8250 = vmatpush2.xpose.msra.mxu0 0.0
    %8251 = vmatprep.subr.mxu0 0.0
    %8252 = vmatpush2.xpose.msra.mxu0 0.0
    %8253 = vmatprep.subr.mxu0 0.0
    %8254 = vmatpush2.xpose.msra.mxu0 0.0
    %8255 = vmatprep.subr.mxu0 0.0
    %8256 = vmatpush2.xpose.msra.mxu0 0.0
    %8257 = vmatprep.subr.mxu0 0.0
    %8258 = vmatpush2.xpose.msra.mxu0 0.0
    %8259 = vmatprep.subr.mxu0 0.0
    %8260 = vmatpush2.xpose.msra.mxu0 0.0
    %8261 = vmatprep.mubr.f32.mxu0 0.0
    %8262 = vmatmul.mubr.f32.gmra.mxu0 %v8193
    %v8263 = vpop.f32.mrf.mxu0
    %v8264 = vadd.f32 0.0, %v8263
    %v8265 = vpop.f32.mrf.mxu0
    %8266 = vdwg.mxu0
    %8268 = vrot.lane.b32.xlu0 %v8186, 96
    %v8269 = vpop.permute.xlu0 %8268
    %v8270 = vsel %vm314, %v8269, 0
    %8272 = vmatprep.subr.mxu0 0.0
    %8273 = vmatpush1.xpose.msra.mxu0 0.0
    %8274 = vmatprep.subr.mxu0 0.0
    %8275 = vmatpush1.xpose.msra.mxu0 0.0
    %8276 = vmatprep.subr.mxu0 0.0
    %8277 = vmatpush1.xpose.msra.mxu0 0.0
    %8278 = vmatprep.subr.mxu0 0.0
    %8279 = vmatpush1.xpose.msra.mxu0 0.0
    %8280 = vmatprep.subr.mxu0 0.0
    %8281 = vmatpush1.xpose.msra.mxu0 0.0
    %8282 = vmatprep.subr.mxu0 0.0
    %8283 = vmatpush1.xpose.msra.mxu0 0.0
    %8284 = vmatprep.subr.mxu0 0.0
    %8285 = vmatpush1.xpose.msra.mxu0 0.0
    %8286 = vmatprep.subr.mxu0 0.0
    %8287 = vmatpush1.xpose.msra.mxu0 0.0
    %8288 = vmatprep.subr.mxu0 0.0
    %8289 = vmatpush1.xpose.msra.mxu0 0.0
    %8290 = vmatprep.subr.mxu0 0.0
    %8291 = vmatpush1.xpose.msra.mxu0 0.0
    %8292 = vmatprep.subr.mxu0 0.0
    %8293 = vmatpush1.xpose.msra.mxu0 0.0
    %8294 = vmatprep.subr.mxu0 0.0
    %8295 = vmatpush1.xpose.msra.mxu0 0.0
    %8296 = vmatprep.subr.mxu0 0.0
    %8297 = vmatpush1.xpose.msra.mxu0 0.0
    %8298 = vmatprep.subr.mxu0 0.0
    %8299 = vmatpush1.xpose.msra.mxu0 0.0
    %8300 = vmatprep.subr.mxu0 0.0
    %8301 = vmatpush1.xpose.msra.mxu0 0.0
    %8302 = vmatprep.subr.mxu0 0.0
    %8303 = vmatpush1.xpose.msra.mxu0 %v8270
    %8304 = vmatprep.subr.mxu0 0.0
    %8305 = vmatpush2.xpose.msra.mxu0 0.0
    %8306 = vmatprep.subr.mxu0 0.0
    %8307 = vmatpush2.xpose.msra.mxu0 0.0
    %8308 = vmatprep.subr.mxu0 0.0
    %8309 = vmatpush2.xpose.msra.mxu0 0.0
    %8310 = vmatprep.subr.mxu0 0.0
    %8311 = vmatpush2.xpose.msra.mxu0 0.0
    %8312 = vmatprep.subr.mxu0 0.0
    %8313 = vmatpush2.xpose.msra.mxu0 0.0
    %8314 = vmatprep.subr.mxu0 0.0
    %8315 = vmatpush2.xpose.msra.mxu0 0.0
    %8316 = vmatprep.subr.mxu0 0.0
    %8317 = vmatpush2.xpose.msra.mxu0 0.0
    %8318 = vmatprep.subr.mxu0 0.0
    %8319 = vmatpush2.xpose.msra.mxu0 0.0
    %8320 = vmatprep.subr.mxu0 0.0
    %8321 = vmatpush2.xpose.msra.mxu0 0.0
    %8322 = vmatprep.subr.mxu0 0.0
    %8323 = vmatpush2.xpose.msra.mxu0 0.0
    %8324 = vmatprep.subr.mxu0 0.0
    %8325 = vmatpush2.xpose.msra.mxu0 0.0
    %8326 = vmatprep.subr.mxu0 0.0
    %8327 = vmatpush2.xpose.msra.mxu0 0.0
    %8328 = vmatprep.subr.mxu0 0.0
    %8329 = vmatpush2.xpose.msra.mxu0 0.0
    %8330 = vmatprep.subr.mxu0 0.0
    %8331 = vmatpush2.xpose.msra.mxu0 0.0
    %8332 = vmatprep.subr.mxu0 0.0
    %8333 = vmatpush2.xpose.msra.mxu0 0.0
    %8334 = vmatprep.subr.mxu0 0.0
    %8335 = vmatpush2.xpose.msra.mxu0 0.0
    %8336 = vmatprep.mubr.f32.mxu0 0.0
    %8337 = vmatmul.mubr.f32.gmra.mxu0 %v8193
    %v8338 = vpop.f32.mrf.mxu0
    %v8339 = vadd.f32 0.0, %v8338
    %v8340 = vpop.f32.mrf.mxu0
    %8341 = vdwg.mxu0
    %v8342 = vadd.f32 %v8171, %v8264
    %v8343 = vadd.f32 %v8174, %v8339
    %v8344 = vsel %vm403, %v8342, -inf
    %8345 = vmax.xlane.f32.xlu0 %v8344
    %v8346 = vpop.xlane.xlu0 %8345
    %v8347 = vsel %vm403, %v8343, -inf
    %8348 = vmax.xlane.f32.xlu0 %v8347
    %v8349 = vpop.xlane.xlu0 %8348
    %v8350 = vsub.f32 %v8342, %v8346
    %v8351 = vsub.f32 %v8343, %v8349
    %v8352 = vmul.f32 %v8350, 1.442695
    %v8353 = vpow.pop %v8352
    %v8354 = vmul.f32 %v8351, 1.442695
    %v8355 = vpow.pop %v8354
    %v8356 = vsel %vm403, %v8353, 0.0
    %8357 = vadd.xlane.f32.xlu0 %v8356
    %v8358 = vpop.xlane.xlu0 %8357
    %v8359 = vsel %vm403, %v8355, 0.0
    %8360 = vadd.xlane.f32.xlu0 %v8359
    %v8361 = vpop.xlane.xlu0 %8360
    %v8362 = vrcp.pop %v8358
    %v8363 = vrcp.pop %v8361
    %v8364 = vmul.f32 %v8353, %v8362
    %v8365 = vmul.f32 %v8355, %v8363
    %v8367 = vsel %vm403, %v8364, 0
    %8369 = vmatprep.subr.mxu0 0.0
    %8370 = vmatpush1.msra.mxu0 0.0
    %8371 = vmatprep.subr.mxu0 0.0
    %8372 = vmatpush1.msra.mxu0 0.0
    %8373 = vmatprep.subr.mxu0 0.0
    %8374 = vmatpush1.msra.mxu0 0.0
    %8375 = vmatprep.subr.mxu0 0.0
    %8376 = vmatpush1.msra.mxu0 0.0
    %8377 = vmatprep.subr.mxu0 0.0
    %8378 = vmatpush1.msra.mxu0 0.0
    %8379 = vmatprep.subr.mxu0 0.0
    %8380 = vmatpush1.msra.mxu0 0.0
    %8381 = vmatprep.subr.mxu0 0.0
    %8382 = vmatpush1.msra.mxu0 0.0
    %8383 = vmatprep.subr.mxu0 0.0
    %8384 = vmatpush1.msra.mxu0 0.0
    %8385 = vmatprep.subr.mxu0 0.0
    %8386 = vmatpush1.msra.mxu0 0.0
    %8387 = vmatprep.subr.mxu0 0.0
    %8388 = vmatpush1.msra.mxu0 0.0
    %8389 = vmatprep.subr.mxu0 0.0
    %8390 = vmatpush1.msra.mxu0 0.0
    %8391 = vmatprep.subr.mxu0 0.0
    %8392 = vmatpush1.msra.mxu0 0.0
    %8393 = vmatprep.subr.mxu0 0.0
    %8394 = vmatpush1.msra.mxu0 0.0
    %8395 = vmatprep.subr.mxu0 0.0
    %8396 = vmatpush1.msra.mxu0 0.0
    %8397 = vmatprep.subr.mxu0 0.0
    %8398 = vmatpush1.msra.mxu0 0.0
    %8399 = vmatprep.subr.mxu0 0.0
    %8400 = vmatpush1.msra.mxu0 %v282
    %8401 = vmatprep.subr.mxu0 0.0
    %8402 = vmatpush2.msra.mxu0 0.0
    %8403 = vmatprep.subr.mxu0 0.0
    %8404 = vmatpush2.msra.mxu0 0.0
    %8405 = vmatprep.subr.mxu0 0.0
    %8406 = vmatpush2.msra.mxu0 0.0
    %8407 = vmatprep.subr.mxu0 0.0
    %8408 = vmatpush2.msra.mxu0 0.0
    %8409 = vmatprep.subr.mxu0 0.0
    %8410 = vmatpush2.msra.mxu0 0.0
    %8411 = vmatprep.subr.mxu0 0.0
    %8412 = vmatpush2.msra.mxu0 0.0
    %8413 = vmatprep.subr.mxu0 0.0
    %8414 = vmatpush2.msra.mxu0 0.0
    %8415 = vmatprep.subr.mxu0 0.0
    %8416 = vmatpush2.msra.mxu0 0.0
    %8417 = vmatprep.subr.mxu0 0.0
    %8418 = vmatpush2.msra.mxu0 0.0
    %8419 = vmatprep.subr.mxu0 0.0
    %8420 = vmatpush2.msra.mxu0 0.0
    %8421 = vmatprep.subr.mxu0 0.0
    %8422 = vmatpush2.msra.mxu0 0.0
    %8423 = vmatprep.subr.mxu0 0.0
    %8424 = vmatpush2.msra.mxu0 0.0
    %8425 = vmatprep.subr.mxu0 0.0
    %8426 = vmatpush2.msra.mxu0 0.0
    %8427 = vmatprep.subr.mxu0 0.0
    %8428 = vmatpush2.msra.mxu0 0.0
    %8429 = vmatprep.subr.mxu0 0.0
    %8430 = vmatpush2.msra.mxu0 0.0
    %8431 = vmatprep.subr.mxu0 0.0
    %8432 = vmatpush2.msra.mxu0 0.0
    %8433 = vmatprep.mubr.f32.mxu0 0.0
    %8434 = vmatmul.mubr.f32.gmra.mxu0 %v8367
    %v8435 = vpop.f32.mrf.mxu0
    %v8436 = vadd.f32 0.0, %v8435
    %v8437 = vpop.f32.mrf.mxu0
    %8438 = vdwg.mxu0
    %v8440 = vsel %vm403, %v8365, 0
    %8442 = vmatprep.subr.mxu0 0.0
    %8443 = vmatpush1.msra.mxu0 0.0
    %8444 = vmatprep.subr.mxu0 0.0
    %8445 = vmatpush1.msra.mxu0 0.0
    %8446 = vmatprep.subr.mxu0 0.0
    %8447 = vmatpush1.msra.mxu0 0.0
    %8448 = vmatprep.subr.mxu0 0.0
    %8449 = vmatpush1.msra.mxu0 0.0
    %8450 = vmatprep.subr.mxu0 0.0
    %8451 = vmatpush1.msra.mxu0 0.0
    %8452 = vmatprep.subr.mxu0 0.0
    %8453 = vmatpush1.msra.mxu0 0.0
    %8454 = vmatprep.subr.mxu0 0.0
    %8455 = vmatpush1.msra.mxu0 0.0
    %8456 = vmatprep.subr.mxu0 0.0
    %8457 = vmatpush1.msra.mxu0 0.0
    %8458 = vmatprep.subr.mxu0 0.0
    %8459 = vmatpush1.msra.mxu0 0.0
    %8460 = vmatprep.subr.mxu0 0.0
    %8461 = vmatpush1.msra.mxu0 0.0
    %8462 = vmatprep.subr.mxu0 0.0
    %8463 = vmatpush1.msra.mxu0 0.0
    %8464 = vmatprep.subr.mxu0 0.0
    %8465 = vmatpush1.msra.mxu0 0.0
    %8466 = vmatprep.subr.mxu0 0.0
    %8467 = vmatpush1.msra.mxu0 0.0
    %8468 = vmatprep.subr.mxu0 0.0
    %8469 = vmatpush1.msra.mxu0 0.0
    %8470 = vmatprep.subr.mxu0 0.0
    %8471 = vmatpush1.msra.mxu0 0.0
    %8472 = vmatprep.subr.mxu0 0.0
    %8473 = vmatpush1.msra.mxu0 %v287
    %8474 = vmatprep.subr.mxu0 0.0
    %8475 = vmatpush2.msra.mxu0 0.0
    %8476 = vmatprep.subr.mxu0 0.0
    %8477 = vmatpush2.msra.mxu0 0.0
    %8478 = vmatprep.subr.mxu0 0.0
    %8479 = vmatpush2.msra.mxu0 0.0
    %8480 = vmatprep.subr.mxu0 0.0
    %8481 = vmatpush2.msra.mxu0 0.0
    %8482 = vmatprep.subr.mxu0 0.0
    %8483 = vmatpush2.msra.mxu0 0.0
    %8484 = vmatprep.subr.mxu0 0.0
    %8485 = vmatpush2.msra.mxu0 0.0
    %8486 = vmatprep.subr.mxu0 0.0
    %8487 = vmatpush2.msra.mxu0 0.0
    %8488 = vmatprep.subr.mxu0 0.0
    %8489 = vmatpush2.msra.mxu0 0.0
    %8490 = vmatprep.subr.mxu0 0.0
    %8491 = vmatpush2.msra.mxu0 0.0
    %8492 = vmatprep.subr.mxu0 0.0
    %8493 = vmatpush2.msra.mxu0 0.0
    %8494 = vmatprep.subr.mxu0 0.0
    %8495 = vmatpush2.msra.mxu0 0.0
    %8496 = vmatprep.subr.mxu0 0.0
    %8497 = vmatpush2.msra.mxu0 0.0
    %8498 = vmatprep.subr.mxu0 0.0
    %8499 = vmatpush2.msra.mxu0 0.0
    %8500 = vmatprep.subr.mxu0 0.0
    %8501 = vmatpush2.msra.mxu0 0.0
    %8502 = vmatprep.subr.mxu0 0.0
    %8503 = vmatpush2.msra.mxu0 0.0
    %8504 = vmatprep.subr.mxu0 0.0
    %8505 = vmatpush2.msra.mxu0 0.0
    %8506 = vmatprep.mubr.f32.mxu0 0.0
    %8507 = vmatmul.mubr.f32.gmra.mxu0 %v8440
    %v8508 = vpop.f32.mrf.mxu0
    %v8509 = vadd.f32 0.0, %v8508
    %v8510 = vpop.f32.mrf.mxu0
    %8511 = vdwg.mxu0
    %v8512 = vld [vmem:[%s16 + $0x2] sm:$0x1]
    %v8513 = vld [vmem:[%s16 + $0x3] sm:$0x1]
    %v8514 = vlaneseq
    %v8515 = vshrl.u32 %v8514, 7
    %v8516 = vsub.s32 0, %v8515
    %v8517 = vrot.slane %v8512, %v8516
    %v8518 = vmul.f32 %v8517, %v8150
    %v8519 = vmul.f32 %v8517, %v8151
    %v8520 = vtanh.pop %v8518
    %v8521 = vtanh.pop %v8519
    %v8522 = vlaneseq
    %v8523 = vshrl.u32 %v8522, 7
    %v8524 = vsub.s32 0, %v8523
    %v8525 = vrot.slane %v8513, %v8524
    %v8526 = vmul.f32 %v8525, %v8520
    %v8527 = vmul.f32 %v8525, %v8521
    %v8528 = vsel %vm314, %v8526, 0.0
    %8529 = vadd.xlane.f32.xlu0 %v8528
    %v8530 = vpop.xlane.xlu0 %8529
    %v8531 = vsel %vm314, %v8527, 0.0
    %8532 = vadd.xlane.f32.xlu0 %v8531
    %v8533 = vpop.xlane.xlu0 %8532
    %8535 = vrot.lane.b32.xlu0 %v8152, 32
    %v8536 = vpop.permute.xlu0 %8535
    %v8538 = vmul.f32 %v8517, %v8536
    %v8539 = vtanh.pop %v8538
    %8541 = vrot.lane.b32.xlu0 %v8525, 96
    %v8542 = vpop.permute.xlu0 %8541
    %8544 = vrot.lane.b32.xlu0 %v8539, 96
    %v8545 = vpop.permute.xlu0 %8544
    %v8546 = vsel %vm314, %v8542, 0
    %v8548 = vsel %vm314, %v8545, 0
    %8550 = vmatprep.subr.mxu0 0.0
    %8551 = vmatpush1.xpose.msra.mxu0 0.0
    %8552 = vmatprep.subr.mxu0 0.0
    %8553 = vmatpush1.xpose.msra.mxu0 0.0
    %8554 = vmatprep.subr.mxu0 0.0
    %8555 = vmatpush1.xpose.msra.mxu0 0.0
    %8556 = vmatprep.subr.mxu0 0.0
    %8557 = vmatpush1.xpose.msra.mxu0 0.0
    %8558 = vmatprep.subr.mxu0 0.0
    %8559 = vmatpush1.xpose.msra.mxu0 0.0
    %8560 = vmatprep.subr.mxu0 0.0
    %8561 = vmatpush1.xpose.msra.mxu0 0.0
    %8562 = vmatprep.subr.mxu0 0.0
    %8563 = vmatpush1.xpose.msra.mxu0 0.0
    %8564 = vmatprep.subr.mxu0 0.0
    %8565 = vmatpush1.xpose.msra.mxu0 0.0
    %8566 = vmatprep.subr.mxu0 0.0
    %8567 = vmatpush1.xpose.msra.mxu0 0.0
    %8568 = vmatprep.subr.mxu0 0.0
    %8569 = vmatpush1.xpose.msra.mxu0 0.0
    %8570 = vmatprep.subr.mxu0 0.0
    %8571 = vmatpush1.xpose.msra.mxu0 0.0
    %8572 = vmatprep.subr.mxu0 0.0
    %8573 = vmatpush1.xpose.msra.mxu0 0.0
    %8574 = vmatprep.subr.mxu0 0.0
    %8575 = vmatpush1.xpose.msra.mxu0 0.0
    %8576 = vmatprep.subr.mxu0 0.0
    %8577 = vmatpush1.xpose.msra.mxu0 0.0
    %8578 = vmatprep.subr.mxu0 0.0
    %8579 = vmatpush1.xpose.msra.mxu0 0.0
    %8580 = vmatprep.subr.mxu0 0.0
    %8581 = vmatpush1.xpose.msra.mxu0 %v8548
    %8582 = vmatprep.subr.mxu0 0.0
    %8583 = vmatpush2.xpose.msra.mxu0 0.0
    %8584 = vmatprep.subr.mxu0 0.0
    %8585 = vmatpush2.xpose.msra.mxu0 0.0
    %8586 = vmatprep.subr.mxu0 0.0
    %8587 = vmatpush2.xpose.msra.mxu0 0.0
    %8588 = vmatprep.subr.mxu0 0.0
    %8589 = vmatpush2.xpose.msra.mxu0 0.0
    %8590 = vmatprep.subr.mxu0 0.0
    %8591 = vmatpush2.xpose.msra.mxu0 0.0
    %8592 = vmatprep.subr.mxu0 0.0
    %8593 = vmatpush2.xpose.msra.mxu0 0.0
    %8594 = vmatprep.subr.mxu0 0.0
    %8595 = vmatpush2.xpose.msra.mxu0 0.0
    %8596 = vmatprep.subr.mxu0 0.0
    %8597 = vmatpush2.xpose.msra.mxu0 0.0
    %8598 = vmatprep.subr.mxu0 0.0
    %8599 = vmatpush2.xpose.msra.mxu0 0.0
    %8600 = vmatprep.subr.mxu0 0.0
    %8601 = vmatpush2.xpose.msra.mxu0 0.0
    %8602 = vmatprep.subr.mxu0 0.0
    %8603 = vmatpush2.xpose.msra.mxu0 0.0
    %8604 = vmatprep.subr.mxu0 0.0
    %8605 = vmatpush2.xpose.msra.mxu0 0.0
    %8606 = vmatprep.subr.mxu0 0.0
    %8607 = vmatpush2.xpose.msra.mxu0 0.0
    %8608 = vmatprep.subr.mxu0 0.0
    %8609 = vmatpush2.xpose.msra.mxu0 0.0
    %8610 = vmatprep.subr.mxu0 0.0
    %8611 = vmatpush2.xpose.msra.mxu0 0.0
    %8612 = vmatprep.subr.mxu0 0.0
    %8613 = vmatpush2.xpose.msra.mxu0 0.0
    %8614 = vmatprep.mubr.f32.mxu0 0.0
    %8615 = vmatmul.mubr.f32.gmra.mxu0 %v8546
    %v8616 = vpop.f32.mrf.mxu0
    %v8617 = vadd.f32 0.0, %v8616
    %v8618 = vpop.f32.mrf.mxu0
    %8619 = vdwg.mxu0
    %v8620 = vadd.f32 %v8530, %v8617
    %v8621 = vadd.f32 %v8533, %v8617
    %v8622 = vsel %vm403, %v8620, -inf
    %8623 = vmax.xlane.f32.xlu0 %v8622
    %v8624 = vpop.xlane.xlu0 %8623
    %v8625 = vsel %vm403, %v8621, -inf
    %8626 = vmax.xlane.f32.xlu0 %v8625
    %v8627 = vpop.xlane.xlu0 %8626
    %v8628 = vsub.f32 %v8620, %v8624
    %v8629 = vsub.f32 %v8621, %v8627
    %v8630 = vmul.f32 %v8628, 1.442695
    %v8631 = vpow.pop %v8630
    %v8632 = vmul.f32 %v8629, 1.442695
    %v8633 = vpow.pop %v8632
    %v8634 = vsel %vm403, %v8631, 0.0
    %8635 = vadd.xlane.f32.xlu0 %v8634
    %v8636 = vpop.xlane.xlu0 %8635
    %v8637 = vsel %vm403, %v8633, 0.0
    %8638 = vadd.xlane.f32.xlu0 %v8637
    %v8639 = vpop.xlane.xlu0 %8638
    %v8640 = vrcp.pop %v8636
    %v8641 = vrcp.pop %v8639
    %v8642 = vmul.f32 %v8631, %v8640
    %v8643 = vmul.f32 %v8633, %v8641
    %v8645 = vsel %vm403, %v8642, 0
    %8647 = vmatprep.subr.mxu0 0.0
    %8648 = vmatpush1.msra.mxu0 0.0
    %8649 = vmatprep.subr.mxu0 0.0
    %8650 = vmatpush1.msra.mxu0 0.0
    %8651 = vmatprep.subr.mxu0 0.0
    %8652 = vmatpush1.msra.mxu0 0.0
    %8653 = vmatprep.subr.mxu0 0.0
    %8654 = vmatpush1.msra.mxu0 0.0
    %8655 = vmatprep.subr.mxu0 0.0
    %8656 = vmatpush1.msra.mxu0 0.0
    %8657 = vmatprep.subr.mxu0 0.0
    %8658 = vmatpush1.msra.mxu0 0.0
    %8659 = vmatprep.subr.mxu0 0.0
    %8660 = vmatpush1.msra.mxu0 0.0
    %8661 = vmatprep.subr.mxu0 0.0
    %8662 = vmatpush1.msra.mxu0 0.0
    %8663 = vmatprep.subr.mxu0 0.0
    %8664 = vmatpush1.msra.mxu0 0.0
    %8665 = vmatprep.subr.mxu0 0.0
    %8666 = vmatpush1.msra.mxu0 0.0
    %8667 = vmatprep.subr.mxu0 0.0
    %8668 = vmatpush1.msra.mxu0 0.0
    %8669 = vmatprep.subr.mxu0 0.0
    %8670 = vmatpush1.msra.mxu0 0.0
    %8671 = vmatprep.subr.mxu0 0.0
    %8672 = vmatpush1.msra.mxu0 0.0
    %8673 = vmatprep.subr.mxu0 0.0
    %8674 = vmatpush1.msra.mxu0 0.0
    %8675 = vmatprep.subr.mxu0 0.0
    %8676 = vmatpush1.msra.mxu0 0.0
    %8677 = vmatprep.subr.mxu0 0.0
    %8678 = vmatpush1.msra.mxu0 %v8152
    %8679 = vmatprep.subr.mxu0 0.0
    %8680 = vmatpush2.msra.mxu0 0.0
    %8681 = vmatprep.subr.mxu0 0.0
    %8682 = vmatpush2.msra.mxu0 0.0
    %8683 = vmatprep.subr.mxu0 0.0
    %8684 = vmatpush2.msra.mxu0 0.0
    %8685 = vmatprep.subr.mxu0 0.0
    %8686 = vmatpush2.msra.mxu0 0.0
    %8687 = vmatprep.subr.mxu0 0.0
    %8688 = vmatpush2.msra.mxu0 0.0
    %8689 = vmatprep.subr.mxu0 0.0
    %8690 = vmatpush2.msra.mxu0 0.0
    %8691 = vmatprep.subr.mxu0 0.0
    %8692 = vmatpush2.msra.mxu0 0.0
    %8693 = vmatprep.subr.mxu0 0.0
    %8694 = vmatpush2.msra.mxu0 0.0
    %8695 = vmatprep.subr.mxu0 0.0
    %8696 = vmatpush2.msra.mxu0 0.0
    %8697 = vmatprep.subr.mxu0 0.0
    %8698 = vmatpush2.msra.mxu0 0.0
    %8699 = vmatprep.subr.mxu0 0.0
    %8700 = vmatpush2.msra.mxu0 0.0
    %8701 = vmatprep.subr.mxu0 0.0
    %8702 = vmatpush2.msra.mxu0 0.0
    %8703 = vmatprep.subr.mxu0 0.0
    %8704 = vmatpush2.msra.mxu0 0.0
    %8705 = vmatprep.subr.mxu0 0.0
    %8706 = vmatpush2.msra.mxu0 0.0
    %8707 = vmatprep.subr.mxu0 0.0
    %8708 = vmatpush2.msra.mxu0 0.0
    %8709 = vmatprep.subr.mxu0 0.0
    %8710 = vmatpush2.msra.mxu0 0.0
    %8711 = vmatprep.mubr.f32.mxu0 0.0
    %8712 = vmatmul.mubr.f32.gmra.mxu0 %v8645
    %v8713 = vpop.f32.mrf.mxu0
    %v8714 = vadd.f32 0.0, %v8713
    %v8715 = vpop.f32.mrf.mxu0
    %8716 = vdwg.mxu0
    %v8718 = vsel %vm403, %v8643, 0
    %8720 = vmatprep.subr.mxu0 0.0
    %8721 = vmatpush1.msra.mxu0 0.0
    %8722 = vmatprep.subr.mxu0 0.0
    %8723 = vmatpush1.msra.mxu0 0.0
    %8724 = vmatprep.subr.mxu0 0.0
    %8725 = vmatpush1.msra.mxu0 0.0
    %8726 = vmatprep.subr.mxu0 0.0
    %8727 = vmatpush1.msra.mxu0 0.0
    %8728 = vmatprep.subr.mxu0 0.0
    %8729 = vmatpush1.msra.mxu0 0.0
    %8730 = vmatprep.subr.mxu0 0.0
    %8731 = vmatpush1.msra.mxu0 0.0
    %8732 = vmatprep.subr.mxu0 0.0
    %8733 = vmatpush1.msra.mxu0 0.0
    %8734 = vmatprep.subr.mxu0 0.0
    %8735 = vmatpush1.msra.mxu0 0.0
    %8736 = vmatprep.subr.mxu0 0.0
    %8737 = vmatpush1.msra.mxu0 0.0
    %8738 = vmatprep.subr.mxu0 0.0
    %8739 = vmatpush1.msra.mxu0 0.0
    %8740 = vmatprep.subr.mxu0 0.0
    %8741 = vmatpush1.msra.mxu0 0.0
    %8742 = vmatprep.subr.mxu0 0.0
    %8743 = vmatpush1.msra.mxu0 0.0
    %8744 = vmatprep.subr.mxu0 0.0
    %8745 = vmatpush1.msra.mxu0 0.0
    %8746 = vmatprep.subr.mxu0 0.0
    %8747 = vmatpush1.msra.mxu0 0.0
    %8748 = vmatprep.subr.mxu0 0.0
    %8749 = vmatpush1.msra.mxu0 0.0
    %8750 = vmatprep.subr.mxu0 0.0
    %8751 = vmatpush1.msra.mxu0 %v8152
    %8752 = vmatprep.subr.mxu0 0.0
    %8753 = vmatpush2.msra.mxu0 0.0
    %8754 = vmatprep.subr.mxu0 0.0
    %8755 = vmatpush2.msra.mxu0 0.0
    %8756 = vmatprep.subr.mxu0 0.0
    %8757 = vmatpush2.msra.mxu0 0.0
    %8758 = vmatprep.subr.mxu0 0.0
    %8759 = vmatpush2.msra.mxu0 0.0
    %8760 = vmatprep.subr.mxu0 0.0
    %8761 = vmatpush2.msra.mxu0 0.0
    %8762 = vmatprep.subr.mxu0 0.0
    %8763 = vmatpush2.msra.mxu0 0.0
    %8764 = vmatprep.subr.mxu0 0.0
    %8765 = vmatpush2.msra.mxu0 0.0
    %8766 = vmatprep.subr.mxu0 0.0
    %8767 = vmatpush2.msra.mxu0 0.0
    %8768 = vmatprep.subr.mxu0 0.0
    %8769 = vmatpush2.msra.mxu0 0.0
    %8770 = vmatprep.subr.mxu0 0.0
    %8771 = vmatpush2.msra.mxu0 0.0
    %8772 = vmatprep.subr.mxu0 0.0
    %8773 = vmatpush2.msra.mxu0 0.0
    %8774 = vmatprep.subr.mxu0 0.0
    %8775 = vmatpush2.msra.mxu0 0.0
    %8776 = vmatprep.subr.mxu0 0.0
    %8777 = vmatpush2.msra.mxu0 0.0
    %8778 = vmatprep.subr.mxu0 0.0
    %8779 = vmatpush2.msra.mxu0 0.0
    %8780 = vmatprep.subr.mxu0 0.0
    %8781 = vmatpush2.msra.mxu0 0.0
    %8782 = vmatprep.subr.mxu0 0.0
    %8783 = vmatpush2.msra.mxu0 0.0
    %8784 = vmatprep.mubr.f32.mxu0 0.0
    %8785 = vmatmul.mubr.f32.gmra.mxu0 %v8718
    %v8786 = vpop.f32.mrf.mxu0
    %v8787 = vadd.f32 0.0, %v8786
    %v8788 = vpop.f32.mrf.mxu0
    %8789 = vdwg.mxu0
    %v8790 = vld [vmem:[%s17] sm:$0xff]
    %v8791 = vld [vmem:[%s17 + $0x8] sm:$0xff]
    %v8792 = vld [vmem:[%s17 + $0x10] sm:$0xff]
    %v8793 = vld [vmem:[%s17 + $0x18] sm:$0xff]
    %v8794 = vld [vmem:[%s17 + $0x20] sm:$0xff]
    %v8795 = vld [vmem:[%s17 + $0x28] sm:$0xff]
    %v8796 = vld [vmem:[%s17 + $0x30] sm:$0xff]
    %v8797 = vld [vmem:[%s17 + $0x38] sm:$0xff]
    %v8798 = vld [vmem:[%s17 + $0x40] sm:$0xff]
    %v8799 = vld [vmem:[%s17 + $0x48] sm:$0xff]
    %v8800 = vld [vmem:[%s17 + $0x50] sm:$0xff]
    %v8801 = vld [vmem:[%s17 + $0x58] sm:$0xff]
    %v8803 = vsel %vm314, %v8436, 0
    %v8806 = vsel %vm314, %v8509, 0
    %8808 = vmatprep.subr.mxu0 0.0
    %8809 = vmatpush1.msra.mxu0 0.0
    %8810 = vmatprep.subr.mxu0 0.0
    %8811 = vmatpush1.msra.mxu0 0.0
    %8812 = vmatprep.subr.mxu0 0.0
    %8813 = vmatpush1.msra.mxu0 0.0
    %8814 = vmatprep.subr.mxu0 0.0
    %8815 = vmatpush1.msra.mxu0 0.0
    %8816 = vmatprep.subr.mxu0 0.0
    %8817 = vmatpush1.msra.mxu0 0.0
    %8818 = vmatprep.subr.mxu0 0.0
    %8819 = vmatpush1.msra.mxu0 0.0
    %8820 = vmatprep.subr.mxu0 0.0
    %8821 = vmatpush1.msra.mxu0 0.0
    %8822 = vmatprep.subr.mxu0 0.0
    %8823 = vmatpush1.msra.mxu0 0.0
    %8824 = vmatprep.subr.mxu0 0.0
    %8825 = vmatpush1.msra.mxu0 0.0
    %8826 = vmatprep.subr.mxu0 0.0
    %8827 = vmatpush1.msra.mxu0 0.0
    %8828 = vmatprep.subr.mxu0 0.0
    %8829 = vmatpush1.msra.mxu0 0.0
    %8830 = vmatprep.subr.mxu0 0.0
    %8831 = vmatpush1.msra.mxu0 0.0
    %8832 = vmatprep.subr.mxu0 0.0
    %8833 = vmatpush1.msra.mxu0 %v8797
    %8834 = vmatprep.subr.mxu0 0.0
    %8835 = vmatpush1.msra.mxu0 %v8796
    %8836 = vmatprep.subr.mxu0 0.0
    %8837 = vmatpush1.msra.mxu0 %v8795
    %8838 = vmatprep.subr.mxu0 0.0
    %8839 = vmatpush1.msra.mxu0 %v8794
    %8840 = vmatprep.subr.mxu0 0.0
    %8841 = vmatpush2.msra.mxu0 0.0
    %8842 = vmatprep.subr.mxu0 0.0
    %8843 = vmatpush2.msra.mxu0 0.0
    %8844 = vmatprep.subr.mxu0 0.0
    %8845 = vmatpush2.msra.mxu0 0.0
    %8846 = vmatprep.subr.mxu0 0.0
    %8847 = vmatpush2.msra.mxu0 0.0
    %8848 = vmatprep.subr.mxu0 0.0
    %8849 = vmatpush2.msra.mxu0 0.0
    %8850 = vmatprep.subr.mxu0 0.0
    %8851 = vmatpush2.msra.mxu0 0.0
    %8852 = vmatprep.subr.mxu0 0.0
    %8853 = vmatpush2.msra.mxu0 0.0
    %8854 = vmatprep.subr.mxu0 0.0
    %8855 = vmatpush2.msra.mxu0 0.0
    %8856 = vmatprep.subr.mxu0 0.0
    %8857 = vmatpush2.msra.mxu0 0.0
    %8858 = vmatprep.subr.mxu0 0.0
    %8859 = vmatpush2.msra.mxu0 0.0
    %8860 = vmatprep.subr.mxu0 0.0
    %8861 = vmatpush2.msra.mxu0 0.0
    %8862 = vmatprep.subr.mxu0 0.0
    %8863 = vmatpush2.msra.mxu0 0.0
    %8864 = vmatprep.subr.mxu0 0.0
    %8865 = vmatpush2.msra.mxu0 0.0
    %8866 = vmatprep.subr.mxu0 0.0
    %8867 = vmatpush2.msra.mxu0 0.0
    %8868 = vmatprep.subr.mxu0 0.0
    %8869 = vmatpush2.msra.mxu0 0.0
    %8870 = vmatprep.subr.mxu0 0.0
    %8871 = vmatpush2.msra.mxu0 0.0
    %8872 = vmatprep.mubr.f32.mxu0 0.0
    %8873 = vmatmul.mubr.f32.gmra.mxu0 %v8803
    %v8874 = vpop.f32.mrf.mxu0
    %v8875 = vadd.f32 0.0, %v8874
    %v8876 = vpop.f32.mrf.mxu0
    %8877 = vmatprep.mubr.f32.mxu0 0.0
    %8878 = vmatmul.mubr.f32.gmra.mxu0 %v8806
    %v8879 = vpop.f32.mrf.mxu0
    %v8880 = vadd.f32 0.0, %v8879
    %v8881 = vpop.f32.mrf.mxu0
    %8882 = vdwg.mxu0
    %v8884 = vsel %vm314, %v8150, 0
    %v8887 = vsel %vm314, %v8151, 0
    %8889 = vmatprep.subr.mxu0 0.0
    %8890 = vmatpush1.msra.mxu0 0.0
    %8891 = vmatprep.subr.mxu0 0.0
    %8892 = vmatpush1.msra.mxu0 0.0
    %8893 = vmatprep.subr.mxu0 0.0
    %8894 = vmatpush1.msra.mxu0 0.0
    %8895 = vmatprep.subr.mxu0 0.0
    %8896 = vmatpush1.msra.mxu0 0.0
    %8897 = vmatprep.subr.mxu0 0.0
    %8898 = vmatpush1.msra.mxu0 0.0
    %8899 = vmatprep.subr.mxu0 0.0
    %8900 = vmatpush1.msra.mxu0 0.0
    %8901 = vmatprep.subr.mxu0 0.0
    %8902 = vmatpush1.msra.mxu0 0.0
    %8903 = vmatprep.subr.mxu0 0.0
    %8904 = vmatpush1.msra.mxu0 0.0
    %8905 = vmatprep.subr.mxu0 0.0
    %8906 = vmatpush1.msra.mxu0 0.0
    %8907 = vmatprep.subr.mxu0 0.0
    %8908 = vmatpush1.msra.mxu0 0.0
    %8909 = vmatprep.subr.mxu0 0.0
    %8910 = vmatpush1.msra.mxu0 0.0
    %8911 = vmatprep.subr.mxu0 0.0
    %8912 = vmatpush1.msra.mxu0 0.0
    %8913 = vmatprep.subr.mxu0 0.0
    %8914 = vmatpush1.msra.mxu0 %v8793
    %8915 = vmatprep.subr.mxu0 0.0
    %8916 = vmatpush1.msra.mxu0 %v8792
    %8917 = vmatprep.subr.mxu0 0.0
    %8918 = vmatpush1.msra.mxu0 %v8791
    %8919 = vmatprep.subr.mxu0 0.0
    %8920 = vmatpush1.msra.mxu0 %v8790
    %8921 = vmatprep.subr.mxu0 0.0
    %8922 = vmatpush2.msra.mxu0 0.0
    %8923 = vmatprep.subr.mxu0 0.0
    %8924 = vmatpush2.msra.mxu0 0.0
    %8925 = vmatprep.subr.mxu0 0.0
    %8926 = vmatpush2.msra.mxu0 0.0
    %8927 = vmatprep.subr.mxu0 0.0
    %8928 = vmatpush2.msra.mxu0 0.0
    %8929 = vmatprep.subr.mxu0 0.0
    %8930 = vmatpush2.msra.mxu0 0.0
    %8931 = vmatprep.subr.mxu0 0.0
    %8932 = vmatpush2.msra.mxu0 0.0
    %8933 = vmatprep.subr.mxu0 0.0
    %8934 = vmatpush2.msra.mxu0 0.0
    %8935 = vmatprep.subr.mxu0 0.0
    %8936 = vmatpush2.msra.mxu0 0.0
    %8937 = vmatprep.subr.mxu0 0.0
    %8938 = vmatpush2.msra.mxu0 0.0
    %8939 = vmatprep.subr.mxu0 0.0
    %8940 = vmatpush2.msra.mxu0 0.0
    %8941 = vmatprep.subr.mxu0 0.0
    %8942 = vmatpush2.msra.mxu0 0.0
    %8943 = vmatprep.subr.mxu0 0.0
    %8944 = vmatpush2.msra.mxu0 0.0
    %8945 = vmatprep.subr.mxu0 0.0
    %8946 = vmatpush2.msra.mxu0 0.0
    %8947 = vmatprep.subr.mxu0 0.0
    %8948 = vmatpush2.msra.mxu0 0.0
    %8949 = vmatprep.subr.mxu0 0.0
    %8950 = vmatpush2.msra.mxu0 0.0
    %8951 = vmatprep.subr.mxu0 0.0
    %8952 = vmatpush2.msra.mxu0 0.0
    %8953 = vmatprep.mubr.f32.mxu0 0.0
    %8954 = vmatmul.mubr.f32.gmra.mxu0 %v8884
    %v8955 = vpop.f32.mrf.mxu0
    %v8956 = vadd.f32 %v8875, %v8955
    %v8957 = vpop.f32.mrf.mxu0
    %8958 = vmatprep.mubr.f32.mxu0 0.0
    %8959 = vmatmul.mubr.f32.gmra.mxu0 %v8887
    %v8960 = vpop.f32.mrf.mxu0
    %v8961 = vadd.f32 %v8880, %v8960
    %v8962 = vpop.f32.mrf.mxu0
    %8963 = vdwg.mxu0
    %v8965 = vsel %vm314, %v8714, 0
    %v8968 = vsel %vm314, %v8787, 0
    %8970 = vmatprep.subr.mxu0 0.0
    %8971 = vmatpush1.msra.mxu0 0.0
    %8972 = vmatprep.subr.mxu0 0.0
    %8973 = vmatpush1.msra.mxu0 0.0
    %8974 = vmatprep.subr.mxu0 0.0
    %8975 = vmatpush1.msra.mxu0 0.0
    %8976 = vmatprep.subr.mxu0 0.0
    %8977 = vmatpush1.msra.mxu0 0.0
    %8978 = vmatprep.subr.mxu0 0.0
    %8979 = vmatpush1.msra.mxu0 0.0
    %8980 = vmatprep.subr.mxu0 0.0
    %8981 = vmatpush1.msra.mxu0 0.0
    %8982 = vmatprep.subr.mxu0 0.0
    %8983 = vmatpush1.msra.mxu0 0.0
    %8984 = vmatprep.subr.mxu0 0.0
    %8985 = vmatpush1.msra.mxu0 0.0
    %8986 = vmatprep.subr.mxu0 0.0
    %8987 = vmatpush1.msra.mxu0 0.0
    %8988 = vmatprep.subr.mxu0 0.0
    %8989 = vmatpush1.msra.mxu0 0.0
    %8990 = vmatprep.subr.mxu0 0.0
    %8991 = vmatpush1.msra.mxu0 0.0
    %8992 = vmatprep.subr.mxu0 0.0
    %8993 = vmatpush1.msra.mxu0 0.0
    %8994 = vmatprep.subr.mxu0 0.0
    %8995 = vmatpush1.msra.mxu0 %v8801
    %8996 = vmatprep.subr.mxu0 0.0
    %8997 = vmatpush1.msra.mxu0 %v8800
    %8998 = vmatprep.subr.mxu0 0.0
    %8999 = vmatpush1.msra.mxu0 %v8799
    %9000 = vmatprep.subr.mxu0 0.0
    %9001 = vmatpush1.msra.mxu0 %v8798
    %9002 = vmatprep.subr.mxu0 0.0
    %9003 = vmatpush2.msra.mxu0 0.0
    %9004 = vmatprep.subr.mxu0 0.0
    %9005 = vmatpush2.msra.mxu0 0.0
    %9006 = vmatprep.subr.mxu0 0.0
    %9007 = vmatpush2.msra.mxu0 0.0
    %9008 = vmatprep.subr.mxu0 0.0
    %9009 = vmatpush2.msra.mxu0 0.0
    %9010 = vmatprep.subr.mxu0 0.0
    %9011 = vmatpush2.msra.mxu0 0.0
    %9012 = vmatprep.subr.mxu0 0.0
    %9013 = vmatpush2.msra.mxu0 0.0
    %9014 = vmatprep.subr.mxu0 0.0
    %9015 = vmatpush2.msra.mxu0 0.0
    %9016 = vmatprep.subr.mxu0 0.0
    %9017 = vmatpush2.msra.mxu0 0.0
    %9018 = vmatprep.subr.mxu0 0.0
    %9019 = vmatpush2.msra.mxu0 0.0
    %9020 = vmatprep.subr.mxu0 0.0
    %9021 = vmatpush2.msra.mxu0 0.0
    %9022 = vmatprep.subr.mxu0 0.0
    %9023 = vmatpush2.msra.mxu0 0.0
    %9024 = vmatprep.subr.mxu0 0.0
    %9025 = vmatpush2.msra.mxu0 0.0
    %9026 = vmatprep.subr.mxu0 0.0
    %9027 = vmatpush2.msra.mxu0 0.0
    %9028 = vmatprep.subr.mxu0 0.0
    %9029 = vmatpush2.msra.mxu0 0.0
    %9030 = vmatprep.subr.mxu0 0.0
    %9031 = vmatpush2.msra.mxu0 0.0
    %9032 = vmatprep.subr.mxu0 0.0
    %9033 = vmatpush2.msra.mxu0 0.0
    %9034 = vmatprep.mubr.f32.mxu0 0.0
    %9035 = vmatmul.mubr.f32.gmra.mxu0 %v8965
    %v9036 = vpop.f32.mrf.mxu0
    %v9037 = vadd.f32 0.0, %v9036
    %v9038 = vpop.f32.mrf.mxu0
    %9039 = vmatprep.mubr.f32.mxu0 0.0
    %9040 = vmatmul.mubr.f32.gmra.mxu0 %v8968
    %v9041 = vpop.f32.mrf.mxu0
    %v9042 = vadd.f32 0.0, %v9041
    %v9043 = vpop.f32.mrf.mxu0
    %9044 = vdwg.mxu0
    %v9045 = vadd.f32 %v8956, %v9037
    %v9046 = vadd.f32 %v8961, %v9042
    %v9047 = vtanh.pop %v9045
    %v9048 = vtanh.pop %v9046
    %v9050 = vsel %vm314, %v9047, 0
    %v9053 = vsel %vm314, %v9048, 0
    %v9056 = vsel %vm314, %v88, 0
    %v9059 = vsel %vm314, %v89, 0
    %v9062 = vsel %vm314, %v90, 0
    %v9065 = vsel %vm314, %v91, 0
    %v9068 = vsel %vm314, %v92, 0
    %v9071 = vsel %vm314, %v93, 0
    %v9074 = vsel %vm314, %v94, 0
    %v9077 = vsel %vm314, %v95, 0
    %v9080 = vsel %vm314, %v96, 0
    %v9083 = vsel %vm314, %v97, 0
    %v9086 = vsel %vm314, %v98, 0
    %v9089 = vsel %vm314, %v99, 0
    %v9092 = vsel %vm314, %v100, 0
    %v9095 = vsel %vm314, %v101, 0
    %v9098 = vsel %vm314, %v102, 0
    %v9101 = vsel %vm314, %v103, 0
    %9103 = vmatprep.subr.mxu0 0.0
    %9104 = vmatpush1.xpose.msra.mxu0 %v9101
    %9105 = vmatprep.subr.mxu0 0.0
    %9106 = vmatpush1.xpose.msra.mxu0 %v9098
    %9107 = vmatprep.subr.mxu0 0.0
    %9108 = vmatpush1.xpose.msra.mxu0 %v9095
    %9109 = vmatprep.subr.mxu0 0.0
    %9110 = vmatpush1.xpose.msra.mxu0 %v9092
    %9111 = vmatprep.subr.mxu0 0.0
    %9112 = vmatpush1.xpose.msra.mxu0 %v9089
    %9113 = vmatprep.subr.mxu0 0.0
    %9114 = vmatpush1.xpose.msra.mxu0 %v9086
    %9115 = vmatprep.subr.mxu0 0.0
    %9116 = vmatpush1.xpose.msra.mxu0 %v9083
    %9117 = vmatprep.subr.mxu0 0.0
    %9118 = vmatpush1.xpose.msra.mxu0 %v9080
    %9119 = vmatprep.subr.mxu0 0.0
    %9120 = vmatpush1.xpose.msra.mxu0 %v9077
    %9121 = vmatprep.subr.mxu0 0.0
    %9122 = vmatpush1.xpose.msra.mxu0 %v9074
    %9123 = vmatprep.subr.mxu0 0.0
    %9124 = vmatpush1.xpose.msra.mxu0 %v9071
    %9125 = vmatprep.subr.mxu0 0.0
    %9126 = vmatpush1.xpose.msra.mxu0 %v9068
    %9127 = vmatprep.subr.mxu0 0.0
    %9128 = vmatpush1.xpose.msra.mxu0 %v9065
    %9129 = vmatprep.subr.mxu0 0.0
    %9130 = vmatpush1.xpose.msra.mxu0 %v9062
    %9131 = vmatprep.subr.mxu0 0.0
    %9132 = vmatpush1.xpose.msra.mxu0 %v9059
    %9133 = vmatprep.subr.mxu0 0.0
    %9134 = vmatpush1.xpose.msra.mxu0 %v9056
    %9135 = vmatprep.subr.mxu0 0.0
    %9136 = vmatpush2.xpose.msra.mxu0 0.0
    %9137 = vmatprep.subr.mxu0 0.0
    %9138 = vmatpush2.xpose.msra.mxu0 0.0
    %9139 = vmatprep.subr.mxu0 0.0
    %9140 = vmatpush2.xpose.msra.mxu0 0.0
    %9141 = vmatprep.subr.mxu0 0.0
    %9142 = vmatpush2.xpose.msra.mxu0 0.0
    %9143 = vmatprep.subr.mxu0 0.0
    %9144 = vmatpush2.xpose.msra.mxu0 0.0
    %9145 = vmatprep.subr.mxu0 0.0
    %9146 = vmatpush2.xpose.msra.mxu0 0.0
    %9147 = vmatprep.subr.mxu0 0.0
    %9148 = vmatpush2.xpose.msra.mxu0 0.0
    %9149 = vmatprep.subr.mxu0 0.0
    %9150 = vmatpush2.xpose.msra.mxu0 0.0
    %9151 = vmatprep.subr.mxu0 0.0
    %9152 = vmatpush2.xpose.msra.mxu0 0.0
    %9153 = vmatprep.subr.mxu0 0.0
    %9154 = vmatpush2.xpose.msra.mxu0 0.0
    %9155 = vmatprep.subr.mxu0 0.0
    %9156 = vmatpush2.xpose.msra.mxu0 0.0
    %9157 = vmatprep.subr.mxu0 0.0
    %9158 = vmatpush2.xpose.msra.mxu0 0.0
    %9159 = vmatprep.subr.mxu0 0.0
    %9160 = vmatpush2.xpose.msra.mxu0 0.0
    %9161 = vmatprep.subr.mxu0 0.0
    %9162 = vmatpush2.xpose.msra.mxu0 0.0
    %9163 = vmatprep.subr.mxu0 0.0
    %9164 = vmatpush2.xpose.msra.mxu0 0.0
    %9165 = vmatprep.subr.mxu0 0.0
    %9166 = vmatpush2.xpose.msra.mxu0 0.0
    %9167 = vmatprep.mubr.f32.mxu0 0.0
    %9168 = vmatmul.mubr.f32.gmra.mxu0 %v9050
    %v9169 = vpop.f32.mrf.mxu0
    %v9170 = vadd.f32 0.0, %v9169
    %v9171 = vpop.f32.mrf.mxu0
    %9172 = vmatprep.mubr.f32.mxu0 0.0
    %9173 = vmatmul.mubr.f32.gmra.mxu0 %v9053
    %v9174 = vpop.f32.mrf.mxu0
    %v9175 = vadd.f32 0.0, %v9174
    %v9176 = vpop.f32.mrf.mxu0
    %9177 = vdwg.mxu0
    %9178 = vst [vmem:[#allocation7] sm:$0xff] %v9170
    %9179 = vst [vmem:[#allocation7 + $0x8] sm:$0xff] %v9175
    %9180 = vmax.xlane.f32.xlu0 %v9170
    %v9181 = vpop.xlane.xlu0 %9180
    %9182 = vmax.xlane.f32.xlu0 %v9175
    %v9183 = vpop.xlane.xlu0 %9182
    %v9184 = vcvt.s32.f32 %v105
    %vm9185 = vcmp.ge.f32.partialorder %v9170, %v9181
    %vm9186 = vcmp.ge.f32.partialorder %v9175, %v9183
    %v9187 = vsel %vm9185, %v9184, 128.0
    %v9188 = vsel %vm9186, %v9184, 128.0
    %9189 = vmin.xlane.f32.xlu0 %v9187
    %v9190 = vpop.xlane.xlu0 %9189
    %9191 = vmin.xlane.f32.xlu0 %v9188
    %v9192 = vpop.xlane.xlu0 %9191
    %v9193 = vcvt.f32.s32.to.zero.pseudo %v9190
    %v9194 = vcvt.f32.s32.to.zero.pseudo %v9192
    %vm9195 = vcmask 7168
    %9196 = vst.msk [vmem:[%s19] sm:$0xff] %vm9195, %v9193
    %9197 = vst.msk [vmem:[%s19 + $0x8] sm:$0xff] %vm9195, %v9194
    // Predicated region
    $region82: #{tpu_custom_call.1} parent=1 // pred_check
      _
    $region83: #{tpu_custom_call.1} parent=1 // pred_check_branch
      %9199 = sbr.rel (0) target = $region85
    $region84: #{tpu_custom_call.1} parent=1 // pred_region
      %s9201 = ssub.s32 256, 256
      %9202 = vsyncadd [#allocation4], %s9201
      %s9203 = sshll.u32 [#allocation7], 4
      %s9204 = int_to_ptr.vmem [resolvable:$true] %s9203
      %9209 = dma.vmem_to_hbm [thread:$0]  %s9204, 256, %s18, [#allocation4], 128, 128, 8
    $region85: #{tpu_custom_call.1} parent=1 // pred_fallthru
      _
    // Predicated region
    $region86: #{tpu_custom_call.1} parent=1 // pred_check
      _
    $region87: #{tpu_custom_call.1} parent=1 // pred_check_branch
      %9211 = sbr.rel (0) target = $region89
    $region88: #{tpu_custom_call.1} parent=1 // pred_region
      _
    $region89: #{tpu_custom_call.1} parent=1 // pred_fallthru
      _
    // Predicated region
    $region90: #{tpu_custom_call.1} parent=1 // pred_check
      _
    $region91: #{tpu_custom_call.1} parent=1 // pred_check_branch
      %9213 = sbr.rel (0) target = $region93
    $region92: #{tpu_custom_call.1} parent=1 // pred_region
      %9214 = dma.done [#allocation4], 256
    $region93: #{tpu_custom_call.1} parent=1 // pred_fallthru
      _
    // Predicated region
    $region94: #{tpu_custom_call.1} parent=1 // pred_check
      _
    $region95: #{tpu_custom_call.1} parent=1 // pred_check_branch
      %9216 = sbr.rel (0) target = $region97
    $region96: #{tpu_custom_call.1} parent=1 // pred_region
      _
    $region97: #{tpu_custom_call.1} parent=1 // pred_fallthru
      _
    %9217 = vsyncpa [#allocation3], 1
    %9218 = vsyncpa [#allocation6], 1
    %9219 = vsyncpa [#allocation4], 1

</llo_original>
